<compile_context>
chip_gen: v7x
topology: tpu7x:2x2x1
jax: 0.10.0
libtpu: 0.0.40
codegen_flags: <defaults>
</compile_context>

<pallas_src>
import functools

import jax
import jax.numpy as jnp
from jax.experimental import pallas as pl
from jax.experimental.pallas import tpu as pltpu


def _round_up(x, m):
    return ((x + m - 1) // m) * m


# ----------------------------------------------------------------------------
# Fused Seq2Seq kernel (single invocation, no grid)
# ----------------------------------------------------------------------------
def seq2seq_kernel(gx_ref,                     # (Ts, B, 4He) pre-projected enc inputs
                   enc_whh_ref,                # (He, 4He)
                   fch_w_ref, fch_b_ref,       # bridge hidden
                   fcc_w_ref, fcc_b_ref,       # bridge cell
                   attn_w_ref, attn_b_ref,     # attention key projection
                   wie_ref,                    # (Vp, 4Hd)  folded  E_dec @ W_ie
                   wic_ref, dec_whh_ref, bg_ref,
                   woh_ref, woc_ref,           # (Hd, Vp), (He, Vp)
                   woe_ref,                    # (Vp, Vp)   folded  E_dec @ W_oe
                   bo_ref,                     # (1, Vp)
                   init_oh_ref,                # (B, Vp)    one-hot of trg[:, 0]
                   teach_oh_ref,               # (Tg, B, Vp) one-hot of trg[:, 1:]
                   tf_ref,                     # (Tg,) int32 teacher-forcing flags (SMEM)
                   logits_ref,                 # out: (Tg, B, Vp)
                   enc_sc,                     # scratch: (B, Ts, He)
                   *, vocab):
    Ts, B, G4 = gx_ref.shape
    He = G4 // 4
    Hd = dec_whh_ref.shape[0]
    Tg, _, Vp = logits_ref.shape

    # ---------------- encoder recurrence (static unroll, static stores) -----
    h = jnp.zeros((B, He), jnp.float32)
    c = jnp.zeros((B, He), jnp.float32)
    for t in range(Ts):                        # tiny fixed trip count
        gates = gx_ref[t] + jnp.dot(h, enc_whh_ref[...],
                                    preferred_element_type=jnp.float32)
        i = jax.nn.sigmoid(gates[:, 0 * He:1 * He])
        f = jax.nn.sigmoid(gates[:, 1 * He:2 * He])
        g = jnp.tanh(gates[:, 2 * He:3 * He])
        o = jax.nn.sigmoid(gates[:, 3 * He:4 * He])
        c = f * c + i * g
        h = o * jnp.tanh(c)
        enc_sc[:, t, :] = h                    # batch-major, static index

    # ---------------- bridge + loop-invariant attention keys ----------------
    h_d = (jnp.dot(h, fch_w_ref[...], preferred_element_type=jnp.float32)
           + fch_b_ref[...])                   # (B, Hd)
    c_d = (jnp.dot(c, fcc_w_ref[...], preferred_element_type=jnp.float32)
           + fcc_b_ref[...])                   # (B, Hd)

    enc_b = enc_sc[...]                        # (B, Ts, He), stays in VMEM
    keys = (jnp.dot(enc_b.reshape(B * Ts, He), attn_w_ref[...],
                    preferred_element_type=jnp.float32)
            + attn_b_ref[...]).reshape(B, Ts, Hd)

    # hoisted out of the decode loop
    lane = jax.lax.broadcasted_iota(jnp.int32, (B, Vp), 1)
    valid = lane < vocab

    # ---------------- decoder loop (in-kernel, unrolled fori_loop) ----------
    def dec_step(t, carry):
        h, c, oh = carry                                           # (B,Hd)x2, (B,Vp)

        # Luong (general) attention, fully batched
        scores = jnp.sum(keys * h[:, None, :], axis=-1)            # (B, Ts)
        m = jnp.max(scores, axis=-1, keepdims=True)
        ea = jnp.exp(scores - m)
        den = jnp.sum(ea, axis=-1, keepdims=True)
        attn = ea * pl.reciprocal(den, approx=True)                # (B, Ts)
        ctx = jnp.sum(attn[:, :, None] * enc_b, axis=1)            # (B, He)

        # LSTM cell on [embedded token ; context]; embedding folded into wie
        gates = (jnp.dot(oh, wie_ref[...], preferred_element_type=jnp.float32)
                 + jnp.dot(ctx, wic_ref[...], preferred_element_type=jnp.float32)
                 + jnp.dot(h, dec_whh_ref[...], preferred_element_type=jnp.float32)
                 + bg_ref[...])                                    # (B, 4Hd)
        ii = jax.nn.sigmoid(gates[:, 0 * Hd:1 * Hd])
        ff = jax.nn.sigmoid(gates[:, 1 * Hd:2 * Hd])
        gg = jnp.tanh(gates[:, 2 * Hd:3 * Hd])
        oo = jax.nn.sigmoid(gates[:, 3 * Hd:4 * Hd])
        c_new = ff * c + ii * gg
        h_new = oo * jnp.tanh(c_new)

        # output projection on [h ; ctx ; embedded token] (embedding folded)
        logits = (jnp.dot(h_new, woh_ref[...], preferred_element_type=jnp.float32)
                  + jnp.dot(ctx, woc_ref[...], preferred_element_type=jnp.float32)
                  + jnp.dot(oh, woe_ref[...], preferred_element_type=jnp.float32)
                  + bo_ref[...])                                   # (B, Vp) lane-dense
        logits_ref[t] = logits

        # next input: greedy argmax (over real vocab) vs teacher forcing
        masked = jnp.where(valid, logits, jnp.float32(-1e30))
        mx = jnp.max(masked, axis=-1, keepdims=True)
        cand = jnp.where(masked >= mx, lane, Vp)                   # first-max index
        idx = jnp.min(cand, axis=-1, keepdims=True)                # (B, 1)
        top1_oh = (lane == idx).astype(jnp.float32)

        tf_f = tf_ref[t].astype(jnp.float32)                       # scalar 0/1 (SMEM)
        oh_next = tf_f * teach_oh_ref[t] + (1.0 - tf_f) * top1_oh
        return h_new, c_new, oh_next

    _ = jax.lax.fori_loop(0, Tg, dec_step,
                          (h_d, c_d, init_oh_ref[...]), unroll=True)


# ----------------------------------------------------------------------------
# pallas_call wrapper
# ----------------------------------------------------------------------------
def run_seq2seq(gx_tm, enc_whh,
                fch_w, fch_b, fcc_w, fcc_b, attn_w, attn_b,
                wie_f, wic, dec_whh, bg, woh_p, woc_p, woe_p, bo_p,
                init_oh, teach_oh, tf_flags, *, vocab):
    Ts, B, _ = gx_tm.shape
    He = enc_whh.shape[0]
    Tg, _, Vp = teach_oh.shape

    vmem = lambda: pl.BlockSpec(memory_space=pltpu.MemorySpace.VMEM)
    smem = pl.BlockSpec(memory_space=pltpu.MemorySpace.SMEM)

    return pl.pallas_call(
        functools.partial(seq2seq_kernel, vocab=vocab),
        out_shape=jax.ShapeDtypeStruct((Tg, B, Vp), jnp.float32),
        in_specs=[vmem() for _ in range(18)] + [smem],
        out_specs=pl.BlockSpec(memory_space=pltpu.MemorySpace.VMEM),
        scratch_shapes=[pltpu.VMEM((B, Ts, He), jnp.float32)],
    )(gx_tm, enc_whh, fch_w, fch_b, fcc_w, fcc_b, attn_w, attn_b,
      wie_f, wic, dec_whh, bg, woh_p, woc_p, woe_p, bo_p,
      init_oh, teach_oh, tf_flags)


# ----------------------------------------------------------------------------
# Seq2Seq forward (jitted host glue; teacher-forcing flags precomputed)
# ----------------------------------------------------------------------------
@jax.jit
def seq2seq_forward(params, src, trg, tf_flags):
    B, Ts = src.shape
    Tt = trg.shape[1]
    Tg = Tt - 1
    V = params["dec_bo"].shape[1]
    Vp = _round_up(V, 128)                     # lane-dense internal vocab width
    pad = Vp - V

    # encoder input projection fused with the embedding gather by XLA
    x = params["enc_embed"][src]                                   # (B, Ts, E)
    gx_tm = jnp.einsum("bte,eg->tbg", x, params["enc_wih"]) + params["enc_b"]

    # fold the decoder embedding table into the decoder weights (one-time)
    wie_f = jnp.pad(jnp.dot(params["dec_embed"], params["dec_wie"]),
                    ((0, pad), (0, 0)))                            # (Vp, 4Hd)
    woe_p = jnp.pad(jnp.dot(params["dec_embed"], params["dec_woe"]),
                    ((0, pad), (0, pad)))                          # (Vp, Vp)
    woh_p = jnp.pad(params["dec_woh"], ((0, 0), (0, pad)))         # (Hd, Vp)
    woc_p = jnp.pad(params["dec_woc"], ((0, 0), (0, pad)))         # (He, Vp)
    bo_p = jnp.pad(params["dec_bo"], ((0, 0), (0, pad)))           # (1, Vp)

    # token one-hots precomputed on the host, lane-dense (padded to Vp)
    init_oh = jax.nn.one_hot(trg[:, 0], Vp, dtype=jnp.float32)     # (B, Vp)
    teach_oh = jax.nn.one_hot(trg[:, 1:].T, Vp, dtype=jnp.float32)  # (Tg, B, Vp)

    logits_tm = run_seq2seq(
        gx_tm, params["enc_whh"],
        params["fc_hidden_w"], params["fc_hidden_b"],
        params["fc_cell_w"], params["fc_cell_b"],
        params["attn_w"], params["attn_b"],
        wie_f, params["dec_wic"], params["dec_whh"], params["dec_b"],
        woh_p, woc_p, woe_p, bo_p,
        init_oh, teach_oh, tf_flags.astype(jnp.int32),
        vocab=V)                                                   # (Tg, B, Vp)

    out = jnp.concatenate(
        [jnp.zeros((B, 1, V), jnp.float32),
         jnp.transpose(logits_tm[:, :, :V], (1, 0, 2))], axis=1)   # (B, Tt, V)
    return out


def make_teacher_forcing_flags(key, trg_len, teacher_forcing_ratio):
    # TODO(synk): the PyTorch reference draws random.random() per decode step
    # at runtime; here the per-step coin flips are precomputed and passed in.
    u = jax.random.uniform(key, (trg_len - 1,))
    return (u < teacher_forcing_ratio).astype(jnp.int32)


# ----------------------------------------------------------------------------
# deterministic parameter construction + demo
# ----------------------------------------------------------------------------
def make_params(key, human_vocab, machine_vocab, E, He, Hd):
    names_shapes = [
        ("enc_embed", (human_vocab, E)),
        ("enc_wih", (E, 4 * He)), ("enc_whh", (He, 4 * He)), ("enc_b", (1, 4 * He)),
        ("fc_hidden_w", (He, Hd)), ("fc_hidden_b", (1, Hd)),
        ("fc_cell_w", (He, Hd)), ("fc_cell_b", (1, Hd)),
        ("attn_w", (He, Hd)), ("attn_b", (1, Hd)),
        ("dec_embed", (machine_vocab, E)),
        ("dec_wie", (E, 4 * Hd)), ("dec_wic", (He, 4 * Hd)),
        ("dec_whh", (Hd, 4 * Hd)), ("dec_b", (1, 4 * Hd)),
        ("dec_woh", (Hd, machine_vocab)), ("dec_woc", (He, machine_vocab)),
        ("dec_woe", (E, machine_vocab)), ("dec_bo", (1, machine_vocab)),
    ]
    keys = jax.random.split(key, len(names_shapes))
    return {name: 0.1 * jax.random.normal(k, shape, jnp.float32)
            for (name, shape), k in zip(names_shapes, keys)}


if __name__ == "__main__":
    B, Ts, Tt = 2, 8, 8
    E, He, Hd = 16, 32, 32
    HUMAN_VOCAB, MACHINE_VOCAB = 32, 16

    root = jax.random.PRNGKey(0)
    k_params, k_src, k_trg, k_tf = jax.random.split(root, 4)
    params = make_params(k_params, HUMAN_VOCAB, MACHINE_VOCAB, E, He, Hd)

    src = jax.random.randint(k_src, (B, Ts), 0, HUMAN_VOCAB, dtype=jnp.int32)
    trg = jax.random.randint(k_trg, (B, Tt), 0, MACHINE_VOCAB, dtype=jnp.int32)
    tf_flags = make_teacher_forcing_flags(k_tf, Tt, teacher_forcing_ratio=0.5)

    out = seq2seq_forward(params, src, trg, tf_flags)
    jax.block_until_ready(out)
    assert out.shape == (B, Tt, MACHINE_VOCAB)
    print("KERNEL_OK")
</pallas_src>

<mosaic_0001>
module attributes {stable_mosaic.version = 11 : i64} {
  func.func @seq2seq_kernel(%arg0: memref<8x2x128xf32, #tpu.memory_space<vmem>>, %arg1: memref<32x128xf32, #tpu.memory_space<vmem>>, %arg2: memref<32x32xf32, #tpu.memory_space<vmem>>, %arg3: memref<1x32xf32, #tpu.memory_space<vmem>>, %arg4: memref<32x32xf32, #tpu.memory_space<vmem>>, %arg5: memref<1x32xf32, #tpu.memory_space<vmem>>, %arg6: memref<32x32xf32, #tpu.memory_space<vmem>>, %arg7: memref<1x32xf32, #tpu.memory_space<vmem>>, %arg8: memref<128x128xf32, #tpu.memory_space<vmem>>, %arg9: memref<32x128xf32, #tpu.memory_space<vmem>>, %arg10: memref<32x128xf32, #tpu.memory_space<vmem>>, %arg11: memref<1x128xf32, #tpu.memory_space<vmem>>, %arg12: memref<32x128xf32, #tpu.memory_space<vmem>>, %arg13: memref<32x128xf32, #tpu.memory_space<vmem>>, %arg14: memref<128x128xf32, #tpu.memory_space<vmem>>, %arg15: memref<1x128xf32, #tpu.memory_space<vmem>>, %arg16: memref<2x128xf32, #tpu.memory_space<vmem>>, %arg17: memref<7x2x128xf32, #tpu.memory_space<vmem>>, %arg18: memref<7xi32, #tpu.memory_space<smem>>, %arg19: memref<7x2x128xf32, #tpu.memory_space<vmem>>, %arg20: memref<2x8x32xf32, #tpu.memory_space<vmem>>) attributes {dimension_semantics = [], scalar_prefetch = 0 : i64, scratch_operands = 1 : i64, tpu.core_type = #tpu.core_type<tc>} {
    %cst = arith.constant 0.000000e+00 : f32
    %0 = vector.broadcast %cst : f32 to vector<2x32xf32>
    %cst_0 = arith.constant 0.000000e+00 : f32
    %1 = vector.broadcast %cst_0 : f32 to vector<2x32xf32>
    %c0 = arith.constant 0 : index
    %c0_1 = arith.constant 0 : index
    %c0_2 = arith.constant 0 : index
    %2 = vector.load %arg0[%c0, %c0_1, %c0_2] : memref<8x2x128xf32, #tpu.memory_space<vmem>>, vector<1x2x128xf32>
    %3 = vector.shape_cast %2 : vector<1x2x128xf32> to vector<2x128xf32>
    %c0_3 = arith.constant 0 : index
    %c0_4 = arith.constant 0 : index
    %4 = vector.load %arg1[%c0_3, %c0_4] : memref<32x128xf32, #tpu.memory_space<vmem>>, vector<32x128xf32>
    %cst_5 = arith.constant dense<0.000000e+00> : vector<2x128xf32>
    %5 = tpu.matmul %0, %4, %cst_5 {dimension_numbers = #tpu.dot_dimension_numbers<[1], [0], [0], [1], [0, 0, 1, 1], [], []>} : vector<2x32xf32>, vector<32x128xf32>, vector<2x128xf32> -> vector<2x128xf32>
    %6 = arith.addf %3, %5 : vector<2x128xf32>
    %7 = vector.extract_strided_slice %6 {offsets = [0, 0], sizes = [2, 32], strides = [1, 1]} : vector<2x128xf32> to vector<2x32xf32>
    %8 = arith.negf %7 : vector<2x32xf32>
    %9 = math.exp %8 : vector<2x32xf32>
    %cst_6 = arith.constant 1.000000e+00 : f32
    %10 = vector.broadcast %cst_6 : f32 to vector<2x32xf32>
    %11 = arith.addf %10, %9 : vector<2x32xf32>
    %12 = arith.divf %10, %11 : vector<2x32xf32>
    %13 = vector.extract_strided_slice %6 {offsets = [0, 32], sizes = [2, 32], strides = [1, 1]} : vector<2x128xf32> to vector<2x32xf32>
    %14 = arith.negf %13 : vector<2x32xf32>
    %15 = math.exp %14 : vector<2x32xf32>
    %cst_7 = arith.constant 1.000000e+00 : f32
    %16 = vector.broadcast %cst_7 : f32 to vector<2x32xf32>
    %17 = arith.addf %16, %15 : vector<2x32xf32>
    %18 = arith.divf %16, %17 : vector<2x32xf32>
    %19 = vector.extract_strided_slice %6 {offsets = [0, 64], sizes = [2, 32], strides = [1, 1]} : vector<2x128xf32> to vector<2x32xf32>
    %20 = math.tanh %19 : vector<2x32xf32>
    %21 = vector.extract_strided_slice %6 {offsets = [0, 96], sizes = [2, 32], strides = [1, 1]} : vector<2x128xf32> to vector<2x32xf32>
    %22 = arith.negf %21 : vector<2x32xf32>
    %23 = math.exp %22 : vector<2x32xf32>
    %cst_8 = arith.constant 1.000000e+00 : f32
    %24 = vector.broadcast %cst_8 : f32 to vector<2x32xf32>
    %25 = arith.addf %24, %23 : vector<2x32xf32>
    %26 = arith.divf %24, %25 : vector<2x32xf32>
    %27 = arith.mulf %18, %1 : vector<2x32xf32>
    %28 = arith.mulf %12, %20 : vector<2x32xf32>
    %29 = arith.addf %27, %28 : vector<2x32xf32>
    %30 = math.tanh %29 : vector<2x32xf32>
    %31 = arith.mulf %26, %30 : vector<2x32xf32>
    %c0_9 = arith.constant 0 : index
    %c0_10 = arith.constant 0 : index
    %c0_11 = arith.constant 0 : index
    %32 = vector.load %arg20[%c0_9, %c0_10, %c0_11] : memref<2x8x32xf32, #tpu.memory_space<vmem>>, vector<2x1x32xf32>
    %33 = vector.shape_cast %32 : vector<2x1x32xf32> to vector<2x32xf32>
    %34 = vector.shape_cast %31 : vector<2x32xf32> to vector<2x1x32xf32>
    tpu.vector_store %arg20[%c0_9, %c0_10, %c0_11], %34 {strides = array<i32>} : memref<2x8x32xf32, #tpu.memory_space<vmem>>, vector<2x1x32xf32>,
    %c1 = arith.constant 1 : index
    %c0_12 = arith.constant 0 : index
    %c0_13 = arith.constant 0 : index
    %35 = vector.load %arg0[%c1, %c0_12, %c0_13] : memref<8x2x128xf32, #tpu.memory_space<vmem>>, vector<1x2x128xf32>
    %36 = vector.shape_cast %35 : vector<1x2x128xf32> to vector<2x128xf32>
    %c0_14 = arith.constant 0 : index
    %c0_15 = arith.constant 0 : index
    %37 = vector.load %arg1[%c0_14, %c0_15] : memref<32x128xf32, #tpu.memory_space<vmem>>, vector<32x128xf32>
    %cst_16 = arith.constant dense<0.000000e+00> : vector<2x128xf32>
    %38 = tpu.matmul %31, %37, %cst_16 {dimension_numbers = #tpu.dot_dimension_numbers<[1], [0], [0], [1], [0, 0, 1, 1], [], []>} : vector<2x32xf32>, vector<32x128xf32>, vector<2x128xf32> -> vector<2x128xf32>
    %39 = arith.addf %36, %38 : vector<2x128xf32>
    %40 = vector.extract_strided_slice %39 {offsets = [0, 0], sizes = [2, 32], strides = [1, 1]} : vector<2x128xf32> to vector<2x32xf32>
    %41 = arith.negf %40 : vector<2x32xf32>
    %42 = math.exp %41 : vector<2x32xf32>
    %cst_17 = arith.constant 1.000000e+00 : f32
    %43 = vector.broadcast %cst_17 : f32 to vector<2x32xf32>
    %44 = arith.addf %43, %42 : vector<2x32xf32>
    %45 = arith.divf %43, %44 : vector<2x32xf32>
    %46 = vector.extract_strided_slice %39 {offsets = [0, 32], sizes = [2, 32], strides = [1, 1]} : vector<2x128xf32> to vector<2x32xf32>
    %47 = arith.negf %46 : vector<2x32xf32>
    %48 = math.exp %47 : vector<2x32xf32>
    %cst_18 = arith.constant 1.000000e+00 : f32
    %49 = vector.broadcast %cst_18 : f32 to vector<2x32xf32>
    %50 = arith.addf %49, %48 : vector<2x32xf32>
    %51 = arith.divf %49, %50 : vector<2x32xf32>
    %52 = vector.extract_strided_slice %39 {offsets = [0, 64], sizes = [2, 32], strides = [1, 1]} : vector<2x128xf32> to vector<2x32xf32>
    %53 = math.tanh %52 : vector<2x32xf32>
    %54 = vector.extract_strided_slice %39 {offsets = [0, 96], sizes = [2, 32], strides = [1, 1]} : vector<2x128xf32> to vector<2x32xf32>
    %55 = arith.negf %54 : vector<2x32xf32>
    %56 = math.exp %55 : vector<2x32xf32>
    %cst_19 = arith.constant 1.000000e+00 : f32
    %57 = vector.broadcast %cst_19 : f32 to vector<2x32xf32>
    %58 = arith.addf %57, %56 : vector<2x32xf32>
    %59 = arith.divf %57, %58 : vector<2x32xf32>
    %60 = arith.mulf %51, %29 : vector<2x32xf32>
    %61 = arith.mulf %45, %53 : vector<2x32xf32>
    %62 = arith.addf %60, %61 : vector<2x32xf32>
    %63 = math.tanh %62 : vector<2x32xf32>
    %64 = arith.mulf %59, %63 : vector<2x32xf32>
    %c0_20 = arith.constant 0 : index
    %c1_21 = arith.constant 1 : index
    %c0_22 = arith.constant 0 : index
    %65 = vector.load %arg20[%c0_20, %c1_21, %c0_22] : memref<2x8x32xf32, #tpu.memory_space<vmem>>, vector<2x1x32xf32>
    %66 = vector.shape_cast %65 : vector<2x1x32xf32> to vector<2x32xf32>
    %67 = vector.shape_cast %64 : vector<2x32xf32> to vector<2x1x32xf32>
    tpu.vector_store %arg20[%c0_20, %c1_21, %c0_22], %67 {strides = array<i32>} : memref<2x8x32xf32, #tpu.memory_space<vmem>>, vector<2x1x32xf32>,
    %c2 = arith.constant 2 : index
    %c0_23 = arith.constant 0 : index
    %c0_24 = arith.constant 0 : index
    %68 = vector.load %arg0[%c2, %c0_23, %c0_24] : memref<8x2x128xf32, #tpu.memory_space<vmem>>, vector<1x2x128xf32>
    %69 = vector.shape_cast %68 : vector<1x2x128xf32> to vector<2x128xf32>
    %c0_25 = arith.constant 0 : index
    %c0_26 = arith.constant 0 : index
    %70 = vector.load %arg1[%c0_25, %c0_26] : memref<32x128xf32, #tpu.memory_space<vmem>>, vector<32x128xf32>
    %cst_27 = arith.constant dense<0.000000e+00> : vector<2x128xf32>
    %71 = tpu.matmul %64, %70, %cst_27 {dimension_numbers = #tpu.dot_dimension_numbers<[1], [0], [0], [1], [0, 0, 1, 1], [], []>} : vector<2x32xf32>, vector<32x128xf32>, vector<2x128xf32> -> vector<2x128xf32>
    %72 = arith.addf %69, %71 : vector<2x128xf32>
    %73 = vector.extract_strided_slice %72 {offsets = [0, 0], sizes = [2, 32], strides = [1, 1]} : vector<2x128xf32> to vector<2x32xf32>
    %74 = arith.negf %73 : vector<2x32xf32>
    %75 = math.exp %74 : vector<2x32xf32>
    %cst_28 = arith.constant 1.000000e+00 : f32
    %76 = vector.broadcast %cst_28 : f32 to vector<2x32xf32>
    %77 = arith.addf %76, %75 : vector<2x32xf32>
    %78 = arith.divf %76, %77 : vector<2x32xf32>
    %79 = vector.extract_strided_slice %72 {offsets = [0, 32], sizes = [2, 32], strides = [1, 1]} : vector<2x128xf32> to vector<2x32xf32>
    %80 = arith.negf %79 : vector<2x32xf32>
    %81 = math.exp %80 : vector<2x32xf32>
    %cst_29 = arith.constant 1.000000e+00 : f32
    %82 = vector.broadcast %cst_29 : f32 to vector<2x32xf32>
    %83 = arith.addf %82, %81 : vector<2x32xf32>
    %84 = arith.divf %82, %83 : vector<2x32xf32>
    %85 = vector.extract_strided_slice %72 {offsets = [0, 64], sizes = [2, 32], strides = [1, 1]} : vector<2x128xf32> to vector<2x32xf32>
    %86 = math.tanh %85 : vector<2x32xf32>
    %87 = vector.extract_strided_slice %72 {offsets = [0, 96], sizes = [2, 32], strides = [1, 1]} : vector<2x128xf32> to vector<2x32xf32>
    %88 = arith.negf %87 : vector<2x32xf32>
    %89 = math.exp %88 : vector<2x32xf32>
    %cst_30 = arith.constant 1.000000e+00 : f32
    %90 = vector.broadcast %cst_30 : f32 to vector<2x32xf32>
    %91 = arith.addf %90, %89 : vector<2x32xf32>
    %92 = arith.divf %90, %91 : vector<2x32xf32>
    %93 = arith.mulf %84, %62 : vector<2x32xf32>
    %94 = arith.mulf %78, %86 : vector<2x32xf32>
    %95 = arith.addf %93, %94 : vector<2x32xf32>
    %96 = math.tanh %95 : vector<2x32xf32>
    %97 = arith.mulf %92, %96 : vector<2x32xf32>
    %c0_31 = arith.constant 0 : index
    %c2_32 = arith.constant 2 : index
    %c0_33 = arith.constant 0 : index
    %98 = vector.load %arg20[%c0_31, %c2_32, %c0_33] : memref<2x8x32xf32, #tpu.memory_space<vmem>>, vector<2x1x32xf32>
    %99 = vector.shape_cast %98 : vector<2x1x32xf32> to vector<2x32xf32>
    %100 = vector.shape_cast %97 : vector<2x32xf32> to vector<2x1x32xf32>
    tpu.vector_store %arg20[%c0_31, %c2_32, %c0_33], %100 {strides = array<i32>} : memref<2x8x32xf32, #tpu.memory_space<vmem>>, vector<2x1x32xf32>,
    %c3 = arith.constant 3 : index
    %c0_34 = arith.constant 0 : index
    %c0_35 = arith.constant 0 : index
    %101 = vector.load %arg0[%c3, %c0_34, %c0_35] : memref<8x2x128xf32, #tpu.memory_space<vmem>>, vector<1x2x128xf32>
    %102 = vector.shape_cast %101 : vector<1x2x128xf32> to vector<2x128xf32>
    %c0_36 = arith.constant 0 : index
    %c0_37 = arith.constant 0 : index
    %103 = vector.load %arg1[%c0_36, %c0_37] : memref<32x128xf32, #tpu.memory_space<vmem>>, vector<32x128xf32>
    %cst_38 = arith.constant dense<0.000000e+00> : vector<2x128xf32>
    %104 = tpu.matmul %97, %103, %cst_38 {dimension_numbers = #tpu.dot_dimension_numbers<[1], [0], [0], [1], [0, 0, 1, 1], [], []>} : vector<2x32xf32>, vector<32x128xf32>, vector<2x128xf32> -> vector<2x128xf32>
    %105 = arith.addf %102, %104 : vector<2x128xf32>
    %106 = vector.extract_strided_slice %105 {offsets = [0, 0], sizes = [2, 32], strides = [1, 1]} : vector<2x128xf32> to vector<2x32xf32>
    %107 = arith.negf %106 : vector<2x32xf32>
    %108 = math.exp %107 : vector<2x32xf32>
    %cst_39 = arith.constant 1.000000e+00 : f32
    %109 = vector.broadcast %cst_39 : f32 to vector<2x32xf32>
    %110 = arith.addf %109, %108 : vector<2x32xf32>
    %111 = arith.divf %109, %110 : vector<2x32xf32>
    %112 = vector.extract_strided_slice %105 {offsets = [0, 32], sizes = [2, 32], strides = [1, 1]} : vector<2x128xf32> to vector<2x32xf32>
    %113 = arith.negf %112 : vector<2x32xf32>
    %114 = math.exp %113 : vector<2x32xf32>
    %cst_40 = arith.constant 1.000000e+00 : f32
    %115 = vector.broadcast %cst_40 : f32 to vector<2x32xf32>
    %116 = arith.addf %115, %114 : vector<2x32xf32>
    %117 = arith.divf %115, %116 : vector<2x32xf32>
    %118 = vector.extract_strided_slice %105 {offsets = [0, 64], sizes = [2, 32], strides = [1, 1]} : vector<2x128xf32> to vector<2x32xf32>
    %119 = math.tanh %118 : vector<2x32xf32>
    %120 = vector.extract_strided_slice %105 {offsets = [0, 96], sizes = [2, 32], strides = [1, 1]} : vector<2x128xf32> to vector<2x32xf32>
    %121 = arith.negf %120 : vector<2x32xf32>
    %122 = math.exp %121 : vector<2x32xf32>
    %cst_41 = arith.constant 1.000000e+00 : f32
    %123 = vector.broadcast %cst_41 : f32 to vector<2x32xf32>
    %124 = arith.addf %123, %122 : vector<2x32xf32>
    %125 = arith.divf %123, %124 : vector<2x32xf32>
    %126 = arith.mulf %117, %95 : vector<2x32xf32>
    %127 = arith.mulf %111, %119 : vector<2x32xf32>
    %128 = arith.addf %126, %127 : vector<2x32xf32>
    %129 = math.tanh %128 : vector<2x32xf32>
    %130 = arith.mulf %125, %129 : vector<2x32xf32>
    %c0_42 = arith.constant 0 : index
    %c3_43 = arith.constant 3 : index
    %c0_44 = arith.constant 0 : index
    %131 = vector.load %arg20[%c0_42, %c3_43, %c0_44] : memref<2x8x32xf32, #tpu.memory_space<vmem>>, vector<2x1x32xf32>
    %132 = vector.shape_cast %131 : vector<2x1x32xf32> to vector<2x32xf32>
    %133 = vector.shape_cast %130 : vector<2x32xf32> to vector<2x1x32xf32>
    tpu.vector_store %arg20[%c0_42, %c3_43, %c0_44], %133 {strides = array<i32>} : memref<2x8x32xf32, #tpu.memory_space<vmem>>, vector<2x1x32xf32>,
    %c4 = arith.constant 4 : index
    %c0_45 = arith.constant 0 : index
    %c0_46 = arith.constant 0 : index
    %134 = vector.load %arg0[%c4, %c0_45, %c0_46] : memref<8x2x128xf32, #tpu.memory_space<vmem>>, vector<1x2x128xf32>
    %135 = vector.shape_cast %134 : vector<1x2x128xf32> to vector<2x128xf32>
    %c0_47 = arith.constant 0 : index
    %c0_48 = arith.constant 0 : index
    %136 = vector.load %arg1[%c0_47, %c0_48] : memref<32x128xf32, #tpu.memory_space<vmem>>, vector<32x128xf32>
    %cst_49 = arith.constant dense<0.000000e+00> : vector<2x128xf32>
    %137 = tpu.matmul %130, %136, %cst_49 {dimension_numbers = #tpu.dot_dimension_numbers<[1], [0], [0], [1], [0, 0, 1, 1], [], []>} : vector<2x32xf32>, vector<32x128xf32>, vector<2x128xf32> -> vector<2x128xf32>
    %138 = arith.addf %135, %137 : vector<2x128xf32>
    %139 = vector.extract_strided_slice %138 {offsets = [0, 0], sizes = [2, 32], strides = [1, 1]} : vector<2x128xf32> to vector<2x32xf32>
    %140 = arith.negf %139 : vector<2x32xf32>
    %141 = math.exp %140 : vector<2x32xf32>
    %cst_50 = arith.constant 1.000000e+00 : f32
    %142 = vector.broadcast %cst_50 : f32 to vector<2x32xf32>
    %143 = arith.addf %142, %141 : vector<2x32xf32>
    %144 = arith.divf %142, %143 : vector<2x32xf32>
    %145 = vector.extract_strided_slice %138 {offsets = [0, 32], sizes = [2, 32], strides = [1, 1]} : vector<2x128xf32> to vector<2x32xf32>
    %146 = arith.negf %145 : vector<2x32xf32>
    %147 = math.exp %146 : vector<2x32xf32>
    %cst_51 = arith.constant 1.000000e+00 : f32
    %148 = vector.broadcast %cst_51 : f32 to vector<2x32xf32>
    %149 = arith.addf %148, %147 : vector<2x32xf32>
    %150 = arith.divf %148, %149 : vector<2x32xf32>
    %151 = vector.extract_strided_slice %138 {offsets = [0, 64], sizes = [2, 32], strides = [1, 1]} : vector<2x128xf32> to vector<2x32xf32>
    %152 = math.tanh %151 : vector<2x32xf32>
    %153 = vector.extract_strided_slice %138 {offsets = [0, 96], sizes = [2, 32], strides = [1, 1]} : vector<2x128xf32> to vector<2x32xf32>
    %154 = arith.negf %153 : vector<2x32xf32>
    %155 = math.exp %154 : vector<2x32xf32>
    %cst_52 = arith.constant 1.000000e+00 : f32
    %156 = vector.broadcast %cst_52 : f32 to vector<2x32xf32>
    %157 = arith.addf %156, %155 : vector<2x32xf32>
    %158 = arith.divf %156, %157 : vector<2x32xf32>
    %159 = arith.mulf %150, %128 : vector<2x32xf32>
    %160 = arith.mulf %144, %152 : vector<2x32xf32>
    %161 = arith.addf %159, %160 : vector<2x32xf32>
    %162 = math.tanh %161 : vector<2x32xf32>
    %163 = arith.mulf %158, %162 : vector<2x32xf32>
    %c0_53 = arith.constant 0 : index
    %c4_54 = arith.constant 4 : index
    %c0_55 = arith.constant 0 : index
    %164 = vector.load %arg20[%c0_53, %c4_54, %c0_55] : memref<2x8x32xf32, #tpu.memory_space<vmem>>, vector<2x1x32xf32>
    %165 = vector.shape_cast %164 : vector<2x1x32xf32> to vector<2x32xf32>
    %166 = vector.shape_cast %163 : vector<2x32xf32> to vector<2x1x32xf32>
    tpu.vector_store %arg20[%c0_53, %c4_54, %c0_55], %166 {strides = array<i32>} : memref<2x8x32xf32, #tpu.memory_space<vmem>>, vector<2x1x32xf32>,
    %c5 = arith.constant 5 : index
    %c0_56 = arith.constant 0 : index
    %c0_57 = arith.constant 0 : index
    %167 = vector.load %arg0[%c5, %c0_56, %c0_57] : memref<8x2x128xf32, #tpu.memory_space<vmem>>, vector<1x2x128xf32>
    %168 = vector.shape_cast %167 : vector<1x2x128xf32> to vector<2x128xf32>
    %c0_58 = arith.constant 0 : index
    %c0_59 = arith.constant 0 : index
    %169 = vector.load %arg1[%c0_58, %c0_59] : memref<32x128xf32, #tpu.memory_space<vmem>>, vector<32x128xf32>
    %cst_60 = arith.constant dense<0.000000e+00> : vector<2x128xf32>
    %170 = tpu.matmul %163, %169, %cst_60 {dimension_numbers = #tpu.dot_dimension_numbers<[1], [0], [0], [1], [0, 0, 1, 1], [], []>} : vector<2x32xf32>, vector<32x128xf32>, vector<2x128xf32> -> vector<2x128xf32>
    %171 = arith.addf %168, %170 : vector<2x128xf32>
    %172 = vector.extract_strided_slice %171 {offsets = [0, 0], sizes = [2, 32], strides = [1, 1]} : vector<2x128xf32> to vector<2x32xf32>
    %173 = arith.negf %172 : vector<2x32xf32>
    %174 = math.exp %173 : vector<2x32xf32>
    %cst_61 = arith.constant 1.000000e+00 : f32
    %175 = vector.broadcast %cst_61 : f32 to vector<2x32xf32>
    %176 = arith.addf %175, %174 : vector<2x32xf32>
    %177 = arith.divf %175, %176 : vector<2x32xf32>
    %178 = vector.extract_strided_slice %171 {offsets = [0, 32], sizes = [2, 32], strides = [1, 1]} : vector<2x128xf32> to vector<2x32xf32>
    %179 = arith.negf %178 : vector<2x32xf32>
    %180 = math.exp %179 : vector<2x32xf32>
    %cst_62 = arith.constant 1.000000e+00 : f32
    %181 = vector.broadcast %cst_62 : f32 to vector<2x32xf32>
    %182 = arith.addf %181, %180 : vector<2x32xf32>
    %183 = arith.divf %181, %182 : vector<2x32xf32>
    %184 = vector.extract_strided_slice %171 {offsets = [0, 64], sizes = [2, 32], strides = [1, 1]} : vector<2x128xf32> to vector<2x32xf32>
    %185 = math.tanh %184 : vector<2x32xf32>
    %186 = vector.extract_strided_slice %171 {offsets = [0, 96], sizes = [2, 32], strides = [1, 1]} : vector<2x128xf32> to vector<2x32xf32>
    %187 = arith.negf %186 : vector<2x32xf32>
    %188 = math.exp %187 : vector<2x32xf32>
    %cst_63 = arith.constant 1.000000e+00 : f32
    %189 = vector.broadcast %cst_63 : f32 to vector<2x32xf32>
    %190 = arith.addf %189, %188 : vector<2x32xf32>
    %191 = arith.divf %189, %190 : vector<2x32xf32>
    %192 = arith.mulf %183, %161 : vector<2x32xf32>
    %193 = arith.mulf %177, %185 : vector<2x32xf32>
    %194 = arith.addf %192, %193 : vector<2x32xf32>
    %195 = math.tanh %194 : vector<2x32xf32>
    %196 = arith.mulf %191, %195 : vector<2x32xf32>
    %c0_64 = arith.constant 0 : index
    %c5_65 = arith.constant 5 : index
    %c0_66 = arith.constant 0 : index
    %197 = vector.load %arg20[%c0_64, %c5_65, %c0_66] : memref<2x8x32xf32, #tpu.memory_space<vmem>>, vector<2x1x32xf32>
    %198 = vector.shape_cast %197 : vector<2x1x32xf32> to vector<2x32xf32>
    %199 = vector.shape_cast %196 : vector<2x32xf32> to vector<2x1x32xf32>
    tpu.vector_store %arg20[%c0_64, %c5_65, %c0_66], %199 {strides = array<i32>} : memref<2x8x32xf32, #tpu.memory_space<vmem>>, vector<2x1x32xf32>,
    %c6 = arith.constant 6 : index
    %c0_67 = arith.constant 0 : index
    %c0_68 = arith.constant 0 : index
    %200 = vector.load %arg0[%c6, %c0_67, %c0_68] : memref<8x2x128xf32, #tpu.memory_space<vmem>>, vector<1x2x128xf32>
    %201 = vector.shape_cast %200 : vector<1x2x128xf32> to vector<2x128xf32>
    %c0_69 = arith.constant 0 : index
    %c0_70 = arith.constant 0 : index
    %202 = vector.load %arg1[%c0_69, %c0_70] : memref<32x128xf32, #tpu.memory_space<vmem>>, vector<32x128xf32>
    %cst_71 = arith.constant dense<0.000000e+00> : vector<2x128xf32>
    %203 = tpu.matmul %196, %202, %cst_71 {dimension_numbers = #tpu.dot_dimension_numbers<[1], [0], [0], [1], [0, 0, 1, 1], [], []>} : vector<2x32xf32>, vector<32x128xf32>, vector<2x128xf32> -> vector<2x128xf32>
    %204 = arith.addf %201, %203 : vector<2x128xf32>
    %205 = vector.extract_strided_slice %204 {offsets = [0, 0], sizes = [2, 32], strides = [1, 1]} : vector<2x128xf32> to vector<2x32xf32>
    %206 = arith.negf %205 : vector<2x32xf32>
    %207 = math.exp %206 : vector<2x32xf32>
    %cst_72 = arith.constant 1.000000e+00 : f32
    %208 = vector.broadcast %cst_72 : f32 to vector<2x32xf32>
    %209 = arith.addf %208, %207 : vector<2x32xf32>
    %210 = arith.divf %208, %209 : vector<2x32xf32>
    %211 = vector.extract_strided_slice %204 {offsets = [0, 32], sizes = [2, 32], strides = [1, 1]} : vector<2x128xf32> to vector<2x32xf32>
    %212 = arith.negf %211 : vector<2x32xf32>
    %213 = math.exp %212 : vector<2x32xf32>
    %cst_73 = arith.constant 1.000000e+00 : f32
    %214 = vector.broadcast %cst_73 : f32 to vector<2x32xf32>
    %215 = arith.addf %214, %213 : vector<2x32xf32>
    %216 = arith.divf %214, %215 : vector<2x32xf32>
    %217 = vector.extract_strided_slice %204 {offsets = [0, 64], sizes = [2, 32], strides = [1, 1]} : vector<2x128xf32> to vector<2x32xf32>
    %218 = math.tanh %217 : vector<2x32xf32>
    %219 = vector.extract_strided_slice %204 {offsets = [0, 96], sizes = [2, 32], strides = [1, 1]} : vector<2x128xf32> to vector<2x32xf32>
    %220 = arith.negf %219 : vector<2x32xf32>
    %221 = math.exp %220 : vector<2x32xf32>
    %cst_74 = arith.constant 1.000000e+00 : f32
    %222 = vector.broadcast %cst_74 : f32 to vector<2x32xf32>
    %223 = arith.addf %222, %221 : vector<2x32xf32>
    %224 = arith.divf %222, %223 : vector<2x32xf32>
    %225 = arith.mulf %216, %194 : vector<2x32xf32>
    %226 = arith.mulf %210, %218 : vector<2x32xf32>
    %227 = arith.addf %225, %226 : vector<2x32xf32>
    %228 = math.tanh %227 : vector<2x32xf32>
    %229 = arith.mulf %224, %228 : vector<2x32xf32>
    %c0_75 = arith.constant 0 : index
    %c6_76 = arith.constant 6 : index
    %c0_77 = arith.constant 0 : index
    %230 = vector.load %arg20[%c0_75, %c6_76, %c0_77] : memref<2x8x32xf32, #tpu.memory_space<vmem>>, vector<2x1x32xf32>
    %231 = vector.shape_cast %230 : vector<2x1x32xf32> to vector<2x32xf32>
    %232 = vector.shape_cast %229 : vector<2x32xf32> to vector<2x1x32xf32>
    tpu.vector_store %arg20[%c0_75, %c6_76, %c0_77], %232 {strides = array<i32>} : memref<2x8x32xf32, #tpu.memory_space<vmem>>, vector<2x1x32xf32>,
    %c7 = arith.constant 7 : index
    %c0_78 = arith.constant 0 : index
    %c0_79 = arith.constant 0 : index
    %233 = vector.load %arg0[%c7, %c0_78, %c0_79] : memref<8x2x128xf32, #tpu.memory_space<vmem>>, vector<1x2x128xf32>
    %234 = vector.shape_cast %233 : vector<1x2x128xf32> to vector<2x128xf32>
    %c0_80 = arith.constant 0 : index
    %c0_81 = arith.constant 0 : index
    %235 = vector.load %arg1[%c0_80, %c0_81] : memref<32x128xf32, #tpu.memory_space<vmem>>, vector<32x128xf32>
    %cst_82 = arith.constant dense<0.000000e+00> : vector<2x128xf32>
    %236 = tpu.matmul %229, %235, %cst_82 {dimension_numbers = #tpu.dot_dimension_numbers<[1], [0], [0], [1], [0, 0, 1, 1], [], []>} : vector<2x32xf32>, vector<32x128xf32>, vector<2x128xf32> -> vector<2x128xf32>
    %237 = arith.addf %234, %236 : vector<2x128xf32>
    %238 = vector.extract_strided_slice %237 {offsets = [0, 0], sizes = [2, 32], strides = [1, 1]} : vector<2x128xf32> to vector<2x32xf32>
    %239 = arith.negf %238 : vector<2x32xf32>
    %240 = math.exp %239 : vector<2x32xf32>
    %cst_83 = arith.constant 1.000000e+00 : f32
    %241 = vector.broadcast %cst_83 : f32 to vector<2x32xf32>
    %242 = arith.addf %241, %240 : vector<2x32xf32>
    %243 = arith.divf %241, %242 : vector<2x32xf32>
    %244 = vector.extract_strided_slice %237 {offsets = [0, 32], sizes = [2, 32], strides = [1, 1]} : vector<2x128xf32> to vector<2x32xf32>
    %245 = arith.negf %244 : vector<2x32xf32>
    %246 = math.exp %245 : vector<2x32xf32>
    %cst_84 = arith.constant 1.000000e+00 : f32
    %247 = vector.broadcast %cst_84 : f32 to vector<2x32xf32>
    %248 = arith.addf %247, %246 : vector<2x32xf32>
    %249 = arith.divf %247, %248 : vector<2x32xf32>
    %250 = vector.extract_strided_slice %237 {offsets = [0, 64], sizes = [2, 32], strides = [1, 1]} : vector<2x128xf32> to vector<2x32xf32>
    %251 = math.tanh %250 : vector<2x32xf32>
    %252 = vector.extract_strided_slice %237 {offsets = [0, 96], sizes = [2, 32], strides = [1, 1]} : vector<2x128xf32> to vector<2x32xf32>
    %253 = arith.negf %252 : vector<2x32xf32>
    %254 = math.exp %253 : vector<2x32xf32>
    %cst_85 = arith.constant 1.000000e+00 : f32
    %255 = vector.broadcast %cst_85 : f32 to vector<2x32xf32>
    %256 = arith.addf %255, %254 : vector<2x32xf32>
    %257 = arith.divf %255, %256 : vector<2x32xf32>
    %258 = arith.mulf %249, %227 : vector<2x32xf32>
    %259 = arith.mulf %243, %251 : vector<2x32xf32>
    %260 = arith.addf %258, %259 : vector<2x32xf32>
    %261 = math.tanh %260 : vector<2x32xf32>
    %262 = arith.mulf %257, %261 : vector<2x32xf32>
    %c0_86 = arith.constant 0 : index
    %c7_87 = arith.constant 7 : index
    %c0_88 = arith.constant 0 : index
    %263 = vector.load %arg20[%c0_86, %c7_87, %c0_88] : memref<2x8x32xf32, #tpu.memory_space<vmem>>, vector<2x1x32xf32>
    %264 = vector.shape_cast %263 : vector<2x1x32xf32> to vector<2x32xf32>
    %265 = vector.shape_cast %262 : vector<2x32xf32> to vector<2x1x32xf32>
    tpu.vector_store %arg20[%c0_86, %c7_87, %c0_88], %265 {strides = array<i32>} : memref<2x8x32xf32, #tpu.memory_space<vmem>>, vector<2x1x32xf32>,
    %c0_89 = arith.constant 0 : index
    %c0_90 = arith.constant 0 : index
    %266 = vector.load %arg2[%c0_89, %c0_90] : memref<32x32xf32, #tpu.memory_space<vmem>>, vector<32x32xf32>
    %cst_91 = arith.constant dense<0.000000e+00> : vector<2x32xf32>
    %267 = tpu.matmul %262, %266, %cst_91 {dimension_numbers = #tpu.dot_dimension_numbers<[1], [0], [0], [1], [0, 0, 1, 1], [], []>} : vector<2x32xf32>, vector<32x32xf32>, vector<2x32xf32> -> vector<2x32xf32>
    %c0_92 = arith.constant 0 : index
    %c0_93 = arith.constant 0 : index
    %268 = vector.load %arg3[%c0_92, %c0_93] : memref<1x32xf32, #tpu.memory_space<vmem>>, vector<1x32xf32>
    %269 = vector.broadcast %268 : vector<1x32xf32> to vector<2x32xf32>
    %270 = arith.addf %267, %269 : vector<2x32xf32>
    %c0_94 = arith.constant 0 : index
    %c0_95 = arith.constant 0 : index
    %271 = vector.load %arg4[%c0_94, %c0_95] : memref<32x32xf32, #tpu.memory_space<vmem>>, vector<32x32xf32>
    %cst_96 = arith.constant dense<0.000000e+00> : vector<2x32xf32>
    %272 = tpu.matmul %260, %271, %cst_96 {dimension_numbers = #tpu.dot_dimension_numbers<[1], [0], [0], [1], [0, 0, 1, 1], [], []>} : vector<2x32xf32>, vector<32x32xf32>, vector<2x32xf32> -> vector<2x32xf32>
    %c0_97 = arith.constant 0 : index
    %c0_98 = arith.constant 0 : index
    %273 = vector.load %arg5[%c0_97, %c0_98] : memref<1x32xf32, #tpu.memory_space<vmem>>, vector<1x32xf32>
    %274 = vector.broadcast %273 : vector<1x32xf32> to vector<2x32xf32>
    %275 = arith.addf %272, %274 : vector<2x32xf32>
    %c0_99 = arith.constant 0 : index
    %c0_100 = arith.constant 0 : index
    %c0_101 = arith.constant 0 : index
    %276 = vector.load %arg20[%c0_99, %c0_100, %c0_101] : memref<2x8x32xf32, #tpu.memory_space<vmem>>, vector<2x8x32xf32>
    %277 = vector.shape_cast %276 : vector<2x8x32xf32> to vector<16x32xf32>
    %c0_102 = arith.constant 0 : index
    %c0_103 = arith.constant 0 : index
    %278 = vector.load %arg6[%c0_102, %c0_103] : memref<32x32xf32, #tpu.memory_space<vmem>>, vector<32x32xf32>
    %cst_104 = arith.constant dense<0.000000e+00> : vector<16x32xf32>
    %279 = tpu.matmul %277, %278, %cst_104 {dimension_numbers = #tpu.dot_dimension_numbers<[1], [0], [0], [1], [0, 0, 1, 1], [], []>} : vector<16x32xf32>, vector<32x32xf32>, vector<16x32xf32> -> vector<16x32xf32>
    %c0_105 = arith.constant 0 : index
    %c0_106 = arith.constant 0 : index
    %280 = vector.load %arg7[%c0_105, %c0_106] : memref<1x32xf32, #tpu.memory_space<vmem>>, vector<1x32xf32>
    %281 = vector.broadcast %280 : vector<1x32xf32> to vector<16x32xf32>
    %282 = arith.addf %279, %281 : vector<16x32xf32>
    %283 = vector.shape_cast %282 : vector<16x32xf32> to vector<2x8x32xf32>
    %284 = tpu.iota {dimensions = array<i32: 1>} : vector<2x128xi32>
    %c16_i32 = arith.constant 16 : i32
    %285 = vector.broadcast %c16_i32 : i32 to vector<2x128xi32>
    %286 = arith.cmpi slt, %284, %285 : vector<2x128xi32>
    %c0_107 = arith.constant 0 : index
    %c0_108 = arith.constant 0 : index
    %287 = vector.load %arg16[%c0_107, %c0_108] : memref<2x128xf32, #tpu.memory_space<vmem>>, vector<2x128xf32>
    %c0_i32 = arith.constant 0 : i32
    %288 = vector.shape_cast %270 : vector<2x32xf32> to vector<2x1x32xf32>
    %289 = vector.broadcast %288 : vector<2x1x32xf32> to vector<2x8x32xf32>
    %290 = arith.mulf %283, %289 : vector<2x8x32xf32>
    %cst_109 = arith.constant dense<0.000000e+00> : vector<2x8xf32>
    %291 = vector.multi_reduction <add>, %290, %cst_109 [2] : vector<2x8x32xf32> to vector<2x8xf32>
    %cst_110 = arith.constant dense<0xFF800000> : vector<2xf32>
    %292 = vector.multi_reduction <maximumf>, %291, %cst_110 [1] : vector<2x8xf32> to vector<2xf32>
    %293 = vector.shape_cast %292 : vector<2xf32> to vector<2x1xf32>
    %294 = vector.broadcast %293 : vector<2x1xf32> to vector<2x8xf32>
    %295 = arith.subf %291, %294 : vector<2x8xf32>
    %296 = math.exp %295 : vector<2x8xf32>
    %cst_111 = arith.constant dense<0.000000e+00> : vector<2xf32>
    %297 = vector.multi_reduction <add>, %296, %cst_111 [1] : vector<2x8xf32> to vector<2xf32>
    %298 = vector.shape_cast %297 : vector<2xf32> to vector<2x1xf32>
    %299 = tpu.reciprocal %298 {approx = true} : vector<2x1xf32> -> vector<2x1xf32>
    %300 = vector.broadcast %299 : vector<2x1xf32> to vector<2x8xf32>
    %301 = arith.mulf %296, %300 : vector<2x8xf32>
    %302 = vector.shape_cast %301 : vector<2x8xf32> to vector<2x8x1xf32>
    %303 = vector.broadcast %302 : vector<2x8x1xf32> to vector<2x8x32xf32>
    %304 = arith.mulf %303, %276 : vector<2x8x32xf32>
    %cst_112 = arith.constant dense<0.000000e+00> : vector<2x32xf32>
    %305 = vector.multi_reduction <add>, %304, %cst_112 [1] : vector<2x8x32xf32> to vector<2x32xf32>
    %c0_113 = arith.constant 0 : index
    %c0_114 = arith.constant 0 : index
    %306 = vector.load %arg8[%c0_113, %c0_114] : memref<128x128xf32, #tpu.memory_space<vmem>>, vector<128x128xf32>
    %cst_115 = arith.constant dense<0.000000e+00> : vector<2x128xf32>
    %307 = tpu.matmul %287, %306, %cst_115 {dimension_numbers = #tpu.dot_dimension_numbers<[1], [0], [0], [1], [0, 0, 1, 1], [], []>} : vector<2x128xf32>, vector<128x128xf32>, vector<2x128xf32> -> vector<2x128xf32>
    %c0_116 = arith.constant 0 : index
    %c0_117 = arith.constant 0 : index
    %308 = vector.load %arg9[%c0_116, %c0_117] : memref<32x128xf32, #tpu.memory_space<vmem>>, vector<32x128xf32>
    %cst_118 = arith.constant dense<0.000000e+00> : vector<2x128xf32>
    %309 = tpu.matmul %305, %308, %cst_118 {dimension_numbers = #tpu.dot_dimension_numbers<[1], [0], [0], [1], [0, 0, 1, 1], [], []>} : vector<2x32xf32>, vector<32x128xf32>, vector<2x128xf32> -> vector<2x128xf32>
    %310 = arith.addf %307, %309 : vector<2x128xf32>
    %c0_119 = arith.constant 0 : index
    %c0_120 = arith.constant 0 : index
    %311 = vector.load %arg10[%c0_119, %c0_120] : memref<32x128xf32, #tpu.memory_space<vmem>>, vector<32x128xf32>
    %cst_121 = arith.constant dense<0.000000e+00> : vector<2x128xf32>
    %312 = tpu.matmul %270, %311, %cst_121 {dimension_numbers = #tpu.dot_dimension_numbers<[1], [0], [0], [1], [0, 0, 1, 1], [], []>} : vector<2x32xf32>, vector<32x128xf32>, vector<2x128xf32> -> vector<2x128xf32>
    %313 = arith.addf %310, %312 : vector<2x128xf32>
    %c0_122 = arith.constant 0 : index
    %c0_123 = arith.constant 0 : index
    %314 = vector.load %arg11[%c0_122, %c0_123] : memref<1x128xf32, #tpu.memory_space<vmem>>, vector<1x128xf32>
    %315 = vector.broadcast %314 : vector<1x128xf32> to vector<2x128xf32>
    %316 = arith.addf %313, %315 : vector<2x128xf32>
    %317 = vector.extract_strided_slice %316 {offsets = [0, 0], sizes = [2, 32], strides = [1, 1]} : vector<2x128xf32> to vector<2x32xf32>
    %318 = arith.negf %317 : vector<2x32xf32>
    %319 = math.exp %318 : vector<2x32xf32>
    %cst_124 = arith.constant 1.000000e+00 : f32
    %320 = vector.broadcast %cst_124 : f32 to vector<2x32xf32>
    %321 = arith.addf %320, %319 : vector<2x32xf32>
    %322 = arith.divf %320, %321 : vector<2x32xf32>
    %323 = vector.extract_strided_slice %316 {offsets = [0, 32], sizes = [2, 32], strides = [1, 1]} : vector<2x128xf32> to vector<2x32xf32>
    %324 = arith.negf %323 : vector<2x32xf32>
    %325 = math.exp %324 : vector<2x32xf32>
    %cst_125 = arith.constant 1.000000e+00 : f32
    %326 = vector.broadcast %cst_125 : f32 to vector<2x32xf32>
    %327 = arith.addf %326, %325 : vector<2x32xf32>
    %328 = arith.divf %326, %327 : vector<2x32xf32>
    %329 = vector.extract_strided_slice %316 {offsets = [0, 64], sizes = [2, 32], strides = [1, 1]} : vector<2x128xf32> to vector<2x32xf32>
    %330 = math.tanh %329 : vector<2x32xf32>
    %331 = vector.extract_strided_slice %316 {offsets = [0, 96], sizes = [2, 32], strides = [1, 1]} : vector<2x128xf32> to vector<2x32xf32>
    %332 = arith.negf %331 : vector<2x32xf32>
    %333 = math.exp %332 : vector<2x32xf32>
    %cst_126 = arith.constant 1.000000e+00 : f32
    %334 = vector.broadcast %cst_126 : f32 to vector<2x32xf32>
    %335 = arith.addf %334, %333 : vector<2x32xf32>
    %336 = arith.divf %334, %335 : vector<2x32xf32>
    %337 = arith.mulf %328, %275 : vector<2x32xf32>
    %338 = arith.mulf %322, %330 : vector<2x32xf32>
    %339 = arith.addf %337, %338 : vector<2x32xf32>
    %340 = math.tanh %339 : vector<2x32xf32>
    %341 = arith.mulf %336, %340 : vector<2x32xf32>
    %c0_127 = arith.constant 0 : index
    %c0_128 = arith.constant 0 : index
    %342 = vector.load %arg12[%c0_127, %c0_128] : memref<32x128xf32, #tpu.memory_space<vmem>>, vector<32x128xf32>
    %cst_129 = arith.constant dense<0.000000e+00> : vector<2x128xf32>
    %343 = tpu.matmul %341, %342, %cst_129 {dimension_numbers = #tpu.dot_dimension_numbers<[1], [0], [0], [1], [0, 0, 1, 1], [], []>} : vector<2x32xf32>, vector<32x128xf32>, vector<2x128xf32> -> vector<2x128xf32>
    %c0_130 = arith.constant 0 : index
    %c0_131 = arith.constant 0 : index
    %344 = vector.load %arg13[%c0_130, %c0_131] : memref<32x128xf32, #tpu.memory_space<vmem>>, vector<32x128xf32>
    %cst_132 = arith.constant dense<0.000000e+00> : vector<2x128xf32>
    %345 = tpu.matmul %305, %344, %cst_132 {dimension_numbers = #tpu.dot_dimension_numbers<[1], [0], [0], [1], [0, 0, 1, 1], [], []>} : vector<2x32xf32>, vector<32x128xf32>, vector<2x128xf32> -> vector<2x128xf32>
    %346 = arith.addf %343, %345 : vector<2x128xf32>
    %c0_133 = arith.constant 0 : index
    %c0_134 = arith.constant 0 : index
    %347 = vector.load %arg14[%c0_133, %c0_134] : memref<128x128xf32, #tpu.memory_space<vmem>>, vector<128x128xf32>
    %cst_135 = arith.constant dense<0.000000e+00> : vector<2x128xf32>
    %348 = tpu.matmul %287, %347, %cst_135 {dimension_numbers = #tpu.dot_dimension_numbers<[1], [0], [0], [1], [0, 0, 1, 1], [], []>} : vector<2x128xf32>, vector<128x128xf32>, vector<2x128xf32> -> vector<2x128xf32>
    %349 = arith.addf %346, %348 : vector<2x128xf32>
    %c0_136 = arith.constant 0 : index
    %c0_137 = arith.constant 0 : index
    %350 = vector.load %arg15[%c0_136, %c0_137] : memref<1x128xf32, #tpu.memory_space<vmem>>, vector<1x128xf32>
    %351 = vector.broadcast %350 : vector<1x128xf32> to vector<2x128xf32>
    %352 = arith.addf %349, %351 : vector<2x128xf32>
    %353 = arith.index_cast %c0_i32 : i32 to index
    %c0_138 = arith.constant 0 : index
    %c0_139 = arith.constant 0 : index
    %354 = vector.load %arg19[%353, %c0_138, %c0_139] : memref<7x2x128xf32, #tpu.memory_space<vmem>>, vector<1x2x128xf32>
    %355 = vector.shape_cast %354 : vector<1x2x128xf32> to vector<2x128xf32>
    %356 = vector.shape_cast %352 : vector<2x128xf32> to vector<1x2x128xf32>
    tpu.vector_store %arg19[%353, %c0_138, %c0_139], %356 {strides = array<i32>} : memref<7x2x128xf32, #tpu.memory_space<vmem>>, vector<1x2x128xf32>,
    %cst_140 = arith.constant -1.000000e+30 : f32
    %357 = vector.broadcast %cst_140 : f32 to vector<2x128xf32>
    %358 = arith.select %286, %352, %357 : vector<2x128xi1>, vector<2x128xf32>
    %cst_141 = arith.constant dense<0xFF800000> : vector<2xf32>
    %359 = vector.multi_reduction <maximumf>, %358, %cst_141 [1] : vector<2x128xf32> to vector<2xf32>
    %360 = vector.shape_cast %359 : vector<2xf32> to vector<2x1xf32>
    %361 = vector.broadcast %360 : vector<2x1xf32> to vector<2x128xf32>
    %362 = arith.cmpf oge, %358, %361 : vector<2x128xf32>
    %c128_i32 = arith.constant 128 : i32
    %363 = vector.broadcast %c128_i32 : i32 to vector<2x128xi32>
    %364 = arith.select %362, %284, %363 : vector<2x128xi1>, vector<2x128xi32>
    %cst_142 = arith.constant dense<2147483647> : vector<2xi32>
    %365 = vector.multi_reduction <minsi>, %364, %cst_142 [1] : vector<2x128xi32> to vector<2xi32>
    %366 = vector.shape_cast %365 : vector<2xi32> to vector<2x1xi32>
    %367 = vector.broadcast %366 : vector<2x1xi32> to vector<2x128xi32>
    %368 = arith.cmpi eq, %284, %367 : vector<2x128xi32>
    %369 = arith.extui %368 : vector<2x128xi1> to vector<2x128xi32>
    %370 = arith.sitofp %369 : vector<2x128xi32> to vector<2x128xf32>
    %371 = arith.index_cast %c0_i32 : i32 to index
    %372 = memref.load %arg18[%371] : memref<7xi32, #tpu.memory_space<smem>>
    %373 = arith.sitofp %372 : i32 to f32
    %374 = arith.index_cast %c0_i32 : i32 to index
    %c0_143 = arith.constant 0 : index
    %c0_144 = arith.constant 0 : index
    %375 = vector.load %arg17[%374, %c0_143, %c0_144] : memref<7x2x128xf32, #tpu.memory_space<vmem>>, vector<1x2x128xf32>
    %376 = vector.shape_cast %375 : vector<1x2x128xf32> to vector<2x128xf32>
    %377 = vector.broadcast %373 : f32 to vector<2x128xf32>
    %378 = arith.mulf %377, %376 : vector<2x128xf32>
    %cst_145 = arith.constant 1.000000e+00 : f32
    %379 = arith.subf %cst_145, %373 : f32
    %380 = vector.broadcast %379 : f32 to vector<2x128xf32>
    %381 = arith.mulf %380, %370 : vector<2x128xf32>
    %382 = arith.addf %378, %381 : vector<2x128xf32>
    %c1_i32 = arith.constant 1 : i32
    %383 = vector.shape_cast %341 : vector<2x32xf32> to vector<2x1x32xf32>
    %384 = vector.broadcast %383 : vector<2x1x32xf32> to vector<2x8x32xf32>
    %385 = arith.mulf %283, %384 : vector<2x8x32xf32>
    %cst_146 = arith.constant dense<0.000000e+00> : vector<2x8xf32>
    %386 = vector.multi_reduction <add>, %385, %cst_146 [2] : vector<2x8x32xf32> to vector<2x8xf32>
    %cst_147 = arith.constant dense<0xFF800000> : vector<2xf32>
    %387 = vector.multi_reduction <maximumf>, %386, %cst_147 [1] : vector<2x8xf32> to vector<2xf32>
    %388 = vector.shape_cast %387 : vector<2xf32> to vector<2x1xf32>
    %389 = vector.broadcast %388 : vector<2x1xf32> to vector<2x8xf32>
    %390 = arith.subf %386, %389 : vector<2x8xf32>
    %391 = math.exp %390 : vector<2x8xf32>
    %cst_148 = arith.constant dense<0.000000e+00> : vector<2xf32>
    %392 = vector.multi_reduction <add>, %391, %cst_148 [1] : vector<2x8xf32> to vector<2xf32>
    %393 = vector.shape_cast %392 : vector<2xf32> to vector<2x1xf32>
    %394 = tpu.reciprocal %393 {approx = true} : vector<2x1xf32> -> vector<2x1xf32>
    %395 = vector.broadcast %394 : vector<2x1xf32> to vector<2x8xf32>
    %396 = arith.mulf %391, %395 : vector<2x8xf32>
    %397 = vector.shape_cast %396 : vector<2x8xf32> to vector<2x8x1xf32>
    %398 = vector.broadcast %397 : vector<2x8x1xf32> to vector<2x8x32xf32>
    %399 = arith.mulf %398, %276 : vector<2x8x32xf32>
    %cst_149 = arith.constant dense<0.000000e+00> : vector<2x32xf32>
    %400 = vector.multi_reduction <add>, %399, %cst_149 [1] : vector<2x8x32xf32> to vector<2x32xf32>
    %c0_150 = arith.constant 0 : index
    %c0_151 = arith.constant 0 : index
    %401 = vector.load %arg8[%c0_150, %c0_151] : memref<128x128xf32, #tpu.memory_space<vmem>>, vector<128x128xf32>
    %cst_152 = arith.constant dense<0.000000e+00> : vector<2x128xf32>
    %402 = tpu.matmul %382, %401, %cst_152 {dimension_numbers = #tpu.dot_dimension_numbers<[1], [0], [0], [1], [0, 0, 1, 1], [], []>} : vector<2x128xf32>, vector<128x128xf32>, vector<2x128xf32> -> vector<2x128xf32>
    %c0_153 = arith.constant 0 : index
    %c0_154 = arith.constant 0 : index
    %403 = vector.load %arg9[%c0_153, %c0_154] : memref<32x128xf32, #tpu.memory_space<vmem>>, vector<32x128xf32>
    %cst_155 = arith.constant dense<0.000000e+00> : vector<2x128xf32>
    %404 = tpu.matmul %400, %403, %cst_155 {dimension_numbers = #tpu.dot_dimension_numbers<[1], [0], [0], [1], [0, 0, 1, 1], [], []>} : vector<2x32xf32>, vector<32x128xf32>, vector<2x128xf32> -> vector<2x128xf32>
    %405 = arith.addf %402, %404 : vector<2x128xf32>
    %c0_156 = arith.constant 0 : index
    %c0_157 = arith.constant 0 : index
    %406 = vector.load %arg10[%c0_156, %c0_157] : memref<32x128xf32, #tpu.memory_space<vmem>>, vector<32x128xf32>
    %cst_158 = arith.constant dense<0.000000e+00> : vector<2x128xf32>
    %407 = tpu.matmul %341, %406, %cst_158 {dimension_numbers = #tpu.dot_dimension_numbers<[1], [0], [0], [1], [0, 0, 1, 1], [], []>} : vector<2x32xf32>, vector<32x128xf32>, vector<2x128xf32> -> vector<2x128xf32>
    %408 = arith.addf %405, %407 : vector<2x128xf32>
    %c0_159 = arith.constant 0 : index
    %c0_160 = arith.constant 0 : index
    %409 = vector.load %arg11[%c0_159, %c0_160] : memref<1x128xf32, #tpu.memory_space<vmem>>, vector<1x128xf32>
    %410 = vector.broadcast %409 : vector<1x128xf32> to vector<2x128xf32>
    %411 = arith.addf %408, %410 : vector<2x128xf32>
    %412 = vector.extract_strided_slice %411 {offsets = [0, 0], sizes = [2, 32], strides = [1, 1]} : vector<2x128xf32> to vector<2x32xf32>
    %413 = arith.negf %412 : vector<2x32xf32>
    %414 = math.exp %413 : vector<2x32xf32>
    %cst_161 = arith.constant 1.000000e+00 : f32
    %415 = vector.broadcast %cst_161 : f32 to vector<2x32xf32>
    %416 = arith.addf %415, %414 : vector<2x32xf32>
    %417 = arith.divf %415, %416 : vector<2x32xf32>
    %418 = vector.extract_strided_slice %411 {offsets = [0, 32], sizes = [2, 32], strides = [1, 1]} : vector<2x128xf32> to vector<2x32xf32>
    %419 = arith.negf %418 : vector<2x32xf32>
    %420 = math.exp %419 : vector<2x32xf32>
    %cst_162 = arith.constant 1.000000e+00 : f32
    %421 = vector.broadcast %cst_162 : f32 to vector<2x32xf32>
    %422 = arith.addf %421, %420 : vector<2x32xf32>
    %423 = arith.divf %421, %422 : vector<2x32xf32>
    %424 = vector.extract_strided_slice %411 {offsets = [0, 64], sizes = [2, 32], strides = [1, 1]} : vector<2x128xf32> to vector<2x32xf32>
    %425 = math.tanh %424 : vector<2x32xf32>
    %426 = vector.extract_strided_slice %411 {offsets = [0, 96], sizes = [2, 32], strides = [1, 1]} : vector<2x128xf32> to vector<2x32xf32>
    %427 = arith.negf %426 : vector<2x32xf32>
    %428 = math.exp %427 : vector<2x32xf32>
    %cst_163 = arith.constant 1.000000e+00 : f32
    %429 = vector.broadcast %cst_163 : f32 to vector<2x32xf32>
    %430 = arith.addf %429, %428 : vector<2x32xf32>
    %431 = arith.divf %429, %430 : vector<2x32xf32>
    %432 = arith.mulf %423, %339 : vector<2x32xf32>
    %433 = arith.mulf %417, %425 : vector<2x32xf32>
    %434 = arith.addf %432, %433 : vector<2x32xf32>
    %435 = math.tanh %434 : vector<2x32xf32>
    %436 = arith.mulf %431, %435 : vector<2x32xf32>
    %c0_164 = arith.constant 0 : index
    %c0_165 = arith.constant 0 : index
    %437 = vector.load %arg12[%c0_164, %c0_165] : memref<32x128xf32, #tpu.memory_space<vmem>>, vector<32x128xf32>
    %cst_166 = arith.constant dense<0.000000e+00> : vector<2x128xf32>
    %438 = tpu.matmul %436, %437, %cst_166 {dimension_numbers = #tpu.dot_dimension_numbers<[1], [0], [0], [1], [0, 0, 1, 1], [], []>} : vector<2x32xf32>, vector<32x128xf32>, vector<2x128xf32> -> vector<2x128xf32>
    %c0_167 = arith.constant 0 : index
    %c0_168 = arith.constant 0 : index
    %439 = vector.load %arg13[%c0_167, %c0_168] : memref<32x128xf32, #tpu.memory_space<vmem>>, vector<32x128xf32>
    %cst_169 = arith.constant dense<0.000000e+00> : vector<2x128xf32>
    %440 = tpu.matmul %400, %439, %cst_169 {dimension_numbers = #tpu.dot_dimension_numbers<[1], [0], [0], [1], [0, 0, 1, 1], [], []>} : vector<2x32xf32>, vector<32x128xf32>, vector<2x128xf32> -> vector<2x128xf32>
    %441 = arith.addf %438, %440 : vector<2x128xf32>
    %c0_170 = arith.constant 0 : index
    %c0_171 = arith.constant 0 : index
    %442 = vector.load %arg14[%c0_170, %c0_171] : memref<128x128xf32, #tpu.memory_space<vmem>>, vector<128x128xf32>
    %cst_172 = arith.constant dense<0.000000e+00> : vector<2x128xf32>
    %443 = tpu.matmul %382, %442, %cst_172 {dimension_numbers = #tpu.dot_dimension_numbers<[1], [0], [0], [1], [0, 0, 1, 1], [], []>} : vector<2x128xf32>, vector<128x128xf32>, vector<2x128xf32> -> vector<2x128xf32>
    %444 = arith.addf %441, %443 : vector<2x128xf32>
    %c0_173 = arith.constant 0 : index
    %c0_174 = arith.constant 0 : index
    %445 = vector.load %arg15[%c0_173, %c0_174] : memref<1x128xf32, #tpu.memory_space<vmem>>, vector<1x128xf32>
    %446 = vector.broadcast %445 : vector<1x128xf32> to vector<2x128xf32>
    %447 = arith.addf %444, %446 : vector<2x128xf32>
    %448 = arith.index_cast %c1_i32 : i32 to index
    %c0_175 = arith.constant 0 : index
    %c0_176 = arith.constant 0 : index
    %449 = vector.load %arg19[%448, %c0_175, %c0_176] : memref<7x2x128xf32, #tpu.memory_space<vmem>>, vector<1x2x128xf32>
    %450 = vector.shape_cast %449 : vector<1x2x128xf32> to vector<2x128xf32>
    %451 = vector.shape_cast %447 : vector<2x128xf32> to vector<1x2x128xf32>
    tpu.vector_store %arg19[%448, %c0_175, %c0_176], %451 {strides = array<i32>} : memref<7x2x128xf32, #tpu.memory_space<vmem>>, vector<1x2x128xf32>,
    %cst_177 = arith.constant -1.000000e+30 : f32
    %452 = vector.broadcast %cst_177 : f32 to vector<2x128xf32>
    %453 = arith.select %286, %447, %452 : vector<2x128xi1>, vector<2x128xf32>
    %cst_178 = arith.constant dense<0xFF800000> : vector<2xf32>
    %454 = vector.multi_reduction <maximumf>, %453, %cst_178 [1] : vector<2x128xf32> to vector<2xf32>
    %455 = vector.shape_cast %454 : vector<2xf32> to vector<2x1xf32>
    %456 = vector.broadcast %455 : vector<2x1xf32> to vector<2x128xf32>
    %457 = arith.cmpf oge, %453, %456 : vector<2x128xf32>
    %c128_i32_179 = arith.constant 128 : i32
    %458 = vector.broadcast %c128_i32_179 : i32 to vector<2x128xi32>
    %459 = arith.select %457, %284, %458 : vector<2x128xi1>, vector<2x128xi32>
    %cst_180 = arith.constant dense<2147483647> : vector<2xi32>
    %460 = vector.multi_reduction <minsi>, %459, %cst_180 [1] : vector<2x128xi32> to vector<2xi32>
    %461 = vector.shape_cast %460 : vector<2xi32> to vector<2x1xi32>
    %462 = vector.broadcast %461 : vector<2x1xi32> to vector<2x128xi32>
    %463 = arith.cmpi eq, %284, %462 : vector<2x128xi32>
    %464 = arith.extui %463 : vector<2x128xi1> to vector<2x128xi32>
    %465 = arith.sitofp %464 : vector<2x128xi32> to vector<2x128xf32>
    %466 = arith.index_cast %c1_i32 : i32 to index
    %467 = memref.load %arg18[%466] : memref<7xi32, #tpu.memory_space<smem>>
    %468 = arith.sitofp %467 : i32 to f32
    %469 = arith.index_cast %c1_i32 : i32 to index
    %c0_181 = arith.constant 0 : index
    %c0_182 = arith.constant 0 : index
    %470 = vector.load %arg17[%469, %c0_181, %c0_182] : memref<7x2x128xf32, #tpu.memory_space<vmem>>, vector<1x2x128xf32>
    %471 = vector.shape_cast %470 : vector<1x2x128xf32> to vector<2x128xf32>
    %472 = vector.broadcast %468 : f32 to vector<2x128xf32>
    %473 = arith.mulf %472, %471 : vector<2x128xf32>
    %cst_183 = arith.constant 1.000000e+00 : f32
    %474 = arith.subf %cst_183, %468 : f32
    %475 = vector.broadcast %474 : f32 to vector<2x128xf32>
    %476 = arith.mulf %475, %465 : vector<2x128xf32>
    %477 = arith.addf %473, %476 : vector<2x128xf32>
    %c2_i32 = arith.constant 2 : i32
    %478 = vector.shape_cast %436 : vector<2x32xf32> to vector<2x1x32xf32>
    %479 = vector.broadcast %478 : vector<2x1x32xf32> to vector<2x8x32xf32>
    %480 = arith.mulf %283, %479 : vector<2x8x32xf32>
    %cst_184 = arith.constant dense<0.000000e+00> : vector<2x8xf32>
    %481 = vector.multi_reduction <add>, %480, %cst_184 [2] : vector<2x8x32xf32> to vector<2x8xf32>
    %cst_185 = arith.constant dense<0xFF800000> : vector<2xf32>
    %482 = vector.multi_reduction <maximumf>, %481, %cst_185 [1] : vector<2x8xf32> to vector<2xf32>
    %483 = vector.shape_cast %482 : vector<2xf32> to vector<2x1xf32>
    %484 = vector.broadcast %483 : vector<2x1xf32> to vector<2x8xf32>
    %485 = arith.subf %481, %484 : vector<2x8xf32>
    %486 = math.exp %485 : vector<2x8xf32>
    %cst_186 = arith.constant dense<0.000000e+00> : vector<2xf32>
    %487 = vector.multi_reduction <add>, %486, %cst_186 [1] : vector<2x8xf32> to vector<2xf32>
    %488 = vector.shape_cast %487 : vector<2xf32> to vector<2x1xf32>
    %489 = tpu.reciprocal %488 {approx = true} : vector<2x1xf32> -> vector<2x1xf32>
    %490 = vector.broadcast %489 : vector<2x1xf32> to vector<2x8xf32>
    %491 = arith.mulf %486, %490 : vector<2x8xf32>
    %492 = vector.shape_cast %491 : vector<2x8xf32> to vector<2x8x1xf32>
    %493 = vector.broadcast %492 : vector<2x8x1xf32> to vector<2x8x32xf32>
    %494 = arith.mulf %493, %276 : vector<2x8x32xf32>
    %cst_187 = arith.constant dense<0.000000e+00> : vector<2x32xf32>
    %495 = vector.multi_reduction <add>, %494, %cst_187 [1] : vector<2x8x32xf32> to vector<2x32xf32>
    %c0_188 = arith.constant 0 : index
    %c0_189 = arith.constant 0 : index
    %496 = vector.load %arg8[%c0_188, %c0_189] : memref<128x128xf32, #tpu.memory_space<vmem>>, vector<128x128xf32>
    %cst_190 = arith.constant dense<0.000000e+00> : vector<2x128xf32>
    %497 = tpu.matmul %477, %496, %cst_190 {dimension_numbers = #tpu.dot_dimension_numbers<[1], [0], [0], [1], [0, 0, 1, 1], [], []>} : vector<2x128xf32>, vector<128x128xf32>, vector<2x128xf32> -> vector<2x128xf32>
    %c0_191 = arith.constant 0 : index
    %c0_192 = arith.constant 0 : index
    %498 = vector.load %arg9[%c0_191, %c0_192] : memref<32x128xf32, #tpu.memory_space<vmem>>, vector<32x128xf32>
    %cst_193 = arith.constant dense<0.000000e+00> : vector<2x128xf32>
    %499 = tpu.matmul %495, %498, %cst_193 {dimension_numbers = #tpu.dot_dimension_numbers<[1], [0], [0], [1], [0, 0, 1, 1], [], []>} : vector<2x32xf32>, vector<32x128xf32>, vector<2x128xf32> -> vector<2x128xf32>
    %500 = arith.addf %497, %499 : vector<2x128xf32>
    %c0_194 = arith.constant 0 : index
    %c0_195 = arith.constant 0 : index
    %501 = vector.load %arg10[%c0_194, %c0_195] : memref<32x128xf32, #tpu.memory_space<vmem>>, vector<32x128xf32>
    %cst_196 = arith.constant dense<0.000000e+00> : vector<2x128xf32>
    %502 = tpu.matmul %436, %501, %cst_196 {dimension_numbers = #tpu.dot_dimension_numbers<[1], [0], [0], [1], [0, 0, 1, 1], [], []>} : vector<2x32xf32>, vector<32x128xf32>, vector<2x128xf32> -> vector<2x128xf32>
    %503 = arith.addf %500, %502 : vector<2x128xf32>
    %c0_197 = arith.constant 0 : index
    %c0_198 = arith.constant 0 : index
    %504 = vector.load %arg11[%c0_197, %c0_198] : memref<1x128xf32, #tpu.memory_space<vmem>>, vector<1x128xf32>
    %505 = vector.broadcast %504 : vector<1x128xf32> to vector<2x128xf32>
    %506 = arith.addf %503, %505 : vector<2x128xf32>
    %507 = vector.extract_strided_slice %506 {offsets = [0, 0], sizes = [2, 32], strides = [1, 1]} : vector<2x128xf32> to vector<2x32xf32>
    %508 = arith.negf %507 : vector<2x32xf32>
    %509 = math.exp %508 : vector<2x32xf32>
    %cst_199 = arith.constant 1.000000e+00 : f32
    %510 = vector.broadcast %cst_199 : f32 to vector<2x32xf32>
    %511 = arith.addf %510, %509 : vector<2x32xf32>
    %512 = arith.divf %510, %511 : vector<2x32xf32>
    %513 = vector.extract_strided_slice %506 {offsets = [0, 32], sizes = [2, 32], strides = [1, 1]} : vector<2x128xf32> to vector<2x32xf32>
    %514 = arith.negf %513 : vector<2x32xf32>
    %515 = math.exp %514 : vector<2x32xf32>
    %cst_200 = arith.constant 1.000000e+00 : f32
    %516 = vector.broadcast %cst_200 : f32 to vector<2x32xf32>
    %517 = arith.addf %516, %515 : vector<2x32xf32>
    %518 = arith.divf %516, %517 : vector<2x32xf32>
    %519 = vector.extract_strided_slice %506 {offsets = [0, 64], sizes = [2, 32], strides = [1, 1]} : vector<2x128xf32> to vector<2x32xf32>
    %520 = math.tanh %519 : vector<2x32xf32>
    %521 = vector.extract_strided_slice %506 {offsets = [0, 96], sizes = [2, 32], strides = [1, 1]} : vector<2x128xf32> to vector<2x32xf32>
    %522 = arith.negf %521 : vector<2x32xf32>
    %523 = math.exp %522 : vector<2x32xf32>
    %cst_201 = arith.constant 1.000000e+00 : f32
    %524 = vector.broadcast %cst_201 : f32 to vector<2x32xf32>
    %525 = arith.addf %524, %523 : vector<2x32xf32>
    %526 = arith.divf %524, %525 : vector<2x32xf32>
    %527 = arith.mulf %518, %434 : vector<2x32xf32>
    %528 = arith.mulf %512, %520 : vector<2x32xf32>
    %529 = arith.addf %527, %528 : vector<2x32xf32>
    %530 = math.tanh %529 : vector<2x32xf32>
    %531 = arith.mulf %526, %530 : vector<2x32xf32>
    %c0_202 = arith.constant 0 : index
    %c0_203 = arith.constant 0 : index
    %532 = vector.load %arg12[%c0_202, %c0_203] : memref<32x128xf32, #tpu.memory_space<vmem>>, vector<32x128xf32>
    %cst_204 = arith.constant dense<0.000000e+00> : vector<2x128xf32>
    %533 = tpu.matmul %531, %532, %cst_204 {dimension_numbers = #tpu.dot_dimension_numbers<[1], [0], [0], [1], [0, 0, 1, 1], [], []>} : vector<2x32xf32>, vector<32x128xf32>, vector<2x128xf32> -> vector<2x128xf32>
    %c0_205 = arith.constant 0 : index
    %c0_206 = arith.constant 0 : index
    %534 = vector.load %arg13[%c0_205, %c0_206] : memref<32x128xf32, #tpu.memory_space<vmem>>, vector<32x128xf32>
    %cst_207 = arith.constant dense<0.000000e+00> : vector<2x128xf32>
    %535 = tpu.matmul %495, %534, %cst_207 {dimension_numbers = #tpu.dot_dimension_numbers<[1], [0], [0], [1], [0, 0, 1, 1], [], []>} : vector<2x32xf32>, vector<32x128xf32>, vector<2x128xf32> -> vector<2x128xf32>
    %536 = arith.addf %533, %535 : vector<2x128xf32>
    %c0_208 = arith.constant 0 : index
    %c0_209 = arith.constant 0 : index
    %537 = vector.load %arg14[%c0_208, %c0_209] : memref<128x128xf32, #tpu.memory_space<vmem>>, vector<128x128xf32>
    %cst_210 = arith.constant dense<0.000000e+00> : vector<2x128xf32>
    %538 = tpu.matmul %477, %537, %cst_210 {dimension_numbers = #tpu.dot_dimension_numbers<[1], [0], [0], [1], [0, 0, 1, 1], [], []>} : vector<2x128xf32>, vector<128x128xf32>, vector<2x128xf32> -> vector<2x128xf32>
    %539 = arith.addf %536, %538 : vector<2x128xf32>
    %c0_211 = arith.constant 0 : index
    %c0_212 = arith.constant 0 : index
    %540 = vector.load %arg15[%c0_211, %c0_212] : memref<1x128xf32, #tpu.memory_space<vmem>>, vector<1x128xf32>
    %541 = vector.broadcast %540 : vector<1x128xf32> to vector<2x128xf32>
    %542 = arith.addf %539, %541 : vector<2x128xf32>
    %543 = arith.index_cast %c2_i32 : i32 to index
    %c0_213 = arith.constant 0 : index
    %c0_214 = arith.constant 0 : index
    %544 = vector.load %arg19[%543, %c0_213, %c0_214] : memref<7x2x128xf32, #tpu.memory_space<vmem>>, vector<1x2x128xf32>
    %545 = vector.shape_cast %544 : vector<1x2x128xf32> to vector<2x128xf32>
    %546 = vector.shape_cast %542 : vector<2x128xf32> to vector<1x2x128xf32>
    tpu.vector_store %arg19[%543, %c0_213, %c0_214], %546 {strides = array<i32>} : memref<7x2x128xf32, #tpu.memory_space<vmem>>, vector<1x2x128xf32>,
    %cst_215 = arith.constant -1.000000e+30 : f32
    %547 = vector.broadcast %cst_215 : f32 to vector<2x128xf32>
    %548 = arith.select %286, %542, %547 : vector<2x128xi1>, vector<2x128xf32>
    %cst_216 = arith.constant dense<0xFF800000> : vector<2xf32>
    %549 = vector.multi_reduction <maximumf>, %548, %cst_216 [1] : vector<2x128xf32> to vector<2xf32>
    %550 = vector.shape_cast %549 : vector<2xf32> to vector<2x1xf32>
    %551 = vector.broadcast %550 : vector<2x1xf32> to vector<2x128xf32>
    %552 = arith.cmpf oge, %548, %551 : vector<2x128xf32>
    %c128_i32_217 = arith.constant 128 : i32
    %553 = vector.broadcast %c128_i32_217 : i32 to vector<2x128xi32>
    %554 = arith.select %552, %284, %553 : vector<2x128xi1>, vector<2x128xi32>
    %cst_218 = arith.constant dense<2147483647> : vector<2xi32>
    %555 = vector.multi_reduction <minsi>, %554, %cst_218 [1] : vector<2x128xi32> to vector<2xi32>
    %556 = vector.shape_cast %555 : vector<2xi32> to vector<2x1xi32>
    %557 = vector.broadcast %556 : vector<2x1xi32> to vector<2x128xi32>
    %558 = arith.cmpi eq, %284, %557 : vector<2x128xi32>
    %559 = arith.extui %558 : vector<2x128xi1> to vector<2x128xi32>
    %560 = arith.sitofp %559 : vector<2x128xi32> to vector<2x128xf32>
    %561 = arith.index_cast %c2_i32 : i32 to index
    %562 = memref.load %arg18[%561] : memref<7xi32, #tpu.memory_space<smem>>
    %563 = arith.sitofp %562 : i32 to f32
    %564 = arith.index_cast %c2_i32 : i32 to index
    %c0_219 = arith.constant 0 : index
    %c0_220 = arith.constant 0 : index
    %565 = vector.load %arg17[%564, %c0_219, %c0_220] : memref<7x2x128xf32, #tpu.memory_space<vmem>>, vector<1x2x128xf32>
    %566 = vector.shape_cast %565 : vector<1x2x128xf32> to vector<2x128xf32>
    %567 = vector.broadcast %563 : f32 to vector<2x128xf32>
    %568 = arith.mulf %567, %566 : vector<2x128xf32>
    %cst_221 = arith.constant 1.000000e+00 : f32
    %569 = arith.subf %cst_221, %563 : f32
    %570 = vector.broadcast %569 : f32 to vector<2x128xf32>
    %571 = arith.mulf %570, %560 : vector<2x128xf32>
    %572 = arith.addf %568, %571 : vector<2x128xf32>
    %c3_i32 = arith.constant 3 : i32
    %573 = vector.shape_cast %531 : vector<2x32xf32> to vector<2x1x32xf32>
    %574 = vector.broadcast %573 : vector<2x1x32xf32> to vector<2x8x32xf32>
    %575 = arith.mulf %283, %574 : vector<2x8x32xf32>
    %cst_222 = arith.constant dense<0.000000e+00> : vector<2x8xf32>
    %576 = vector.multi_reduction <add>, %575, %cst_222 [2] : vector<2x8x32xf32> to vector<2x8xf32>
    %cst_223 = arith.constant dense<0xFF800000> : vector<2xf32>
    %577 = vector.multi_reduction <maximumf>, %576, %cst_223 [1] : vector<2x8xf32> to vector<2xf32>
    %578 = vector.shape_cast %577 : vector<2xf32> to vector<2x1xf32>
    %579 = vector.broadcast %578 : vector<2x1xf32> to vector<2x8xf32>
    %580 = arith.subf %576, %579 : vector<2x8xf32>
    %581 = math.exp %580 : vector<2x8xf32>
    %cst_224 = arith.constant dense<0.000000e+00> : vector<2xf32>
    %582 = vector.multi_reduction <add>, %581, %cst_224 [1] : vector<2x8xf32> to vector<2xf32>
    %583 = vector.shape_cast %582 : vector<2xf32> to vector<2x1xf32>
    %584 = tpu.reciprocal %583 {approx = true} : vector<2x1xf32> -> vector<2x1xf32>
    %585 = vector.broadcast %584 : vector<2x1xf32> to vector<2x8xf32>
    %586 = arith.mulf %581, %585 : vector<2x8xf32>
    %587 = vector.shape_cast %586 : vector<2x8xf32> to vector<2x8x1xf32>
    %588 = vector.broadcast %587 : vector<2x8x1xf32> to vector<2x8x32xf32>
    %589 = arith.mulf %588, %276 : vector<2x8x32xf32>
    %cst_225 = arith.constant dense<0.000000e+00> : vector<2x32xf32>
    %590 = vector.multi_reduction <add>, %589, %cst_225 [1] : vector<2x8x32xf32> to vector<2x32xf32>
    %c0_226 = arith.constant 0 : index
    %c0_227 = arith.constant 0 : index
    %591 = vector.load %arg8[%c0_226, %c0_227] : memref<128x128xf32, #tpu.memory_space<vmem>>, vector<128x128xf32>
    %cst_228 = arith.constant dense<0.000000e+00> : vector<2x128xf32>
    %592 = tpu.matmul %572, %591, %cst_228 {dimension_numbers = #tpu.dot_dimension_numbers<[1], [0], [0], [1], [0, 0, 1, 1], [], []>} : vector<2x128xf32>, vector<128x128xf32>, vector<2x128xf32> -> vector<2x128xf32>
    %c0_229 = arith.constant 0 : index
    %c0_230 = arith.constant 0 : index
    %593 = vector.load %arg9[%c0_229, %c0_230] : memref<32x128xf32, #tpu.memory_space<vmem>>, vector<32x128xf32>
    %cst_231 = arith.constant dense<0.000000e+00> : vector<2x128xf32>
    %594 = tpu.matmul %590, %593, %cst_231 {dimension_numbers = #tpu.dot_dimension_numbers<[1], [0], [0], [1], [0, 0, 1, 1], [], []>} : vector<2x32xf32>, vector<32x128xf32>, vector<2x128xf32> -> vector<2x128xf32>
    %595 = arith.addf %592, %594 : vector<2x128xf32>
    %c0_232 = arith.constant 0 : index
    %c0_233 = arith.constant 0 : index
    %596 = vector.load %arg10[%c0_232, %c0_233] : memref<32x128xf32, #tpu.memory_space<vmem>>, vector<32x128xf32>
    %cst_234 = arith.constant dense<0.000000e+00> : vector<2x128xf32>
    %597 = tpu.matmul %531, %596, %cst_234 {dimension_numbers = #tpu.dot_dimension_numbers<[1], [0], [0], [1], [0, 0, 1, 1], [], []>} : vector<2x32xf32>, vector<32x128xf32>, vector<2x128xf32> -> vector<2x128xf32>
    %598 = arith.addf %595, %597 : vector<2x128xf32>
    %c0_235 = arith.constant 0 : index
    %c0_236 = arith.constant 0 : index
    %599 = vector.load %arg11[%c0_235, %c0_236] : memref<1x128xf32, #tpu.memory_space<vmem>>, vector<1x128xf32>
    %600 = vector.broadcast %599 : vector<1x128xf32> to vector<2x128xf32>
    %601 = arith.addf %598, %600 : vector<2x128xf32>
    %602 = vector.extract_strided_slice %601 {offsets = [0, 0], sizes = [2, 32], strides = [1, 1]} : vector<2x128xf32> to vector<2x32xf32>
    %603 = arith.negf %602 : vector<2x32xf32>
    %604 = math.exp %603 : vector<2x32xf32>
    %cst_237 = arith.constant 1.000000e+00 : f32
    %605 = vector.broadcast %cst_237 : f32 to vector<2x32xf32>
    %606 = arith.addf %605, %604 : vector<2x32xf32>
    %607 = arith.divf %605, %606 : vector<2x32xf32>
    %608 = vector.extract_strided_slice %601 {offsets = [0, 32], sizes = [2, 32], strides = [1, 1]} : vector<2x128xf32> to vector<2x32xf32>
    %609 = arith.negf %608 : vector<2x32xf32>
    %610 = math.exp %609 : vector<2x32xf32>
    %cst_238 = arith.constant 1.000000e+00 : f32
    %611 = vector.broadcast %cst_238 : f32 to vector<2x32xf32>
    %612 = arith.addf %611, %610 : vector<2x32xf32>
    %613 = arith.divf %611, %612 : vector<2x32xf32>
    %614 = vector.extract_strided_slice %601 {offsets = [0, 64], sizes = [2, 32], strides = [1, 1]} : vector<2x128xf32> to vector<2x32xf32>
    %615 = math.tanh %614 : vector<2x32xf32>
    %616 = vector.extract_strided_slice %601 {offsets = [0, 96], sizes = [2, 32], strides = [1, 1]} : vector<2x128xf32> to vector<2x32xf32>
    %617 = arith.negf %616 : vector<2x32xf32>
    %618 = math.exp %617 : vector<2x32xf32>
    %cst_239 = arith.constant 1.000000e+00 : f32
    %619 = vector.broadcast %cst_239 : f32 to vector<2x32xf32>
    %620 = arith.addf %619, %618 : vector<2x32xf32>
    %621 = arith.divf %619, %620 : vector<2x32xf32>
    %622 = arith.mulf %613, %529 : vector<2x32xf32>
    %623 = arith.mulf %607, %615 : vector<2x32xf32>
    %624 = arith.addf %622, %623 : vector<2x32xf32>
    %625 = math.tanh %624 : vector<2x32xf32>
    %626 = arith.mulf %621, %625 : vector<2x32xf32>
    %c0_240 = arith.constant 0 : index
    %c0_241 = arith.constant 0 : index
    %627 = vector.load %arg12[%c0_240, %c0_241] : memref<32x128xf32, #tpu.memory_space<vmem>>, vector<32x128xf32>
    %cst_242 = arith.constant dense<0.000000e+00> : vector<2x128xf32>
    %628 = tpu.matmul %626, %627, %cst_242 {dimension_numbers = #tpu.dot_dimension_numbers<[1], [0], [0], [1], [0, 0, 1, 1], [], []>} : vector<2x32xf32>, vector<32x128xf32>, vector<2x128xf32> -> vector<2x128xf32>
    %c0_243 = arith.constant 0 : index
    %c0_244 = arith.constant 0 : index
    %629 = vector.load %arg13[%c0_243, %c0_244] : memref<32x128xf32, #tpu.memory_space<vmem>>, vector<32x128xf32>
    %cst_245 = arith.constant dense<0.000000e+00> : vector<2x128xf32>
    %630 = tpu.matmul %590, %629, %cst_245 {dimension_numbers = #tpu.dot_dimension_numbers<[1], [0], [0], [1], [0, 0, 1, 1], [], []>} : vector<2x32xf32>, vector<32x128xf32>, vector<2x128xf32> -> vector<2x128xf32>
    %631 = arith.addf %628, %630 : vector<2x128xf32>
    %c0_246 = arith.constant 0 : index
    %c0_247 = arith.constant 0 : index
    %632 = vector.load %arg14[%c0_246, %c0_247] : memref<128x128xf32, #tpu.memory_space<vmem>>, vector<128x128xf32>
    %cst_248 = arith.constant dense<0.000000e+00> : vector<2x128xf32>
    %633 = tpu.matmul %572, %632, %cst_248 {dimension_numbers = #tpu.dot_dimension_numbers<[1], [0], [0], [1], [0, 0, 1, 1], [], []>} : vector<2x128xf32>, vector<128x128xf32>, vector<2x128xf32> -> vector<2x128xf32>
    %634 = arith.addf %631, %633 : vector<2x128xf32>
    %c0_249 = arith.constant 0 : index
    %c0_250 = arith.constant 0 : index
    %635 = vector.load %arg15[%c0_249, %c0_250] : memref<1x128xf32, #tpu.memory_space<vmem>>, vector<1x128xf32>
    %636 = vector.broadcast %635 : vector<1x128xf32> to vector<2x128xf32>
    %637 = arith.addf %634, %636 : vector<2x128xf32>
    %638 = arith.index_cast %c3_i32 : i32 to index
    %c0_251 = arith.constant 0 : index
    %c0_252 = arith.constant 0 : index
    %639 = vector.load %arg19[%638, %c0_251, %c0_252] : memref<7x2x128xf32, #tpu.memory_space<vmem>>, vector<1x2x128xf32>
    %640 = vector.shape_cast %639 : vector<1x2x128xf32> to vector<2x128xf32>
    %641 = vector.shape_cast %637 : vector<2x128xf32> to vector<1x2x128xf32>
    tpu.vector_store %arg19[%638, %c0_251, %c0_252], %641 {strides = array<i32>} : memref<7x2x128xf32, #tpu.memory_space<vmem>>, vector<1x2x128xf32>,
    %cst_253 = arith.constant -1.000000e+30 : f32
    %642 = vector.broadcast %cst_253 : f32 to vector<2x128xf32>
    %643 = arith.select %286, %637, %642 : vector<2x128xi1>, vector<2x128xf32>
    %cst_254 = arith.constant dense<0xFF800000> : vector<2xf32>
    %644 = vector.multi_reduction <maximumf>, %643, %cst_254 [1] : vector<2x128xf32> to vector<2xf32>
    %645 = vector.shape_cast %644 : vector<2xf32> to vector<2x1xf32>
    %646 = vector.broadcast %645 : vector<2x1xf32> to vector<2x128xf32>
    %647 = arith.cmpf oge, %643, %646 : vector<2x128xf32>
    %c128_i32_255 = arith.constant 128 : i32
    %648 = vector.broadcast %c128_i32_255 : i32 to vector<2x128xi32>
    %649 = arith.select %647, %284, %648 : vector<2x128xi1>, vector<2x128xi32>
    %cst_256 = arith.constant dense<2147483647> : vector<2xi32>
    %650 = vector.multi_reduction <minsi>, %649, %cst_256 [1] : vector<2x128xi32> to vector<2xi32>
    %651 = vector.shape_cast %650 : vector<2xi32> to vector<2x1xi32>
    %652 = vector.broadcast %651 : vector<2x1xi32> to vector<2x128xi32>
    %653 = arith.cmpi eq, %284, %652 : vector<2x128xi32>
    %654 = arith.extui %653 : vector<2x128xi1> to vector<2x128xi32>
    %655 = arith.sitofp %654 : vector<2x128xi32> to vector<2x128xf32>
    %656 = arith.index_cast %c3_i32 : i32 to index
    %657 = memref.load %arg18[%656] : memref<7xi32, #tpu.memory_space<smem>>
    %658 = arith.sitofp %657 : i32 to f32
    %659 = arith.index_cast %c3_i32 : i32 to index
    %c0_257 = arith.constant 0 : index
    %c0_258 = arith.constant 0 : index
    %660 = vector.load %arg17[%659, %c0_257, %c0_258] : memref<7x2x128xf32, #tpu.memory_space<vmem>>, vector<1x2x128xf32>
    %661 = vector.shape_cast %660 : vector<1x2x128xf32> to vector<2x128xf32>
    %662 = vector.broadcast %658 : f32 to vector<2x128xf32>
    %663 = arith.mulf %662, %661 : vector<2x128xf32>
    %cst_259 = arith.constant 1.000000e+00 : f32
    %664 = arith.subf %cst_259, %658 : f32
    %665 = vector.broadcast %664 : f32 to vector<2x128xf32>
    %666 = arith.mulf %665, %655 : vector<2x128xf32>
    %667 = arith.addf %663, %666 : vector<2x128xf32>
    %c4_i32 = arith.constant 4 : i32
    %668 = vector.shape_cast %626 : vector<2x32xf32> to vector<2x1x32xf32>
    %669 = vector.broadcast %668 : vector<2x1x32xf32> to vector<2x8x32xf32>
    %670 = arith.mulf %283, %669 : vector<2x8x32xf32>
    %cst_260 = arith.constant dense<0.000000e+00> : vector<2x8xf32>
    %671 = vector.multi_reduction <add>, %670, %cst_260 [2] : vector<2x8x32xf32> to vector<2x8xf32>
    %cst_261 = arith.constant dense<0xFF800000> : vector<2xf32>
    %672 = vector.multi_reduction <maximumf>, %671, %cst_261 [1] : vector<2x8xf32> to vector<2xf32>
    %673 = vector.shape_cast %672 : vector<2xf32> to vector<2x1xf32>
    %674 = vector.broadcast %673 : vector<2x1xf32> to vector<2x8xf32>
    %675 = arith.subf %671, %674 : vector<2x8xf32>
    %676 = math.exp %675 : vector<2x8xf32>
    %cst_262 = arith.constant dense<0.000000e+00> : vector<2xf32>
    %677 = vector.multi_reduction <add>, %676, %cst_262 [1] : vector<2x8xf32> to vector<2xf32>
    %678 = vector.shape_cast %677 : vector<2xf32> to vector<2x1xf32>
    %679 = tpu.reciprocal %678 {approx = true} : vector<2x1xf32> -> vector<2x1xf32>
    %680 = vector.broadcast %679 : vector<2x1xf32> to vector<2x8xf32>
    %681 = arith.mulf %676, %680 : vector<2x8xf32>
    %682 = vector.shape_cast %681 : vector<2x8xf32> to vector<2x8x1xf32>
    %683 = vector.broadcast %682 : vector<2x8x1xf32> to vector<2x8x32xf32>
    %684 = arith.mulf %683, %276 : vector<2x8x32xf32>
    %cst_263 = arith.constant dense<0.000000e+00> : vector<2x32xf32>
    %685 = vector.multi_reduction <add>, %684, %cst_263 [1] : vector<2x8x32xf32> to vector<2x32xf32>
    %c0_264 = arith.constant 0 : index
    %c0_265 = arith.constant 0 : index
    %686 = vector.load %arg8[%c0_264, %c0_265] : memref<128x128xf32, #tpu.memory_space<vmem>>, vector<128x128xf32>
    %cst_266 = arith.constant dense<0.000000e+00> : vector<2x128xf32>
    %687 = tpu.matmul %667, %686, %cst_266 {dimension_numbers = #tpu.dot_dimension_numbers<[1], [0], [0], [1], [0, 0, 1, 1], [], []>} : vector<2x128xf32>, vector<128x128xf32>, vector<2x128xf32> -> vector<2x128xf32>
    %c0_267 = arith.constant 0 : index
    %c0_268 = arith.constant 0 : index
    %688 = vector.load %arg9[%c0_267, %c0_268] : memref<32x128xf32, #tpu.memory_space<vmem>>, vector<32x128xf32>
    %cst_269 = arith.constant dense<0.000000e+00> : vector<2x128xf32>
    %689 = tpu.matmul %685, %688, %cst_269 {dimension_numbers = #tpu.dot_dimension_numbers<[1], [0], [0], [1], [0, 0, 1, 1], [], []>} : vector<2x32xf32>, vector<32x128xf32>, vector<2x128xf32> -> vector<2x128xf32>
    %690 = arith.addf %687, %689 : vector<2x128xf32>
    %c0_270 = arith.constant 0 : index
    %c0_271 = arith.constant 0 : index
    %691 = vector.load %arg10[%c0_270, %c0_271] : memref<32x128xf32, #tpu.memory_space<vmem>>, vector<32x128xf32>
    %cst_272 = arith.constant dense<0.000000e+00> : vector<2x128xf32>
    %692 = tpu.matmul %626, %691, %cst_272 {dimension_numbers = #tpu.dot_dimension_numbers<[1], [0], [0], [1], [0, 0, 1, 1], [], []>} : vector<2x32xf32>, vector<32x128xf32>, vector<2x128xf32> -> vector<2x128xf32>
    %693 = arith.addf %690, %692 : vector<2x128xf32>
    %c0_273 = arith.constant 0 : index
    %c0_274 = arith.constant 0 : index
    %694 = vector.load %arg11[%c0_273, %c0_274] : memref<1x128xf32, #tpu.memory_space<vmem>>, vector<1x128xf32>
    %695 = vector.broadcast %694 : vector<1x128xf32> to vector<2x128xf32>
    %696 = arith.addf %693, %695 : vector<2x128xf32>
    %697 = vector.extract_strided_slice %696 {offsets = [0, 0], sizes = [2, 32], strides = [1, 1]} : vector<2x128xf32> to vector<2x32xf32>
    %698 = arith.negf %697 : vector<2x32xf32>
    %699 = math.exp %698 : vector<2x32xf32>
    %cst_275 = arith.constant 1.000000e+00 : f32
    %700 = vector.broadcast %cst_275 : f32 to vector<2x32xf32>
    %701 = arith.addf %700, %699 : vector<2x32xf32>
    %702 = arith.divf %700, %701 : vector<2x32xf32>
    %703 = vector.extract_strided_slice %696 {offsets = [0, 32], sizes = [2, 32], strides = [1, 1]} : vector<2x128xf32> to vector<2x32xf32>
    %704 = arith.negf %703 : vector<2x32xf32>
    %705 = math.exp %704 : vector<2x32xf32>
    %cst_276 = arith.constant 1.000000e+00 : f32
    %706 = vector.broadcast %cst_276 : f32 to vector<2x32xf32>
    %707 = arith.addf %706, %705 : vector<2x32xf32>
    %708 = arith.divf %706, %707 : vector<2x32xf32>
    %709 = vector.extract_strided_slice %696 {offsets = [0, 64], sizes = [2, 32], strides = [1, 1]} : vector<2x128xf32> to vector<2x32xf32>
    %710 = math.tanh %709 : vector<2x32xf32>
    %711 = vector.extract_strided_slice %696 {offsets = [0, 96], sizes = [2, 32], strides = [1, 1]} : vector<2x128xf32> to vector<2x32xf32>
    %712 = arith.negf %711 : vector<2x32xf32>
    %713 = math.exp %712 : vector<2x32xf32>
    %cst_277 = arith.constant 1.000000e+00 : f32
    %714 = vector.broadcast %cst_277 : f32 to vector<2x32xf32>
    %715 = arith.addf %714, %713 : vector<2x32xf32>
    %716 = arith.divf %714, %715 : vector<2x32xf32>
    %717 = arith.mulf %708, %624 : vector<2x32xf32>
    %718 = arith.mulf %702, %710 : vector<2x32xf32>
    %719 = arith.addf %717, %718 : vector<2x32xf32>
    %720 = math.tanh %719 : vector<2x32xf32>
    %721 = arith.mulf %716, %720 : vector<2x32xf32>
    %c0_278 = arith.constant 0 : index
    %c0_279 = arith.constant 0 : index
    %722 = vector.load %arg12[%c0_278, %c0_279] : memref<32x128xf32, #tpu.memory_space<vmem>>, vector<32x128xf32>
    %cst_280 = arith.constant dense<0.000000e+00> : vector<2x128xf32>
    %723 = tpu.matmul %721, %722, %cst_280 {dimension_numbers = #tpu.dot_dimension_numbers<[1], [0], [0], [1], [0, 0, 1, 1], [], []>} : vector<2x32xf32>, vector<32x128xf32>, vector<2x128xf32> -> vector<2x128xf32>
    %c0_281 = arith.constant 0 : index
    %c0_282 = arith.constant 0 : index
    %724 = vector.load %arg13[%c0_281, %c0_282] : memref<32x128xf32, #tpu.memory_space<vmem>>, vector<32x128xf32>
    %cst_283 = arith.constant dense<0.000000e+00> : vector<2x128xf32>
    %725 = tpu.matmul %685, %724, %cst_283 {dimension_numbers = #tpu.dot_dimension_numbers<[1], [0], [0], [1], [0, 0, 1, 1], [], []>} : vector<2x32xf32>, vector<32x128xf32>, vector<2x128xf32> -> vector<2x128xf32>
    %726 = arith.addf %723, %725 : vector<2x128xf32>
    %c0_284 = arith.constant 0 : index
    %c0_285 = arith.constant 0 : index
    %727 = vector.load %arg14[%c0_284, %c0_285] : memref<128x128xf32, #tpu.memory_space<vmem>>, vector<128x128xf32>
    %cst_286 = arith.constant dense<0.000000e+00> : vector<2x128xf32>
    %728 = tpu.matmul %667, %727, %cst_286 {dimension_numbers = #tpu.dot_dimension_numbers<[1], [0], [0], [1], [0, 0, 1, 1], [], []>} : vector<2x128xf32>, vector<128x128xf32>, vector<2x128xf32> -> vector<2x128xf32>
    %729 = arith.addf %726, %728 : vector<2x128xf32>
    %c0_287 = arith.constant 0 : index
    %c0_288 = arith.constant 0 : index
    %730 = vector.load %arg15[%c0_287, %c0_288] : memref<1x128xf32, #tpu.memory_space<vmem>>, vector<1x128xf32>
    %731 = vector.broadcast %730 : vector<1x128xf32> to vector<2x128xf32>
    %732 = arith.addf %729, %731 : vector<2x128xf32>
    %733 = arith.index_cast %c4_i32 : i32 to index
    %c0_289 = arith.constant 0 : index
    %c0_290 = arith.constant 0 : index
    %734 = vector.load %arg19[%733, %c0_289, %c0_290] : memref<7x2x128xf32, #tpu.memory_space<vmem>>, vector<1x2x128xf32>
    %735 = vector.shape_cast %734 : vector<1x2x128xf32> to vector<2x128xf32>
    %736 = vector.shape_cast %732 : vector<2x128xf32> to vector<1x2x128xf32>
    tpu.vector_store %arg19[%733, %c0_289, %c0_290], %736 {strides = array<i32>} : memref<7x2x128xf32, #tpu.memory_space<vmem>>, vector<1x2x128xf32>,
    %cst_291 = arith.constant -1.000000e+30 : f32
    %737 = vector.broadcast %cst_291 : f32 to vector<2x128xf32>
    %738 = arith.select %286, %732, %737 : vector<2x128xi1>, vector<2x128xf32>
    %cst_292 = arith.constant dense<0xFF800000> : vector<2xf32>
    %739 = vector.multi_reduction <maximumf>, %738, %cst_292 [1] : vector<2x128xf32> to vector<2xf32>
    %740 = vector.shape_cast %739 : vector<2xf32> to vector<2x1xf32>
    %741 = vector.broadcast %740 : vector<2x1xf32> to vector<2x128xf32>
    %742 = arith.cmpf oge, %738, %741 : vector<2x128xf32>
    %c128_i32_293 = arith.constant 128 : i32
    %743 = vector.broadcast %c128_i32_293 : i32 to vector<2x128xi32>
    %744 = arith.select %742, %284, %743 : vector<2x128xi1>, vector<2x128xi32>
    %cst_294 = arith.constant dense<2147483647> : vector<2xi32>
    %745 = vector.multi_reduction <minsi>, %744, %cst_294 [1] : vector<2x128xi32> to vector<2xi32>
    %746 = vector.shape_cast %745 : vector<2xi32> to vector<2x1xi32>
    %747 = vector.broadcast %746 : vector<2x1xi32> to vector<2x128xi32>
    %748 = arith.cmpi eq, %284, %747 : vector<2x128xi32>
    %749 = arith.extui %748 : vector<2x128xi1> to vector<2x128xi32>
    %750 = arith.sitofp %749 : vector<2x128xi32> to vector<2x128xf32>
    %751 = arith.index_cast %c4_i32 : i32 to index
    %752 = memref.load %arg18[%751] : memref<7xi32, #tpu.memory_space<smem>>
    %753 = arith.sitofp %752 : i32 to f32
    %754 = arith.index_cast %c4_i32 : i32 to index
    %c0_295 = arith.constant 0 : index
    %c0_296 = arith.constant 0 : index
    %755 = vector.load %arg17[%754, %c0_295, %c0_296] : memref<7x2x128xf32, #tpu.memory_space<vmem>>, vector<1x2x128xf32>
    %756 = vector.shape_cast %755 : vector<1x2x128xf32> to vector<2x128xf32>
    %757 = vector.broadcast %753 : f32 to vector<2x128xf32>
    %758 = arith.mulf %757, %756 : vector<2x128xf32>
    %cst_297 = arith.constant 1.000000e+00 : f32
    %759 = arith.subf %cst_297, %753 : f32
    %760 = vector.broadcast %759 : f32 to vector<2x128xf32>
    %761 = arith.mulf %760, %750 : vector<2x128xf32>
    %762 = arith.addf %758, %761 : vector<2x128xf32>
    %c5_i32 = arith.constant 5 : i32
    %763 = vector.shape_cast %721 : vector<2x32xf32> to vector<2x1x32xf32>
    %764 = vector.broadcast %763 : vector<2x1x32xf32> to vector<2x8x32xf32>
    %765 = arith.mulf %283, %764 : vector<2x8x32xf32>
    %cst_298 = arith.constant dense<0.000000e+00> : vector<2x8xf32>
    %766 = vector.multi_reduction <add>, %765, %cst_298 [2] : vector<2x8x32xf32> to vector<2x8xf32>
    %cst_299 = arith.constant dense<0xFF800000> : vector<2xf32>
    %767 = vector.multi_reduction <maximumf>, %766, %cst_299 [1] : vector<2x8xf32> to vector<2xf32>
    %768 = vector.shape_cast %767 : vector<2xf32> to vector<2x1xf32>
    %769 = vector.broadcast %768 : vector<2x1xf32> to vector<2x8xf32>
    %770 = arith.subf %766, %769 : vector<2x8xf32>
    %771 = math.exp %770 : vector<2x8xf32>
    %cst_300 = arith.constant dense<0.000000e+00> : vector<2xf32>
    %772 = vector.multi_reduction <add>, %771, %cst_300 [1] : vector<2x8xf32> to vector<2xf32>
    %773 = vector.shape_cast %772 : vector<2xf32> to vector<2x1xf32>
    %774 = tpu.reciprocal %773 {approx = true} : vector<2x1xf32> -> vector<2x1xf32>
    %775 = vector.broadcast %774 : vector<2x1xf32> to vector<2x8xf32>
    %776 = arith.mulf %771, %775 : vector<2x8xf32>
    %777 = vector.shape_cast %776 : vector<2x8xf32> to vector<2x8x1xf32>
    %778 = vector.broadcast %777 : vector<2x8x1xf32> to vector<2x8x32xf32>
    %779 = arith.mulf %778, %276 : vector<2x8x32xf32>
    %cst_301 = arith.constant dense<0.000000e+00> : vector<2x32xf32>
    %780 = vector.multi_reduction <add>, %779, %cst_301 [1] : vector<2x8x32xf32> to vector<2x32xf32>
    %c0_302 = arith.constant 0 : index
    %c0_303 = arith.constant 0 : index
    %781 = vector.load %arg8[%c0_302, %c0_303] : memref<128x128xf32, #tpu.memory_space<vmem>>, vector<128x128xf32>
    %cst_304 = arith.constant dense<0.000000e+00> : vector<2x128xf32>
    %782 = tpu.matmul %762, %781, %cst_304 {dimension_numbers = #tpu.dot_dimension_numbers<[1], [0], [0], [1], [0, 0, 1, 1], [], []>} : vector<2x128xf32>, vector<128x128xf32>, vector<2x128xf32> -> vector<2x128xf32>
    %c0_305 = arith.constant 0 : index
    %c0_306 = arith.constant 0 : index
    %783 = vector.load %arg9[%c0_305, %c0_306] : memref<32x128xf32, #tpu.memory_space<vmem>>, vector<32x128xf32>
    %cst_307 = arith.constant dense<0.000000e+00> : vector<2x128xf32>
    %784 = tpu.matmul %780, %783, %cst_307 {dimension_numbers = #tpu.dot_dimension_numbers<[1], [0], [0], [1], [0, 0, 1, 1], [], []>} : vector<2x32xf32>, vector<32x128xf32>, vector<2x128xf32> -> vector<2x128xf32>
    %785 = arith.addf %782, %784 : vector<2x128xf32>
    %c0_308 = arith.constant 0 : index
    %c0_309 = arith.constant 0 : index
    %786 = vector.load %arg10[%c0_308, %c0_309] : memref<32x128xf32, #tpu.memory_space<vmem>>, vector<32x128xf32>
    %cst_310 = arith.constant dense<0.000000e+00> : vector<2x128xf32>
    %787 = tpu.matmul %721, %786, %cst_310 {dimension_numbers = #tpu.dot_dimension_numbers<[1], [0], [0], [1], [0, 0, 1, 1], [], []>} : vector<2x32xf32>, vector<32x128xf32>, vector<2x128xf32> -> vector<2x128xf32>
    %788 = arith.addf %785, %787 : vector<2x128xf32>
    %c0_311 = arith.constant 0 : index
    %c0_312 = arith.constant 0 : index
    %789 = vector.load %arg11[%c0_311, %c0_312] : memref<1x128xf32, #tpu.memory_space<vmem>>, vector<1x128xf32>
    %790 = vector.broadcast %789 : vector<1x128xf32> to vector<2x128xf32>
    %791 = arith.addf %788, %790 : vector<2x128xf32>
    %792 = vector.extract_strided_slice %791 {offsets = [0, 0], sizes = [2, 32], strides = [1, 1]} : vector<2x128xf32> to vector<2x32xf32>
    %793 = arith.negf %792 : vector<2x32xf32>
    %794 = math.exp %793 : vector<2x32xf32>
    %cst_313 = arith.constant 1.000000e+00 : f32
    %795 = vector.broadcast %cst_313 : f32 to vector<2x32xf32>
    %796 = arith.addf %795, %794 : vector<2x32xf32>
    %797 = arith.divf %795, %796 : vector<2x32xf32>
    %798 = vector.extract_strided_slice %791 {offsets = [0, 32], sizes = [2, 32], strides = [1, 1]} : vector<2x128xf32> to vector<2x32xf32>
    %799 = arith.negf %798 : vector<2x32xf32>
    %800 = math.exp %799 : vector<2x32xf32>
    %cst_314 = arith.constant 1.000000e+00 : f32
    %801 = vector.broadcast %cst_314 : f32 to vector<2x32xf32>
    %802 = arith.addf %801, %800 : vector<2x32xf32>
    %803 = arith.divf %801, %802 : vector<2x32xf32>
    %804 = vector.extract_strided_slice %791 {offsets = [0, 64], sizes = [2, 32], strides = [1, 1]} : vector<2x128xf32> to vector<2x32xf32>
    %805 = math.tanh %804 : vector<2x32xf32>
    %806 = vector.extract_strided_slice %791 {offsets = [0, 96], sizes = [2, 32], strides = [1, 1]} : vector<2x128xf32> to vector<2x32xf32>
    %807 = arith.negf %806 : vector<2x32xf32>
    %808 = math.exp %807 : vector<2x32xf32>
    %cst_315 = arith.constant 1.000000e+00 : f32
    %809 = vector.broadcast %cst_315 : f32 to vector<2x32xf32>
    %810 = arith.addf %809, %808 : vector<2x32xf32>
    %811 = arith.divf %809, %810 : vector<2x32xf32>
    %812 = arith.mulf %803, %719 : vector<2x32xf32>
    %813 = arith.mulf %797, %805 : vector<2x32xf32>
    %814 = arith.addf %812, %813 : vector<2x32xf32>
    %815 = math.tanh %814 : vector<2x32xf32>
    %816 = arith.mulf %811, %815 : vector<2x32xf32>
    %c0_316 = arith.constant 0 : index
    %c0_317 = arith.constant 0 : index
    %817 = vector.load %arg12[%c0_316, %c0_317] : memref<32x128xf32, #tpu.memory_space<vmem>>, vector<32x128xf32>
    %cst_318 = arith.constant dense<0.000000e+00> : vector<2x128xf32>
    %818 = tpu.matmul %816, %817, %cst_318 {dimension_numbers = #tpu.dot_dimension_numbers<[1], [0], [0], [1], [0, 0, 1, 1], [], []>} : vector<2x32xf32>, vector<32x128xf32>, vector<2x128xf32> -> vector<2x128xf32>
    %c0_319 = arith.constant 0 : index
    %c0_320 = arith.constant 0 : index
    %819 = vector.load %arg13[%c0_319, %c0_320] : memref<32x128xf32, #tpu.memory_space<vmem>>, vector<32x128xf32>
    %cst_321 = arith.constant dense<0.000000e+00> : vector<2x128xf32>
    %820 = tpu.matmul %780, %819, %cst_321 {dimension_numbers = #tpu.dot_dimension_numbers<[1], [0], [0], [1], [0, 0, 1, 1], [], []>} : vector<2x32xf32>, vector<32x128xf32>, vector<2x128xf32> -> vector<2x128xf32>
    %821 = arith.addf %818, %820 : vector<2x128xf32>
    %c0_322 = arith.constant 0 : index
    %c0_323 = arith.constant 0 : index
    %822 = vector.load %arg14[%c0_322, %c0_323] : memref<128x128xf32, #tpu.memory_space<vmem>>, vector<128x128xf32>
    %cst_324 = arith.constant dense<0.000000e+00> : vector<2x128xf32>
    %823 = tpu.matmul %762, %822, %cst_324 {dimension_numbers = #tpu.dot_dimension_numbers<[1], [0], [0], [1], [0, 0, 1, 1], [], []>} : vector<2x128xf32>, vector<128x128xf32>, vector<2x128xf32> -> vector<2x128xf32>
    %824 = arith.addf %821, %823 : vector<2x128xf32>
    %c0_325 = arith.constant 0 : index
    %c0_326 = arith.constant 0 : index
    %825 = vector.load %arg15[%c0_325, %c0_326] : memref<1x128xf32, #tpu.memory_space<vmem>>, vector<1x128xf32>
    %826 = vector.broadcast %825 : vector<1x128xf32> to vector<2x128xf32>
    %827 = arith.addf %824, %826 : vector<2x128xf32>
    %828 = arith.index_cast %c5_i32 : i32 to index
    %c0_327 = arith.constant 0 : index
    %c0_328 = arith.constant 0 : index
    %829 = vector.load %arg19[%828, %c0_327, %c0_328] : memref<7x2x128xf32, #tpu.memory_space<vmem>>, vector<1x2x128xf32>
    %830 = vector.shape_cast %829 : vector<1x2x128xf32> to vector<2x128xf32>
    %831 = vector.shape_cast %827 : vector<2x128xf32> to vector<1x2x128xf32>
    tpu.vector_store %arg19[%828, %c0_327, %c0_328], %831 {strides = array<i32>} : memref<7x2x128xf32, #tpu.memory_space<vmem>>, vector<1x2x128xf32>,
    %cst_329 = arith.constant -1.000000e+30 : f32
    %832 = vector.broadcast %cst_329 : f32 to vector<2x128xf32>
    %833 = arith.select %286, %827, %832 : vector<2x128xi1>, vector<2x128xf32>
    %cst_330 = arith.constant dense<0xFF800000> : vector<2xf32>
    %834 = vector.multi_reduction <maximumf>, %833, %cst_330 [1] : vector<2x128xf32> to vector<2xf32>
    %835 = vector.shape_cast %834 : vector<2xf32> to vector<2x1xf32>
    %836 = vector.broadcast %835 : vector<2x1xf32> to vector<2x128xf32>
    %837 = arith.cmpf oge, %833, %836 : vector<2x128xf32>
    %c128_i32_331 = arith.constant 128 : i32
    %838 = vector.broadcast %c128_i32_331 : i32 to vector<2x128xi32>
    %839 = arith.select %837, %284, %838 : vector<2x128xi1>, vector<2x128xi32>
    %cst_332 = arith.constant dense<2147483647> : vector<2xi32>
    %840 = vector.multi_reduction <minsi>, %839, %cst_332 [1] : vector<2x128xi32> to vector<2xi32>
    %841 = vector.shape_cast %840 : vector<2xi32> to vector<2x1xi32>
    %842 = vector.broadcast %841 : vector<2x1xi32> to vector<2x128xi32>
    %843 = arith.cmpi eq, %284, %842 : vector<2x128xi32>
    %844 = arith.extui %843 : vector<2x128xi1> to vector<2x128xi32>
    %845 = arith.sitofp %844 : vector<2x128xi32> to vector<2x128xf32>
    %846 = arith.index_cast %c5_i32 : i32 to index
    %847 = memref.load %arg18[%846] : memref<7xi32, #tpu.memory_space<smem>>
    %848 = arith.sitofp %847 : i32 to f32
    %849 = arith.index_cast %c5_i32 : i32 to index
    %c0_333 = arith.constant 0 : index
    %c0_334 = arith.constant 0 : index
    %850 = vector.load %arg17[%849, %c0_333, %c0_334] : memref<7x2x128xf32, #tpu.memory_space<vmem>>, vector<1x2x128xf32>
    %851 = vector.shape_cast %850 : vector<1x2x128xf32> to vector<2x128xf32>
    %852 = vector.broadcast %848 : f32 to vector<2x128xf32>
    %853 = arith.mulf %852, %851 : vector<2x128xf32>
    %cst_335 = arith.constant 1.000000e+00 : f32
    %854 = arith.subf %cst_335, %848 : f32
    %855 = vector.broadcast %854 : f32 to vector<2x128xf32>
    %856 = arith.mulf %855, %845 : vector<2x128xf32>
    %857 = arith.addf %853, %856 : vector<2x128xf32>
    %c6_i32 = arith.constant 6 : i32
    %858 = vector.shape_cast %816 : vector<2x32xf32> to vector<2x1x32xf32>
    %859 = vector.broadcast %858 : vector<2x1x32xf32> to vector<2x8x32xf32>
    %860 = arith.mulf %283, %859 : vector<2x8x32xf32>
    %cst_336 = arith.constant dense<0.000000e+00> : vector<2x8xf32>
    %861 = vector.multi_reduction <add>, %860, %cst_336 [2] : vector<2x8x32xf32> to vector<2x8xf32>
    %cst_337 = arith.constant dense<0xFF800000> : vector<2xf32>
    %862 = vector.multi_reduction <maximumf>, %861, %cst_337 [1] : vector<2x8xf32> to vector<2xf32>
    %863 = vector.shape_cast %862 : vector<2xf32> to vector<2x1xf32>
    %864 = vector.broadcast %863 : vector<2x1xf32> to vector<2x8xf32>
    %865 = arith.subf %861, %864 : vector<2x8xf32>
    %866 = math.exp %865 : vector<2x8xf32>
    %cst_338 = arith.constant dense<0.000000e+00> : vector<2xf32>
    %867 = vector.multi_reduction <add>, %866, %cst_338 [1] : vector<2x8xf32> to vector<2xf32>
    %868 = vector.shape_cast %867 : vector<2xf32> to vector<2x1xf32>
    %869 = tpu.reciprocal %868 {approx = true} : vector<2x1xf32> -> vector<2x1xf32>
    %870 = vector.broadcast %869 : vector<2x1xf32> to vector<2x8xf32>
    %871 = arith.mulf %866, %870 : vector<2x8xf32>
    %872 = vector.shape_cast %871 : vector<2x8xf32> to vector<2x8x1xf32>
    %873 = vector.broadcast %872 : vector<2x8x1xf32> to vector<2x8x32xf32>
    %874 = arith.mulf %873, %276 : vector<2x8x32xf32>
    %cst_339 = arith.constant dense<0.000000e+00> : vector<2x32xf32>
    %875 = vector.multi_reduction <add>, %874, %cst_339 [1] : vector<2x8x32xf32> to vector<2x32xf32>
    %c0_340 = arith.constant 0 : index
    %c0_341 = arith.constant 0 : index
    %876 = vector.load %arg8[%c0_340, %c0_341] : memref<128x128xf32, #tpu.memory_space<vmem>>, vector<128x128xf32>
    %cst_342 = arith.constant dense<0.000000e+00> : vector<2x128xf32>
    %877 = tpu.matmul %857, %876, %cst_342 {dimension_numbers = #tpu.dot_dimension_numbers<[1], [0], [0], [1], [0, 0, 1, 1], [], []>} : vector<2x128xf32>, vector<128x128xf32>, vector<2x128xf32> -> vector<2x128xf32>
    %c0_343 = arith.constant 0 : index
    %c0_344 = arith.constant 0 : index
    %878 = vector.load %arg9[%c0_343, %c0_344] : memref<32x128xf32, #tpu.memory_space<vmem>>, vector<32x128xf32>
    %cst_345 = arith.constant dense<0.000000e+00> : vector<2x128xf32>
    %879 = tpu.matmul %875, %878, %cst_345 {dimension_numbers = #tpu.dot_dimension_numbers<[1], [0], [0], [1], [0, 0, 1, 1], [], []>} : vector<2x32xf32>, vector<32x128xf32>, vector<2x128xf32> -> vector<2x128xf32>
    %880 = arith.addf %877, %879 : vector<2x128xf32>
    %c0_346 = arith.constant 0 : index
    %c0_347 = arith.constant 0 : index
    %881 = vector.load %arg10[%c0_346, %c0_347] : memref<32x128xf32, #tpu.memory_space<vmem>>, vector<32x128xf32>
    %cst_348 = arith.constant dense<0.000000e+00> : vector<2x128xf32>
    %882 = tpu.matmul %816, %881, %cst_348 {dimension_numbers = #tpu.dot_dimension_numbers<[1], [0], [0], [1], [0, 0, 1, 1], [], []>} : vector<2x32xf32>, vector<32x128xf32>, vector<2x128xf32> -> vector<2x128xf32>
    %883 = arith.addf %880, %882 : vector<2x128xf32>
    %c0_349 = arith.constant 0 : index
    %c0_350 = arith.constant 0 : index
    %884 = vector.load %arg11[%c0_349, %c0_350] : memref<1x128xf32, #tpu.memory_space<vmem>>, vector<1x128xf32>
    %885 = vector.broadcast %884 : vector<1x128xf32> to vector<2x128xf32>
    %886 = arith.addf %883, %885 : vector<2x128xf32>
    %887 = vector.extract_strided_slice %886 {offsets = [0, 0], sizes = [2, 32], strides = [1, 1]} : vector<2x128xf32> to vector<2x32xf32>
    %888 = arith.negf %887 : vector<2x32xf32>
    %889 = math.exp %888 : vector<2x32xf32>
    %cst_351 = arith.constant 1.000000e+00 : f32
    %890 = vector.broadcast %cst_351 : f32 to vector<2x32xf32>
    %891 = arith.addf %890, %889 : vector<2x32xf32>
    %892 = arith.divf %890, %891 : vector<2x32xf32>
    %893 = vector.extract_strided_slice %886 {offsets = [0, 32], sizes = [2, 32], strides = [1, 1]} : vector<2x128xf32> to vector<2x32xf32>
    %894 = arith.negf %893 : vector<2x32xf32>
    %895 = math.exp %894 : vector<2x32xf32>
    %cst_352 = arith.constant 1.000000e+00 : f32
    %896 = vector.broadcast %cst_352 : f32 to vector<2x32xf32>
    %897 = arith.addf %896, %895 : vector<2x32xf32>
    %898 = arith.divf %896, %897 : vector<2x32xf32>
    %899 = vector.extract_strided_slice %886 {offsets = [0, 64], sizes = [2, 32], strides = [1, 1]} : vector<2x128xf32> to vector<2x32xf32>
    %900 = math.tanh %899 : vector<2x32xf32>
    %901 = vector.extract_strided_slice %886 {offsets = [0, 96], sizes = [2, 32], strides = [1, 1]} : vector<2x128xf32> to vector<2x32xf32>
    %902 = arith.negf %901 : vector<2x32xf32>
    %903 = math.exp %902 : vector<2x32xf32>
    %cst_353 = arith.constant 1.000000e+00 : f32
    %904 = vector.broadcast %cst_353 : f32 to vector<2x32xf32>
    %905 = arith.addf %904, %903 : vector<2x32xf32>
    %906 = arith.divf %904, %905 : vector<2x32xf32>
    %907 = arith.mulf %898, %814 : vector<2x32xf32>
    %908 = arith.mulf %892, %900 : vector<2x32xf32>
    %909 = arith.addf %907, %908 : vector<2x32xf32>
    %910 = math.tanh %909 : vector<2x32xf32>
    %911 = arith.mulf %906, %910 : vector<2x32xf32>
    %c0_354 = arith.constant 0 : index
    %c0_355 = arith.constant 0 : index
    %912 = vector.load %arg12[%c0_354, %c0_355] : memref<32x128xf32, #tpu.memory_space<vmem>>, vector<32x128xf32>
    %cst_356 = arith.constant dense<0.000000e+00> : vector<2x128xf32>
    %913 = tpu.matmul %911, %912, %cst_356 {dimension_numbers = #tpu.dot_dimension_numbers<[1], [0], [0], [1], [0, 0, 1, 1], [], []>} : vector<2x32xf32>, vector<32x128xf32>, vector<2x128xf32> -> vector<2x128xf32>
    %c0_357 = arith.constant 0 : index
    %c0_358 = arith.constant 0 : index
    %914 = vector.load %arg13[%c0_357, %c0_358] : memref<32x128xf32, #tpu.memory_space<vmem>>, vector<32x128xf32>
    %cst_359 = arith.constant dense<0.000000e+00> : vector<2x128xf32>
    %915 = tpu.matmul %875, %914, %cst_359 {dimension_numbers = #tpu.dot_dimension_numbers<[1], [0], [0], [1], [0, 0, 1, 1], [], []>} : vector<2x32xf32>, vector<32x128xf32>, vector<2x128xf32> -> vector<2x128xf32>
    %916 = arith.addf %913, %915 : vector<2x128xf32>
    %c0_360 = arith.constant 0 : index
    %c0_361 = arith.constant 0 : index
    %917 = vector.load %arg14[%c0_360, %c0_361] : memref<128x128xf32, #tpu.memory_space<vmem>>, vector<128x128xf32>
    %cst_362 = arith.constant dense<0.000000e+00> : vector<2x128xf32>
    %918 = tpu.matmul %857, %917, %cst_362 {dimension_numbers = #tpu.dot_dimension_numbers<[1], [0], [0], [1], [0, 0, 1, 1], [], []>} : vector<2x128xf32>, vector<128x128xf32>, vector<2x128xf32> -> vector<2x128xf32>
    %919 = arith.addf %916, %918 : vector<2x128xf32>
    %c0_363 = arith.constant 0 : index
    %c0_364 = arith.constant 0 : index
    %920 = vector.load %arg15[%c0_363, %c0_364] : memref<1x128xf32, #tpu.memory_space<vmem>>, vector<1x128xf32>
    %921 = vector.broadcast %920 : vector<1x128xf32> to vector<2x128xf32>
    %922 = arith.addf %919, %921 : vector<2x128xf32>
    %923 = arith.index_cast %c6_i32 : i32 to index
    %c0_365 = arith.constant 0 : index
    %c0_366 = arith.constant 0 : index
    %924 = vector.load %arg19[%923, %c0_365, %c0_366] : memref<7x2x128xf32, #tpu.memory_space<vmem>>, vector<1x2x128xf32>
    %925 = vector.shape_cast %924 : vector<1x2x128xf32> to vector<2x128xf32>
    %926 = vector.shape_cast %922 : vector<2x128xf32> to vector<1x2x128xf32>
    tpu.vector_store %arg19[%923, %c0_365, %c0_366], %926 {strides = array<i32>} : memref<7x2x128xf32, #tpu.memory_space<vmem>>, vector<1x2x128xf32>,
    %cst_367 = arith.constant -1.000000e+30 : f32
    %927 = vector.broadcast %cst_367 : f32 to vector<2x128xf32>
    %928 = arith.select %286, %922, %927 : vector<2x128xi1>, vector<2x128xf32>
    %cst_368 = arith.constant dense<0xFF800000> : vector<2xf32>
    %929 = vector.multi_reduction <maximumf>, %928, %cst_368 [1] : vector<2x128xf32> to vector<2xf32>
    %930 = vector.shape_cast %929 : vector<2xf32> to vector<2x1xf32>
    %931 = vector.broadcast %930 : vector<2x1xf32> to vector<2x128xf32>
    %932 = arith.cmpf oge, %928, %931 : vector<2x128xf32>
    %c128_i32_369 = arith.constant 128 : i32
    %933 = vector.broadcast %c128_i32_369 : i32 to vector<2x128xi32>
    %934 = arith.select %932, %284, %933 : vector<2x128xi1>, vector<2x128xi32>
    %cst_370 = arith.constant dense<2147483647> : vector<2xi32>
    %935 = vector.multi_reduction <minsi>, %934, %cst_370 [1] : vector<2x128xi32> to vector<2xi32>
    %936 = vector.shape_cast %935 : vector<2xi32> to vector<2x1xi32>
    %937 = vector.broadcast %936 : vector<2x1xi32> to vector<2x128xi32>
    %938 = arith.cmpi eq, %284, %937 : vector<2x128xi32>
    %939 = arith.extui %938 : vector<2x128xi1> to vector<2x128xi32>
    %940 = arith.sitofp %939 : vector<2x128xi32> to vector<2x128xf32>
    %941 = arith.index_cast %c6_i32 : i32 to index
    %942 = memref.load %arg18[%941] : memref<7xi32, #tpu.memory_space<smem>>
    %943 = arith.sitofp %942 : i32 to f32
    %944 = arith.index_cast %c6_i32 : i32 to index
    %c0_371 = arith.constant 0 : index
    %c0_372 = arith.constant 0 : index
    %945 = vector.load %arg17[%944, %c0_371, %c0_372] : memref<7x2x128xf32, #tpu.memory_space<vmem>>, vector<1x2x128xf32>
    %946 = vector.shape_cast %945 : vector<1x2x128xf32> to vector<2x128xf32>
    %947 = vector.broadcast %943 : f32 to vector<2x128xf32>
    %948 = arith.mulf %947, %946 : vector<2x128xf32>
    %cst_373 = arith.constant 1.000000e+00 : f32
    %949 = arith.subf %cst_373, %943 : f32
    %950 = vector.broadcast %949 : f32 to vector<2x128xf32>
    %951 = arith.mulf %950, %940 : vector<2x128xf32>
    %952 = arith.addf %948, %951 : vector<2x128xf32>
    %c7_i32 = arith.constant 7 : i32
    return
  }
}

</mosaic_0001>

<llo_original>
// kernel: seq2seq_forward.1
$region0: #{seq2seq_forward.1}
  #allocation0 [shape = 'u32[]', space=smem, size = 0x4, offset = 0x4, fixed_abs, tag = 'smem constant byte address 0x4 - core index']
  #allocation1 [shape = 'u32[144,128]{1,0:T(1,128)}', space=vmem, size = 0x12000, scoped, tag = 'internal scratch']
  #allocation2 [shape = 'f32[2,8,32]{2,1,0:T(8,128)}', space=vmem, size = 0x2000, scoped, tag = 'scratch operand']
  %s0 = inlined_call_operand.vmem [shape: f32[8,2,128], index: 0, kind: input, shape index: {}]
  %s1 = inlined_call_operand.vmem [shape: f32[32,128], index: 1, kind: input, shape index: {}]
  %s2 = inlined_call_operand.vmem [shape: f32[32,32], index: 2, kind: input, shape index: {}]
  %s3 = inlined_call_operand.vmem [shape: f32[1,32], index: 3, kind: input, shape index: {}]
  %s4 = inlined_call_operand.vmem [shape: f32[32,32], index: 4, kind: input, shape index: {}]
  %s5 = inlined_call_operand.vmem [shape: f32[1,32], index: 5, kind: input, shape index: {}]
  %s6 = inlined_call_operand.vmem [shape: f32[32,32], index: 6, kind: input, shape index: {}]
  %s7 = inlined_call_operand.vmem [shape: f32[1,32], index: 7, kind: input, shape index: {}]
  %s8 = inlined_call_operand.vmem [shape: f32[128,128], index: 8, kind: input, shape index: {}]
  %s9 = inlined_call_operand.vmem [shape: f32[32,128], index: 9, kind: input, shape index: {}]
  %s10 = inlined_call_operand.vmem [shape: f32[32,128], index: 10, kind: input, shape index: {}]
  %s11 = inlined_call_operand.vmem [shape: f32[1,128], index: 11, kind: input, shape index: {}]
  %s12 = inlined_call_operand.vmem [shape: f32[32,128], index: 12, kind: input, shape index: {}]
  %s13 = inlined_call_operand.vmem [shape: f32[32,128], index: 13, kind: input, shape index: {}]
  %s14 = inlined_call_operand.vmem [shape: f32[128,128], index: 14, kind: input, shape index: {}]
  %s15 = inlined_call_operand.vmem [shape: f32[1,128], index: 15, kind: input, shape index: {}]
  %s16 = inlined_call_operand.vmem [shape: f32[2,128], index: 16, kind: input, shape index: {}]
  %s17 = inlined_call_operand.vmem [shape: f32[7,2,128], index: 17, kind: input, shape index: {}]
  %s18 = inlined_call_operand.vmem [shape: s32[7], index: 18, kind: input, shape index: {}]
  %s19 = inlined_call_operand.vmem [shape: f32[7,2,128], index: 19, kind: output, shape index: {}]
  %s20 = sld [smem:[#allocation0]]
  $region90: #{seq2seq_forward.1} parent=0
    _
  %s22 = ssub.s32 1, %s20
  %s23 = scalar_select 0, %s22, %s20
  $region1: #{seq2seq_forward.1} parent=0
    #allocation3 [shape = 'u8[512]{0}', space=smem, size = 0x200, scoped, tag = 'input window, operand 18, single buffered']
    #allocation4 [shape = 's32[1]{0}', space=sflag, size = 0x4, scoped, tag = 'scoped memory for seq2seq_forward.1']
    %24 = vsyncpa [#allocation4], 0
    // Predicated region
    $region2: #{seq2seq_forward.1} parent=1 // pred_check
      _
    $region3: #{seq2seq_forward.1} parent=1 // pred_check_branch
      %26 = sbr.rel (0) target = $region5
    $region4: #{seq2seq_forward.1} parent=1 // pred_region
      _
    $region5: #{seq2seq_forward.1} parent=1 // pred_fallthru
      _
    // Predicated region
    $region6: #{seq2seq_forward.1} parent=1 // pred_check
      _
    $region7: #{seq2seq_forward.1} parent=1 // pred_check_branch
      %28 = sbr.rel (0) target = $region9
    $region8: #{seq2seq_forward.1} parent=1 // pred_region
      _
    $region9: #{seq2seq_forward.1} parent=1 // pred_fallthru
      _
    // Predicated region
    $region10: #{seq2seq_forward.1} parent=1 // pred_check
      _
    $region11: #{seq2seq_forward.1} parent=1 // pred_check_branch
      %30 = sbr.rel (0) target = $region13
    $region12: #{seq2seq_forward.1} parent=1 // pred_region
      _
    $region13: #{seq2seq_forward.1} parent=1 // pred_fallthru
      _
    // Predicated region
    $region14: #{seq2seq_forward.1} parent=1 // pred_check
      _
    $region15: #{seq2seq_forward.1} parent=1 // pred_check_branch
      %32 = sbr.rel (0) target = $region17
    $region16: #{seq2seq_forward.1} parent=1 // pred_region
      _
    $region17: #{seq2seq_forward.1} parent=1 // pred_fallthru
      _
    // Predicated region
    $region18: #{seq2seq_forward.1} parent=1 // pred_check
      _
    $region19: #{seq2seq_forward.1} parent=1 // pred_check_branch
      %34 = sbr.rel (0) target = $region21
    $region20: #{seq2seq_forward.1} parent=1 // pred_region
      _
    $region21: #{seq2seq_forward.1} parent=1 // pred_fallthru
      _
    // Predicated region
    $region22: #{seq2seq_forward.1} parent=1 // pred_check
      _
    $region23: #{seq2seq_forward.1} parent=1 // pred_check_branch
      %36 = sbr.rel (0) target = $region25
    $region24: #{seq2seq_forward.1} parent=1 // pred_region
      _
    $region25: #{seq2seq_forward.1} parent=1 // pred_fallthru
      _
    // Predicated region
    $region26: #{seq2seq_forward.1} parent=1 // pred_check
      _
    $region27: #{seq2seq_forward.1} parent=1 // pred_check_branch
      %38 = sbr.rel (0) target = $region29
    $region28: #{seq2seq_forward.1} parent=1 // pred_region
      _
    $region29: #{seq2seq_forward.1} parent=1 // pred_fallthru
      _
    // Predicated region
    $region30: #{seq2seq_forward.1} parent=1 // pred_check
      _
    $region31: #{seq2seq_forward.1} parent=1 // pred_check_branch
      %40 = sbr.rel (0) target = $region33
    $region32: #{seq2seq_forward.1} parent=1 // pred_region
      _
    $region33: #{seq2seq_forward.1} parent=1 // pred_fallthru
      _
    // Predicated region
    $region34: #{seq2seq_forward.1} parent=1 // pred_check
      _
    $region35: #{seq2seq_forward.1} parent=1 // pred_check_branch
      %42 = sbr.rel (0) target = $region37
    $region36: #{seq2seq_forward.1} parent=1 // pred_region
      _
    $region37: #{seq2seq_forward.1} parent=1 // pred_fallthru
      _
    // Predicated region
    $region38: #{seq2seq_forward.1} parent=1 // pred_check
      _
    $region39: #{seq2seq_forward.1} parent=1 // pred_check_branch
      %44 = sbr.rel (0) target = $region41
    $region40: #{seq2seq_forward.1} parent=1 // pred_region
      _
    $region41: #{seq2seq_forward.1} parent=1 // pred_fallthru
      _
    // Predicated region
    $region42: #{seq2seq_forward.1} parent=1 // pred_check
      _
    $region43: #{seq2seq_forward.1} parent=1 // pred_check_branch
      %46 = sbr.rel (0) target = $region45
    $region44: #{seq2seq_forward.1} parent=1 // pred_region
      _
    $region45: #{seq2seq_forward.1} parent=1 // pred_fallthru
      _
    // Predicated region
    $region46: #{seq2seq_forward.1} parent=1 // pred_check
      _
    $region47: #{seq2seq_forward.1} parent=1 // pred_check_branch
      %48 = sbr.rel (0) target = $region49
    $region48: #{seq2seq_forward.1} parent=1 // pred_region
      _
    $region49: #{seq2seq_forward.1} parent=1 // pred_fallthru
      _
    // Predicated region
    $region50: #{seq2seq_forward.1} parent=1 // pred_check
      _
    $region51: #{seq2seq_forward.1} parent=1 // pred_check_branch
      %50 = sbr.rel (0) target = $region53
    $region52: #{seq2seq_forward.1} parent=1 // pred_region
      _
    $region53: #{seq2seq_forward.1} parent=1 // pred_fallthru
      _
    // Predicated region
    $region54: #{seq2seq_forward.1} parent=1 // pred_check
      _
    $region55: #{seq2seq_forward.1} parent=1 // pred_check_branch
      %52 = sbr.rel (0) target = $region57
    $region56: #{seq2seq_forward.1} parent=1 // pred_region
      _
    $region57: #{seq2seq_forward.1} parent=1 // pred_fallthru
      _
    // Predicated region
    $region58: #{seq2seq_forward.1} parent=1 // pred_check
      _
    $region59: #{seq2seq_forward.1} parent=1 // pred_check_branch
      %54 = sbr.rel (0) target = $region61
    $region60: #{seq2seq_forward.1} parent=1 // pred_region
      _
    $region61: #{seq2seq_forward.1} parent=1 // pred_fallthru
      _
    // Predicated region
    $region62: #{seq2seq_forward.1} parent=1 // pred_check
      _
    $region63: #{seq2seq_forward.1} parent=1 // pred_check_branch
      %56 = sbr.rel (0) target = $region65
    $region64: #{seq2seq_forward.1} parent=1 // pred_region
      _
    $region65: #{seq2seq_forward.1} parent=1 // pred_fallthru
      _
    // Predicated region
    $region66: #{seq2seq_forward.1} parent=1 // pred_check
      _
    $region67: #{seq2seq_forward.1} parent=1 // pred_check_branch
      %58 = sbr.rel (0) target = $region69
    $region68: #{seq2seq_forward.1} parent=1 // pred_region
      _
    $region69: #{seq2seq_forward.1} parent=1 // pred_fallthru
      _
    // Predicated region
    $region70: #{seq2seq_forward.1} parent=1 // pred_check
      _
    $region71: #{seq2seq_forward.1} parent=1 // pred_check_branch
      %60 = sbr.rel (0) target = $region73
    $region72: #{seq2seq_forward.1} parent=1 // pred_region
      _
    $region73: #{seq2seq_forward.1} parent=1 // pred_fallthru
      _
    // Predicated region
    $region74: #{seq2seq_forward.1} parent=1 // pred_check
      _
    $region75: #{seq2seq_forward.1} parent=1 // pred_check_branch
      %62 = sbr.rel (0) target = $region77
    $region76: #{seq2seq_forward.1} parent=1 // pred_region
      %s64 = ssub.s32 16, 16
      %65 = vsyncadd [#allocation4], %s64
      %s67 = sshll.u32 %s18, 4
      %s68 = int_to_ptr.vmem [resolvable:$true] %s67
      %70 = dma.vmem_to_smem %s68, 16, [#allocation3], [#allocation4]
    $region77: #{seq2seq_forward.1} parent=1 // pred_fallthru
      _
    // Predicated region
    $region78: #{seq2seq_forward.1} parent=1 // pred_check
      _
    $region79: #{seq2seq_forward.1} parent=1 // pred_check_branch
      %72 = sbr.rel (0) target = $region81
    $region80: #{seq2seq_forward.1} parent=1 // pred_region
      %73 = dma.done [#allocation4], 16
    $region81: #{seq2seq_forward.1} parent=1 // pred_fallthru
      _
    %74 = sfence
    %v75 = vld [vmem:[%s0] sm:$0x3]
    %v76 = vld [vmem:[%s1] sm:$0xff]
    %v77 = vld [vmem:[%s1 + $0x8] sm:$0xff]
    %v78 = vld [vmem:[%s1 + $0x10] sm:$0xff]
    %v79 = vld [vmem:[%s1 + $0x18] sm:$0xff]
    %vm80 = vcmask 261120
    %v82 = vsel %vm80, 0.0, 0
    %84 = vmatprep.subr.mxu0 0.0
    %85 = vmatpush1.msra.mxu0 %v76
    %86 = vmatprep.subr.mxu0 0.0
    %87 = vmatpush1.msra.mxu0 %v77
    %88 = vmatprep.subr.mxu0 0.0
    %89 = vmatpush1.msra.mxu0 %v78
    %90 = vmatprep.subr.mxu0 0.0
    %91 = vmatpush1.msra.mxu0 %v79
    %92 = vmatprep.subr.mxu0 0.0
    %93 = vmatpush1.msra.mxu0 0.0
    %94 = vmatprep.subr.mxu0 0.0
    %95 = vmatpush1.msra.mxu0 0.0
    %96 = vmatprep.subr.mxu0 0.0
    %97 = vmatpush1.msra.mxu0 0.0
    %98 = vmatprep.subr.mxu0 0.0
    %99 = vmatpush1.msra.mxu0 0.0
    %100 = vmatprep.subr.mxu0 0.0
    %101 = vmatpush1.msra.mxu0 0.0
    %102 = vmatprep.subr.mxu0 0.0
    %103 = vmatpush1.msra.mxu0 0.0
    %104 = vmatprep.subr.mxu0 0.0
    %105 = vmatpush1.msra.mxu0 0.0
    %106 = vmatprep.subr.mxu0 0.0
    %107 = vmatpush1.msra.mxu0 0.0
    %108 = vmatprep.subr.mxu0 0.0
    %109 = vmatpush1.msra.mxu0 0.0
    %110 = vmatprep.subr.mxu0 0.0
    %111 = vmatpush1.msra.mxu0 0.0
    %112 = vmatprep.subr.mxu0 0.0
    %113 = vmatpush1.msra.mxu0 0.0
    %114 = vmatprep.subr.mxu0 0.0
    %115 = vmatpush1.msra.mxu0 0.0
    %116 = vmatprep.subr.mxu0 0.0
    %117 = vmatpush1.msra.mxu0 0.0
    %118 = vmatprep.subr.mxu0 0.0
    %119 = vmatpush1.msra.mxu0 0.0
    %120 = vmatprep.subr.mxu0 0.0
    %121 = vmatpush1.msra.mxu0 0.0
    %122 = vmatprep.subr.mxu0 0.0
    %123 = vmatpush1.msra.mxu0 0.0
    %124 = vmatprep.subr.mxu0 0.0
    %125 = vmatpush1.msra.mxu0 0.0
    %126 = vmatprep.subr.mxu0 0.0
    %127 = vmatpush1.msra.mxu0 0.0
    %128 = vmatprep.subr.mxu0 0.0
    %129 = vmatpush1.msra.mxu0 0.0
    %130 = vmatprep.subr.mxu0 0.0
    %131 = vmatpush1.msra.mxu0 0.0
    %132 = vmatprep.subr.mxu0 0.0
    %133 = vmatpush1.msra.mxu0 0.0
    %134 = vmatprep.subr.mxu0 0.0
    %135 = vmatpush1.msra.mxu0 0.0
    %136 = vmatprep.subr.mxu0 0.0
    %137 = vmatpush1.msra.mxu0 0.0
    %138 = vmatprep.subr.mxu0 0.0
    %139 = vmatpush1.msra.mxu0 0.0
    %140 = vmatprep.subr.mxu0 0.0
    %141 = vmatpush1.msra.mxu0 0.0
    %142 = vmatprep.subr.mxu0 0.0
    %143 = vmatpush1.msra.mxu0 0.0
    %144 = vmatprep.subr.mxu0 0.0
    %145 = vmatpush1.msra.mxu0 0.0
    %146 = vmatprep.subr.mxu0 0.0
    %147 = vmatpush1.msra.mxu0 0.0
    %148 = vmatprep.mubr.f32.mxu0 0.0
    %149 = vmatmul.mubr.f32.gmra.mrb[0].mxu0 %v82
    %v150 = vpop.f32.mrb[0].mxu0
    %v151 = vadd.f32 0.0, %v150
    %v152 = vpop.f32.mrb[0].mxu0
    %153 = vdwg.mxu0
    %v154 = vadd.f32 %v75, %v151
    %v155 = vxor.u32 %v154, 2147483648
    %v156 = vmul.f32 %v155, 1.442695
    %v157 = vpow.pop %v156
    %v158 = vadd.f32 %v157, 1.0
    %v159 = vrcp.pop %v158
    %v160 = vmul.f32 1.0, %v159
    %v161 = vtanh.pop %v154
    %v162 = vmul.f32 %v160, 0.0
    %164 = vrot.lane.b32.xlu0 %v161, 64
    %v165 = vpop.permute.xlu0 %164
    %v167 = vmul.f32 %v160, %v165
    %169 = vrot.lane.b32.xlu0 %v167, 32
    %v170 = vpop.permute.xlu0 %169
    %v172 = vadd.f32 %v162, %v170
    %v173 = vtanh.pop %v172
    %175 = vrot.lane.b32.xlu0 %v173, 64
    %v176 = vpop.permute.xlu0 %175
    %v178 = vmul.f32 %v160, %v176
    %v181 = vunpack.c.l.s4 1966171168
    %v182 = vunpack.c.0.s8 %v181
    %v183 = vlaneseq
    %v184 = vshrl.u32 %v183, 7
    %v185 = vsub.s32 %v182, %v184
    %v186 = vrot.slane %v178, %v185
    %v187 = vcombine.high %v186, %v186
    %v189 = vunpack.c.l.s4 1966171168
    %v190 = vunpack.c.0.s8 %v189
    %v191 = vlaneseq
    %v192 = vshrl.u32 %v191, 7
    %v193 = vsub.s32 %v190, %v192
    %v194 = vrot.slane %v186, %v193
    %v196 = vunpack.c.l.s4 1966171168
    %v197 = vunpack.c.0.s8 %v196
    %v198 = vlaneseq
    %v199 = vshrl.u32 %v198, 7
    %v200 = vsub.s32 %v197, %v199
    %v201 = vrot.slane %v187, %v200
    %v202 = vlaneseq
    %v203 = vshrl.u32 %v202, 7
    %v204 = vsub.s32 0, %v203
    %v205 = vrot.slane %v194, %v204
    %v206 = vlaneseq
    %v207 = vshrl.u32 %v206, 7
    %v208 = vsub.s32 0, %v207
    %v209 = vrot.slane %v201, %v208
    %210 = vrot.lane.b32.xlu0 %v205, 32
    %v211 = vpop.permute.xlu0 %210
    %212 = vrot.lane.b32.xlu0 %v209, 32
    %v213 = vpop.permute.xlu0 %212
    %vm216 = vcmask 253952
    %217 = vst.msk [vmem:[#allocation2] sm:$0x1] %vm216, %v211
    %218 = vst.msk [vmem:[#allocation2 + $0x8] sm:$0x1] %vm216, %v213
    %s219 = scalar_lea.vmem %s0, 2
    %v220 = vld [vmem:[%s219] sm:$0x3]
    %v221 = vld [vmem:[%s1] sm:$0xff]
    %v222 = vld [vmem:[%s1 + $0x8] sm:$0xff]
    %v223 = vld [vmem:[%s1 + $0x10] sm:$0xff]
    %v224 = vld [vmem:[%s1 + $0x18] sm:$0xff]
    %225 = vrot.lane.b32.xlu0 %v178, 32
    %v226 = vpop.permute.xlu0 %225
    %v227 = vsel %vm80, %v226, 0
    %229 = vmatprep.subr.mxu0 0.0
    %230 = vmatpush1.msra.mxu0 %v221
    %231 = vmatprep.subr.mxu0 0.0
    %232 = vmatpush1.msra.mxu0 %v222
    %233 = vmatprep.subr.mxu0 0.0
    %234 = vmatpush1.msra.mxu0 %v223
    %235 = vmatprep.subr.mxu0 0.0
    %236 = vmatpush1.msra.mxu0 %v224
    %237 = vmatprep.subr.mxu0 0.0
    %238 = vmatpush1.msra.mxu0 0.0
    %239 = vmatprep.subr.mxu0 0.0
    %240 = vmatpush1.msra.mxu0 0.0
    %241 = vmatprep.subr.mxu0 0.0
    %242 = vmatpush1.msra.mxu0 0.0
    %243 = vmatprep.subr.mxu0 0.0
    %244 = vmatpush1.msra.mxu0 0.0
    %245 = vmatprep.subr.mxu0 0.0
    %246 = vmatpush1.msra.mxu0 0.0
    %247 = vmatprep.subr.mxu0 0.0
    %248 = vmatpush1.msra.mxu0 0.0
    %249 = vmatprep.subr.mxu0 0.0
    %250 = vmatpush1.msra.mxu0 0.0
    %251 = vmatprep.subr.mxu0 0.0
    %252 = vmatpush1.msra.mxu0 0.0
    %253 = vmatprep.subr.mxu0 0.0
    %254 = vmatpush1.msra.mxu0 0.0
    %255 = vmatprep.subr.mxu0 0.0
    %256 = vmatpush1.msra.mxu0 0.0
    %257 = vmatprep.subr.mxu0 0.0
    %258 = vmatpush1.msra.mxu0 0.0
    %259 = vmatprep.subr.mxu0 0.0
    %260 = vmatpush1.msra.mxu0 0.0
    %261 = vmatprep.subr.mxu0 0.0
    %262 = vmatpush1.msra.mxu0 0.0
    %263 = vmatprep.subr.mxu0 0.0
    %264 = vmatpush1.msra.mxu0 0.0
    %265 = vmatprep.subr.mxu0 0.0
    %266 = vmatpush1.msra.mxu0 0.0
    %267 = vmatprep.subr.mxu0 0.0
    %268 = vmatpush1.msra.mxu0 0.0
    %269 = vmatprep.subr.mxu0 0.0
    %270 = vmatpush1.msra.mxu0 0.0
    %271 = vmatprep.subr.mxu0 0.0
    %272 = vmatpush1.msra.mxu0 0.0
    %273 = vmatprep.subr.mxu0 0.0
    %274 = vmatpush1.msra.mxu0 0.0
    %275 = vmatprep.subr.mxu0 0.0
    %276 = vmatpush1.msra.mxu0 0.0
    %277 = vmatprep.subr.mxu0 0.0
    %278 = vmatpush1.msra.mxu0 0.0
    %279 = vmatprep.subr.mxu0 0.0
    %280 = vmatpush1.msra.mxu0 0.0
    %281 = vmatprep.subr.mxu0 0.0
    %282 = vmatpush1.msra.mxu0 0.0
    %283 = vmatprep.subr.mxu0 0.0
    %284 = vmatpush1.msra.mxu0 0.0
    %285 = vmatprep.subr.mxu0 0.0
    %286 = vmatpush1.msra.mxu0 0.0
    %287 = vmatprep.subr.mxu0 0.0
    %288 = vmatpush1.msra.mxu0 0.0
    %289 = vmatprep.subr.mxu0 0.0
    %290 = vmatpush1.msra.mxu0 0.0
    %291 = vmatprep.subr.mxu0 0.0
    %292 = vmatpush1.msra.mxu0 0.0
    %293 = vmatprep.mubr.f32.mxu0 0.0
    %294 = vmatmul.mubr.f32.gmra.mrb[0].mxu0 %v227
    %v295 = vpop.f32.mrb[0].mxu0
    %v296 = vadd.f32 0.0, %v295
    %v297 = vpop.f32.mrb[0].mxu0
    %298 = vdwg.mxu0
    %v299 = vadd.f32 %v220, %v296
    %v300 = vxor.u32 %v299, 2147483648
    %v301 = vmul.f32 %v300, 1.442695
    %v302 = vpow.pop %v301
    %v303 = vadd.f32 %v302, 1.0
    %v304 = vrcp.pop %v303
    %v305 = vmul.f32 1.0, %v304
    %v306 = vtanh.pop %v299
    %v307 = vmul.f32 %v305, %v172
    %309 = vrot.lane.b32.xlu0 %v306, 64
    %v310 = vpop.permute.xlu0 %309
    %v312 = vmul.f32 %v305, %v310
    %314 = vrot.lane.b32.xlu0 %v312, 32
    %v315 = vpop.permute.xlu0 %314
    %v317 = vadd.f32 %v307, %v315
    %v318 = vtanh.pop %v317
    %320 = vrot.lane.b32.xlu0 %v318, 64
    %v321 = vpop.permute.xlu0 %320
    %v323 = vmul.f32 %v305, %v321
    %v326 = vunpack.c.l.s4 1966171168
    %v327 = vunpack.c.0.s8 %v326
    %v328 = vlaneseq
    %v329 = vshrl.u32 %v328, 7
    %v330 = vsub.s32 %v327, %v329
    %v331 = vrot.slane %v323, %v330
    %v332 = vcombine.high %v331, %v331
    %v334 = vunpack.c.l.s4 1966171168
    %v335 = vunpack.c.0.s8 %v334
    %v336 = vlaneseq
    %v337 = vshrl.u32 %v336, 7
    %v338 = vsub.s32 %v335, %v337
    %v339 = vrot.slane %v331, %v338
    %v341 = vunpack.c.l.s4 1966171168
    %v342 = vunpack.c.0.s8 %v341
    %v343 = vlaneseq
    %v344 = vshrl.u32 %v343, 7
    %v345 = vsub.s32 %v342, %v344
    %v346 = vrot.slane %v332, %v345
    %v347 = vlaneseq
    %v348 = vshrl.u32 %v347, 7
    %v349 = vsub.s32 0, %v348
    %v350 = vrot.slane %v339, %v349
    %v351 = vlaneseq
    %v352 = vshrl.u32 %v351, 7
    %v353 = vsub.s32 0, %v352
    %v354 = vrot.slane %v346, %v353
    %355 = vrot.lane.b32.xlu0 %v350, 32
    %v356 = vpop.permute.xlu0 %355
    %357 = vrot.lane.b32.xlu0 %v354, 32
    %v358 = vpop.permute.xlu0 %357
    %361 = vst.msk [vmem:[#allocation2 + $0x1] sm:$0x1] %vm216, %v356
    %362 = vst.msk [vmem:[#allocation2 + $0x9] sm:$0x1] %vm216, %v358
    %s363 = scalar_lea.vmem %s0, 4
    %v364 = vld [vmem:[%s363] sm:$0x3]
    %v365 = vld [vmem:[%s1] sm:$0xff]
    %v366 = vld [vmem:[%s1 + $0x8] sm:$0xff]
    %v367 = vld [vmem:[%s1 + $0x10] sm:$0xff]
    %v368 = vld [vmem:[%s1 + $0x18] sm:$0xff]
    %369 = vrot.lane.b32.xlu0 %v323, 32
    %v370 = vpop.permute.xlu0 %369
    %v371 = vsel %vm80, %v370, 0
    %373 = vmatprep.subr.mxu0 0.0
    %374 = vmatpush1.msra.mxu0 %v365
    %375 = vmatprep.subr.mxu0 0.0
    %376 = vmatpush1.msra.mxu0 %v366
    %377 = vmatprep.subr.mxu0 0.0
    %378 = vmatpush1.msra.mxu0 %v367
    %379 = vmatprep.subr.mxu0 0.0
    %380 = vmatpush1.msra.mxu0 %v368
    %381 = vmatprep.subr.mxu0 0.0
    %382 = vmatpush1.msra.mxu0 0.0
    %383 = vmatprep.subr.mxu0 0.0
    %384 = vmatpush1.msra.mxu0 0.0
    %385 = vmatprep.subr.mxu0 0.0
    %386 = vmatpush1.msra.mxu0 0.0
    %387 = vmatprep.subr.mxu0 0.0
    %388 = vmatpush1.msra.mxu0 0.0
    %389 = vmatprep.subr.mxu0 0.0
    %390 = vmatpush1.msra.mxu0 0.0
    %391 = vmatprep.subr.mxu0 0.0
    %392 = vmatpush1.msra.mxu0 0.0
    %393 = vmatprep.subr.mxu0 0.0
    %394 = vmatpush1.msra.mxu0 0.0
    %395 = vmatprep.subr.mxu0 0.0
    %396 = vmatpush1.msra.mxu0 0.0
    %397 = vmatprep.subr.mxu0 0.0
    %398 = vmatpush1.msra.mxu0 0.0
    %399 = vmatprep.subr.mxu0 0.0
    %400 = vmatpush1.msra.mxu0 0.0
    %401 = vmatprep.subr.mxu0 0.0
    %402 = vmatpush1.msra.mxu0 0.0
    %403 = vmatprep.subr.mxu0 0.0
    %404 = vmatpush1.msra.mxu0 0.0
    %405 = vmatprep.subr.mxu0 0.0
    %406 = vmatpush1.msra.mxu0 0.0
    %407 = vmatprep.subr.mxu0 0.0
    %408 = vmatpush1.msra.mxu0 0.0
    %409 = vmatprep.subr.mxu0 0.0
    %410 = vmatpush1.msra.mxu0 0.0
    %411 = vmatprep.subr.mxu0 0.0
    %412 = vmatpush1.msra.mxu0 0.0
    %413 = vmatprep.subr.mxu0 0.0
    %414 = vmatpush1.msra.mxu0 0.0
    %415 = vmatprep.subr.mxu0 0.0
    %416 = vmatpush1.msra.mxu0 0.0
    %417 = vmatprep.subr.mxu0 0.0
    %418 = vmatpush1.msra.mxu0 0.0
    %419 = vmatprep.subr.mxu0 0.0
    %420 = vmatpush1.msra.mxu0 0.0
    %421 = vmatprep.subr.mxu0 0.0
    %422 = vmatpush1.msra.mxu0 0.0
    %423 = vmatprep.subr.mxu0 0.0
    %424 = vmatpush1.msra.mxu0 0.0
    %425 = vmatprep.subr.mxu0 0.0
    %426 = vmatpush1.msra.mxu0 0.0
    %427 = vmatprep.subr.mxu0 0.0
    %428 = vmatpush1.msra.mxu0 0.0
    %429 = vmatprep.subr.mxu0 0.0
    %430 = vmatpush1.msra.mxu0 0.0
    %431 = vmatprep.subr.mxu0 0.0
    %432 = vmatpush1.msra.mxu0 0.0
    %433 = vmatprep.subr.mxu0 0.0
    %434 = vmatpush1.msra.mxu0 0.0
    %435 = vmatprep.subr.mxu0 0.0
    %436 = vmatpush1.msra.mxu0 0.0
    %437 = vmatprep.mubr.f32.mxu0 0.0
    %438 = vmatmul.mubr.f32.gmra.mrb[0].mxu0 %v371
    %v439 = vpop.f32.mrb[0].mxu0
    %v440 = vadd.f32 0.0, %v439
    %v441 = vpop.f32.mrb[0].mxu0
    %442 = vdwg.mxu0
    %v443 = vadd.f32 %v364, %v440
    %v444 = vxor.u32 %v443, 2147483648
    %v445 = vmul.f32 %v444, 1.442695
    %v446 = vpow.pop %v445
    %v447 = vadd.f32 %v446, 1.0
    %v448 = vrcp.pop %v447
    %v449 = vmul.f32 1.0, %v448
    %v450 = vtanh.pop %v443
    %v451 = vmul.f32 %v449, %v317
    %453 = vrot.lane.b32.xlu0 %v450, 64
    %v454 = vpop.permute.xlu0 %453
    %v456 = vmul.f32 %v449, %v454
    %458 = vrot.lane.b32.xlu0 %v456, 32
    %v459 = vpop.permute.xlu0 %458
    %v461 = vadd.f32 %v451, %v459
    %v462 = vtanh.pop %v461
    %464 = vrot.lane.b32.xlu0 %v462, 64
    %v465 = vpop.permute.xlu0 %464
    %v467 = vmul.f32 %v449, %v465
    %v470 = vunpack.c.l.s4 1966171168
    %v471 = vunpack.c.0.s8 %v470
    %v472 = vlaneseq
    %v473 = vshrl.u32 %v472, 7
    %v474 = vsub.s32 %v471, %v473
    %v475 = vrot.slane %v467, %v474
    %v476 = vcombine.high %v475, %v475
    %v478 = vunpack.c.l.s4 1966171168
    %v479 = vunpack.c.0.s8 %v478
    %v480 = vlaneseq
    %v481 = vshrl.u32 %v480, 7
    %v482 = vsub.s32 %v479, %v481
    %v483 = vrot.slane %v475, %v482
    %v485 = vunpack.c.l.s4 1966171168
    %v486 = vunpack.c.0.s8 %v485
    %v487 = vlaneseq
    %v488 = vshrl.u32 %v487, 7
    %v489 = vsub.s32 %v486, %v488
    %v490 = vrot.slane %v476, %v489
    %v491 = vlaneseq
    %v492 = vshrl.u32 %v491, 7
    %v493 = vsub.s32 0, %v492
    %v494 = vrot.slane %v483, %v493
    %v495 = vlaneseq
    %v496 = vshrl.u32 %v495, 7
    %v497 = vsub.s32 0, %v496
    %v498 = vrot.slane %v490, %v497
    %499 = vrot.lane.b32.xlu0 %v494, 32
    %v500 = vpop.permute.xlu0 %499
    %501 = vrot.lane.b32.xlu0 %v498, 32
    %v502 = vpop.permute.xlu0 %501
    %505 = vst.msk [vmem:[#allocation2 + $0x2] sm:$0x1] %vm216, %v500
    %506 = vst.msk [vmem:[#allocation2 + $0xa] sm:$0x1] %vm216, %v502
    %s507 = scalar_lea.vmem %s0, 6
    %v508 = vld [vmem:[%s507] sm:$0x3]
    %v509 = vld [vmem:[%s1] sm:$0xff]
    %v510 = vld [vmem:[%s1 + $0x8] sm:$0xff]
    %v511 = vld [vmem:[%s1 + $0x10] sm:$0xff]
    %v512 = vld [vmem:[%s1 + $0x18] sm:$0xff]
    %513 = vrot.lane.b32.xlu0 %v467, 32
    %v514 = vpop.permute.xlu0 %513
    %v515 = vsel %vm80, %v514, 0
    %517 = vmatprep.subr.mxu0 0.0
    %518 = vmatpush1.msra.mxu0 %v509
    %519 = vmatprep.subr.mxu0 0.0
    %520 = vmatpush1.msra.mxu0 %v510
    %521 = vmatprep.subr.mxu0 0.0
    %522 = vmatpush1.msra.mxu0 %v511
    %523 = vmatprep.subr.mxu0 0.0
    %524 = vmatpush1.msra.mxu0 %v512
    %525 = vmatprep.subr.mxu0 0.0
    %526 = vmatpush1.msra.mxu0 0.0
    %527 = vmatprep.subr.mxu0 0.0
    %528 = vmatpush1.msra.mxu0 0.0
    %529 = vmatprep.subr.mxu0 0.0
    %530 = vmatpush1.msra.mxu0 0.0
    %531 = vmatprep.subr.mxu0 0.0
    %532 = vmatpush1.msra.mxu0 0.0
    %533 = vmatprep.subr.mxu0 0.0
    %534 = vmatpush1.msra.mxu0 0.0
    %535 = vmatprep.subr.mxu0 0.0
    %536 = vmatpush1.msra.mxu0 0.0
    %537 = vmatprep.subr.mxu0 0.0
    %538 = vmatpush1.msra.mxu0 0.0
    %539 = vmatprep.subr.mxu0 0.0
    %540 = vmatpush1.msra.mxu0 0.0
    %541 = vmatprep.subr.mxu0 0.0
    %542 = vmatpush1.msra.mxu0 0.0
    %543 = vmatprep.subr.mxu0 0.0
    %544 = vmatpush1.msra.mxu0 0.0
    %545 = vmatprep.subr.mxu0 0.0
    %546 = vmatpush1.msra.mxu0 0.0
    %547 = vmatprep.subr.mxu0 0.0
    %548 = vmatpush1.msra.mxu0 0.0
    %549 = vmatprep.subr.mxu0 0.0
    %550 = vmatpush1.msra.mxu0 0.0
    %551 = vmatprep.subr.mxu0 0.0
    %552 = vmatpush1.msra.mxu0 0.0
    %553 = vmatprep.subr.mxu0 0.0
    %554 = vmatpush1.msra.mxu0 0.0
    %555 = vmatprep.subr.mxu0 0.0
    %556 = vmatpush1.msra.mxu0 0.0
    %557 = vmatprep.subr.mxu0 0.0
    %558 = vmatpush1.msra.mxu0 0.0
    %559 = vmatprep.subr.mxu0 0.0
    %560 = vmatpush1.msra.mxu0 0.0
    %561 = vmatprep.subr.mxu0 0.0
    %562 = vmatpush1.msra.mxu0 0.0
    %563 = vmatprep.subr.mxu0 0.0
    %564 = vmatpush1.msra.mxu0 0.0
    %565 = vmatprep.subr.mxu0 0.0
    %566 = vmatpush1.msra.mxu0 0.0
    %567 = vmatprep.subr.mxu0 0.0
    %568 = vmatpush1.msra.mxu0 0.0
    %569 = vmatprep.subr.mxu0 0.0
    %570 = vmatpush1.msra.mxu0 0.0
    %571 = vmatprep.subr.mxu0 0.0
    %572 = vmatpush1.msra.mxu0 0.0
    %573 = vmatprep.subr.mxu0 0.0
    %574 = vmatpush1.msra.mxu0 0.0
    %575 = vmatprep.subr.mxu0 0.0
    %576 = vmatpush1.msra.mxu0 0.0
    %577 = vmatprep.subr.mxu0 0.0
    %578 = vmatpush1.msra.mxu0 0.0
    %579 = vmatprep.subr.mxu0 0.0
    %580 = vmatpush1.msra.mxu0 0.0
    %581 = vmatprep.mubr.f32.mxu0 0.0
    %582 = vmatmul.mubr.f32.gmra.mrb[0].mxu0 %v515
    %v583 = vpop.f32.mrb[0].mxu0
    %v584 = vadd.f32 0.0, %v583
    %v585 = vpop.f32.mrb[0].mxu0
    %586 = vdwg.mxu0
    %v587 = vadd.f32 %v508, %v584
    %v588 = vxor.u32 %v587, 2147483648
    %v589 = vmul.f32 %v588, 1.442695
    %v590 = vpow.pop %v589
    %v591 = vadd.f32 %v590, 1.0
    %v592 = vrcp.pop %v591
    %v593 = vmul.f32 1.0, %v592
    %v594 = vtanh.pop %v587
    %v595 = vmul.f32 %v593, %v461
    %597 = vrot.lane.b32.xlu0 %v594, 64
    %v598 = vpop.permute.xlu0 %597
    %v600 = vmul.f32 %v593, %v598
    %602 = vrot.lane.b32.xlu0 %v600, 32
    %v603 = vpop.permute.xlu0 %602
    %v605 = vadd.f32 %v595, %v603
    %v606 = vtanh.pop %v605
    %608 = vrot.lane.b32.xlu0 %v606, 64
    %v609 = vpop.permute.xlu0 %608
    %v611 = vmul.f32 %v593, %v609
    %v614 = vunpack.c.l.s4 1966171168
    %v615 = vunpack.c.0.s8 %v614
    %v616 = vlaneseq
    %v617 = vshrl.u32 %v616, 7
    %v618 = vsub.s32 %v615, %v617
    %v619 = vrot.slane %v611, %v618
    %v620 = vcombine.high %v619, %v619
    %v622 = vunpack.c.l.s4 1966171168
    %v623 = vunpack.c.0.s8 %v622
    %v624 = vlaneseq
    %v625 = vshrl.u32 %v624, 7
    %v626 = vsub.s32 %v623, %v625
    %v627 = vrot.slane %v619, %v626
    %v629 = vunpack.c.l.s4 1966171168
    %v630 = vunpack.c.0.s8 %v629
    %v631 = vlaneseq
    %v632 = vshrl.u32 %v631, 7
    %v633 = vsub.s32 %v630, %v632
    %v634 = vrot.slane %v620, %v633
    %v635 = vlaneseq
    %v636 = vshrl.u32 %v635, 7
    %v637 = vsub.s32 0, %v636
    %v638 = vrot.slane %v627, %v637
    %v639 = vlaneseq
    %v640 = vshrl.u32 %v639, 7
    %v641 = vsub.s32 0, %v640
    %v642 = vrot.slane %v634, %v641
    %643 = vrot.lane.b32.xlu0 %v638, 32
    %v644 = vpop.permute.xlu0 %643
    %645 = vrot.lane.b32.xlu0 %v642, 32
    %v646 = vpop.permute.xlu0 %645
    %649 = vst.msk [vmem:[#allocation2 + $0x3] sm:$0x1] %vm216, %v644
    %650 = vst.msk [vmem:[#allocation2 + $0xb] sm:$0x1] %vm216, %v646
    %s651 = scalar_lea.vmem %s0, 8
    %v652 = vld [vmem:[%s651] sm:$0x3]
    %v653 = vld [vmem:[%s1] sm:$0xff]
    %v654 = vld [vmem:[%s1 + $0x8] sm:$0xff]
    %v655 = vld [vmem:[%s1 + $0x10] sm:$0xff]
    %v656 = vld [vmem:[%s1 + $0x18] sm:$0xff]
    %657 = vrot.lane.b32.xlu0 %v611, 32
    %v658 = vpop.permute.xlu0 %657
    %v659 = vsel %vm80, %v658, 0
    %661 = vmatprep.subr.mxu0 0.0
    %662 = vmatpush1.msra.mxu0 %v653
    %663 = vmatprep.subr.mxu0 0.0
    %664 = vmatpush1.msra.mxu0 %v654
    %665 = vmatprep.subr.mxu0 0.0
    %666 = vmatpush1.msra.mxu0 %v655
    %667 = vmatprep.subr.mxu0 0.0
    %668 = vmatpush1.msra.mxu0 %v656
    %669 = vmatprep.subr.mxu0 0.0
    %670 = vmatpush1.msra.mxu0 0.0
    %671 = vmatprep.subr.mxu0 0.0
    %672 = vmatpush1.msra.mxu0 0.0
    %673 = vmatprep.subr.mxu0 0.0
    %674 = vmatpush1.msra.mxu0 0.0
    %675 = vmatprep.subr.mxu0 0.0
    %676 = vmatpush1.msra.mxu0 0.0
    %677 = vmatprep.subr.mxu0 0.0
    %678 = vmatpush1.msra.mxu0 0.0
    %679 = vmatprep.subr.mxu0 0.0
    %680 = vmatpush1.msra.mxu0 0.0
    %681 = vmatprep.subr.mxu0 0.0
    %682 = vmatpush1.msra.mxu0 0.0
    %683 = vmatprep.subr.mxu0 0.0
    %684 = vmatpush1.msra.mxu0 0.0
    %685 = vmatprep.subr.mxu0 0.0
    %686 = vmatpush1.msra.mxu0 0.0
    %687 = vmatprep.subr.mxu0 0.0
    %688 = vmatpush1.msra.mxu0 0.0
    %689 = vmatprep.subr.mxu0 0.0
    %690 = vmatpush1.msra.mxu0 0.0
    %691 = vmatprep.subr.mxu0 0.0
    %692 = vmatpush1.msra.mxu0 0.0
    %693 = vmatprep.subr.mxu0 0.0
    %694 = vmatpush1.msra.mxu0 0.0
    %695 = vmatprep.subr.mxu0 0.0
    %696 = vmatpush1.msra.mxu0 0.0
    %697 = vmatprep.subr.mxu0 0.0
    %698 = vmatpush1.msra.mxu0 0.0
    %699 = vmatprep.subr.mxu0 0.0
    %700 = vmatpush1.msra.mxu0 0.0
    %701 = vmatprep.subr.mxu0 0.0
    %702 = vmatpush1.msra.mxu0 0.0
    %703 = vmatprep.subr.mxu0 0.0
    %704 = vmatpush1.msra.mxu0 0.0
    %705 = vmatprep.subr.mxu0 0.0
    %706 = vmatpush1.msra.mxu0 0.0
    %707 = vmatprep.subr.mxu0 0.0
    %708 = vmatpush1.msra.mxu0 0.0
    %709 = vmatprep.subr.mxu0 0.0
    %710 = vmatpush1.msra.mxu0 0.0
    %711 = vmatprep.subr.mxu0 0.0
    %712 = vmatpush1.msra.mxu0 0.0
    %713 = vmatprep.subr.mxu0 0.0
    %714 = vmatpush1.msra.mxu0 0.0
    %715 = vmatprep.subr.mxu0 0.0
    %716 = vmatpush1.msra.mxu0 0.0
    %717 = vmatprep.subr.mxu0 0.0
    %718 = vmatpush1.msra.mxu0 0.0
    %719 = vmatprep.subr.mxu0 0.0
    %720 = vmatpush1.msra.mxu0 0.0
    %721 = vmatprep.subr.mxu0 0.0
    %722 = vmatpush1.msra.mxu0 0.0
    %723 = vmatprep.subr.mxu0 0.0
    %724 = vmatpush1.msra.mxu0 0.0
    %725 = vmatprep.mubr.f32.mxu0 0.0
    %726 = vmatmul.mubr.f32.gmra.mrb[0].mxu0 %v659
    %v727 = vpop.f32.mrb[0].mxu0
    %v728 = vadd.f32 0.0, %v727
    %v729 = vpop.f32.mrb[0].mxu0
    %730 = vdwg.mxu0
    %v731 = vadd.f32 %v652, %v728
    %v732 = vxor.u32 %v731, 2147483648
    %v733 = vmul.f32 %v732, 1.442695
    %v734 = vpow.pop %v733
    %v735 = vadd.f32 %v734, 1.0
    %v736 = vrcp.pop %v735
    %v737 = vmul.f32 1.0, %v736
    %v738 = vtanh.pop %v731
    %v739 = vmul.f32 %v737, %v605
    %741 = vrot.lane.b32.xlu0 %v738, 64
    %v742 = vpop.permute.xlu0 %741
    %v744 = vmul.f32 %v737, %v742
    %746 = vrot.lane.b32.xlu0 %v744, 32
    %v747 = vpop.permute.xlu0 %746
    %v749 = vadd.f32 %v739, %v747
    %v750 = vtanh.pop %v749
    %752 = vrot.lane.b32.xlu0 %v750, 64
    %v753 = vpop.permute.xlu0 %752
    %v755 = vmul.f32 %v737, %v753
    %v758 = vunpack.c.l.s4 1966171168
    %v759 = vunpack.c.0.s8 %v758
    %v760 = vlaneseq
    %v761 = vshrl.u32 %v760, 7
    %v762 = vsub.s32 %v759, %v761
    %v763 = vrot.slane %v755, %v762
    %v764 = vcombine.high %v763, %v763
    %v766 = vunpack.c.l.s4 1966171168
    %v767 = vunpack.c.0.s8 %v766
    %v768 = vlaneseq
    %v769 = vshrl.u32 %v768, 7
    %v770 = vsub.s32 %v767, %v769
    %v771 = vrot.slane %v763, %v770
    %v773 = vunpack.c.l.s4 1966171168
    %v774 = vunpack.c.0.s8 %v773
    %v775 = vlaneseq
    %v776 = vshrl.u32 %v775, 7
    %v777 = vsub.s32 %v774, %v776
    %v778 = vrot.slane %v764, %v777
    %v779 = vlaneseq
    %v780 = vshrl.u32 %v779, 7
    %v781 = vsub.s32 0, %v780
    %v782 = vrot.slane %v771, %v781
    %v783 = vlaneseq
    %v784 = vshrl.u32 %v783, 7
    %v785 = vsub.s32 0, %v784
    %v786 = vrot.slane %v778, %v785
    %787 = vrot.lane.b32.xlu0 %v782, 32
    %v788 = vpop.permute.xlu0 %787
    %789 = vrot.lane.b32.xlu0 %v786, 32
    %v790 = vpop.permute.xlu0 %789
    %793 = vst.msk [vmem:[#allocation2 + $0x4] sm:$0x1] %vm216, %v788
    %794 = vst.msk [vmem:[#allocation2 + $0xc] sm:$0x1] %vm216, %v790
    %s795 = scalar_lea.vmem %s0, 10
    %v796 = vld [vmem:[%s795] sm:$0x3]
    %v797 = vld [vmem:[%s1] sm:$0xff]
    %v798 = vld [vmem:[%s1 + $0x8] sm:$0xff]
    %v799 = vld [vmem:[%s1 + $0x10] sm:$0xff]
    %v800 = vld [vmem:[%s1 + $0x18] sm:$0xff]
    %801 = vrot.lane.b32.xlu0 %v755, 32
    %v802 = vpop.permute.xlu0 %801
    %v803 = vsel %vm80, %v802, 0
    %805 = vmatprep.subr.mxu0 0.0
    %806 = vmatpush1.msra.mxu0 %v797
    %807 = vmatprep.subr.mxu0 0.0
    %808 = vmatpush1.msra.mxu0 %v798
    %809 = vmatprep.subr.mxu0 0.0
    %810 = vmatpush1.msra.mxu0 %v799
    %811 = vmatprep.subr.mxu0 0.0
    %812 = vmatpush1.msra.mxu0 %v800
    %813 = vmatprep.subr.mxu0 0.0
    %814 = vmatpush1.msra.mxu0 0.0
    %815 = vmatprep.subr.mxu0 0.0
    %816 = vmatpush1.msra.mxu0 0.0
    %817 = vmatprep.subr.mxu0 0.0
    %818 = vmatpush1.msra.mxu0 0.0
    %819 = vmatprep.subr.mxu0 0.0
    %820 = vmatpush1.msra.mxu0 0.0
    %821 = vmatprep.subr.mxu0 0.0
    %822 = vmatpush1.msra.mxu0 0.0
    %823 = vmatprep.subr.mxu0 0.0
    %824 = vmatpush1.msra.mxu0 0.0
    %825 = vmatprep.subr.mxu0 0.0
    %826 = vmatpush1.msra.mxu0 0.0
    %827 = vmatprep.subr.mxu0 0.0
    %828 = vmatpush1.msra.mxu0 0.0
    %829 = vmatprep.subr.mxu0 0.0
    %830 = vmatpush1.msra.mxu0 0.0
    %831 = vmatprep.subr.mxu0 0.0
    %832 = vmatpush1.msra.mxu0 0.0
    %833 = vmatprep.subr.mxu0 0.0
    %834 = vmatpush1.msra.mxu0 0.0
    %835 = vmatprep.subr.mxu0 0.0
    %836 = vmatpush1.msra.mxu0 0.0
    %837 = vmatprep.subr.mxu0 0.0
    %838 = vmatpush1.msra.mxu0 0.0
    %839 = vmatprep.subr.mxu0 0.0
    %840 = vmatpush1.msra.mxu0 0.0
    %841 = vmatprep.subr.mxu0 0.0
    %842 = vmatpush1.msra.mxu0 0.0
    %843 = vmatprep.subr.mxu0 0.0
    %844 = vmatpush1.msra.mxu0 0.0
    %845 = vmatprep.subr.mxu0 0.0
    %846 = vmatpush1.msra.mxu0 0.0
    %847 = vmatprep.subr.mxu0 0.0
    %848 = vmatpush1.msra.mxu0 0.0
    %849 = vmatprep.subr.mxu0 0.0
    %850 = vmatpush1.msra.mxu0 0.0
    %851 = vmatprep.subr.mxu0 0.0
    %852 = vmatpush1.msra.mxu0 0.0
    %853 = vmatprep.subr.mxu0 0.0
    %854 = vmatpush1.msra.mxu0 0.0
    %855 = vmatprep.subr.mxu0 0.0
    %856 = vmatpush1.msra.mxu0 0.0
    %857 = vmatprep.subr.mxu0 0.0
    %858 = vmatpush1.msra.mxu0 0.0
    %859 = vmatprep.subr.mxu0 0.0
    %860 = vmatpush1.msra.mxu0 0.0
    %861 = vmatprep.subr.mxu0 0.0
    %862 = vmatpush1.msra.mxu0 0.0
    %863 = vmatprep.subr.mxu0 0.0
    %864 = vmatpush1.msra.mxu0 0.0
    %865 = vmatprep.subr.mxu0 0.0
    %866 = vmatpush1.msra.mxu0 0.0
    %867 = vmatprep.subr.mxu0 0.0
    %868 = vmatpush1.msra.mxu0 0.0
    %869 = vmatprep.mubr.f32.mxu0 0.0
    %870 = vmatmul.mubr.f32.gmra.mrb[0].mxu0 %v803
    %v871 = vpop.f32.mrb[0].mxu0
    %v872 = vadd.f32 0.0, %v871
    %v873 = vpop.f32.mrb[0].mxu0
    %874 = vdwg.mxu0
    %v875 = vadd.f32 %v796, %v872
    %v876 = vxor.u32 %v875, 2147483648
    %v877 = vmul.f32 %v876, 1.442695
    %v878 = vpow.pop %v877
    %v879 = vadd.f32 %v878, 1.0
    %v880 = vrcp.pop %v879
    %v881 = vmul.f32 1.0, %v880
    %v882 = vtanh.pop %v875
    %v883 = vmul.f32 %v881, %v749
    %885 = vrot.lane.b32.xlu0 %v882, 64
    %v886 = vpop.permute.xlu0 %885
    %v888 = vmul.f32 %v881, %v886
    %890 = vrot.lane.b32.xlu0 %v888, 32
    %v891 = vpop.permute.xlu0 %890
    %v893 = vadd.f32 %v883, %v891
    %v894 = vtanh.pop %v893
    %896 = vrot.lane.b32.xlu0 %v894, 64
    %v897 = vpop.permute.xlu0 %896
    %v899 = vmul.f32 %v881, %v897
    %v902 = vunpack.c.l.s4 1966171168
    %v903 = vunpack.c.0.s8 %v902
    %v904 = vlaneseq
    %v905 = vshrl.u32 %v904, 7
    %v906 = vsub.s32 %v903, %v905
    %v907 = vrot.slane %v899, %v906
    %v908 = vcombine.high %v907, %v907
    %v910 = vunpack.c.l.s4 1966171168
    %v911 = vunpack.c.0.s8 %v910
    %v912 = vlaneseq
    %v913 = vshrl.u32 %v912, 7
    %v914 = vsub.s32 %v911, %v913
    %v915 = vrot.slane %v907, %v914
    %v917 = vunpack.c.l.s4 1966171168
    %v918 = vunpack.c.0.s8 %v917
    %v919 = vlaneseq
    %v920 = vshrl.u32 %v919, 7
    %v921 = vsub.s32 %v918, %v920
    %v922 = vrot.slane %v908, %v921
    %v923 = vlaneseq
    %v924 = vshrl.u32 %v923, 7
    %v925 = vsub.s32 0, %v924
    %v926 = vrot.slane %v915, %v925
    %v927 = vlaneseq
    %v928 = vshrl.u32 %v927, 7
    %v929 = vsub.s32 0, %v928
    %v930 = vrot.slane %v922, %v929
    %931 = vrot.lane.b32.xlu0 %v926, 32
    %v932 = vpop.permute.xlu0 %931
    %933 = vrot.lane.b32.xlu0 %v930, 32
    %v934 = vpop.permute.xlu0 %933
    %937 = vst.msk [vmem:[#allocation2 + $0x5] sm:$0x1] %vm216, %v932
    %938 = vst.msk [vmem:[#allocation2 + $0xd] sm:$0x1] %vm216, %v934
    %s939 = scalar_lea.vmem %s0, 12
    %v940 = vld [vmem:[%s939] sm:$0x3]
    %v941 = vld [vmem:[%s1] sm:$0xff]
    %v942 = vld [vmem:[%s1 + $0x8] sm:$0xff]
    %v943 = vld [vmem:[%s1 + $0x10] sm:$0xff]
    %v944 = vld [vmem:[%s1 + $0x18] sm:$0xff]
    %945 = vrot.lane.b32.xlu0 %v899, 32
    %v946 = vpop.permute.xlu0 %945
    %v947 = vsel %vm80, %v946, 0
    %949 = vmatprep.subr.mxu0 0.0
    %950 = vmatpush1.msra.mxu0 %v941
    %951 = vmatprep.subr.mxu0 0.0
    %952 = vmatpush1.msra.mxu0 %v942
    %953 = vmatprep.subr.mxu0 0.0
    %954 = vmatpush1.msra.mxu0 %v943
    %955 = vmatprep.subr.mxu0 0.0
    %956 = vmatpush1.msra.mxu0 %v944
    %957 = vmatprep.subr.mxu0 0.0
    %958 = vmatpush1.msra.mxu0 0.0
    %959 = vmatprep.subr.mxu0 0.0
    %960 = vmatpush1.msra.mxu0 0.0
    %961 = vmatprep.subr.mxu0 0.0
    %962 = vmatpush1.msra.mxu0 0.0
    %963 = vmatprep.subr.mxu0 0.0
    %964 = vmatpush1.msra.mxu0 0.0
    %965 = vmatprep.subr.mxu0 0.0
    %966 = vmatpush1.msra.mxu0 0.0
    %967 = vmatprep.subr.mxu0 0.0
    %968 = vmatpush1.msra.mxu0 0.0
    %969 = vmatprep.subr.mxu0 0.0
    %970 = vmatpush1.msra.mxu0 0.0
    %971 = vmatprep.subr.mxu0 0.0
    %972 = vmatpush1.msra.mxu0 0.0
    %973 = vmatprep.subr.mxu0 0.0
    %974 = vmatpush1.msra.mxu0 0.0
    %975 = vmatprep.subr.mxu0 0.0
    %976 = vmatpush1.msra.mxu0 0.0
    %977 = vmatprep.subr.mxu0 0.0
    %978 = vmatpush1.msra.mxu0 0.0
    %979 = vmatprep.subr.mxu0 0.0
    %980 = vmatpush1.msra.mxu0 0.0
    %981 = vmatprep.subr.mxu0 0.0
    %982 = vmatpush1.msra.mxu0 0.0
    %983 = vmatprep.subr.mxu0 0.0
    %984 = vmatpush1.msra.mxu0 0.0
    %985 = vmatprep.subr.mxu0 0.0
    %986 = vmatpush1.msra.mxu0 0.0
    %987 = vmatprep.subr.mxu0 0.0
    %988 = vmatpush1.msra.mxu0 0.0
    %989 = vmatprep.subr.mxu0 0.0
    %990 = vmatpush1.msra.mxu0 0.0
    %991 = vmatprep.subr.mxu0 0.0
    %992 = vmatpush1.msra.mxu0 0.0
    %993 = vmatprep.subr.mxu0 0.0
    %994 = vmatpush1.msra.mxu0 0.0
    %995 = vmatprep.subr.mxu0 0.0
    %996 = vmatpush1.msra.mxu0 0.0
    %997 = vmatprep.subr.mxu0 0.0
    %998 = vmatpush1.msra.mxu0 0.0
    %999 = vmatprep.subr.mxu0 0.0
    %1000 = vmatpush1.msra.mxu0 0.0
    %1001 = vmatprep.subr.mxu0 0.0
    %1002 = vmatpush1.msra.mxu0 0.0
    %1003 = vmatprep.subr.mxu0 0.0
    %1004 = vmatpush1.msra.mxu0 0.0
    %1005 = vmatprep.subr.mxu0 0.0
    %1006 = vmatpush1.msra.mxu0 0.0
    %1007 = vmatprep.subr.mxu0 0.0
    %1008 = vmatpush1.msra.mxu0 0.0
    %1009 = vmatprep.subr.mxu0 0.0
    %1010 = vmatpush1.msra.mxu0 0.0
    %1011 = vmatprep.subr.mxu0 0.0
    %1012 = vmatpush1.msra.mxu0 0.0
    %1013 = vmatprep.mubr.f32.mxu0 0.0
    %1014 = vmatmul.mubr.f32.gmra.mrb[0].mxu0 %v947
    %v1015 = vpop.f32.mrb[0].mxu0
    %v1016 = vadd.f32 0.0, %v1015
    %v1017 = vpop.f32.mrb[0].mxu0
    %1018 = vdwg.mxu0
    %v1019 = vadd.f32 %v940, %v1016
    %v1020 = vxor.u32 %v1019, 2147483648
    %v1021 = vmul.f32 %v1020, 1.442695
    %v1022 = vpow.pop %v1021
    %v1023 = vadd.f32 %v1022, 1.0
    %v1024 = vrcp.pop %v1023
    %v1025 = vmul.f32 1.0, %v1024
    %v1026 = vtanh.pop %v1019
    %v1027 = vmul.f32 %v1025, %v893
    %1029 = vrot.lane.b32.xlu0 %v1026, 64
    %v1030 = vpop.permute.xlu0 %1029
    %v1032 = vmul.f32 %v1025, %v1030
    %1034 = vrot.lane.b32.xlu0 %v1032, 32
    %v1035 = vpop.permute.xlu0 %1034
    %v1037 = vadd.f32 %v1027, %v1035
    %v1038 = vtanh.pop %v1037
    %1040 = vrot.lane.b32.xlu0 %v1038, 64
    %v1041 = vpop.permute.xlu0 %1040
    %v1043 = vmul.f32 %v1025, %v1041
    %v1046 = vunpack.c.l.s4 1966171168
    %v1047 = vunpack.c.0.s8 %v1046
    %v1048 = vlaneseq
    %v1049 = vshrl.u32 %v1048, 7
    %v1050 = vsub.s32 %v1047, %v1049
    %v1051 = vrot.slane %v1043, %v1050
    %v1052 = vcombine.high %v1051, %v1051
    %v1054 = vunpack.c.l.s4 1966171168
    %v1055 = vunpack.c.0.s8 %v1054
    %v1056 = vlaneseq
    %v1057 = vshrl.u32 %v1056, 7
    %v1058 = vsub.s32 %v1055, %v1057
    %v1059 = vrot.slane %v1051, %v1058
    %v1061 = vunpack.c.l.s4 1966171168
    %v1062 = vunpack.c.0.s8 %v1061
    %v1063 = vlaneseq
    %v1064 = vshrl.u32 %v1063, 7
    %v1065 = vsub.s32 %v1062, %v1064
    %v1066 = vrot.slane %v1052, %v1065
    %v1067 = vlaneseq
    %v1068 = vshrl.u32 %v1067, 7
    %v1069 = vsub.s32 0, %v1068
    %v1070 = vrot.slane %v1059, %v1069
    %v1071 = vlaneseq
    %v1072 = vshrl.u32 %v1071, 7
    %v1073 = vsub.s32 0, %v1072
    %v1074 = vrot.slane %v1066, %v1073
    %1075 = vrot.lane.b32.xlu0 %v1070, 32
    %v1076 = vpop.permute.xlu0 %1075
    %1077 = vrot.lane.b32.xlu0 %v1074, 32
    %v1078 = vpop.permute.xlu0 %1077
    %1081 = vst.msk [vmem:[#allocation2 + $0x6] sm:$0x1] %vm216, %v1076
    %1082 = vst.msk [vmem:[#allocation2 + $0xe] sm:$0x1] %vm216, %v1078
    %s1083 = scalar_lea.vmem %s0, 14
    %v1084 = vld [vmem:[%s1083] sm:$0x3]
    %v1085 = vld [vmem:[%s1] sm:$0xff]
    %v1086 = vld [vmem:[%s1 + $0x8] sm:$0xff]
    %v1087 = vld [vmem:[%s1 + $0x10] sm:$0xff]
    %v1088 = vld [vmem:[%s1 + $0x18] sm:$0xff]
    %1089 = vrot.lane.b32.xlu0 %v1043, 32
    %v1090 = vpop.permute.xlu0 %1089
    %v1091 = vsel %vm80, %v1090, 0
    %1093 = vmatprep.subr.mxu0 0.0
    %1094 = vmatpush1.msra.mxu0 %v1085
    %1095 = vmatprep.subr.mxu0 0.0
    %1096 = vmatpush1.msra.mxu0 %v1086
    %1097 = vmatprep.subr.mxu0 0.0
    %1098 = vmatpush1.msra.mxu0 %v1087
    %1099 = vmatprep.subr.mxu0 0.0
    %1100 = vmatpush1.msra.mxu0 %v1088
    %1101 = vmatprep.subr.mxu0 0.0
    %1102 = vmatpush1.msra.mxu0 0.0
    %1103 = vmatprep.subr.mxu0 0.0
    %1104 = vmatpush1.msra.mxu0 0.0
    %1105 = vmatprep.subr.mxu0 0.0
    %1106 = vmatpush1.msra.mxu0 0.0
    %1107 = vmatprep.subr.mxu0 0.0
    %1108 = vmatpush1.msra.mxu0 0.0
    %1109 = vmatprep.subr.mxu0 0.0
    %1110 = vmatpush1.msra.mxu0 0.0
    %1111 = vmatprep.subr.mxu0 0.0
    %1112 = vmatpush1.msra.mxu0 0.0
    %1113 = vmatprep.subr.mxu0 0.0
    %1114 = vmatpush1.msra.mxu0 0.0
    %1115 = vmatprep.subr.mxu0 0.0
    %1116 = vmatpush1.msra.mxu0 0.0
    %1117 = vmatprep.subr.mxu0 0.0
    %1118 = vmatpush1.msra.mxu0 0.0
    %1119 = vmatprep.subr.mxu0 0.0
    %1120 = vmatpush1.msra.mxu0 0.0
    %1121 = vmatprep.subr.mxu0 0.0
    %1122 = vmatpush1.msra.mxu0 0.0
    %1123 = vmatprep.subr.mxu0 0.0
    %1124 = vmatpush1.msra.mxu0 0.0
    %1125 = vmatprep.subr.mxu0 0.0
    %1126 = vmatpush1.msra.mxu0 0.0
    %1127 = vmatprep.subr.mxu0 0.0
    %1128 = vmatpush1.msra.mxu0 0.0
    %1129 = vmatprep.subr.mxu0 0.0
    %1130 = vmatpush1.msra.mxu0 0.0
    %1131 = vmatprep.subr.mxu0 0.0
    %1132 = vmatpush1.msra.mxu0 0.0
    %1133 = vmatprep.subr.mxu0 0.0
    %1134 = vmatpush1.msra.mxu0 0.0
    %1135 = vmatprep.subr.mxu0 0.0
    %1136 = vmatpush1.msra.mxu0 0.0
    %1137 = vmatprep.subr.mxu0 0.0
    %1138 = vmatpush1.msra.mxu0 0.0
    %1139 = vmatprep.subr.mxu0 0.0
    %1140 = vmatpush1.msra.mxu0 0.0
    %1141 = vmatprep.subr.mxu0 0.0
    %1142 = vmatpush1.msra.mxu0 0.0
    %1143 = vmatprep.subr.mxu0 0.0
    %1144 = vmatpush1.msra.mxu0 0.0
    %1145 = vmatprep.subr.mxu0 0.0
    %1146 = vmatpush1.msra.mxu0 0.0
    %1147 = vmatprep.subr.mxu0 0.0
    %1148 = vmatpush1.msra.mxu0 0.0
    %1149 = vmatprep.subr.mxu0 0.0
    %1150 = vmatpush1.msra.mxu0 0.0
    %1151 = vmatprep.subr.mxu0 0.0
    %1152 = vmatpush1.msra.mxu0 0.0
    %1153 = vmatprep.subr.mxu0 0.0
    %1154 = vmatpush1.msra.mxu0 0.0
    %1155 = vmatprep.subr.mxu0 0.0
    %1156 = vmatpush1.msra.mxu0 0.0
    %1157 = vmatprep.mubr.f32.mxu0 0.0
    %1158 = vmatmul.mubr.f32.gmra.mrb[0].mxu0 %v1091
    %v1159 = vpop.f32.mrb[0].mxu0
    %v1160 = vadd.f32 0.0, %v1159
    %v1161 = vpop.f32.mrb[0].mxu0
    %1162 = vdwg.mxu0
    %v1163 = vadd.f32 %v1084, %v1160
    %v1164 = vxor.u32 %v1163, 2147483648
    %v1165 = vmul.f32 %v1164, 1.442695
    %v1166 = vpow.pop %v1165
    %v1167 = vadd.f32 %v1166, 1.0
    %v1168 = vrcp.pop %v1167
    %v1169 = vmul.f32 1.0, %v1168
    %v1170 = vtanh.pop %v1163
    %v1171 = vmul.f32 %v1169, %v1037
    %1173 = vrot.lane.b32.xlu0 %v1170, 64
    %v1174 = vpop.permute.xlu0 %1173
    %v1176 = vmul.f32 %v1169, %v1174
    %1178 = vrot.lane.b32.xlu0 %v1176, 32
    %v1179 = vpop.permute.xlu0 %1178
    %v1181 = vadd.f32 %v1171, %v1179
    %v1182 = vtanh.pop %v1181
    %1184 = vrot.lane.b32.xlu0 %v1182, 64
    %v1185 = vpop.permute.xlu0 %1184
    %v1187 = vmul.f32 %v1169, %v1185
    %v1190 = vunpack.c.l.s4 1966171168
    %v1191 = vunpack.c.0.s8 %v1190
    %v1192 = vlaneseq
    %v1193 = vshrl.u32 %v1192, 7
    %v1194 = vsub.s32 %v1191, %v1193
    %v1195 = vrot.slane %v1187, %v1194
    %v1196 = vcombine.high %v1195, %v1195
    %v1198 = vunpack.c.l.s4 1966171168
    %v1199 = vunpack.c.0.s8 %v1198
    %v1200 = vlaneseq
    %v1201 = vshrl.u32 %v1200, 7
    %v1202 = vsub.s32 %v1199, %v1201
    %v1203 = vrot.slane %v1195, %v1202
    %v1205 = vunpack.c.l.s4 1966171168
    %v1206 = vunpack.c.0.s8 %v1205
    %v1207 = vlaneseq
    %v1208 = vshrl.u32 %v1207, 7
    %v1209 = vsub.s32 %v1206, %v1208
    %v1210 = vrot.slane %v1196, %v1209
    %v1211 = vlaneseq
    %v1212 = vshrl.u32 %v1211, 7
    %v1213 = vsub.s32 0, %v1212
    %v1214 = vrot.slane %v1203, %v1213
    %v1215 = vlaneseq
    %v1216 = vshrl.u32 %v1215, 7
    %v1217 = vsub.s32 0, %v1216
    %v1218 = vrot.slane %v1210, %v1217
    %1219 = vrot.lane.b32.xlu0 %v1214, 32
    %v1220 = vpop.permute.xlu0 %1219
    %1221 = vrot.lane.b32.xlu0 %v1218, 32
    %v1222 = vpop.permute.xlu0 %1221
    %1225 = vst.msk [vmem:[#allocation2 + $0x7] sm:$0x1] %vm216, %v1220
    %1226 = vst.msk [vmem:[#allocation2 + $0xf] sm:$0x1] %vm216, %v1222
    %v1227 = vld [vmem:[%s2] sm:$0xff]
    %v1228 = vld [vmem:[%s2 + $0x8] sm:$0xff]
    %v1229 = vld [vmem:[%s2 + $0x10] sm:$0xff]
    %v1230 = vld [vmem:[%s2 + $0x18] sm:$0xff]
    %v1231 = vld [vmem:[%s3] sm:$0x1]
    %v1233 = vlaneseq
    %v1234 = vshrl.u32 %v1233, 7
    %v1235 = vsub.s32 0, %v1234
    %v1236 = vrot.slane %v1231, %v1235
    %1238 = vrot.lane.b32.xlu0 %v1187, 32
    %v1239 = vpop.permute.xlu0 %1238
    %v1240 = vsel %vm80, %v1239, 0
    %1242 = vmatprep.subr.mxu0 0.0
    %1243 = vmatpush1.msra.mxu0 %v1227
    %1244 = vmatprep.subr.mxu0 0.0
    %1245 = vmatpush1.msra.mxu0 %v1228
    %1246 = vmatprep.subr.mxu0 0.0
    %1247 = vmatpush1.msra.mxu0 %v1229
    %1248 = vmatprep.subr.mxu0 0.0
    %1249 = vmatpush1.msra.mxu0 %v1230
    %1250 = vmatprep.subr.mxu0 0.0
    %1251 = vmatpush1.msra.mxu0 0.0
    %1252 = vmatprep.subr.mxu0 0.0
    %1253 = vmatpush1.msra.mxu0 0.0
    %1254 = vmatprep.subr.mxu0 0.0
    %1255 = vmatpush1.msra.mxu0 0.0
    %1256 = vmatprep.subr.mxu0 0.0
    %1257 = vmatpush1.msra.mxu0 0.0
    %1258 = vmatprep.subr.mxu0 0.0
    %1259 = vmatpush1.msra.mxu0 0.0
    %1260 = vmatprep.subr.mxu0 0.0
    %1261 = vmatpush1.msra.mxu0 0.0
    %1262 = vmatprep.subr.mxu0 0.0
    %1263 = vmatpush1.msra.mxu0 0.0
    %1264 = vmatprep.subr.mxu0 0.0
    %1265 = vmatpush1.msra.mxu0 0.0
    %1266 = vmatprep.subr.mxu0 0.0
    %1267 = vmatpush1.msra.mxu0 0.0
    %1268 = vmatprep.subr.mxu0 0.0
    %1269 = vmatpush1.msra.mxu0 0.0
    %1270 = vmatprep.subr.mxu0 0.0
    %1271 = vmatpush1.msra.mxu0 0.0
    %1272 = vmatprep.subr.mxu0 0.0
    %1273 = vmatpush1.msra.mxu0 0.0
    %1274 = vmatprep.subr.mxu0 0.0
    %1275 = vmatpush1.msra.mxu0 0.0
    %1276 = vmatprep.subr.mxu0 0.0
    %1277 = vmatpush1.msra.mxu0 0.0
    %1278 = vmatprep.subr.mxu0 0.0
    %1279 = vmatpush1.msra.mxu0 0.0
    %1280 = vmatprep.subr.mxu0 0.0
    %1281 = vmatpush1.msra.mxu0 0.0
    %1282 = vmatprep.subr.mxu0 0.0
    %1283 = vmatpush1.msra.mxu0 0.0
    %1284 = vmatprep.subr.mxu0 0.0
    %1285 = vmatpush1.msra.mxu0 0.0
    %1286 = vmatprep.subr.mxu0 0.0
    %1287 = vmatpush1.msra.mxu0 0.0
    %1288 = vmatprep.subr.mxu0 0.0
    %1289 = vmatpush1.msra.mxu0 0.0
    %1290 = vmatprep.subr.mxu0 0.0
    %1291 = vmatpush1.msra.mxu0 0.0
    %1292 = vmatprep.subr.mxu0 0.0
    %1293 = vmatpush1.msra.mxu0 0.0
    %1294 = vmatprep.subr.mxu0 0.0
    %1295 = vmatpush1.msra.mxu0 0.0
    %1296 = vmatprep.subr.mxu0 0.0
    %1297 = vmatpush1.msra.mxu0 0.0
    %1298 = vmatprep.subr.mxu0 0.0
    %1299 = vmatpush1.msra.mxu0 0.0
    %1300 = vmatprep.subr.mxu0 0.0
    %1301 = vmatpush1.msra.mxu0 0.0
    %1302 = vmatprep.subr.mxu0 0.0
    %1303 = vmatpush1.msra.mxu0 0.0
    %1304 = vmatprep.subr.mxu0 0.0
    %1305 = vmatpush1.msra.mxu0 0.0
    %1306 = vmatprep.mubr.f32.mxu0 0.0
    %1307 = vmatmul.mubr.f32.gmra.mrb[0].mxu0 %v1240
    %v1308 = vpop.f32.mrb[0].mxu0
    %v1309 = vadd.f32 %v1236, %v1308
    %v1310 = vpop.f32.mrb[0].mxu0
    %1311 = vdwg.mxu0
    %v1312 = vld [vmem:[%s4] sm:$0xff]
    %v1313 = vld [vmem:[%s4 + $0x8] sm:$0xff]
    %v1314 = vld [vmem:[%s4 + $0x10] sm:$0xff]
    %v1315 = vld [vmem:[%s4 + $0x18] sm:$0xff]
    %v1316 = vld [vmem:[%s5] sm:$0x1]
    %v1318 = vlaneseq
    %v1319 = vshrl.u32 %v1318, 7
    %v1320 = vsub.s32 0, %v1319
    %v1321 = vrot.slane %v1316, %v1320
    %1324 = vrot.lane.b32.xlu0 %v1181, 96
    %v1325 = vpop.permute.xlu0 %1324
    %v1326 = vsel %vm80, %v1325, 0
    %1328 = vmatprep.subr.mxu0 0.0
    %1329 = vmatpush1.msra.mxu0 %v1312
    %1330 = vmatprep.subr.mxu0 0.0
    %1331 = vmatpush1.msra.mxu0 %v1313
    %1332 = vmatprep.subr.mxu0 0.0
    %1333 = vmatpush1.msra.mxu0 %v1314
    %1334 = vmatprep.subr.mxu0 0.0
    %1335 = vmatpush1.msra.mxu0 %v1315
    %1336 = vmatprep.subr.mxu0 0.0
    %1337 = vmatpush1.msra.mxu0 0.0
    %1338 = vmatprep.subr.mxu0 0.0
    %1339 = vmatpush1.msra.mxu0 0.0
    %1340 = vmatprep.subr.mxu0 0.0
    %1341 = vmatpush1.msra.mxu0 0.0
    %1342 = vmatprep.subr.mxu0 0.0
    %1343 = vmatpush1.msra.mxu0 0.0
    %1344 = vmatprep.subr.mxu0 0.0
    %1345 = vmatpush1.msra.mxu0 0.0
    %1346 = vmatprep.subr.mxu0 0.0
    %1347 = vmatpush1.msra.mxu0 0.0
    %1348 = vmatprep.subr.mxu0 0.0
    %1349 = vmatpush1.msra.mxu0 0.0
    %1350 = vmatprep.subr.mxu0 0.0
    %1351 = vmatpush1.msra.mxu0 0.0
    %1352 = vmatprep.subr.mxu0 0.0
    %1353 = vmatpush1.msra.mxu0 0.0
    %1354 = vmatprep.subr.mxu0 0.0
    %1355 = vmatpush1.msra.mxu0 0.0
    %1356 = vmatprep.subr.mxu0 0.0
    %1357 = vmatpush1.msra.mxu0 0.0
    %1358 = vmatprep.subr.mxu0 0.0
    %1359 = vmatpush1.msra.mxu0 0.0
    %1360 = vmatprep.subr.mxu0 0.0
    %1361 = vmatpush1.msra.mxu0 0.0
    %1362 = vmatprep.subr.mxu0 0.0
    %1363 = vmatpush1.msra.mxu0 0.0
    %1364 = vmatprep.subr.mxu0 0.0
    %1365 = vmatpush1.msra.mxu0 0.0
    %1366 = vmatprep.subr.mxu0 0.0
    %1367 = vmatpush1.msra.mxu0 0.0
    %1368 = vmatprep.subr.mxu0 0.0
    %1369 = vmatpush1.msra.mxu0 0.0
    %1370 = vmatprep.subr.mxu0 0.0
    %1371 = vmatpush1.msra.mxu0 0.0
    %1372 = vmatprep.subr.mxu0 0.0
    %1373 = vmatpush1.msra.mxu0 0.0
    %1374 = vmatprep.subr.mxu0 0.0
    %1375 = vmatpush1.msra.mxu0 0.0
    %1376 = vmatprep.subr.mxu0 0.0
    %1377 = vmatpush1.msra.mxu0 0.0
    %1378 = vmatprep.subr.mxu0 0.0
    %1379 = vmatpush1.msra.mxu0 0.0
    %1380 = vmatprep.subr.mxu0 0.0
    %1381 = vmatpush1.msra.mxu0 0.0
    %1382 = vmatprep.subr.mxu0 0.0
    %1383 = vmatpush1.msra.mxu0 0.0
    %1384 = vmatprep.subr.mxu0 0.0
    %1385 = vmatpush1.msra.mxu0 0.0
    %1386 = vmatprep.subr.mxu0 0.0
    %1387 = vmatpush1.msra.mxu0 0.0
    %1388 = vmatprep.subr.mxu0 0.0
    %1389 = vmatpush1.msra.mxu0 0.0
    %1390 = vmatprep.subr.mxu0 0.0
    %1391 = vmatpush1.msra.mxu0 0.0
    %1392 = vmatprep.mubr.f32.mxu0 0.0
    %1393 = vmatmul.mubr.f32.gmra.mrb[0].mxu0 %v1326
    %v1394 = vpop.f32.mrb[0].mxu0
    %v1395 = vadd.f32 %v1321, %v1394
    %v1396 = vpop.f32.mrb[0].mxu0
    %1397 = vdwg.mxu0
    %v1398 = vld [vmem:[#allocation2] sm:$0xff]
    %v1399 = vld [vmem:[#allocation2 + $0x8] sm:$0xff]
    %v1400 = vld [vmem:[%s6] sm:$0xff]
    %v1401 = vld [vmem:[%s6 + $0x8] sm:$0xff]
    %v1402 = vld [vmem:[%s6 + $0x10] sm:$0xff]
    %v1403 = vld [vmem:[%s6 + $0x18] sm:$0xff]
    %v1404 = vld [vmem:[%s7] sm:$0x1]
    %v1406 = vlaneseq
    %v1407 = vshrl.u32 %v1406, 7
    %v1408 = vsub.s32 0, %v1407
    %v1409 = vrot.slane %v1404, %v1408
    %v1412 = vsel %vm80, %v1398, 0
    %v1415 = vsel %vm80, %v1399, 0
    %1417 = vmatprep.subr.mxu0 0.0
    %1418 = vmatpush1.msra.mxu0 %v1400
    %1419 = vmatprep.subr.mxu0 0.0
    %1420 = vmatpush1.msra.mxu0 %v1401
    %1421 = vmatprep.subr.mxu0 0.0
    %1422 = vmatpush1.msra.mxu0 %v1402
    %1423 = vmatprep.subr.mxu0 0.0
    %1424 = vmatpush1.msra.mxu0 %v1403
    %1425 = vmatprep.subr.mxu0 0.0
    %1426 = vmatpush1.msra.mxu0 0.0
    %1427 = vmatprep.subr.mxu0 0.0
    %1428 = vmatpush1.msra.mxu0 0.0
    %1429 = vmatprep.subr.mxu0 0.0
    %1430 = vmatpush1.msra.mxu0 0.0
    %1431 = vmatprep.subr.mxu0 0.0
    %1432 = vmatpush1.msra.mxu0 0.0
    %1433 = vmatprep.subr.mxu0 0.0
    %1434 = vmatpush1.msra.mxu0 0.0
    %1435 = vmatprep.subr.mxu0 0.0
    %1436 = vmatpush1.msra.mxu0 0.0
    %1437 = vmatprep.subr.mxu0 0.0
    %1438 = vmatpush1.msra.mxu0 0.0
    %1439 = vmatprep.subr.mxu0 0.0
    %1440 = vmatpush1.msra.mxu0 0.0
    %1441 = vmatprep.subr.mxu0 0.0
    %1442 = vmatpush1.msra.mxu0 0.0
    %1443 = vmatprep.subr.mxu0 0.0
    %1444 = vmatpush1.msra.mxu0 0.0
    %1445 = vmatprep.subr.mxu0 0.0
    %1446 = vmatpush1.msra.mxu0 0.0
    %1447 = vmatprep.subr.mxu0 0.0
    %1448 = vmatpush1.msra.mxu0 0.0
    %1449 = vmatprep.subr.mxu0 0.0
    %1450 = vmatpush1.msra.mxu0 0.0
    %1451 = vmatprep.subr.mxu0 0.0
    %1452 = vmatpush1.msra.mxu0 0.0
    %1453 = vmatprep.subr.mxu0 0.0
    %1454 = vmatpush1.msra.mxu0 0.0
    %1455 = vmatprep.subr.mxu0 0.0
    %1456 = vmatpush1.msra.mxu0 0.0
    %1457 = vmatprep.subr.mxu0 0.0
    %1458 = vmatpush1.msra.mxu0 0.0
    %1459 = vmatprep.subr.mxu0 0.0
    %1460 = vmatpush1.msra.mxu0 0.0
    %1461 = vmatprep.subr.mxu0 0.0
    %1462 = vmatpush1.msra.mxu0 0.0
    %1463 = vmatprep.subr.mxu0 0.0
    %1464 = vmatpush1.msra.mxu0 0.0
    %1465 = vmatprep.subr.mxu0 0.0
    %1466 = vmatpush1.msra.mxu0 0.0
    %1467 = vmatprep.subr.mxu0 0.0
    %1468 = vmatpush1.msra.mxu0 0.0
    %1469 = vmatprep.subr.mxu0 0.0
    %1470 = vmatpush1.msra.mxu0 0.0
    %1471 = vmatprep.subr.mxu0 0.0
    %1472 = vmatpush1.msra.mxu0 0.0
    %1473 = vmatprep.subr.mxu0 0.0
    %1474 = vmatpush1.msra.mxu0 0.0
    %1475 = vmatprep.subr.mxu0 0.0
    %1476 = vmatpush1.msra.mxu0 0.0
    %1477 = vmatprep.subr.mxu0 0.0
    %1478 = vmatpush1.msra.mxu0 0.0
    %1479 = vmatprep.subr.mxu0 0.0
    %1480 = vmatpush1.msra.mxu0 0.0
    %1481 = vmatprep.mubr.f32.mxu0 0.0
    %1482 = vmatmul.mubr.f32.gmra.mrb[0].mxu0 %v1412
    %v1483 = vpop.f32.mrb[0].mxu0
    %v1484 = vadd.f32 %v1409, %v1483
    %v1485 = vpop.f32.mrb[0].mxu0
    %1486 = vmatprep.mubr.f32.mxu0 0.0
    %1487 = vmatmul.mubr.f32.gmra.mrb[0].mxu0 %v1415
    %v1488 = vpop.f32.mrb[0].mxu0
    %v1489 = vadd.f32 %v1409, %v1488
    %v1490 = vpop.f32.mrb[0].mxu0
    %1491 = vdwg.mxu0
    %v1492 = vlaneseq
    %v1493 = vand.u32 %v1492, 127
    %vm1494 = vcmp.lt.s32.totalorder %v1493, 16
    %v1495 = vld [vmem:[%s16] sm:$0x3]
    %v1498 = vunpack.c.l.s4 1966171168
    %v1499 = vunpack.c.0.s8 %v1498
    %v1500 = vlaneseq
    %v1501 = vshrl.u32 %v1500, 7
    %v1502 = vsub.s32 %v1499, %v1501
    %v1503 = vrot.slane %v1309, %v1502
    %v1504 = vcombine.high %v1503, %v1503
    %v1506 = vunpack.c.l.s4 1966171168
    %v1507 = vunpack.c.0.s8 %v1506
    %v1508 = vlaneseq
    %v1509 = vshrl.u32 %v1508, 7
    %v1510 = vsub.s32 %v1507, %v1509
    %v1511 = vrot.slane %v1503, %v1510
    %v1513 = vunpack.c.l.s4 1966171168
    %v1514 = vunpack.c.0.s8 %v1513
    %v1515 = vlaneseq
    %v1516 = vshrl.u32 %v1515, 7
    %v1517 = vsub.s32 %v1514, %v1516
    %v1518 = vrot.slane %v1504, %v1517
    %v1519 = vlaneseq
    %v1520 = vshrl.u32 %v1519, 7
    %v1521 = vsub.s32 0, %v1520
    %v1522 = vrot.slane %v1511, %v1521
    %v1523 = vlaneseq
    %v1524 = vshrl.u32 %v1523, 7
    %v1525 = vsub.s32 0, %v1524
    %v1526 = vrot.slane %v1518, %v1525
    %v1529 = vmul.f32 %v1484, %v1522
    %v1530 = vmul.f32 %v1489, %v1526
    %v1531 = vsel %vm80, %v1529, 0.0
    %1532 = vadd.xlane.f32.xlu0 %v1531
    %v1533 = vpop.xlane.xlu0 %1532
    %v1534 = vsel %vm80, %v1530, 0.0
    %1535 = vadd.xlane.f32.xlu0 %v1534
    %v1536 = vpop.xlane.xlu0 %1535
    %v1539 = vlaneseq
    %v1540 = vshrl.u32 %v1539, 7
    %v1541 = vsub.s32 %v1493, %v1540
    %v1542 = vrot.slane %v1533, %v1541
    %v1543 = vlaneseq
    %v1544 = vshrl.u32 %v1543, 7
    %v1545 = vsub.s32 %v1493, %v1544
    %v1546 = vrot.slane %v1536, %v1545
    %vm1547 = vcmask 1041409
    %v1548 = vsel %vm1547, %v1546, %v1542
    %vm1550 = vcmask 58368
    %v1551 = vsel %vm1550, %v1548, -inf
    %1552 = vmax.xlane.f32.xlu0 %v1551
    %v1553 = vpop.xlane.xlu0 %1552
    %v1555 = vlaneseq
    %v1556 = vshrl.u32 %v1555, 7
    %v1557 = vsub.s32 0, %v1556
    %v1558 = vrot.slane %v1553, %v1557
    %v1559 = vlaneseq
    %v1560 = vshrl.u32 %v1559, 7
    %v1561 = vsub.s32 1, %v1560
    %v1562 = vrot.slane %v1553, %v1561
    %v1565 = vsub.f32 %v1533, %v1558
    %v1566 = vsub.f32 %v1536, %v1562
    %v1567 = vmul.f32 %v1565, 1.442695
    %v1568 = vpow.pop %v1567
    %v1569 = vmul.f32 %v1566, 1.442695
    %v1570 = vpow.pop %v1569
    %1573 = vset.pattern.permute.xlu0 0
    %1574 = vperm.xlu0 %1573, %v1568
    %v1575 = vpop.permute.xlu0 %1574
    %1576 = vset.pattern.permute.xlu0 0
    %1577 = vperm.xlu0 %1576, %v1570
    %v1578 = vpop.permute.xlu0 %1577
    %v1579 = vlaneseq
    %v1580 = vshrl.u32 %v1579, 7
    %v1581 = vsub.s32 %v1493, %v1580
    %v1582 = vrot.slane %v1575, %v1581
    %v1583 = vlaneseq
    %v1584 = vshrl.u32 %v1583, 7
    %v1585 = vsub.s32 %v1493, %v1584
    %v1586 = vrot.slane %v1578, %v1585
    %v1587 = vsel %vm1547, %v1586, %v1582
    %v1589 = vsel %vm1550, %v1587, 0.0
    %1590 = vadd.xlane.f32.xlu0 %v1589
    %v1591 = vpop.xlane.xlu0 %1590
    %v1592 = vrcp.pop %v1591
    %v1594 = vlaneseq
    %v1595 = vshrl.u32 %v1594, 7
    %v1596 = vsub.s32 0, %v1595
    %v1597 = vrot.slane %v1592, %v1596
    %v1598 = vlaneseq
    %v1599 = vshrl.u32 %v1598, 7
    %v1600 = vsub.s32 1, %v1599
    %v1601 = vrot.slane %v1592, %v1600
    %v1604 = vmul.f32 %v1568, %v1597
    %v1605 = vmul.f32 %v1570, %v1601
    %1607 = vset.pattern.permute.xlu0 0
    %1608 = vperm.xlu0 %1607, %v1604
    %v1609 = vpop.permute.xlu0 %1608
    %1612 = vset.pattern.permute.xlu0 0
    %1613 = vperm.xlu0 %1612, %v1605
    %v1614 = vpop.permute.xlu0 %1613
    %v1616 = vmul.f32 %v1609, %v1398
    %v1617 = vmul.f32 %v1614, %v1399
    %v1618 = vsel %vm80, %v1616, 0.0
    %v1619 = vrot.slane %v1618, 4
    %v1620 = vadd.f32 %v1618, %v1619
    %v1621 = vrot.slane %v1620, 2
    %v1622 = vadd.f32 %v1620, %v1621
    %v1623 = vrot.slane %v1622, 1
    %v1624 = vadd.f32 %v1622, %v1623
    %v1625 = vsel %vm80, %v1617, 0.0
    %v1626 = vrot.slane %v1625, 4
    %v1627 = vadd.f32 %v1625, %v1626
    %v1628 = vrot.slane %v1627, 2
    %v1629 = vadd.f32 %v1627, %v1628
    %v1630 = vrot.slane %v1629, 1
    %v1631 = vadd.f32 %v1629, %v1630
    %v1632 = vld [vmem:[%s8] sm:$0xff]
    %v1633 = vld [vmem:[%s8 + $0x8] sm:$0xff]
    %v1634 = vld [vmem:[%s8 + $0x10] sm:$0xff]
    %v1635 = vld [vmem:[%s8 + $0x18] sm:$0xff]
    %v1636 = vld [vmem:[%s8 + $0x20] sm:$0xff]
    %v1637 = vld [vmem:[%s8 + $0x28] sm:$0xff]
    %v1638 = vld [vmem:[%s8 + $0x30] sm:$0xff]
    %v1639 = vld [vmem:[%s8 + $0x38] sm:$0xff]
    %v1640 = vld [vmem:[%s8 + $0x40] sm:$0xff]
    %v1641 = vld [vmem:[%s8 + $0x48] sm:$0xff]
    %v1642 = vld [vmem:[%s8 + $0x50] sm:$0xff]
    %v1643 = vld [vmem:[%s8 + $0x58] sm:$0xff]
    %v1644 = vld [vmem:[%s8 + $0x60] sm:$0xff]
    %v1645 = vld [vmem:[%s8 + $0x68] sm:$0xff]
    %v1646 = vld [vmem:[%s8 + $0x70] sm:$0xff]
    %v1647 = vld [vmem:[%s8 + $0x78] sm:$0xff]
    %v1648 = vld [vmem:[%s9] sm:$0xff]
    %v1649 = vld [vmem:[%s9 + $0x8] sm:$0xff]
    %v1650 = vld [vmem:[%s9 + $0x10] sm:$0xff]
    %v1651 = vld [vmem:[%s9 + $0x18] sm:$0xff]
    %v1654 = vsel %vm1547, %v1631, %v1624
    %v1655 = vsel %vm80, %v1654, 0
    %1657 = vmatprep.subr.mxu0 0.0
    %1658 = vmatpush1.msra.mxu0 %v1648
    %1659 = vmatprep.subr.mxu0 0.0
    %1660 = vmatpush1.msra.mxu0 %v1649
    %1661 = vmatprep.subr.mxu0 0.0
    %1662 = vmatpush1.msra.mxu0 %v1650
    %1663 = vmatprep.subr.mxu0 0.0
    %1664 = vmatpush1.msra.mxu0 %v1651
    %1665 = vmatprep.subr.mxu0 0.0
    %1666 = vmatpush1.msra.mxu0 0.0
    %1667 = vmatprep.subr.mxu0 0.0
    %1668 = vmatpush1.msra.mxu0 0.0
    %1669 = vmatprep.subr.mxu0 0.0
    %1670 = vmatpush1.msra.mxu0 0.0
    %1671 = vmatprep.subr.mxu0 0.0
    %1672 = vmatpush1.msra.mxu0 0.0
    %1673 = vmatprep.subr.mxu0 0.0
    %1674 = vmatpush1.msra.mxu0 0.0
    %1675 = vmatprep.subr.mxu0 0.0
    %1676 = vmatpush1.msra.mxu0 0.0
    %1677 = vmatprep.subr.mxu0 0.0
    %1678 = vmatpush1.msra.mxu0 0.0
    %1679 = vmatprep.subr.mxu0 0.0
    %1680 = vmatpush1.msra.mxu0 0.0
    %1681 = vmatprep.subr.mxu0 0.0
    %1682 = vmatpush1.msra.mxu0 0.0
    %1683 = vmatprep.subr.mxu0 0.0
    %1684 = vmatpush1.msra.mxu0 0.0
    %1685 = vmatprep.subr.mxu0 0.0
    %1686 = vmatpush1.msra.mxu0 0.0
    %1687 = vmatprep.subr.mxu0 0.0
    %1688 = vmatpush1.msra.mxu0 0.0
    %1689 = vmatprep.subr.mxu0 0.0
    %1690 = vmatpush1.msra.mxu0 0.0
    %1691 = vmatprep.subr.mxu0 0.0
    %1692 = vmatpush1.msra.mxu0 0.0
    %1693 = vmatprep.subr.mxu0 0.0
    %1694 = vmatpush1.msra.mxu0 0.0
    %1695 = vmatprep.subr.mxu0 0.0
    %1696 = vmatpush1.msra.mxu0 0.0
    %1697 = vmatprep.subr.mxu0 0.0
    %1698 = vmatpush1.msra.mxu0 0.0
    %1699 = vmatprep.subr.mxu0 0.0
    %1700 = vmatpush1.msra.mxu0 0.0
    %1701 = vmatprep.subr.mxu0 0.0
    %1702 = vmatpush1.msra.mxu0 0.0
    %1703 = vmatprep.subr.mxu0 0.0
    %1704 = vmatpush1.msra.mxu0 0.0
    %1705 = vmatprep.subr.mxu0 0.0
    %1706 = vmatpush1.msra.mxu0 0.0
    %1707 = vmatprep.subr.mxu0 0.0
    %1708 = vmatpush1.msra.mxu0 0.0
    %1709 = vmatprep.subr.mxu0 0.0
    %1710 = vmatpush1.msra.mxu0 0.0
    %1711 = vmatprep.subr.mxu0 0.0
    %1712 = vmatpush1.msra.mxu0 0.0
    %1713 = vmatprep.subr.mxu0 0.0
    %1714 = vmatpush1.msra.mxu0 0.0
    %1715 = vmatprep.subr.mxu0 0.0
    %1716 = vmatpush1.msra.mxu0 0.0
    %1717 = vmatprep.subr.mxu0 0.0
    %1718 = vmatpush1.msra.mxu0 0.0
    %1719 = vmatprep.subr.mxu0 0.0
    %1720 = vmatpush1.msra.mxu0 0.0
    %1721 = vmatprep.mubr.f32.mxu0 0.0
    %1722 = vmatmul.mubr.f32.gmra.mrb[0].mxu0 %v1655
    %v1723 = vpop.f32.mrb[0].mxu0
    %v1724 = vadd.f32 0.0, %v1723
    %v1725 = vpop.f32.mrb[0].mxu0
    %1726 = vdwg.mxu0
    %1727 = vmatprep.subr.mxu0 0.0
    %1728 = vmatpush1.msra.mxu0 %v1632
    %1729 = vmatprep.subr.mxu0 0.0
    %1730 = vmatpush1.msra.mxu0 %v1633
    %1731 = vmatprep.subr.mxu0 0.0
    %1732 = vmatpush1.msra.mxu0 %v1634
    %1733 = vmatprep.subr.mxu0 0.0
    %1734 = vmatpush1.msra.mxu0 %v1635
    %1735 = vmatprep.subr.mxu0 0.0
    %1736 = vmatpush1.msra.mxu0 %v1636
    %1737 = vmatprep.subr.mxu0 0.0
    %1738 = vmatpush1.msra.mxu0 %v1637
    %1739 = vmatprep.subr.mxu0 0.0
    %1740 = vmatpush1.msra.mxu0 %v1638
    %1741 = vmatprep.subr.mxu0 0.0
    %1742 = vmatpush1.msra.mxu0 %v1639
    %1743 = vmatprep.subr.mxu0 0.0
    %1744 = vmatpush1.msra.mxu0 %v1640
    %1745 = vmatprep.subr.mxu0 0.0
    %1746 = vmatpush1.msra.mxu0 %v1641
    %1747 = vmatprep.subr.mxu0 0.0
    %1748 = vmatpush1.msra.mxu0 %v1642
    %1749 = vmatprep.subr.mxu0 0.0
    %1750 = vmatpush1.msra.mxu0 %v1643
    %1751 = vmatprep.subr.mxu0 0.0
    %1752 = vmatpush1.msra.mxu0 %v1644
    %1753 = vmatprep.subr.mxu0 0.0
    %1754 = vmatpush1.msra.mxu0 %v1645
    %1755 = vmatprep.subr.mxu0 0.0
    %1756 = vmatpush1.msra.mxu0 %v1646
    %1757 = vmatprep.subr.mxu0 0.0
    %1758 = vmatpush1.msra.mxu0 %v1647
    %1759 = vmatprep.subr.mxu0 0.0
    %1760 = vmatpush1.msra.mxu0 0.0
    %1761 = vmatprep.subr.mxu0 0.0
    %1762 = vmatpush1.msra.mxu0 0.0
    %1763 = vmatprep.subr.mxu0 0.0
    %1764 = vmatpush1.msra.mxu0 0.0
    %1765 = vmatprep.subr.mxu0 0.0
    %1766 = vmatpush1.msra.mxu0 0.0
    %1767 = vmatprep.subr.mxu0 0.0
    %1768 = vmatpush1.msra.mxu0 0.0
    %1769 = vmatprep.subr.mxu0 0.0
    %1770 = vmatpush1.msra.mxu0 0.0
    %1771 = vmatprep.subr.mxu0 0.0
    %1772 = vmatpush1.msra.mxu0 0.0
    %1773 = vmatprep.subr.mxu0 0.0
    %1774 = vmatpush1.msra.mxu0 0.0
    %1775 = vmatprep.subr.mxu0 0.0
    %1776 = vmatpush1.msra.mxu0 0.0
    %1777 = vmatprep.subr.mxu0 0.0
    %1778 = vmatpush1.msra.mxu0 0.0
    %1779 = vmatprep.subr.mxu0 0.0
    %1780 = vmatpush1.msra.mxu0 0.0
    %1781 = vmatprep.subr.mxu0 0.0
    %1782 = vmatpush1.msra.mxu0 0.0
    %1783 = vmatprep.subr.mxu0 0.0
    %1784 = vmatpush1.msra.mxu0 0.0
    %1785 = vmatprep.subr.mxu0 0.0
    %1786 = vmatpush1.msra.mxu0 0.0
    %1787 = vmatprep.subr.mxu0 0.0
    %1788 = vmatpush1.msra.mxu0 0.0
    %1789 = vmatprep.subr.mxu0 0.0
    %1790 = vmatpush1.msra.mxu0 0.0
    %1791 = vmatprep.mubr.f32.mxu0 0.0
    %1792 = vmatmul.mubr.f32.gmra.mrb[0].mxu0 %v1495
    %v1793 = vpop.f32.mrb[0].mxu0
    %v1794 = vadd.f32 %v1724, %v1793
    %v1795 = vpop.f32.mrb[0].mxu0
    %1796 = vdwg.mxu0
    %v1797 = vld [vmem:[%s10] sm:$0xff]
    %v1798 = vld [vmem:[%s10 + $0x8] sm:$0xff]
    %v1799 = vld [vmem:[%s10 + $0x10] sm:$0xff]
    %v1800 = vld [vmem:[%s10 + $0x18] sm:$0xff]
    %v1801 = vsel %vm80, %v1309, 0
    %1803 = vmatprep.subr.mxu0 0.0
    %1804 = vmatpush1.msra.mxu0 %v1797
    %1805 = vmatprep.subr.mxu0 0.0
    %1806 = vmatpush1.msra.mxu0 %v1798
    %1807 = vmatprep.subr.mxu0 0.0
    %1808 = vmatpush1.msra.mxu0 %v1799
    %1809 = vmatprep.subr.mxu0 0.0
    %1810 = vmatpush1.msra.mxu0 %v1800
    %1811 = vmatprep.subr.mxu0 0.0
    %1812 = vmatpush1.msra.mxu0 0.0
    %1813 = vmatprep.subr.mxu0 0.0
    %1814 = vmatpush1.msra.mxu0 0.0
    %1815 = vmatprep.subr.mxu0 0.0
    %1816 = vmatpush1.msra.mxu0 0.0
    %1817 = vmatprep.subr.mxu0 0.0
    %1818 = vmatpush1.msra.mxu0 0.0
    %1819 = vmatprep.subr.mxu0 0.0
    %1820 = vmatpush1.msra.mxu0 0.0
    %1821 = vmatprep.subr.mxu0 0.0
    %1822 = vmatpush1.msra.mxu0 0.0
    %1823 = vmatprep.subr.mxu0 0.0
    %1824 = vmatpush1.msra.mxu0 0.0
    %1825 = vmatprep.subr.mxu0 0.0
    %1826 = vmatpush1.msra.mxu0 0.0
    %1827 = vmatprep.subr.mxu0 0.0
    %1828 = vmatpush1.msra.mxu0 0.0
    %1829 = vmatprep.subr.mxu0 0.0
    %1830 = vmatpush1.msra.mxu0 0.0
    %1831 = vmatprep.subr.mxu0 0.0
    %1832 = vmatpush1.msra.mxu0 0.0
    %1833 = vmatprep.subr.mxu0 0.0
    %1834 = vmatpush1.msra.mxu0 0.0
    %1835 = vmatprep.subr.mxu0 0.0
    %1836 = vmatpush1.msra.mxu0 0.0
    %1837 = vmatprep.subr.mxu0 0.0
    %1838 = vmatpush1.msra.mxu0 0.0
    %1839 = vmatprep.subr.mxu0 0.0
    %1840 = vmatpush1.msra.mxu0 0.0
    %1841 = vmatprep.subr.mxu0 0.0
    %1842 = vmatpush1.msra.mxu0 0.0
    %1843 = vmatprep.subr.mxu0 0.0
    %1844 = vmatpush1.msra.mxu0 0.0
    %1845 = vmatprep.subr.mxu0 0.0
    %1846 = vmatpush1.msra.mxu0 0.0
    %1847 = vmatprep.subr.mxu0 0.0
    %1848 = vmatpush1.msra.mxu0 0.0
    %1849 = vmatprep.subr.mxu0 0.0
    %1850 = vmatpush1.msra.mxu0 0.0
    %1851 = vmatprep.subr.mxu0 0.0
    %1852 = vmatpush1.msra.mxu0 0.0
    %1853 = vmatprep.subr.mxu0 0.0
    %1854 = vmatpush1.msra.mxu0 0.0
    %1855 = vmatprep.subr.mxu0 0.0
    %1856 = vmatpush1.msra.mxu0 0.0
    %1857 = vmatprep.subr.mxu0 0.0
    %1858 = vmatpush1.msra.mxu0 0.0
    %1859 = vmatprep.subr.mxu0 0.0
    %1860 = vmatpush1.msra.mxu0 0.0
    %1861 = vmatprep.subr.mxu0 0.0
    %1862 = vmatpush1.msra.mxu0 0.0
    %1863 = vmatprep.subr.mxu0 0.0
    %1864 = vmatpush1.msra.mxu0 0.0
    %1865 = vmatprep.subr.mxu0 0.0
    %1866 = vmatpush1.msra.mxu0 0.0
    %1867 = vmatprep.mubr.f32.mxu0 0.0
    %1868 = vmatmul.mubr.f32.gmra.mrb[0].mxu0 %v1801
    %v1869 = vpop.f32.mrb[0].mxu0
    %v1870 = vadd.f32 0.0, %v1869
    %v1871 = vpop.f32.mrb[0].mxu0
    %1872 = vdwg.mxu0
    %v1873 = vadd.f32 %v1794, %v1870
    %v1874 = vld [vmem:[%s11] sm:$0x1]
    %v1876 = vlaneseq
    %v1877 = vshrl.u32 %v1876, 7
    %v1878 = vsub.s32 0, %v1877
    %v1879 = vrot.slane %v1874, %v1878
    %v1881 = vadd.f32 %v1873, %v1879
    %v1882 = vxor.u32 %v1881, 2147483648
    %v1883 = vmul.f32 %v1882, 1.442695
    %v1884 = vpow.pop %v1883
    %v1885 = vadd.f32 %v1884, 1.0
    %v1886 = vrcp.pop %v1885
    %v1887 = vmul.f32 1.0, %v1886
    %v1888 = vtanh.pop %v1881
    %1890 = vrot.lane.b32.xlu0 %v1395, 32
    %v1891 = vpop.permute.xlu0 %1890
    %v1893 = vmul.f32 %v1887, %v1891
    %1895 = vrot.lane.b32.xlu0 %v1888, 64
    %v1896 = vpop.permute.xlu0 %1895
    %v1898 = vmul.f32 %v1887, %v1896
    %1900 = vrot.lane.b32.xlu0 %v1898, 32
    %v1901 = vpop.permute.xlu0 %1900
    %v1903 = vadd.f32 %v1893, %v1901
    %v1904 = vtanh.pop %v1903
    %1906 = vrot.lane.b32.xlu0 %v1904, 64
    %v1907 = vpop.permute.xlu0 %1906
    %v1909 = vmul.f32 %v1887, %v1907
    %v1910 = vld [vmem:[%s12] sm:$0xff]
    %v1911 = vld [vmem:[%s12 + $0x8] sm:$0xff]
    %v1912 = vld [vmem:[%s12 + $0x10] sm:$0xff]
    %v1913 = vld [vmem:[%s12 + $0x18] sm:$0xff]
    %v1914 = vld [vmem:[%s13] sm:$0xff]
    %v1915 = vld [vmem:[%s13 + $0x8] sm:$0xff]
    %v1916 = vld [vmem:[%s13 + $0x10] sm:$0xff]
    %v1917 = vld [vmem:[%s13 + $0x18] sm:$0xff]
    %1918 = vmatprep.subr.mxu0 0.0
    %1919 = vmatpush1.msra.mxu0 %v1914
    %1920 = vmatprep.subr.mxu0 0.0
    %1921 = vmatpush1.msra.mxu0 %v1915
    %1922 = vmatprep.subr.mxu0 0.0
    %1923 = vmatpush1.msra.mxu0 %v1916
    %1924 = vmatprep.subr.mxu0 0.0
    %1925 = vmatpush1.msra.mxu0 %v1917
    %1926 = vmatprep.subr.mxu0 0.0
    %1927 = vmatpush1.msra.mxu0 0.0
    %1928 = vmatprep.subr.mxu0 0.0
    %1929 = vmatpush1.msra.mxu0 0.0
    %1930 = vmatprep.subr.mxu0 0.0
    %1931 = vmatpush1.msra.mxu0 0.0
    %1932 = vmatprep.subr.mxu0 0.0
    %1933 = vmatpush1.msra.mxu0 0.0
    %1934 = vmatprep.subr.mxu0 0.0
    %1935 = vmatpush1.msra.mxu0 0.0
    %1936 = vmatprep.subr.mxu0 0.0
    %1937 = vmatpush1.msra.mxu0 0.0
    %1938 = vmatprep.subr.mxu0 0.0
    %1939 = vmatpush1.msra.mxu0 0.0
    %1940 = vmatprep.subr.mxu0 0.0
    %1941 = vmatpush1.msra.mxu0 0.0
    %1942 = vmatprep.subr.mxu0 0.0
    %1943 = vmatpush1.msra.mxu0 0.0
    %1944 = vmatprep.subr.mxu0 0.0
    %1945 = vmatpush1.msra.mxu0 0.0
    %1946 = vmatprep.subr.mxu0 0.0
    %1947 = vmatpush1.msra.mxu0 0.0
    %1948 = vmatprep.subr.mxu0 0.0
    %1949 = vmatpush1.msra.mxu0 0.0
    %1950 = vmatprep.subr.mxu0 0.0
    %1951 = vmatpush1.msra.mxu0 0.0
    %1952 = vmatprep.subr.mxu0 0.0
    %1953 = vmatpush1.msra.mxu0 0.0
    %1954 = vmatprep.subr.mxu0 0.0
    %1955 = vmatpush1.msra.mxu0 0.0
    %1956 = vmatprep.subr.mxu0 0.0
    %1957 = vmatpush1.msra.mxu0 0.0
    %1958 = vmatprep.subr.mxu0 0.0
    %1959 = vmatpush1.msra.mxu0 0.0
    %1960 = vmatprep.subr.mxu0 0.0
    %1961 = vmatpush1.msra.mxu0 0.0
    %1962 = vmatprep.subr.mxu0 0.0
    %1963 = vmatpush1.msra.mxu0 0.0
    %1964 = vmatprep.subr.mxu0 0.0
    %1965 = vmatpush1.msra.mxu0 0.0
    %1966 = vmatprep.subr.mxu0 0.0
    %1967 = vmatpush1.msra.mxu0 0.0
    %1968 = vmatprep.subr.mxu0 0.0
    %1969 = vmatpush1.msra.mxu0 0.0
    %1970 = vmatprep.subr.mxu0 0.0
    %1971 = vmatpush1.msra.mxu0 0.0
    %1972 = vmatprep.subr.mxu0 0.0
    %1973 = vmatpush1.msra.mxu0 0.0
    %1974 = vmatprep.subr.mxu0 0.0
    %1975 = vmatpush1.msra.mxu0 0.0
    %1976 = vmatprep.subr.mxu0 0.0
    %1977 = vmatpush1.msra.mxu0 0.0
    %1978 = vmatprep.subr.mxu0 0.0
    %1979 = vmatpush1.msra.mxu0 0.0
    %1980 = vmatprep.subr.mxu0 0.0
    %1981 = vmatpush1.msra.mxu0 0.0
    %1982 = vmatprep.mubr.f32.mxu0 0.0
    %1983 = vmatmul.mubr.f32.gmra.mrb[0].mxu0 %v1655
    %v1984 = vpop.f32.mrb[0].mxu0
    %v1985 = vadd.f32 0.0, %v1984
    %v1986 = vpop.f32.mrb[0].mxu0
    %1987 = vdwg.mxu0
    %1989 = vrot.lane.b32.xlu0 %v1909, 32
    %v1990 = vpop.permute.xlu0 %1989
    %v1991 = vsel %vm80, %v1990, 0
    %1993 = vmatprep.subr.mxu0 0.0
    %1994 = vmatpush1.msra.mxu0 %v1910
    %1995 = vmatprep.subr.mxu0 0.0
    %1996 = vmatpush1.msra.mxu0 %v1911
    %1997 = vmatprep.subr.mxu0 0.0
    %1998 = vmatpush1.msra.mxu0 %v1912
    %1999 = vmatprep.subr.mxu0 0.0
    %2000 = vmatpush1.msra.mxu0 %v1913
    %2001 = vmatprep.subr.mxu0 0.0
    %2002 = vmatpush1.msra.mxu0 0.0
    %2003 = vmatprep.subr.mxu0 0.0
    %2004 = vmatpush1.msra.mxu0 0.0
    %2005 = vmatprep.subr.mxu0 0.0
    %2006 = vmatpush1.msra.mxu0 0.0
    %2007 = vmatprep.subr.mxu0 0.0
    %2008 = vmatpush1.msra.mxu0 0.0
    %2009 = vmatprep.subr.mxu0 0.0
    %2010 = vmatpush1.msra.mxu0 0.0
    %2011 = vmatprep.subr.mxu0 0.0
    %2012 = vmatpush1.msra.mxu0 0.0
    %2013 = vmatprep.subr.mxu0 0.0
    %2014 = vmatpush1.msra.mxu0 0.0
    %2015 = vmatprep.subr.mxu0 0.0
    %2016 = vmatpush1.msra.mxu0 0.0
    %2017 = vmatprep.subr.mxu0 0.0
    %2018 = vmatpush1.msra.mxu0 0.0
    %2019 = vmatprep.subr.mxu0 0.0
    %2020 = vmatpush1.msra.mxu0 0.0
    %2021 = vmatprep.subr.mxu0 0.0
    %2022 = vmatpush1.msra.mxu0 0.0
    %2023 = vmatprep.subr.mxu0 0.0
    %2024 = vmatpush1.msra.mxu0 0.0
    %2025 = vmatprep.subr.mxu0 0.0
    %2026 = vmatpush1.msra.mxu0 0.0
    %2027 = vmatprep.subr.mxu0 0.0
    %2028 = vmatpush1.msra.mxu0 0.0
    %2029 = vmatprep.subr.mxu0 0.0
    %2030 = vmatpush1.msra.mxu0 0.0
    %2031 = vmatprep.subr.mxu0 0.0
    %2032 = vmatpush1.msra.mxu0 0.0
    %2033 = vmatprep.subr.mxu0 0.0
    %2034 = vmatpush1.msra.mxu0 0.0
    %2035 = vmatprep.subr.mxu0 0.0
    %2036 = vmatpush1.msra.mxu0 0.0
    %2037 = vmatprep.subr.mxu0 0.0
    %2038 = vmatpush1.msra.mxu0 0.0
    %2039 = vmatprep.subr.mxu0 0.0
    %2040 = vmatpush1.msra.mxu0 0.0
    %2041 = vmatprep.subr.mxu0 0.0
    %2042 = vmatpush1.msra.mxu0 0.0
    %2043 = vmatprep.subr.mxu0 0.0
    %2044 = vmatpush1.msra.mxu0 0.0
    %2045 = vmatprep.subr.mxu0 0.0
    %2046 = vmatpush1.msra.mxu0 0.0
    %2047 = vmatprep.subr.mxu0 0.0
    %2048 = vmatpush1.msra.mxu0 0.0
    %2049 = vmatprep.subr.mxu0 0.0
    %2050 = vmatpush1.msra.mxu0 0.0
    %2051 = vmatprep.subr.mxu0 0.0
    %2052 = vmatpush1.msra.mxu0 0.0
    %2053 = vmatprep.subr.mxu0 0.0
    %2054 = vmatpush1.msra.mxu0 0.0
    %2055 = vmatprep.subr.mxu0 0.0
    %2056 = vmatpush1.msra.mxu0 0.0
    %2057 = vmatprep.mubr.f32.mxu0 0.0
    %2058 = vmatmul.mubr.f32.gmra.mrb[0].mxu0 %v1991
    %v2059 = vpop.f32.mrb[0].mxu0
    %v2060 = vadd.f32 %v1985, %v2059
    %v2061 = vpop.f32.mrb[0].mxu0
    %2062 = vdwg.mxu0
    %v2063 = vld [vmem:[%s14] sm:$0xff]
    %v2064 = vld [vmem:[%s14 + $0x8] sm:$0xff]
    %v2065 = vld [vmem:[%s14 + $0x10] sm:$0xff]
    %v2066 = vld [vmem:[%s14 + $0x18] sm:$0xff]
    %v2067 = vld [vmem:[%s14 + $0x20] sm:$0xff]
    %v2068 = vld [vmem:[%s14 + $0x28] sm:$0xff]
    %v2069 = vld [vmem:[%s14 + $0x30] sm:$0xff]
    %v2070 = vld [vmem:[%s14 + $0x38] sm:$0xff]
    %v2071 = vld [vmem:[%s14 + $0x40] sm:$0xff]
    %v2072 = vld [vmem:[%s14 + $0x48] sm:$0xff]
    %v2073 = vld [vmem:[%s14 + $0x50] sm:$0xff]
    %v2074 = vld [vmem:[%s14 + $0x58] sm:$0xff]
    %v2075 = vld [vmem:[%s14 + $0x60] sm:$0xff]
    %v2076 = vld [vmem:[%s14 + $0x68] sm:$0xff]
    %v2077 = vld [vmem:[%s14 + $0x70] sm:$0xff]
    %v2078 = vld [vmem:[%s14 + $0x78] sm:$0xff]
    %2079 = vmatprep.subr.mxu0 0.0
    %2080 = vmatpush1.msra.mxu0 %v2063
    %2081 = vmatprep.subr.mxu0 0.0
    %2082 = vmatpush1.msra.mxu0 %v2064
    %2083 = vmatprep.subr.mxu0 0.0
    %2084 = vmatpush1.msra.mxu0 %v2065
    %2085 = vmatprep.subr.mxu0 0.0
    %2086 = vmatpush1.msra.mxu0 %v2066
    %2087 = vmatprep.subr.mxu0 0.0
    %2088 = vmatpush1.msra.mxu0 %v2067
    %2089 = vmatprep.subr.mxu0 0.0
    %2090 = vmatpush1.msra.mxu0 %v2068
    %2091 = vmatprep.subr.mxu0 0.0
    %2092 = vmatpush1.msra.mxu0 %v2069
    %2093 = vmatprep.subr.mxu0 0.0
    %2094 = vmatpush1.msra.mxu0 %v2070
    %2095 = vmatprep.subr.mxu0 0.0
    %2096 = vmatpush1.msra.mxu0 %v2071
    %2097 = vmatprep.subr.mxu0 0.0
    %2098 = vmatpush1.msra.mxu0 %v2072
    %2099 = vmatprep.subr.mxu0 0.0
    %2100 = vmatpush1.msra.mxu0 %v2073
    %2101 = vmatprep.subr.mxu0 0.0
    %2102 = vmatpush1.msra.mxu0 %v2074
    %2103 = vmatprep.subr.mxu0 0.0
    %2104 = vmatpush1.msra.mxu0 %v2075
    %2105 = vmatprep.subr.mxu0 0.0
    %2106 = vmatpush1.msra.mxu0 %v2076
    %2107 = vmatprep.subr.mxu0 0.0
    %2108 = vmatpush1.msra.mxu0 %v2077
    %2109 = vmatprep.subr.mxu0 0.0
    %2110 = vmatpush1.msra.mxu0 %v2078
    %2111 = vmatprep.subr.mxu0 0.0
    %2112 = vmatpush1.msra.mxu0 0.0
    %2113 = vmatprep.subr.mxu0 0.0
    %2114 = vmatpush1.msra.mxu0 0.0
    %2115 = vmatprep.subr.mxu0 0.0
    %2116 = vmatpush1.msra.mxu0 0.0
    %2117 = vmatprep.subr.mxu0 0.0
    %2118 = vmatpush1.msra.mxu0 0.0
    %2119 = vmatprep.subr.mxu0 0.0
    %2120 = vmatpush1.msra.mxu0 0.0
    %2121 = vmatprep.subr.mxu0 0.0
    %2122 = vmatpush1.msra.mxu0 0.0
    %2123 = vmatprep.subr.mxu0 0.0
    %2124 = vmatpush1.msra.mxu0 0.0
    %2125 = vmatprep.subr.mxu0 0.0
    %2126 = vmatpush1.msra.mxu0 0.0
    %2127 = vmatprep.subr.mxu0 0.0
    %2128 = vmatpush1.msra.mxu0 0.0
    %2129 = vmatprep.subr.mxu0 0.0
    %2130 = vmatpush1.msra.mxu0 0.0
    %2131 = vmatprep.subr.mxu0 0.0
    %2132 = vmatpush1.msra.mxu0 0.0
    %2133 = vmatprep.subr.mxu0 0.0
    %2134 = vmatpush1.msra.mxu0 0.0
    %2135 = vmatprep.subr.mxu0 0.0
    %2136 = vmatpush1.msra.mxu0 0.0
    %2137 = vmatprep.subr.mxu0 0.0
    %2138 = vmatpush1.msra.mxu0 0.0
    %2139 = vmatprep.subr.mxu0 0.0
    %2140 = vmatpush1.msra.mxu0 0.0
    %2141 = vmatprep.subr.mxu0 0.0
    %2142 = vmatpush1.msra.mxu0 0.0
    %2143 = vmatprep.mubr.f32.mxu0 0.0
    %2144 = vmatmul.mubr.f32.gmra.mrb[0].mxu0 %v1495
    %v2145 = vpop.f32.mrb[0].mxu0
    %v2146 = vadd.f32 0.0, %v2145
    %v2147 = vpop.f32.mrb[0].mxu0
    %2148 = vdwg.mxu0
    %v2149 = vadd.f32 %v2060, %v2146
    %v2150 = vld [vmem:[%s15] sm:$0x1]
    %v2152 = vlaneseq
    %v2153 = vshrl.u32 %v2152, 7
    %v2154 = vsub.s32 0, %v2153
    %v2155 = vrot.slane %v2150, %v2154
    %v2157 = vadd.f32 %v2149, %v2155
    %2158 = vst [vmem:[%s19] sm:$0x3] %v2157
    %v2159 = vsel %vm1494, %v2157, -1e+30
    %vm2160 = vcmask 1041408
    %v2161 = vsel %vm2160, %v2159, -inf
    %2162 = vmax.xlane.f32.xlu0 %v2161
    %v2163 = vpop.xlane.xlu0 %2162
    %vm2164 = vcmp.ge.f32.partialorder %v2159, %v2163
    %v2165 = vsel %vm2164, %v1493, 128
    %v2166 = vsel %vm2160, %v2165, 2147483647
    %v2167 = vand.u32 %v2166, 65535
    %v2168 = vshra.s32 %v2166, 16
    %v2169 = vcvt.s32.f32 %v2167
    %v2170 = vcvt.s32.f32 %v2168
    %2171 = vmin.xlane.f32.xlu0 %v2170
    %v2172 = vpop.xlane.xlu0 %2171
    %vm2173 = vcmp.eq.f32.partialorder %v2170, %v2172
    %v2174 = vsel %vm2173, %v2169, inf
    %2175 = vmin.xlane.f32.xlu0 %v2174
    %v2176 = vpop.xlane.xlu0 %2175
    %v2177 = vcvt.f32.s32 %v2176
    %v2178 = vcvt.f32.s32 %v2172
    %v2179 = vshll.u32 %v2178, 16
    %v2180 = vadd.s32 %v2179, %v2177
    %vm2181 = vcmp.eq.s32.totalorder %v1493, %v2180
    %v2182 = vsel %vm2181, 1, 0
    %v2183 = vcvt.s32.f32 %v2182
    %s2184 = sld [smem:[#allocation3]]
    %s2185 = scvt.s32.f32 %s2184
    %v2186 = vld [vmem:[%s17] sm:$0x3]
    %v2187 = vstv %s2185
    %v2188 = vmul.f32 %v2187, %v2186
    %s2189 = ssub.f32 1.0, %s2185
    %v2190 = vstv %s2189
    %v2191 = vmul.f32 %v2190, %v2183
    %v2192 = vadd.f32 %v2188, %v2191
    %v2194 = vunpack.c.l.s4 1966171168
    %v2195 = vunpack.c.0.s8 %v2194
    %v2196 = vlaneseq
    %v2197 = vshrl.u32 %v2196, 7
    %v2198 = vsub.s32 %v2195, %v2197
    %v2199 = vrot.slane %v1909, %v2198
    %v2200 = vcombine.high %v2199, %v2199
    %v2202 = vunpack.c.l.s4 1966171168
    %v2203 = vunpack.c.0.s8 %v2202
    %v2204 = vlaneseq
    %v2205 = vshrl.u32 %v2204, 7
    %v2206 = vsub.s32 %v2203, %v2205
    %v2207 = vrot.slane %v2199, %v2206
    %v2209 = vunpack.c.l.s4 1966171168
    %v2210 = vunpack.c.0.s8 %v2209
    %v2211 = vlaneseq
    %v2212 = vshrl.u32 %v2211, 7
    %v2213 = vsub.s32 %v2210, %v2212
    %v2214 = vrot.slane %v2200, %v2213
    %v2215 = vlaneseq
    %v2216 = vshrl.u32 %v2215, 7
    %v2217 = vsub.s32 0, %v2216
    %v2218 = vrot.slane %v2207, %v2217
    %v2219 = vlaneseq
    %v2220 = vshrl.u32 %v2219, 7
    %v2221 = vsub.s32 0, %v2220
    %v2222 = vrot.slane %v2214, %v2221
    %2223 = vrot.lane.b32.xlu0 %v2218, 32
    %v2224 = vpop.permute.xlu0 %2223
    %2225 = vrot.lane.b32.xlu0 %v2222, 32
    %v2226 = vpop.permute.xlu0 %2225
    %v2229 = vmul.f32 %v1484, %v2224
    %v2230 = vmul.f32 %v1489, %v2226
    %v2231 = vsel %vm80, %v2229, 0.0
    %2232 = vadd.xlane.f32.xlu0 %v2231
    %v2233 = vpop.xlane.xlu0 %2232
    %v2234 = vsel %vm80, %v2230, 0.0
    %2235 = vadd.xlane.f32.xlu0 %v2234
    %v2236 = vpop.xlane.xlu0 %2235
    %v2239 = vlaneseq
    %v2240 = vshrl.u32 %v2239, 7
    %v2241 = vsub.s32 %v1493, %v2240
    %v2242 = vrot.slane %v2233, %v2241
    %v2243 = vlaneseq
    %v2244 = vshrl.u32 %v2243, 7
    %v2245 = vsub.s32 %v1493, %v2244
    %v2246 = vrot.slane %v2236, %v2245
    %v2247 = vsel %vm1547, %v2246, %v2242
    %v2249 = vsel %vm1550, %v2247, -inf
    %2250 = vmax.xlane.f32.xlu0 %v2249
    %v2251 = vpop.xlane.xlu0 %2250
    %v2253 = vlaneseq
    %v2254 = vshrl.u32 %v2253, 7
    %v2255 = vsub.s32 0, %v2254
    %v2256 = vrot.slane %v2251, %v2255
    %v2257 = vlaneseq
    %v2258 = vshrl.u32 %v2257, 7
    %v2259 = vsub.s32 1, %v2258
    %v2260 = vrot.slane %v2251, %v2259
    %v2263 = vsub.f32 %v2233, %v2256
    %v2264 = vsub.f32 %v2236, %v2260
    %v2265 = vmul.f32 %v2263, 1.442695
    %v2266 = vpow.pop %v2265
    %v2267 = vmul.f32 %v2264, 1.442695
    %v2268 = vpow.pop %v2267
    %2271 = vset.pattern.permute.xlu0 0
    %2272 = vperm.xlu0 %2271, %v2266
    %v2273 = vpop.permute.xlu0 %2272
    %2274 = vset.pattern.permute.xlu0 0
    %2275 = vperm.xlu0 %2274, %v2268
    %v2276 = vpop.permute.xlu0 %2275
    %v2277 = vlaneseq
    %v2278 = vshrl.u32 %v2277, 7
    %v2279 = vsub.s32 %v1493, %v2278
    %v2280 = vrot.slane %v2273, %v2279
    %v2281 = vlaneseq
    %v2282 = vshrl.u32 %v2281, 7
    %v2283 = vsub.s32 %v1493, %v2282
    %v2284 = vrot.slane %v2276, %v2283
    %v2285 = vsel %vm1547, %v2284, %v2280
    %v2287 = vsel %vm1550, %v2285, 0.0
    %2288 = vadd.xlane.f32.xlu0 %v2287
    %v2289 = vpop.xlane.xlu0 %2288
    %v2290 = vrcp.pop %v2289
    %v2292 = vlaneseq
    %v2293 = vshrl.u32 %v2292, 7
    %v2294 = vsub.s32 0, %v2293
    %v2295 = vrot.slane %v2290, %v2294
    %v2296 = vlaneseq
    %v2297 = vshrl.u32 %v2296, 7
    %v2298 = vsub.s32 1, %v2297
    %v2299 = vrot.slane %v2290, %v2298
    %v2302 = vmul.f32 %v2266, %v2295
    %v2303 = vmul.f32 %v2268, %v2299
    %2305 = vset.pattern.permute.xlu0 0
    %2306 = vperm.xlu0 %2305, %v2302
    %v2307 = vpop.permute.xlu0 %2306
    %2310 = vset.pattern.permute.xlu0 0
    %2311 = vperm.xlu0 %2310, %v2303
    %v2312 = vpop.permute.xlu0 %2311
    %v2314 = vmul.f32 %v2307, %v1398
    %v2315 = vmul.f32 %v2312, %v1399
    %v2316 = vsel %vm80, %v2314, 0.0
    %v2317 = vrot.slane %v2316, 4
    %v2318 = vadd.f32 %v2316, %v2317
    %v2319 = vrot.slane %v2318, 2
    %v2320 = vadd.f32 %v2318, %v2319
    %v2321 = vrot.slane %v2320, 1
    %v2322 = vadd.f32 %v2320, %v2321
    %v2323 = vsel %vm80, %v2315, 0.0
    %v2324 = vrot.slane %v2323, 4
    %v2325 = vadd.f32 %v2323, %v2324
    %v2326 = vrot.slane %v2325, 2
    %v2327 = vadd.f32 %v2325, %v2326
    %v2328 = vrot.slane %v2327, 1
    %v2329 = vadd.f32 %v2327, %v2328
    %v2330 = vld [vmem:[%s8] sm:$0xff]
    %v2331 = vld [vmem:[%s8 + $0x8] sm:$0xff]
    %v2332 = vld [vmem:[%s8 + $0x10] sm:$0xff]
    %v2333 = vld [vmem:[%s8 + $0x18] sm:$0xff]
    %v2334 = vld [vmem:[%s8 + $0x20] sm:$0xff]
    %v2335 = vld [vmem:[%s8 + $0x28] sm:$0xff]
    %v2336 = vld [vmem:[%s8 + $0x30] sm:$0xff]
    %v2337 = vld [vmem:[%s8 + $0x38] sm:$0xff]
    %v2338 = vld [vmem:[%s8 + $0x40] sm:$0xff]
    %v2339 = vld [vmem:[%s8 + $0x48] sm:$0xff]
    %v2340 = vld [vmem:[%s8 + $0x50] sm:$0xff]
    %v2341 = vld [vmem:[%s8 + $0x58] sm:$0xff]
    %v2342 = vld [vmem:[%s8 + $0x60] sm:$0xff]
    %v2343 = vld [vmem:[%s8 + $0x68] sm:$0xff]
    %v2344 = vld [vmem:[%s8 + $0x70] sm:$0xff]
    %v2345 = vld [vmem:[%s8 + $0x78] sm:$0xff]
    %v2346 = vld [vmem:[%s9] sm:$0xff]
    %v2347 = vld [vmem:[%s9 + $0x8] sm:$0xff]
    %v2348 = vld [vmem:[%s9 + $0x10] sm:$0xff]
    %v2349 = vld [vmem:[%s9 + $0x18] sm:$0xff]
    %v2352 = vsel %vm1547, %v2329, %v2322
    %v2353 = vsel %vm80, %v2352, 0
    %2355 = vmatprep.subr.mxu0 0.0
    %2356 = vmatpush1.msra.mxu0 %v2346
    %2357 = vmatprep.subr.mxu0 0.0
    %2358 = vmatpush1.msra.mxu0 %v2347
    %2359 = vmatprep.subr.mxu0 0.0
    %2360 = vmatpush1.msra.mxu0 %v2348
    %2361 = vmatprep.subr.mxu0 0.0
    %2362 = vmatpush1.msra.mxu0 %v2349
    %2363 = vmatprep.subr.mxu0 0.0
    %2364 = vmatpush1.msra.mxu0 0.0
    %2365 = vmatprep.subr.mxu0 0.0
    %2366 = vmatpush1.msra.mxu0 0.0
    %2367 = vmatprep.subr.mxu0 0.0
    %2368 = vmatpush1.msra.mxu0 0.0
    %2369 = vmatprep.subr.mxu0 0.0
    %2370 = vmatpush1.msra.mxu0 0.0
    %2371 = vmatprep.subr.mxu0 0.0
    %2372 = vmatpush1.msra.mxu0 0.0
    %2373 = vmatprep.subr.mxu0 0.0
    %2374 = vmatpush1.msra.mxu0 0.0
    %2375 = vmatprep.subr.mxu0 0.0
    %2376 = vmatpush1.msra.mxu0 0.0
    %2377 = vmatprep.subr.mxu0 0.0
    %2378 = vmatpush1.msra.mxu0 0.0
    %2379 = vmatprep.subr.mxu0 0.0
    %2380 = vmatpush1.msra.mxu0 0.0
    %2381 = vmatprep.subr.mxu0 0.0
    %2382 = vmatpush1.msra.mxu0 0.0
    %2383 = vmatprep.subr.mxu0 0.0
    %2384 = vmatpush1.msra.mxu0 0.0
    %2385 = vmatprep.subr.mxu0 0.0
    %2386 = vmatpush1.msra.mxu0 0.0
    %2387 = vmatprep.subr.mxu0 0.0
    %2388 = vmatpush1.msra.mxu0 0.0
    %2389 = vmatprep.subr.mxu0 0.0
    %2390 = vmatpush1.msra.mxu0 0.0
    %2391 = vmatprep.subr.mxu0 0.0
    %2392 = vmatpush1.msra.mxu0 0.0
    %2393 = vmatprep.subr.mxu0 0.0
    %2394 = vmatpush1.msra.mxu0 0.0
    %2395 = vmatprep.subr.mxu0 0.0
    %2396 = vmatpush1.msra.mxu0 0.0
    %2397 = vmatprep.subr.mxu0 0.0
    %2398 = vmatpush1.msra.mxu0 0.0
    %2399 = vmatprep.subr.mxu0 0.0
    %2400 = vmatpush1.msra.mxu0 0.0
    %2401 = vmatprep.subr.mxu0 0.0
    %2402 = vmatpush1.msra.mxu0 0.0
    %2403 = vmatprep.subr.mxu0 0.0
    %2404 = vmatpush1.msra.mxu0 0.0
    %2405 = vmatprep.subr.mxu0 0.0
    %2406 = vmatpush1.msra.mxu0 0.0
    %2407 = vmatprep.subr.mxu0 0.0
    %2408 = vmatpush1.msra.mxu0 0.0
    %2409 = vmatprep.subr.mxu0 0.0
    %2410 = vmatpush1.msra.mxu0 0.0
    %2411 = vmatprep.subr.mxu0 0.0
    %2412 = vmatpush1.msra.mxu0 0.0
    %2413 = vmatprep.subr.mxu0 0.0
    %2414 = vmatpush1.msra.mxu0 0.0
    %2415 = vmatprep.subr.mxu0 0.0
    %2416 = vmatpush1.msra.mxu0 0.0
    %2417 = vmatprep.subr.mxu0 0.0
    %2418 = vmatpush1.msra.mxu0 0.0
    %2419 = vmatprep.mubr.f32.mxu0 0.0
    %2420 = vmatmul.mubr.f32.gmra.mrb[0].mxu0 %v2353
    %v2421 = vpop.f32.mrb[0].mxu0
    %v2422 = vadd.f32 0.0, %v2421
    %v2423 = vpop.f32.mrb[0].mxu0
    %2424 = vdwg.mxu0
    %2425 = vmatprep.subr.mxu0 0.0
    %2426 = vmatpush1.msra.mxu0 %v2330
    %2427 = vmatprep.subr.mxu0 0.0
    %2428 = vmatpush1.msra.mxu0 %v2331
    %2429 = vmatprep.subr.mxu0 0.0
    %2430 = vmatpush1.msra.mxu0 %v2332
    %2431 = vmatprep.subr.mxu0 0.0
    %2432 = vmatpush1.msra.mxu0 %v2333
    %2433 = vmatprep.subr.mxu0 0.0
    %2434 = vmatpush1.msra.mxu0 %v2334
    %2435 = vmatprep.subr.mxu0 0.0
    %2436 = vmatpush1.msra.mxu0 %v2335
    %2437 = vmatprep.subr.mxu0 0.0
    %2438 = vmatpush1.msra.mxu0 %v2336
    %2439 = vmatprep.subr.mxu0 0.0
    %2440 = vmatpush1.msra.mxu0 %v2337
    %2441 = vmatprep.subr.mxu0 0.0
    %2442 = vmatpush1.msra.mxu0 %v2338
    %2443 = vmatprep.subr.mxu0 0.0
    %2444 = vmatpush1.msra.mxu0 %v2339
    %2445 = vmatprep.subr.mxu0 0.0
    %2446 = vmatpush1.msra.mxu0 %v2340
    %2447 = vmatprep.subr.mxu0 0.0
    %2448 = vmatpush1.msra.mxu0 %v2341
    %2449 = vmatprep.subr.mxu0 0.0
    %2450 = vmatpush1.msra.mxu0 %v2342
    %2451 = vmatprep.subr.mxu0 0.0
    %2452 = vmatpush1.msra.mxu0 %v2343
    %2453 = vmatprep.subr.mxu0 0.0
    %2454 = vmatpush1.msra.mxu0 %v2344
    %2455 = vmatprep.subr.mxu0 0.0
    %2456 = vmatpush1.msra.mxu0 %v2345
    %2457 = vmatprep.subr.mxu0 0.0
    %2458 = vmatpush1.msra.mxu0 0.0
    %2459 = vmatprep.subr.mxu0 0.0
    %2460 = vmatpush1.msra.mxu0 0.0
    %2461 = vmatprep.subr.mxu0 0.0
    %2462 = vmatpush1.msra.mxu0 0.0
    %2463 = vmatprep.subr.mxu0 0.0
    %2464 = vmatpush1.msra.mxu0 0.0
    %2465 = vmatprep.subr.mxu0 0.0
    %2466 = vmatpush1.msra.mxu0 0.0
    %2467 = vmatprep.subr.mxu0 0.0
    %2468 = vmatpush1.msra.mxu0 0.0
    %2469 = vmatprep.subr.mxu0 0.0
    %2470 = vmatpush1.msra.mxu0 0.0
    %2471 = vmatprep.subr.mxu0 0.0
    %2472 = vmatpush1.msra.mxu0 0.0
    %2473 = vmatprep.subr.mxu0 0.0
    %2474 = vmatpush1.msra.mxu0 0.0
    %2475 = vmatprep.subr.mxu0 0.0
    %2476 = vmatpush1.msra.mxu0 0.0
    %2477 = vmatprep.subr.mxu0 0.0
    %2478 = vmatpush1.msra.mxu0 0.0
    %2479 = vmatprep.subr.mxu0 0.0
    %2480 = vmatpush1.msra.mxu0 0.0
    %2481 = vmatprep.subr.mxu0 0.0
    %2482 = vmatpush1.msra.mxu0 0.0
    %2483 = vmatprep.subr.mxu0 0.0
    %2484 = vmatpush1.msra.mxu0 0.0
    %2485 = vmatprep.subr.mxu0 0.0
    %2486 = vmatpush1.msra.mxu0 0.0
    %2487 = vmatprep.subr.mxu0 0.0
    %2488 = vmatpush1.msra.mxu0 0.0
    %2489 = vmatprep.mubr.f32.mxu0 0.0
    %2490 = vmatmul.mubr.f32.gmra.mrb[0].mxu0 %v2192
    %v2491 = vpop.f32.mrb[0].mxu0
    %v2492 = vadd.f32 %v2422, %v2491
    %v2493 = vpop.f32.mrb[0].mxu0
    %2494 = vdwg.mxu0
    %v2495 = vld [vmem:[%s10] sm:$0xff]
    %v2496 = vld [vmem:[%s10 + $0x8] sm:$0xff]
    %v2497 = vld [vmem:[%s10 + $0x10] sm:$0xff]
    %v2498 = vld [vmem:[%s10 + $0x18] sm:$0xff]
    %2499 = vmatprep.subr.mxu0 0.0
    %2500 = vmatpush1.msra.mxu0 %v2495
    %2501 = vmatprep.subr.mxu0 0.0
    %2502 = vmatpush1.msra.mxu0 %v2496
    %2503 = vmatprep.subr.mxu0 0.0
    %2504 = vmatpush1.msra.mxu0 %v2497
    %2505 = vmatprep.subr.mxu0 0.0
    %2506 = vmatpush1.msra.mxu0 %v2498
    %2507 = vmatprep.subr.mxu0 0.0
    %2508 = vmatpush1.msra.mxu0 0.0
    %2509 = vmatprep.subr.mxu0 0.0
    %2510 = vmatpush1.msra.mxu0 0.0
    %2511 = vmatprep.subr.mxu0 0.0
    %2512 = vmatpush1.msra.mxu0 0.0
    %2513 = vmatprep.subr.mxu0 0.0
    %2514 = vmatpush1.msra.mxu0 0.0
    %2515 = vmatprep.subr.mxu0 0.0
    %2516 = vmatpush1.msra.mxu0 0.0
    %2517 = vmatprep.subr.mxu0 0.0
    %2518 = vmatpush1.msra.mxu0 0.0
    %2519 = vmatprep.subr.mxu0 0.0
    %2520 = vmatpush1.msra.mxu0 0.0
    %2521 = vmatprep.subr.mxu0 0.0
    %2522 = vmatpush1.msra.mxu0 0.0
    %2523 = vmatprep.subr.mxu0 0.0
    %2524 = vmatpush1.msra.mxu0 0.0
    %2525 = vmatprep.subr.mxu0 0.0
    %2526 = vmatpush1.msra.mxu0 0.0
    %2527 = vmatprep.subr.mxu0 0.0
    %2528 = vmatpush1.msra.mxu0 0.0
    %2529 = vmatprep.subr.mxu0 0.0
    %2530 = vmatpush1.msra.mxu0 0.0
    %2531 = vmatprep.subr.mxu0 0.0
    %2532 = vmatpush1.msra.mxu0 0.0
    %2533 = vmatprep.subr.mxu0 0.0
    %2534 = vmatpush1.msra.mxu0 0.0
    %2535 = vmatprep.subr.mxu0 0.0
    %2536 = vmatpush1.msra.mxu0 0.0
    %2537 = vmatprep.subr.mxu0 0.0
    %2538 = vmatpush1.msra.mxu0 0.0
    %2539 = vmatprep.subr.mxu0 0.0
    %2540 = vmatpush1.msra.mxu0 0.0
    %2541 = vmatprep.subr.mxu0 0.0
    %2542 = vmatpush1.msra.mxu0 0.0
    %2543 = vmatprep.subr.mxu0 0.0
    %2544 = vmatpush1.msra.mxu0 0.0
    %2545 = vmatprep.subr.mxu0 0.0
    %2546 = vmatpush1.msra.mxu0 0.0
    %2547 = vmatprep.subr.mxu0 0.0
    %2548 = vmatpush1.msra.mxu0 0.0
    %2549 = vmatprep.subr.mxu0 0.0
    %2550 = vmatpush1.msra.mxu0 0.0
    %2551 = vmatprep.subr.mxu0 0.0
    %2552 = vmatpush1.msra.mxu0 0.0
    %2553 = vmatprep.subr.mxu0 0.0
    %2554 = vmatpush1.msra.mxu0 0.0
    %2555 = vmatprep.subr.mxu0 0.0
    %2556 = vmatpush1.msra.mxu0 0.0
    %2557 = vmatprep.subr.mxu0 0.0
    %2558 = vmatpush1.msra.mxu0 0.0
    %2559 = vmatprep.subr.mxu0 0.0
    %2560 = vmatpush1.msra.mxu0 0.0
    %2561 = vmatprep.subr.mxu0 0.0
    %2562 = vmatpush1.msra.mxu0 0.0
    %2563 = vmatprep.mubr.f32.mxu0 0.0
    %2564 = vmatmul.mubr.f32.gmra.mrb[0].mxu0 %v1991
    %v2565 = vpop.f32.mrb[0].mxu0
    %v2566 = vadd.f32 0.0, %v2565
    %v2567 = vpop.f32.mrb[0].mxu0
    %2568 = vdwg.mxu0
    %v2569 = vadd.f32 %v2492, %v2566
    %v2570 = vld [vmem:[%s11] sm:$0x1]
    %v2572 = vlaneseq
    %v2573 = vshrl.u32 %v2572, 7
    %v2574 = vsub.s32 0, %v2573
    %v2575 = vrot.slane %v2570, %v2574
    %v2577 = vadd.f32 %v2569, %v2575
    %v2578 = vxor.u32 %v2577, 2147483648
    %v2579 = vmul.f32 %v2578, 1.442695
    %v2580 = vpow.pop %v2579
    %v2581 = vadd.f32 %v2580, 1.0
    %v2582 = vrcp.pop %v2581
    %v2583 = vmul.f32 1.0, %v2582
    %v2584 = vtanh.pop %v2577
    %v2585 = vmul.f32 %v2583, %v1903
    %2587 = vrot.lane.b32.xlu0 %v2584, 64
    %v2588 = vpop.permute.xlu0 %2587
    %v2590 = vmul.f32 %v2583, %v2588
    %2592 = vrot.lane.b32.xlu0 %v2590, 32
    %v2593 = vpop.permute.xlu0 %2592
    %v2595 = vadd.f32 %v2585, %v2593
    %v2596 = vtanh.pop %v2595
    %2598 = vrot.lane.b32.xlu0 %v2596, 64
    %v2599 = vpop.permute.xlu0 %2598
    %v2601 = vmul.f32 %v2583, %v2599
    %v2602 = vld [vmem:[%s12] sm:$0xff]
    %v2603 = vld [vmem:[%s12 + $0x8] sm:$0xff]
    %v2604 = vld [vmem:[%s12 + $0x10] sm:$0xff]
    %v2605 = vld [vmem:[%s12 + $0x18] sm:$0xff]
    %v2606 = vld [vmem:[%s13] sm:$0xff]
    %v2607 = vld [vmem:[%s13 + $0x8] sm:$0xff]
    %v2608 = vld [vmem:[%s13 + $0x10] sm:$0xff]
    %v2609 = vld [vmem:[%s13 + $0x18] sm:$0xff]
    %2610 = vmatprep.subr.mxu0 0.0
    %2611 = vmatpush1.msra.mxu0 %v2606
    %2612 = vmatprep.subr.mxu0 0.0
    %2613 = vmatpush1.msra.mxu0 %v2607
    %2614 = vmatprep.subr.mxu0 0.0
    %2615 = vmatpush1.msra.mxu0 %v2608
    %2616 = vmatprep.subr.mxu0 0.0
    %2617 = vmatpush1.msra.mxu0 %v2609
    %2618 = vmatprep.subr.mxu0 0.0
    %2619 = vmatpush1.msra.mxu0 0.0
    %2620 = vmatprep.subr.mxu0 0.0
    %2621 = vmatpush1.msra.mxu0 0.0
    %2622 = vmatprep.subr.mxu0 0.0
    %2623 = vmatpush1.msra.mxu0 0.0
    %2624 = vmatprep.subr.mxu0 0.0
    %2625 = vmatpush1.msra.mxu0 0.0
    %2626 = vmatprep.subr.mxu0 0.0
    %2627 = vmatpush1.msra.mxu0 0.0
    %2628 = vmatprep.subr.mxu0 0.0
    %2629 = vmatpush1.msra.mxu0 0.0
    %2630 = vmatprep.subr.mxu0 0.0
    %2631 = vmatpush1.msra.mxu0 0.0
    %2632 = vmatprep.subr.mxu0 0.0
    %2633 = vmatpush1.msra.mxu0 0.0
    %2634 = vmatprep.subr.mxu0 0.0
    %2635 = vmatpush1.msra.mxu0 0.0
    %2636 = vmatprep.subr.mxu0 0.0
    %2637 = vmatpush1.msra.mxu0 0.0
    %2638 = vmatprep.subr.mxu0 0.0
    %2639 = vmatpush1.msra.mxu0 0.0
    %2640 = vmatprep.subr.mxu0 0.0
    %2641 = vmatpush1.msra.mxu0 0.0
    %2642 = vmatprep.subr.mxu0 0.0
    %2643 = vmatpush1.msra.mxu0 0.0
    %2644 = vmatprep.subr.mxu0 0.0
    %2645 = vmatpush1.msra.mxu0 0.0
    %2646 = vmatprep.subr.mxu0 0.0
    %2647 = vmatpush1.msra.mxu0 0.0
    %2648 = vmatprep.subr.mxu0 0.0
    %2649 = vmatpush1.msra.mxu0 0.0
    %2650 = vmatprep.subr.mxu0 0.0
    %2651 = vmatpush1.msra.mxu0 0.0
    %2652 = vmatprep.subr.mxu0 0.0
    %2653 = vmatpush1.msra.mxu0 0.0
    %2654 = vmatprep.subr.mxu0 0.0
    %2655 = vmatpush1.msra.mxu0 0.0
    %2656 = vmatprep.subr.mxu0 0.0
    %2657 = vmatpush1.msra.mxu0 0.0
    %2658 = vmatprep.subr.mxu0 0.0
    %2659 = vmatpush1.msra.mxu0 0.0
    %2660 = vmatprep.subr.mxu0 0.0
    %2661 = vmatpush1.msra.mxu0 0.0
    %2662 = vmatprep.subr.mxu0 0.0
    %2663 = vmatpush1.msra.mxu0 0.0
    %2664 = vmatprep.subr.mxu0 0.0
    %2665 = vmatpush1.msra.mxu0 0.0
    %2666 = vmatprep.subr.mxu0 0.0
    %2667 = vmatpush1.msra.mxu0 0.0
    %2668 = vmatprep.subr.mxu0 0.0
    %2669 = vmatpush1.msra.mxu0 0.0
    %2670 = vmatprep.subr.mxu0 0.0
    %2671 = vmatpush1.msra.mxu0 0.0
    %2672 = vmatprep.subr.mxu0 0.0
    %2673 = vmatpush1.msra.mxu0 0.0
    %2674 = vmatprep.mubr.f32.mxu0 0.0
    %2675 = vmatmul.mubr.f32.gmra.mrb[0].mxu0 %v2353
    %v2676 = vpop.f32.mrb[0].mxu0
    %v2677 = vadd.f32 0.0, %v2676
    %v2678 = vpop.f32.mrb[0].mxu0
    %2679 = vdwg.mxu0
    %2681 = vrot.lane.b32.xlu0 %v2601, 32
    %v2682 = vpop.permute.xlu0 %2681
    %v2683 = vsel %vm80, %v2682, 0
    %2685 = vmatprep.subr.mxu0 0.0
    %2686 = vmatpush1.msra.mxu0 %v2602
    %2687 = vmatprep.subr.mxu0 0.0
    %2688 = vmatpush1.msra.mxu0 %v2603
    %2689 = vmatprep.subr.mxu0 0.0
    %2690 = vmatpush1.msra.mxu0 %v2604
    %2691 = vmatprep.subr.mxu0 0.0
    %2692 = vmatpush1.msra.mxu0 %v2605
    %2693 = vmatprep.subr.mxu0 0.0
    %2694 = vmatpush1.msra.mxu0 0.0
    %2695 = vmatprep.subr.mxu0 0.0
    %2696 = vmatpush1.msra.mxu0 0.0
    %2697 = vmatprep.subr.mxu0 0.0
    %2698 = vmatpush1.msra.mxu0 0.0
    %2699 = vmatprep.subr.mxu0 0.0
    %2700 = vmatpush1.msra.mxu0 0.0
    %2701 = vmatprep.subr.mxu0 0.0
    %2702 = vmatpush1.msra.mxu0 0.0
    %2703 = vmatprep.subr.mxu0 0.0
    %2704 = vmatpush1.msra.mxu0 0.0
    %2705 = vmatprep.subr.mxu0 0.0
    %2706 = vmatpush1.msra.mxu0 0.0
    %2707 = vmatprep.subr.mxu0 0.0
    %2708 = vmatpush1.msra.mxu0 0.0
    %2709 = vmatprep.subr.mxu0 0.0
    %2710 = vmatpush1.msra.mxu0 0.0
    %2711 = vmatprep.subr.mxu0 0.0
    %2712 = vmatpush1.msra.mxu0 0.0
    %2713 = vmatprep.subr.mxu0 0.0
    %2714 = vmatpush1.msra.mxu0 0.0
    %2715 = vmatprep.subr.mxu0 0.0
    %2716 = vmatpush1.msra.mxu0 0.0
    %2717 = vmatprep.subr.mxu0 0.0
    %2718 = vmatpush1.msra.mxu0 0.0
    %2719 = vmatprep.subr.mxu0 0.0
    %2720 = vmatpush1.msra.mxu0 0.0
    %2721 = vmatprep.subr.mxu0 0.0
    %2722 = vmatpush1.msra.mxu0 0.0
    %2723 = vmatprep.subr.mxu0 0.0
    %2724 = vmatpush1.msra.mxu0 0.0
    %2725 = vmatprep.subr.mxu0 0.0
    %2726 = vmatpush1.msra.mxu0 0.0
    %2727 = vmatprep.subr.mxu0 0.0
    %2728 = vmatpush1.msra.mxu0 0.0
    %2729 = vmatprep.subr.mxu0 0.0
    %2730 = vmatpush1.msra.mxu0 0.0
    %2731 = vmatprep.subr.mxu0 0.0
    %2732 = vmatpush1.msra.mxu0 0.0
    %2733 = vmatprep.subr.mxu0 0.0
    %2734 = vmatpush1.msra.mxu0 0.0
    %2735 = vmatprep.subr.mxu0 0.0
    %2736 = vmatpush1.msra.mxu0 0.0
    %2737 = vmatprep.subr.mxu0 0.0
    %2738 = vmatpush1.msra.mxu0 0.0
    %2739 = vmatprep.subr.mxu0 0.0
    %2740 = vmatpush1.msra.mxu0 0.0
    %2741 = vmatprep.subr.mxu0 0.0
    %2742 = vmatpush1.msra.mxu0 0.0
    %2743 = vmatprep.subr.mxu0 0.0
    %2744 = vmatpush1.msra.mxu0 0.0
    %2745 = vmatprep.subr.mxu0 0.0
    %2746 = vmatpush1.msra.mxu0 0.0
    %2747 = vmatprep.subr.mxu0 0.0
    %2748 = vmatpush1.msra.mxu0 0.0
    %2749 = vmatprep.mubr.f32.mxu0 0.0
    %2750 = vmatmul.mubr.f32.gmra.mrb[0].mxu0 %v2683
    %v2751 = vpop.f32.mrb[0].mxu0
    %v2752 = vadd.f32 %v2677, %v2751
    %v2753 = vpop.f32.mrb[0].mxu0
    %2754 = vdwg.mxu0
    %v2755 = vld [vmem:[%s14] sm:$0xff]
    %v2756 = vld [vmem:[%s14 + $0x8] sm:$0xff]
    %v2757 = vld [vmem:[%s14 + $0x10] sm:$0xff]
    %v2758 = vld [vmem:[%s14 + $0x18] sm:$0xff]
    %v2759 = vld [vmem:[%s14 + $0x20] sm:$0xff]
    %v2760 = vld [vmem:[%s14 + $0x28] sm:$0xff]
    %v2761 = vld [vmem:[%s14 + $0x30] sm:$0xff]
    %v2762 = vld [vmem:[%s14 + $0x38] sm:$0xff]
    %v2763 = vld [vmem:[%s14 + $0x40] sm:$0xff]
    %v2764 = vld [vmem:[%s14 + $0x48] sm:$0xff]
    %v2765 = vld [vmem:[%s14 + $0x50] sm:$0xff]
    %v2766 = vld [vmem:[%s14 + $0x58] sm:$0xff]
    %v2767 = vld [vmem:[%s14 + $0x60] sm:$0xff]
    %v2768 = vld [vmem:[%s14 + $0x68] sm:$0xff]
    %v2769 = vld [vmem:[%s14 + $0x70] sm:$0xff]
    %v2770 = vld [vmem:[%s14 + $0x78] sm:$0xff]
    %2771 = vmatprep.subr.mxu0 0.0
    %2772 = vmatpush1.msra.mxu0 %v2755
    %2773 = vmatprep.subr.mxu0 0.0
    %2774 = vmatpush1.msra.mxu0 %v2756
    %2775 = vmatprep.subr.mxu0 0.0
    %2776 = vmatpush1.msra.mxu0 %v2757
    %2777 = vmatprep.subr.mxu0 0.0
    %2778 = vmatpush1.msra.mxu0 %v2758
    %2779 = vmatprep.subr.mxu0 0.0
    %2780 = vmatpush1.msra.mxu0 %v2759
    %2781 = vmatprep.subr.mxu0 0.0
    %2782 = vmatpush1.msra.mxu0 %v2760
    %2783 = vmatprep.subr.mxu0 0.0
    %2784 = vmatpush1.msra.mxu0 %v2761
    %2785 = vmatprep.subr.mxu0 0.0
    %2786 = vmatpush1.msra.mxu0 %v2762
    %2787 = vmatprep.subr.mxu0 0.0
    %2788 = vmatpush1.msra.mxu0 %v2763
    %2789 = vmatprep.subr.mxu0 0.0
    %2790 = vmatpush1.msra.mxu0 %v2764
    %2791 = vmatprep.subr.mxu0 0.0
    %2792 = vmatpush1.msra.mxu0 %v2765
    %2793 = vmatprep.subr.mxu0 0.0
    %2794 = vmatpush1.msra.mxu0 %v2766
    %2795 = vmatprep.subr.mxu0 0.0
    %2796 = vmatpush1.msra.mxu0 %v2767
    %2797 = vmatprep.subr.mxu0 0.0
    %2798 = vmatpush1.msra.mxu0 %v2768
    %2799 = vmatprep.subr.mxu0 0.0
    %2800 = vmatpush1.msra.mxu0 %v2769
    %2801 = vmatprep.subr.mxu0 0.0
    %2802 = vmatpush1.msra.mxu0 %v2770
    %2803 = vmatprep.subr.mxu0 0.0
    %2804 = vmatpush1.msra.mxu0 0.0
    %2805 = vmatprep.subr.mxu0 0.0
    %2806 = vmatpush1.msra.mxu0 0.0
    %2807 = vmatprep.subr.mxu0 0.0
    %2808 = vmatpush1.msra.mxu0 0.0
    %2809 = vmatprep.subr.mxu0 0.0
    %2810 = vmatpush1.msra.mxu0 0.0
    %2811 = vmatprep.subr.mxu0 0.0
    %2812 = vmatpush1.msra.mxu0 0.0
    %2813 = vmatprep.subr.mxu0 0.0
    %2814 = vmatpush1.msra.mxu0 0.0
    %2815 = vmatprep.subr.mxu0 0.0
    %2816 = vmatpush1.msra.mxu0 0.0
    %2817 = vmatprep.subr.mxu0 0.0
    %2818 = vmatpush1.msra.mxu0 0.0
    %2819 = vmatprep.subr.mxu0 0.0
    %2820 = vmatpush1.msra.mxu0 0.0
    %2821 = vmatprep.subr.mxu0 0.0
    %2822 = vmatpush1.msra.mxu0 0.0
    %2823 = vmatprep.subr.mxu0 0.0
    %2824 = vmatpush1.msra.mxu0 0.0
    %2825 = vmatprep.subr.mxu0 0.0
    %2826 = vmatpush1.msra.mxu0 0.0
    %2827 = vmatprep.subr.mxu0 0.0
    %2828 = vmatpush1.msra.mxu0 0.0
    %2829 = vmatprep.subr.mxu0 0.0
    %2830 = vmatpush1.msra.mxu0 0.0
    %2831 = vmatprep.subr.mxu0 0.0
    %2832 = vmatpush1.msra.mxu0 0.0
    %2833 = vmatprep.subr.mxu0 0.0
    %2834 = vmatpush1.msra.mxu0 0.0
    %2835 = vmatprep.mubr.f32.mxu0 0.0
    %2836 = vmatmul.mubr.f32.gmra.mrb[0].mxu0 %v2192
    %v2837 = vpop.f32.mrb[0].mxu0
    %v2838 = vadd.f32 0.0, %v2837
    %v2839 = vpop.f32.mrb[0].mxu0
    %2840 = vdwg.mxu0
    %v2841 = vadd.f32 %v2752, %v2838
    %v2842 = vld [vmem:[%s15] sm:$0x1]
    %v2844 = vlaneseq
    %v2845 = vshrl.u32 %v2844, 7
    %v2846 = vsub.s32 0, %v2845
    %v2847 = vrot.slane %v2842, %v2846
    %v2849 = vadd.f32 %v2841, %v2847
    %s2850 = scalar_lea.vmem %s19, 2
    %2851 = vst [vmem:[%s2850] sm:$0x3] %v2849
    %v2852 = vsel %vm1494, %v2849, -1e+30
    %v2853 = vsel %vm2160, %v2852, -inf
    %2854 = vmax.xlane.f32.xlu0 %v2853
    %v2855 = vpop.xlane.xlu0 %2854
    %vm2856 = vcmp.ge.f32.partialorder %v2852, %v2855
    %v2857 = vsel %vm2856, %v1493, 128
    %v2858 = vsel %vm2160, %v2857, 2147483647
    %v2859 = vand.u32 %v2858, 65535
    %v2860 = vshra.s32 %v2858, 16
    %v2861 = vcvt.s32.f32 %v2859
    %v2862 = vcvt.s32.f32 %v2860
    %2863 = vmin.xlane.f32.xlu0 %v2862
    %v2864 = vpop.xlane.xlu0 %2863
    %vm2865 = vcmp.eq.f32.partialorder %v2862, %v2864
    %v2866 = vsel %vm2865, %v2861, inf
    %2867 = vmin.xlane.f32.xlu0 %v2866
    %v2868 = vpop.xlane.xlu0 %2867
    %v2869 = vcvt.f32.s32 %v2868
    %v2870 = vcvt.f32.s32 %v2864
    %v2871 = vshll.u32 %v2870, 16
    %v2872 = vadd.s32 %v2871, %v2869
    %vm2873 = vcmp.eq.s32.totalorder %v1493, %v2872
    %v2874 = vsel %vm2873, 1, 0
    %v2875 = vcvt.s32.f32 %v2874
    %s2876 = sld [smem:[#allocation3 + $0x1]]
    %s2877 = scvt.s32.f32 %s2876
    %s2878 = scalar_lea.vmem %s17, 2
    %v2879 = vld [vmem:[%s2878] sm:$0x3]
    %v2880 = vstv %s2877
    %v2881 = vmul.f32 %v2880, %v2879
    %s2882 = ssub.f32 1.0, %s2877
    %v2883 = vstv %s2882
    %v2884 = vmul.f32 %v2883, %v2875
    %v2885 = vadd.f32 %v2881, %v2884
    %v2887 = vunpack.c.l.s4 1966171168
    %v2888 = vunpack.c.0.s8 %v2887
    %v2889 = vlaneseq
    %v2890 = vshrl.u32 %v2889, 7
    %v2891 = vsub.s32 %v2888, %v2890
    %v2892 = vrot.slane %v2601, %v2891
    %v2893 = vcombine.high %v2892, %v2892
    %v2895 = vunpack.c.l.s4 1966171168
    %v2896 = vunpack.c.0.s8 %v2895
    %v2897 = vlaneseq
    %v2898 = vshrl.u32 %v2897, 7
    %v2899 = vsub.s32 %v2896, %v2898
    %v2900 = vrot.slane %v2892, %v2899
    %v2902 = vunpack.c.l.s4 1966171168
    %v2903 = vunpack.c.0.s8 %v2902
    %v2904 = vlaneseq
    %v2905 = vshrl.u32 %v2904, 7
    %v2906 = vsub.s32 %v2903, %v2905
    %v2907 = vrot.slane %v2893, %v2906
    %v2908 = vlaneseq
    %v2909 = vshrl.u32 %v2908, 7
    %v2910 = vsub.s32 0, %v2909
    %v2911 = vrot.slane %v2900, %v2910
    %v2912 = vlaneseq
    %v2913 = vshrl.u32 %v2912, 7
    %v2914 = vsub.s32 0, %v2913
    %v2915 = vrot.slane %v2907, %v2914
    %2916 = vrot.lane.b32.xlu0 %v2911, 32
    %v2917 = vpop.permute.xlu0 %2916
    %2918 = vrot.lane.b32.xlu0 %v2915, 32
    %v2919 = vpop.permute.xlu0 %2918
    %v2922 = vmul.f32 %v1484, %v2917
    %v2923 = vmul.f32 %v1489, %v2919
    %v2924 = vsel %vm80, %v2922, 0.0
    %2925 = vadd.xlane.f32.xlu0 %v2924
    %v2926 = vpop.xlane.xlu0 %2925
    %v2927 = vsel %vm80, %v2923, 0.0
    %2928 = vadd.xlane.f32.xlu0 %v2927
    %v2929 = vpop.xlane.xlu0 %2928
    %v2932 = vlaneseq
    %v2933 = vshrl.u32 %v2932, 7
    %v2934 = vsub.s32 %v1493, %v2933
    %v2935 = vrot.slane %v2926, %v2934
    %v2936 = vlaneseq
    %v2937 = vshrl.u32 %v2936, 7
    %v2938 = vsub.s32 %v1493, %v2937
    %v2939 = vrot.slane %v2929, %v2938
    %v2940 = vsel %vm1547, %v2939, %v2935
    %v2942 = vsel %vm1550, %v2940, -inf
    %2943 = vmax.xlane.f32.xlu0 %v2942
    %v2944 = vpop.xlane.xlu0 %2943
    %v2946 = vlaneseq
    %v2947 = vshrl.u32 %v2946, 7
    %v2948 = vsub.s32 0, %v2947
    %v2949 = vrot.slane %v2944, %v2948
    %v2950 = vlaneseq
    %v2951 = vshrl.u32 %v2950, 7
    %v2952 = vsub.s32 1, %v2951
    %v2953 = vrot.slane %v2944, %v2952
    %v2956 = vsub.f32 %v2926, %v2949
    %v2957 = vsub.f32 %v2929, %v2953
    %v2958 = vmul.f32 %v2956, 1.442695
    %v2959 = vpow.pop %v2958
    %v2960 = vmul.f32 %v2957, 1.442695
    %v2961 = vpow.pop %v2960
    %2964 = vset.pattern.permute.xlu0 0
    %2965 = vperm.xlu0 %2964, %v2959
    %v2966 = vpop.permute.xlu0 %2965
    %2967 = vset.pattern.permute.xlu0 0
    %2968 = vperm.xlu0 %2967, %v2961
    %v2969 = vpop.permute.xlu0 %2968
    %v2970 = vlaneseq
    %v2971 = vshrl.u32 %v2970, 7
    %v2972 = vsub.s32 %v1493, %v2971
    %v2973 = vrot.slane %v2966, %v2972
    %v2974 = vlaneseq
    %v2975 = vshrl.u32 %v2974, 7
    %v2976 = vsub.s32 %v1493, %v2975
    %v2977 = vrot.slane %v2969, %v2976
    %v2978 = vsel %vm1547, %v2977, %v2973
    %v2980 = vsel %vm1550, %v2978, 0.0
    %2981 = vadd.xlane.f32.xlu0 %v2980
    %v2982 = vpop.xlane.xlu0 %2981
    %v2983 = vrcp.pop %v2982
    %v2985 = vlaneseq
    %v2986 = vshrl.u32 %v2985, 7
    %v2987 = vsub.s32 0, %v2986
    %v2988 = vrot.slane %v2983, %v2987
    %v2989 = vlaneseq
    %v2990 = vshrl.u32 %v2989, 7
    %v2991 = vsub.s32 1, %v2990
    %v2992 = vrot.slane %v2983, %v2991
    %v2995 = vmul.f32 %v2959, %v2988
    %v2996 = vmul.f32 %v2961, %v2992
    %2998 = vset.pattern.permute.xlu0 0
    %2999 = vperm.xlu0 %2998, %v2995
    %v3000 = vpop.permute.xlu0 %2999
    %3003 = vset.pattern.permute.xlu0 0
    %3004 = vperm.xlu0 %3003, %v2996
    %v3005 = vpop.permute.xlu0 %3004
    %v3007 = vmul.f32 %v3000, %v1398
    %v3008 = vmul.f32 %v3005, %v1399
    %v3009 = vsel %vm80, %v3007, 0.0
    %v3010 = vrot.slane %v3009, 4
    %v3011 = vadd.f32 %v3009, %v3010
    %v3012 = vrot.slane %v3011, 2
    %v3013 = vadd.f32 %v3011, %v3012
    %v3014 = vrot.slane %v3013, 1
    %v3015 = vadd.f32 %v3013, %v3014
    %v3016 = vsel %vm80, %v3008, 0.0
    %v3017 = vrot.slane %v3016, 4
    %v3018 = vadd.f32 %v3016, %v3017
    %v3019 = vrot.slane %v3018, 2
    %v3020 = vadd.f32 %v3018, %v3019
    %v3021 = vrot.slane %v3020, 1
    %v3022 = vadd.f32 %v3020, %v3021
    %v3023 = vld [vmem:[%s8] sm:$0xff]
    %v3024 = vld [vmem:[%s8 + $0x8] sm:$0xff]
    %v3025 = vld [vmem:[%s8 + $0x10] sm:$0xff]
    %v3026 = vld [vmem:[%s8 + $0x18] sm:$0xff]
    %v3027 = vld [vmem:[%s8 + $0x20] sm:$0xff]
    %v3028 = vld [vmem:[%s8 + $0x28] sm:$0xff]
    %v3029 = vld [vmem:[%s8 + $0x30] sm:$0xff]
    %v3030 = vld [vmem:[%s8 + $0x38] sm:$0xff]
    %v3031 = vld [vmem:[%s8 + $0x40] sm:$0xff]
    %v3032 = vld [vmem:[%s8 + $0x48] sm:$0xff]
    %v3033 = vld [vmem:[%s8 + $0x50] sm:$0xff]
    %v3034 = vld [vmem:[%s8 + $0x58] sm:$0xff]
    %v3035 = vld [vmem:[%s8 + $0x60] sm:$0xff]
    %v3036 = vld [vmem:[%s8 + $0x68] sm:$0xff]
    %v3037 = vld [vmem:[%s8 + $0x70] sm:$0xff]
    %v3038 = vld [vmem:[%s8 + $0x78] sm:$0xff]
    %v3039 = vld [vmem:[%s9] sm:$0xff]
    %v3040 = vld [vmem:[%s9 + $0x8] sm:$0xff]
    %v3041 = vld [vmem:[%s9 + $0x10] sm:$0xff]
    %v3042 = vld [vmem:[%s9 + $0x18] sm:$0xff]
    %v3045 = vsel %vm1547, %v3022, %v3015
    %v3046 = vsel %vm80, %v3045, 0
    %3048 = vmatprep.subr.mxu0 0.0
    %3049 = vmatpush1.msra.mxu0 %v3039
    %3050 = vmatprep.subr.mxu0 0.0
    %3051 = vmatpush1.msra.mxu0 %v3040
    %3052 = vmatprep.subr.mxu0 0.0
    %3053 = vmatpush1.msra.mxu0 %v3041
    %3054 = vmatprep.subr.mxu0 0.0
    %3055 = vmatpush1.msra.mxu0 %v3042
    %3056 = vmatprep.subr.mxu0 0.0
    %3057 = vmatpush1.msra.mxu0 0.0
    %3058 = vmatprep.subr.mxu0 0.0
    %3059 = vmatpush1.msra.mxu0 0.0
    %3060 = vmatprep.subr.mxu0 0.0
    %3061 = vmatpush1.msra.mxu0 0.0
    %3062 = vmatprep.subr.mxu0 0.0
    %3063 = vmatpush1.msra.mxu0 0.0
    %3064 = vmatprep.subr.mxu0 0.0
    %3065 = vmatpush1.msra.mxu0 0.0
    %3066 = vmatprep.subr.mxu0 0.0
    %3067 = vmatpush1.msra.mxu0 0.0
    %3068 = vmatprep.subr.mxu0 0.0
    %3069 = vmatpush1.msra.mxu0 0.0
    %3070 = vmatprep.subr.mxu0 0.0
    %3071 = vmatpush1.msra.mxu0 0.0
    %3072 = vmatprep.subr.mxu0 0.0
    %3073 = vmatpush1.msra.mxu0 0.0
    %3074 = vmatprep.subr.mxu0 0.0
    %3075 = vmatpush1.msra.mxu0 0.0
    %3076 = vmatprep.subr.mxu0 0.0
    %3077 = vmatpush1.msra.mxu0 0.0
    %3078 = vmatprep.subr.mxu0 0.0
    %3079 = vmatpush1.msra.mxu0 0.0
    %3080 = vmatprep.subr.mxu0 0.0
    %3081 = vmatpush1.msra.mxu0 0.0
    %3082 = vmatprep.subr.mxu0 0.0
    %3083 = vmatpush1.msra.mxu0 0.0
    %3084 = vmatprep.subr.mxu0 0.0
    %3085 = vmatpush1.msra.mxu0 0.0
    %3086 = vmatprep.subr.mxu0 0.0
    %3087 = vmatpush1.msra.mxu0 0.0
    %3088 = vmatprep.subr.mxu0 0.0
    %3089 = vmatpush1.msra.mxu0 0.0
    %3090 = vmatprep.subr.mxu0 0.0
    %3091 = vmatpush1.msra.mxu0 0.0
    %3092 = vmatprep.subr.mxu0 0.0
    %3093 = vmatpush1.msra.mxu0 0.0
    %3094 = vmatprep.subr.mxu0 0.0
    %3095 = vmatpush1.msra.mxu0 0.0
    %3096 = vmatprep.subr.mxu0 0.0
    %3097 = vmatpush1.msra.mxu0 0.0
    %3098 = vmatprep.subr.mxu0 0.0
    %3099 = vmatpush1.msra.mxu0 0.0
    %3100 = vmatprep.subr.mxu0 0.0
    %3101 = vmatpush1.msra.mxu0 0.0
    %3102 = vmatprep.subr.mxu0 0.0
    %3103 = vmatpush1.msra.mxu0 0.0
    %3104 = vmatprep.subr.mxu0 0.0
    %3105 = vmatpush1.msra.mxu0 0.0
    %3106 = vmatprep.subr.mxu0 0.0
    %3107 = vmatpush1.msra.mxu0 0.0
    %3108 = vmatprep.subr.mxu0 0.0
    %3109 = vmatpush1.msra.mxu0 0.0
    %3110 = vmatprep.subr.mxu0 0.0
    %3111 = vmatpush1.msra.mxu0 0.0
    %3112 = vmatprep.mubr.f32.mxu0 0.0
    %3113 = vmatmul.mubr.f32.gmra.mrb[0].mxu0 %v3046
    %v3114 = vpop.f32.mrb[0].mxu0
    %v3115 = vadd.f32 0.0, %v3114
    %v3116 = vpop.f32.mrb[0].mxu0
    %3117 = vdwg.mxu0
    %3118 = vmatprep.subr.mxu0 0.0
    %3119 = vmatpush1.msra.mxu0 %v3023
    %3120 = vmatprep.subr.mxu0 0.0
    %3121 = vmatpush1.msra.mxu0 %v3024
    %3122 = vmatprep.subr.mxu0 0.0
    %3123 = vmatpush1.msra.mxu0 %v3025
    %3124 = vmatprep.subr.mxu0 0.0
    %3125 = vmatpush1.msra.mxu0 %v3026
    %3126 = vmatprep.subr.mxu0 0.0
    %3127 = vmatpush1.msra.mxu0 %v3027
    %3128 = vmatprep.subr.mxu0 0.0
    %3129 = vmatpush1.msra.mxu0 %v3028
    %3130 = vmatprep.subr.mxu0 0.0
    %3131 = vmatpush1.msra.mxu0 %v3029
    %3132 = vmatprep.subr.mxu0 0.0
    %3133 = vmatpush1.msra.mxu0 %v3030
    %3134 = vmatprep.subr.mxu0 0.0
    %3135 = vmatpush1.msra.mxu0 %v3031
    %3136 = vmatprep.subr.mxu0 0.0
    %3137 = vmatpush1.msra.mxu0 %v3032
    %3138 = vmatprep.subr.mxu0 0.0
    %3139 = vmatpush1.msra.mxu0 %v3033
    %3140 = vmatprep.subr.mxu0 0.0
    %3141 = vmatpush1.msra.mxu0 %v3034
    %3142 = vmatprep.subr.mxu0 0.0
    %3143 = vmatpush1.msra.mxu0 %v3035
    %3144 = vmatprep.subr.mxu0 0.0
    %3145 = vmatpush1.msra.mxu0 %v3036
    %3146 = vmatprep.subr.mxu0 0.0
    %3147 = vmatpush1.msra.mxu0 %v3037
    %3148 = vmatprep.subr.mxu0 0.0
    %3149 = vmatpush1.msra.mxu0 %v3038
    %3150 = vmatprep.subr.mxu0 0.0
    %3151 = vmatpush1.msra.mxu0 0.0
    %3152 = vmatprep.subr.mxu0 0.0
    %3153 = vmatpush1.msra.mxu0 0.0
    %3154 = vmatprep.subr.mxu0 0.0
    %3155 = vmatpush1.msra.mxu0 0.0
    %3156 = vmatprep.subr.mxu0 0.0
    %3157 = vmatpush1.msra.mxu0 0.0
    %3158 = vmatprep.subr.mxu0 0.0
    %3159 = vmatpush1.msra.mxu0 0.0
    %3160 = vmatprep.subr.mxu0 0.0
    %3161 = vmatpush1.msra.mxu0 0.0
    %3162 = vmatprep.subr.mxu0 0.0
    %3163 = vmatpush1.msra.mxu0 0.0
    %3164 = vmatprep.subr.mxu0 0.0
    %3165 = vmatpush1.msra.mxu0 0.0
    %3166 = vmatprep.subr.mxu0 0.0
    %3167 = vmatpush1.msra.mxu0 0.0
    %3168 = vmatprep.subr.mxu0 0.0
    %3169 = vmatpush1.msra.mxu0 0.0
    %3170 = vmatprep.subr.mxu0 0.0
    %3171 = vmatpush1.msra.mxu0 0.0
    %3172 = vmatprep.subr.mxu0 0.0
    %3173 = vmatpush1.msra.mxu0 0.0
    %3174 = vmatprep.subr.mxu0 0.0
    %3175 = vmatpush1.msra.mxu0 0.0
    %3176 = vmatprep.subr.mxu0 0.0
    %3177 = vmatpush1.msra.mxu0 0.0
    %3178 = vmatprep.subr.mxu0 0.0
    %3179 = vmatpush1.msra.mxu0 0.0
    %3180 = vmatprep.subr.mxu0 0.0
    %3181 = vmatpush1.msra.mxu0 0.0
    %3182 = vmatprep.mubr.f32.mxu0 0.0
    %3183 = vmatmul.mubr.f32.gmra.mrb[0].mxu0 %v2885
    %v3184 = vpop.f32.mrb[0].mxu0
    %v3185 = vadd.f32 %v3115, %v3184
    %v3186 = vpop.f32.mrb[0].mxu0
    %3187 = vdwg.mxu0
    %v3188 = vld [vmem:[%s10] sm:$0xff]
    %v3189 = vld [vmem:[%s10 + $0x8] sm:$0xff]
    %v3190 = vld [vmem:[%s10 + $0x10] sm:$0xff]
    %v3191 = vld [vmem:[%s10 + $0x18] sm:$0xff]
    %3192 = vmatprep.subr.mxu0 0.0
    %3193 = vmatpush1.msra.mxu0 %v3188
    %3194 = vmatprep.subr.mxu0 0.0
    %3195 = vmatpush1.msra.mxu0 %v3189
    %3196 = vmatprep.subr.mxu0 0.0
    %3197 = vmatpush1.msra.mxu0 %v3190
    %3198 = vmatprep.subr.mxu0 0.0
    %3199 = vmatpush1.msra.mxu0 %v3191
    %3200 = vmatprep.subr.mxu0 0.0
    %3201 = vmatpush1.msra.mxu0 0.0
    %3202 = vmatprep.subr.mxu0 0.0
    %3203 = vmatpush1.msra.mxu0 0.0
    %3204 = vmatprep.subr.mxu0 0.0
    %3205 = vmatpush1.msra.mxu0 0.0
    %3206 = vmatprep.subr.mxu0 0.0
    %3207 = vmatpush1.msra.mxu0 0.0
    %3208 = vmatprep.subr.mxu0 0.0
    %3209 = vmatpush1.msra.mxu0 0.0
    %3210 = vmatprep.subr.mxu0 0.0
    %3211 = vmatpush1.msra.mxu0 0.0
    %3212 = vmatprep.subr.mxu0 0.0
    %3213 = vmatpush1.msra.mxu0 0.0
    %3214 = vmatprep.subr.mxu0 0.0
    %3215 = vmatpush1.msra.mxu0 0.0
    %3216 = vmatprep.subr.mxu0 0.0
    %3217 = vmatpush1.msra.mxu0 0.0
    %3218 = vmatprep.subr.mxu0 0.0
    %3219 = vmatpush1.msra.mxu0 0.0
    %3220 = vmatprep.subr.mxu0 0.0
    %3221 = vmatpush1.msra.mxu0 0.0
    %3222 = vmatprep.subr.mxu0 0.0
    %3223 = vmatpush1.msra.mxu0 0.0
    %3224 = vmatprep.subr.mxu0 0.0
    %3225 = vmatpush1.msra.mxu0 0.0
    %3226 = vmatprep.subr.mxu0 0.0
    %3227 = vmatpush1.msra.mxu0 0.0
    %3228 = vmatprep.subr.mxu0 0.0
    %3229 = vmatpush1.msra.mxu0 0.0
    %3230 = vmatprep.subr.mxu0 0.0
    %3231 = vmatpush1.msra.mxu0 0.0
    %3232 = vmatprep.subr.mxu0 0.0
    %3233 = vmatpush1.msra.mxu0 0.0
    %3234 = vmatprep.subr.mxu0 0.0
    %3235 = vmatpush1.msra.mxu0 0.0
    %3236 = vmatprep.subr.mxu0 0.0
    %3237 = vmatpush1.msra.mxu0 0.0
    %3238 = vmatprep.subr.mxu0 0.0
    %3239 = vmatpush1.msra.mxu0 0.0
    %3240 = vmatprep.subr.mxu0 0.0
    %3241 = vmatpush1.msra.mxu0 0.0
    %3242 = vmatprep.subr.mxu0 0.0
    %3243 = vmatpush1.msra.mxu0 0.0
    %3244 = vmatprep.subr.mxu0 0.0
    %3245 = vmatpush1.msra.mxu0 0.0
    %3246 = vmatprep.subr.mxu0 0.0
    %3247 = vmatpush1.msra.mxu0 0.0
    %3248 = vmatprep.subr.mxu0 0.0
    %3249 = vmatpush1.msra.mxu0 0.0
    %3250 = vmatprep.subr.mxu0 0.0
    %3251 = vmatpush1.msra.mxu0 0.0
    %3252 = vmatprep.subr.mxu0 0.0
    %3253 = vmatpush1.msra.mxu0 0.0
    %3254 = vmatprep.subr.mxu0 0.0
    %3255 = vmatpush1.msra.mxu0 0.0
    %3256 = vmatprep.mubr.f32.mxu0 0.0
    %3257 = vmatmul.mubr.f32.gmra.mrb[0].mxu0 %v2683
    %v3258 = vpop.f32.mrb[0].mxu0
    %v3259 = vadd.f32 0.0, %v3258
    %v3260 = vpop.f32.mrb[0].mxu0
    %3261 = vdwg.mxu0
    %v3262 = vadd.f32 %v3185, %v3259
    %v3263 = vld [vmem:[%s11] sm:$0x1]
    %v3265 = vlaneseq
    %v3266 = vshrl.u32 %v3265, 7
    %v3267 = vsub.s32 0, %v3266
    %v3268 = vrot.slane %v3263, %v3267
    %v3270 = vadd.f32 %v3262, %v3268
    %v3271 = vxor.u32 %v3270, 2147483648
    %v3272 = vmul.f32 %v3271, 1.442695
    %v3273 = vpow.pop %v3272
    %v3274 = vadd.f32 %v3273, 1.0
    %v3275 = vrcp.pop %v3274
    %v3276 = vmul.f32 1.0, %v3275
    %v3277 = vtanh.pop %v3270
    %v3278 = vmul.f32 %v3276, %v2595
    %3280 = vrot.lane.b32.xlu0 %v3277, 64
    %v3281 = vpop.permute.xlu0 %3280
    %v3283 = vmul.f32 %v3276, %v3281
    %3285 = vrot.lane.b32.xlu0 %v3283, 32
    %v3286 = vpop.permute.xlu0 %3285
    %v3288 = vadd.f32 %v3278, %v3286
    %v3289 = vtanh.pop %v3288
    %3291 = vrot.lane.b32.xlu0 %v3289, 64
    %v3292 = vpop.permute.xlu0 %3291
    %v3294 = vmul.f32 %v3276, %v3292
    %v3295 = vld [vmem:[%s12] sm:$0xff]
    %v3296 = vld [vmem:[%s12 + $0x8] sm:$0xff]
    %v3297 = vld [vmem:[%s12 + $0x10] sm:$0xff]
    %v3298 = vld [vmem:[%s12 + $0x18] sm:$0xff]
    %v3299 = vld [vmem:[%s13] sm:$0xff]
    %v3300 = vld [vmem:[%s13 + $0x8] sm:$0xff]
    %v3301 = vld [vmem:[%s13 + $0x10] sm:$0xff]
    %v3302 = vld [vmem:[%s13 + $0x18] sm:$0xff]
    %3303 = vmatprep.subr.mxu0 0.0
    %3304 = vmatpush1.msra.mxu0 %v3299
    %3305 = vmatprep.subr.mxu0 0.0
    %3306 = vmatpush1.msra.mxu0 %v3300
    %3307 = vmatprep.subr.mxu0 0.0
    %3308 = vmatpush1.msra.mxu0 %v3301
    %3309 = vmatprep.subr.mxu0 0.0
    %3310 = vmatpush1.msra.mxu0 %v3302
    %3311 = vmatprep.subr.mxu0 0.0
    %3312 = vmatpush1.msra.mxu0 0.0
    %3313 = vmatprep.subr.mxu0 0.0
    %3314 = vmatpush1.msra.mxu0 0.0
    %3315 = vmatprep.subr.mxu0 0.0
    %3316 = vmatpush1.msra.mxu0 0.0
    %3317 = vmatprep.subr.mxu0 0.0
    %3318 = vmatpush1.msra.mxu0 0.0
    %3319 = vmatprep.subr.mxu0 0.0
    %3320 = vmatpush1.msra.mxu0 0.0
    %3321 = vmatprep.subr.mxu0 0.0
    %3322 = vmatpush1.msra.mxu0 0.0
    %3323 = vmatprep.subr.mxu0 0.0
    %3324 = vmatpush1.msra.mxu0 0.0
    %3325 = vmatprep.subr.mxu0 0.0
    %3326 = vmatpush1.msra.mxu0 0.0
    %3327 = vmatprep.subr.mxu0 0.0
    %3328 = vmatpush1.msra.mxu0 0.0
    %3329 = vmatprep.subr.mxu0 0.0
    %3330 = vmatpush1.msra.mxu0 0.0
    %3331 = vmatprep.subr.mxu0 0.0
    %3332 = vmatpush1.msra.mxu0 0.0
    %3333 = vmatprep.subr.mxu0 0.0
    %3334 = vmatpush1.msra.mxu0 0.0
    %3335 = vmatprep.subr.mxu0 0.0
    %3336 = vmatpush1.msra.mxu0 0.0
    %3337 = vmatprep.subr.mxu0 0.0
    %3338 = vmatpush1.msra.mxu0 0.0
    %3339 = vmatprep.subr.mxu0 0.0
    %3340 = vmatpush1.msra.mxu0 0.0
    %3341 = vmatprep.subr.mxu0 0.0
    %3342 = vmatpush1.msra.mxu0 0.0
    %3343 = vmatprep.subr.mxu0 0.0
    %3344 = vmatpush1.msra.mxu0 0.0
    %3345 = vmatprep.subr.mxu0 0.0
    %3346 = vmatpush1.msra.mxu0 0.0
    %3347 = vmatprep.subr.mxu0 0.0
    %3348 = vmatpush1.msra.mxu0 0.0
    %3349 = vmatprep.subr.mxu0 0.0
    %3350 = vmatpush1.msra.mxu0 0.0
    %3351 = vmatprep.subr.mxu0 0.0
    %3352 = vmatpush1.msra.mxu0 0.0
    %3353 = vmatprep.subr.mxu0 0.0
    %3354 = vmatpush1.msra.mxu0 0.0
    %3355 = vmatprep.subr.mxu0 0.0
    %3356 = vmatpush1.msra.mxu0 0.0
    %3357 = vmatprep.subr.mxu0 0.0
    %3358 = vmatpush1.msra.mxu0 0.0
    %3359 = vmatprep.subr.mxu0 0.0
    %3360 = vmatpush1.msra.mxu0 0.0
    %3361 = vmatprep.subr.mxu0 0.0
    %3362 = vmatpush1.msra.mxu0 0.0
    %3363 = vmatprep.subr.mxu0 0.0
    %3364 = vmatpush1.msra.mxu0 0.0
    %3365 = vmatprep.subr.mxu0 0.0
    %3366 = vmatpush1.msra.mxu0 0.0
    %3367 = vmatprep.mubr.f32.mxu0 0.0
    %3368 = vmatmul.mubr.f32.gmra.mrb[0].mxu0 %v3046
    %v3369 = vpop.f32.mrb[0].mxu0
    %v3370 = vadd.f32 0.0, %v3369
    %v3371 = vpop.f32.mrb[0].mxu0
    %3372 = vdwg.mxu0
    %3374 = vrot.lane.b32.xlu0 %v3294, 32
    %v3375 = vpop.permute.xlu0 %3374
    %v3376 = vsel %vm80, %v3375, 0
    %3378 = vmatprep.subr.mxu0 0.0
    %3379 = vmatpush1.msra.mxu0 %v3295
    %3380 = vmatprep.subr.mxu0 0.0
    %3381 = vmatpush1.msra.mxu0 %v3296
    %3382 = vmatprep.subr.mxu0 0.0
    %3383 = vmatpush1.msra.mxu0 %v3297
    %3384 = vmatprep.subr.mxu0 0.0
    %3385 = vmatpush1.msra.mxu0 %v3298
    %3386 = vmatprep.subr.mxu0 0.0
    %3387 = vmatpush1.msra.mxu0 0.0
    %3388 = vmatprep.subr.mxu0 0.0
    %3389 = vmatpush1.msra.mxu0 0.0
    %3390 = vmatprep.subr.mxu0 0.0
    %3391 = vmatpush1.msra.mxu0 0.0
    %3392 = vmatprep.subr.mxu0 0.0
    %3393 = vmatpush1.msra.mxu0 0.0
    %3394 = vmatprep.subr.mxu0 0.0
    %3395 = vmatpush1.msra.mxu0 0.0
    %3396 = vmatprep.subr.mxu0 0.0
    %3397 = vmatpush1.msra.mxu0 0.0
    %3398 = vmatprep.subr.mxu0 0.0
    %3399 = vmatpush1.msra.mxu0 0.0
    %3400 = vmatprep.subr.mxu0 0.0
    %3401 = vmatpush1.msra.mxu0 0.0
    %3402 = vmatprep.subr.mxu0 0.0
    %3403 = vmatpush1.msra.mxu0 0.0
    %3404 = vmatprep.subr.mxu0 0.0
    %3405 = vmatpush1.msra.mxu0 0.0
    %3406 = vmatprep.subr.mxu0 0.0
    %3407 = vmatpush1.msra.mxu0 0.0
    %3408 = vmatprep.subr.mxu0 0.0
    %3409 = vmatpush1.msra.mxu0 0.0
    %3410 = vmatprep.subr.mxu0 0.0
    %3411 = vmatpush1.msra.mxu0 0.0
    %3412 = vmatprep.subr.mxu0 0.0
    %3413 = vmatpush1.msra.mxu0 0.0
    %3414 = vmatprep.subr.mxu0 0.0
    %3415 = vmatpush1.msra.mxu0 0.0
    %3416 = vmatprep.subr.mxu0 0.0
    %3417 = vmatpush1.msra.mxu0 0.0
    %3418 = vmatprep.subr.mxu0 0.0
    %3419 = vmatpush1.msra.mxu0 0.0
    %3420 = vmatprep.subr.mxu0 0.0
    %3421 = vmatpush1.msra.mxu0 0.0
    %3422 = vmatprep.subr.mxu0 0.0
    %3423 = vmatpush1.msra.mxu0 0.0
    %3424 = vmatprep.subr.mxu0 0.0
    %3425 = vmatpush1.msra.mxu0 0.0
    %3426 = vmatprep.subr.mxu0 0.0
    %3427 = vmatpush1.msra.mxu0 0.0
    %3428 = vmatprep.subr.mxu0 0.0
    %3429 = vmatpush1.msra.mxu0 0.0
    %3430 = vmatprep.subr.mxu0 0.0
    %3431 = vmatpush1.msra.mxu0 0.0
    %3432 = vmatprep.subr.mxu0 0.0
    %3433 = vmatpush1.msra.mxu0 0.0
    %3434 = vmatprep.subr.mxu0 0.0
    %3435 = vmatpush1.msra.mxu0 0.0
    %3436 = vmatprep.subr.mxu0 0.0
    %3437 = vmatpush1.msra.mxu0 0.0
    %3438 = vmatprep.subr.mxu0 0.0
    %3439 = vmatpush1.msra.mxu0 0.0
    %3440 = vmatprep.subr.mxu0 0.0
    %3441 = vmatpush1.msra.mxu0 0.0
    %3442 = vmatprep.mubr.f32.mxu0 0.0
    %3443 = vmatmul.mubr.f32.gmra.mrb[0].mxu0 %v3376
    %v3444 = vpop.f32.mrb[0].mxu0
    %v3445 = vadd.f32 %v3370, %v3444
    %v3446 = vpop.f32.mrb[0].mxu0
    %3447 = vdwg.mxu0
    %v3448 = vld [vmem:[%s14] sm:$0xff]
    %v3449 = vld [vmem:[%s14 + $0x8] sm:$0xff]
    %v3450 = vld [vmem:[%s14 + $0x10] sm:$0xff]
    %v3451 = vld [vmem:[%s14 + $0x18] sm:$0xff]
    %v3452 = vld [vmem:[%s14 + $0x20] sm:$0xff]
    %v3453 = vld [vmem:[%s14 + $0x28] sm:$0xff]
    %v3454 = vld [vmem:[%s14 + $0x30] sm:$0xff]
    %v3455 = vld [vmem:[%s14 + $0x38] sm:$0xff]
    %v3456 = vld [vmem:[%s14 + $0x40] sm:$0xff]
    %v3457 = vld [vmem:[%s14 + $0x48] sm:$0xff]
    %v3458 = vld [vmem:[%s14 + $0x50] sm:$0xff]
    %v3459 = vld [vmem:[%s14 + $0x58] sm:$0xff]
    %v3460 = vld [vmem:[%s14 + $0x60] sm:$0xff]
    %v3461 = vld [vmem:[%s14 + $0x68] sm:$0xff]
    %v3462 = vld [vmem:[%s14 + $0x70] sm:$0xff]
    %v3463 = vld [vmem:[%s14 + $0x78] sm:$0xff]
    %3464 = vmatprep.subr.mxu0 0.0
    %3465 = vmatpush1.msra.mxu0 %v3448
    %3466 = vmatprep.subr.mxu0 0.0
    %3467 = vmatpush1.msra.mxu0 %v3449
    %3468 = vmatprep.subr.mxu0 0.0
    %3469 = vmatpush1.msra.mxu0 %v3450
    %3470 = vmatprep.subr.mxu0 0.0
    %3471 = vmatpush1.msra.mxu0 %v3451
    %3472 = vmatprep.subr.mxu0 0.0
    %3473 = vmatpush1.msra.mxu0 %v3452
    %3474 = vmatprep.subr.mxu0 0.0
    %3475 = vmatpush1.msra.mxu0 %v3453
    %3476 = vmatprep.subr.mxu0 0.0
    %3477 = vmatpush1.msra.mxu0 %v3454
    %3478 = vmatprep.subr.mxu0 0.0
    %3479 = vmatpush1.msra.mxu0 %v3455
    %3480 = vmatprep.subr.mxu0 0.0
    %3481 = vmatpush1.msra.mxu0 %v3456
    %3482 = vmatprep.subr.mxu0 0.0
    %3483 = vmatpush1.msra.mxu0 %v3457
    %3484 = vmatprep.subr.mxu0 0.0
    %3485 = vmatpush1.msra.mxu0 %v3458
    %3486 = vmatprep.subr.mxu0 0.0
    %3487 = vmatpush1.msra.mxu0 %v3459
    %3488 = vmatprep.subr.mxu0 0.0
    %3489 = vmatpush1.msra.mxu0 %v3460
    %3490 = vmatprep.subr.mxu0 0.0
    %3491 = vmatpush1.msra.mxu0 %v3461
    %3492 = vmatprep.subr.mxu0 0.0
    %3493 = vmatpush1.msra.mxu0 %v3462
    %3494 = vmatprep.subr.mxu0 0.0
    %3495 = vmatpush1.msra.mxu0 %v3463
    %3496 = vmatprep.subr.mxu0 0.0
    %3497 = vmatpush1.msra.mxu0 0.0
    %3498 = vmatprep.subr.mxu0 0.0
    %3499 = vmatpush1.msra.mxu0 0.0
    %3500 = vmatprep.subr.mxu0 0.0
    %3501 = vmatpush1.msra.mxu0 0.0
    %3502 = vmatprep.subr.mxu0 0.0
    %3503 = vmatpush1.msra.mxu0 0.0
    %3504 = vmatprep.subr.mxu0 0.0
    %3505 = vmatpush1.msra.mxu0 0.0
    %3506 = vmatprep.subr.mxu0 0.0
    %3507 = vmatpush1.msra.mxu0 0.0
    %3508 = vmatprep.subr.mxu0 0.0
    %3509 = vmatpush1.msra.mxu0 0.0
    %3510 = vmatprep.subr.mxu0 0.0
    %3511 = vmatpush1.msra.mxu0 0.0
    %3512 = vmatprep.subr.mxu0 0.0
    %3513 = vmatpush1.msra.mxu0 0.0
    %3514 = vmatprep.subr.mxu0 0.0
    %3515 = vmatpush1.msra.mxu0 0.0
    %3516 = vmatprep.subr.mxu0 0.0
    %3517 = vmatpush1.msra.mxu0 0.0
    %3518 = vmatprep.subr.mxu0 0.0
    %3519 = vmatpush1.msra.mxu0 0.0
    %3520 = vmatprep.subr.mxu0 0.0
    %3521 = vmatpush1.msra.mxu0 0.0
    %3522 = vmatprep.subr.mxu0 0.0
    %3523 = vmatpush1.msra.mxu0 0.0
    %3524 = vmatprep.subr.mxu0 0.0
    %3525 = vmatpush1.msra.mxu0 0.0
    %3526 = vmatprep.subr.mxu0 0.0
    %3527 = vmatpush1.msra.mxu0 0.0
    %3528 = vmatprep.mubr.f32.mxu0 0.0
    %3529 = vmatmul.mubr.f32.gmra.mrb[0].mxu0 %v2885
    %v3530 = vpop.f32.mrb[0].mxu0
    %v3531 = vadd.f32 0.0, %v3530
    %v3532 = vpop.f32.mrb[0].mxu0
    %3533 = vdwg.mxu0
    %v3534 = vadd.f32 %v3445, %v3531
    %v3535 = vld [vmem:[%s15] sm:$0x1]
    %v3537 = vlaneseq
    %v3538 = vshrl.u32 %v3537, 7
    %v3539 = vsub.s32 0, %v3538
    %v3540 = vrot.slane %v3535, %v3539
    %v3542 = vadd.f32 %v3534, %v3540
    %s3543 = scalar_lea.vmem %s19, 4
    %3544 = vst [vmem:[%s3543] sm:$0x3] %v3542
    %v3545 = vsel %vm1494, %v3542, -1e+30
    %v3546 = vsel %vm2160, %v3545, -inf
    %3547 = vmax.xlane.f32.xlu0 %v3546
    %v3548 = vpop.xlane.xlu0 %3547
    %vm3549 = vcmp.ge.f32.partialorder %v3545, %v3548
    %v3550 = vsel %vm3549, %v1493, 128
    %v3551 = vsel %vm2160, %v3550, 2147483647
    %v3552 = vand.u32 %v3551, 65535
    %v3553 = vshra.s32 %v3551, 16
    %v3554 = vcvt.s32.f32 %v3552
    %v3555 = vcvt.s32.f32 %v3553
    %3556 = vmin.xlane.f32.xlu0 %v3555
    %v3557 = vpop.xlane.xlu0 %3556
    %vm3558 = vcmp.eq.f32.partialorder %v3555, %v3557
    %v3559 = vsel %vm3558, %v3554, inf
    %3560 = vmin.xlane.f32.xlu0 %v3559
    %v3561 = vpop.xlane.xlu0 %3560
    %v3562 = vcvt.f32.s32 %v3561
    %v3563 = vcvt.f32.s32 %v3557
    %v3564 = vshll.u32 %v3563, 16
    %v3565 = vadd.s32 %v3564, %v3562
    %vm3566 = vcmp.eq.s32.totalorder %v1493, %v3565
    %v3567 = vsel %vm3566, 1, 0
    %v3568 = vcvt.s32.f32 %v3567
    %s3569 = sld [smem:[#allocation3 + $0x2]]
    %s3570 = scvt.s32.f32 %s3569
    %s3571 = scalar_lea.vmem %s17, 4
    %v3572 = vld [vmem:[%s3571] sm:$0x3]
    %v3573 = vstv %s3570
    %v3574 = vmul.f32 %v3573, %v3572
    %s3575 = ssub.f32 1.0, %s3570
    %v3576 = vstv %s3575
    %v3577 = vmul.f32 %v3576, %v3568
    %v3578 = vadd.f32 %v3574, %v3577
    %v3580 = vunpack.c.l.s4 1966171168
    %v3581 = vunpack.c.0.s8 %v3580
    %v3582 = vlaneseq
    %v3583 = vshrl.u32 %v3582, 7
    %v3584 = vsub.s32 %v3581, %v3583
    %v3585 = vrot.slane %v3294, %v3584
    %v3586 = vcombine.high %v3585, %v3585
    %v3588 = vunpack.c.l.s4 1966171168
    %v3589 = vunpack.c.0.s8 %v3588
    %v3590 = vlaneseq
    %v3591 = vshrl.u32 %v3590, 7
    %v3592 = vsub.s32 %v3589, %v3591
    %v3593 = vrot.slane %v3585, %v3592
    %v3595 = vunpack.c.l.s4 1966171168
    %v3596 = vunpack.c.0.s8 %v3595
    %v3597 = vlaneseq
    %v3598 = vshrl.u32 %v3597, 7
    %v3599 = vsub.s32 %v3596, %v3598
    %v3600 = vrot.slane %v3586, %v3599
    %v3601 = vlaneseq
    %v3602 = vshrl.u32 %v3601, 7
    %v3603 = vsub.s32 0, %v3602
    %v3604 = vrot.slane %v3593, %v3603
    %v3605 = vlaneseq
    %v3606 = vshrl.u32 %v3605, 7
    %v3607 = vsub.s32 0, %v3606
    %v3608 = vrot.slane %v3600, %v3607
    %3609 = vrot.lane.b32.xlu0 %v3604, 32
    %v3610 = vpop.permute.xlu0 %3609
    %3611 = vrot.lane.b32.xlu0 %v3608, 32
    %v3612 = vpop.permute.xlu0 %3611
    %v3615 = vmul.f32 %v1484, %v3610
    %v3616 = vmul.f32 %v1489, %v3612
    %v3617 = vsel %vm80, %v3615, 0.0
    %3618 = vadd.xlane.f32.xlu0 %v3617
    %v3619 = vpop.xlane.xlu0 %3618
    %v3620 = vsel %vm80, %v3616, 0.0
    %3621 = vadd.xlane.f32.xlu0 %v3620
    %v3622 = vpop.xlane.xlu0 %3621
    %v3625 = vlaneseq
    %v3626 = vshrl.u32 %v3625, 7
    %v3627 = vsub.s32 %v1493, %v3626
    %v3628 = vrot.slane %v3619, %v3627
    %v3629 = vlaneseq
    %v3630 = vshrl.u32 %v3629, 7
    %v3631 = vsub.s32 %v1493, %v3630
    %v3632 = vrot.slane %v3622, %v3631
    %v3633 = vsel %vm1547, %v3632, %v3628
    %v3635 = vsel %vm1550, %v3633, -inf
    %3636 = vmax.xlane.f32.xlu0 %v3635
    %v3637 = vpop.xlane.xlu0 %3636
    %v3639 = vlaneseq
    %v3640 = vshrl.u32 %v3639, 7
    %v3641 = vsub.s32 0, %v3640
    %v3642 = vrot.slane %v3637, %v3641
    %v3643 = vlaneseq
    %v3644 = vshrl.u32 %v3643, 7
    %v3645 = vsub.s32 1, %v3644
    %v3646 = vrot.slane %v3637, %v3645
    %v3649 = vsub.f32 %v3619, %v3642
    %v3650 = vsub.f32 %v3622, %v3646
    %v3651 = vmul.f32 %v3649, 1.442695
    %v3652 = vpow.pop %v3651
    %v3653 = vmul.f32 %v3650, 1.442695
    %v3654 = vpow.pop %v3653
    %3657 = vset.pattern.permute.xlu0 0
    %3658 = vperm.xlu0 %3657, %v3652
    %v3659 = vpop.permute.xlu0 %3658
    %3660 = vset.pattern.permute.xlu0 0
    %3661 = vperm.xlu0 %3660, %v3654
    %v3662 = vpop.permute.xlu0 %3661
    %v3663 = vlaneseq
    %v3664 = vshrl.u32 %v3663, 7
    %v3665 = vsub.s32 %v1493, %v3664
    %v3666 = vrot.slane %v3659, %v3665
    %v3667 = vlaneseq
    %v3668 = vshrl.u32 %v3667, 7
    %v3669 = vsub.s32 %v1493, %v3668
    %v3670 = vrot.slane %v3662, %v3669
    %v3671 = vsel %vm1547, %v3670, %v3666
    %v3673 = vsel %vm1550, %v3671, 0.0
    %3674 = vadd.xlane.f32.xlu0 %v3673
    %v3675 = vpop.xlane.xlu0 %3674
    %v3676 = vrcp.pop %v3675
    %v3678 = vlaneseq
    %v3679 = vshrl.u32 %v3678, 7
    %v3680 = vsub.s32 0, %v3679
    %v3681 = vrot.slane %v3676, %v3680
    %v3682 = vlaneseq
    %v3683 = vshrl.u32 %v3682, 7
    %v3684 = vsub.s32 1, %v3683
    %v3685 = vrot.slane %v3676, %v3684
    %v3688 = vmul.f32 %v3652, %v3681
    %v3689 = vmul.f32 %v3654, %v3685
    %3691 = vset.pattern.permute.xlu0 0
    %3692 = vperm.xlu0 %3691, %v3688
    %v3693 = vpop.permute.xlu0 %3692
    %3696 = vset.pattern.permute.xlu0 0
    %3697 = vperm.xlu0 %3696, %v3689
    %v3698 = vpop.permute.xlu0 %3697
    %v3700 = vmul.f32 %v3693, %v1398
    %v3701 = vmul.f32 %v3698, %v1399
    %v3702 = vsel %vm80, %v3700, 0.0
    %v3703 = vrot.slane %v3702, 4
    %v3704 = vadd.f32 %v3702, %v3703
    %v3705 = vrot.slane %v3704, 2
    %v3706 = vadd.f32 %v3704, %v3705
    %v3707 = vrot.slane %v3706, 1
    %v3708 = vadd.f32 %v3706, %v3707
    %v3709 = vsel %vm80, %v3701, 0.0
    %v3710 = vrot.slane %v3709, 4
    %v3711 = vadd.f32 %v3709, %v3710
    %v3712 = vrot.slane %v3711, 2
    %v3713 = vadd.f32 %v3711, %v3712
    %v3714 = vrot.slane %v3713, 1
    %v3715 = vadd.f32 %v3713, %v3714
    %v3716 = vld [vmem:[%s8] sm:$0xff]
    %v3717 = vld [vmem:[%s8 + $0x8] sm:$0xff]
    %v3718 = vld [vmem:[%s8 + $0x10] sm:$0xff]
    %v3719 = vld [vmem:[%s8 + $0x18] sm:$0xff]
    %v3720 = vld [vmem:[%s8 + $0x20] sm:$0xff]
    %v3721 = vld [vmem:[%s8 + $0x28] sm:$0xff]
    %v3722 = vld [vmem:[%s8 + $0x30] sm:$0xff]
    %v3723 = vld [vmem:[%s8 + $0x38] sm:$0xff]
    %v3724 = vld [vmem:[%s8 + $0x40] sm:$0xff]
    %v3725 = vld [vmem:[%s8 + $0x48] sm:$0xff]
    %v3726 = vld [vmem:[%s8 + $0x50] sm:$0xff]
    %v3727 = vld [vmem:[%s8 + $0x58] sm:$0xff]
    %v3728 = vld [vmem:[%s8 + $0x60] sm:$0xff]
    %v3729 = vld [vmem:[%s8 + $0x68] sm:$0xff]
    %v3730 = vld [vmem:[%s8 + $0x70] sm:$0xff]
    %v3731 = vld [vmem:[%s8 + $0x78] sm:$0xff]
    %v3732 = vld [vmem:[%s9] sm:$0xff]
    %v3733 = vld [vmem:[%s9 + $0x8] sm:$0xff]
    %v3734 = vld [vmem:[%s9 + $0x10] sm:$0xff]
    %v3735 = vld [vmem:[%s9 + $0x18] sm:$0xff]
    %v3738 = vsel %vm1547, %v3715, %v3708
    %v3739 = vsel %vm80, %v3738, 0
    %3741 = vmatprep.subr.mxu0 0.0
    %3742 = vmatpush1.msra.mxu0 %v3732
    %3743 = vmatprep.subr.mxu0 0.0
    %3744 = vmatpush1.msra.mxu0 %v3733
    %3745 = vmatprep.subr.mxu0 0.0
    %3746 = vmatpush1.msra.mxu0 %v3734
    %3747 = vmatprep.subr.mxu0 0.0
    %3748 = vmatpush1.msra.mxu0 %v3735
    %3749 = vmatprep.subr.mxu0 0.0
    %3750 = vmatpush1.msra.mxu0 0.0
    %3751 = vmatprep.subr.mxu0 0.0
    %3752 = vmatpush1.msra.mxu0 0.0
    %3753 = vmatprep.subr.mxu0 0.0
    %3754 = vmatpush1.msra.mxu0 0.0
    %3755 = vmatprep.subr.mxu0 0.0
    %3756 = vmatpush1.msra.mxu0 0.0
    %3757 = vmatprep.subr.mxu0 0.0
    %3758 = vmatpush1.msra.mxu0 0.0
    %3759 = vmatprep.subr.mxu0 0.0
    %3760 = vmatpush1.msra.mxu0 0.0
    %3761 = vmatprep.subr.mxu0 0.0
    %3762 = vmatpush1.msra.mxu0 0.0
    %3763 = vmatprep.subr.mxu0 0.0
    %3764 = vmatpush1.msra.mxu0 0.0
    %3765 = vmatprep.subr.mxu0 0.0
    %3766 = vmatpush1.msra.mxu0 0.0
    %3767 = vmatprep.subr.mxu0 0.0
    %3768 = vmatpush1.msra.mxu0 0.0
    %3769 = vmatprep.subr.mxu0 0.0
    %3770 = vmatpush1.msra.mxu0 0.0
    %3771 = vmatprep.subr.mxu0 0.0
    %3772 = vmatpush1.msra.mxu0 0.0
    %3773 = vmatprep.subr.mxu0 0.0
    %3774 = vmatpush1.msra.mxu0 0.0
    %3775 = vmatprep.subr.mxu0 0.0
    %3776 = vmatpush1.msra.mxu0 0.0
    %3777 = vmatprep.subr.mxu0 0.0
    %3778 = vmatpush1.msra.mxu0 0.0
    %3779 = vmatprep.subr.mxu0 0.0
    %3780 = vmatpush1.msra.mxu0 0.0
    %3781 = vmatprep.subr.mxu0 0.0
    %3782 = vmatpush1.msra.mxu0 0.0
    %3783 = vmatprep.subr.mxu0 0.0
    %3784 = vmatpush1.msra.mxu0 0.0
    %3785 = vmatprep.subr.mxu0 0.0
    %3786 = vmatpush1.msra.mxu0 0.0
    %3787 = vmatprep.subr.mxu0 0.0
    %3788 = vmatpush1.msra.mxu0 0.0
    %3789 = vmatprep.subr.mxu0 0.0
    %3790 = vmatpush1.msra.mxu0 0.0
    %3791 = vmatprep.subr.mxu0 0.0
    %3792 = vmatpush1.msra.mxu0 0.0
    %3793 = vmatprep.subr.mxu0 0.0
    %3794 = vmatpush1.msra.mxu0 0.0
    %3795 = vmatprep.subr.mxu0 0.0
    %3796 = vmatpush1.msra.mxu0 0.0
    %3797 = vmatprep.subr.mxu0 0.0
    %3798 = vmatpush1.msra.mxu0 0.0
    %3799 = vmatprep.subr.mxu0 0.0
    %3800 = vmatpush1.msra.mxu0 0.0
    %3801 = vmatprep.subr.mxu0 0.0
    %3802 = vmatpush1.msra.mxu0 0.0
    %3803 = vmatprep.subr.mxu0 0.0
    %3804 = vmatpush1.msra.mxu0 0.0
    %3805 = vmatprep.mubr.f32.mxu0 0.0
    %3806 = vmatmul.mubr.f32.gmra.mrb[0].mxu0 %v3739
    %v3807 = vpop.f32.mrb[0].mxu0
    %v3808 = vadd.f32 0.0, %v3807
    %v3809 = vpop.f32.mrb[0].mxu0
    %3810 = vdwg.mxu0
    %3811 = vmatprep.subr.mxu0 0.0
    %3812 = vmatpush1.msra.mxu0 %v3716
    %3813 = vmatprep.subr.mxu0 0.0
    %3814 = vmatpush1.msra.mxu0 %v3717
    %3815 = vmatprep.subr.mxu0 0.0
    %3816 = vmatpush1.msra.mxu0 %v3718
    %3817 = vmatprep.subr.mxu0 0.0
    %3818 = vmatpush1.msra.mxu0 %v3719
    %3819 = vmatprep.subr.mxu0 0.0
    %3820 = vmatpush1.msra.mxu0 %v3720
    %3821 = vmatprep.subr.mxu0 0.0
    %3822 = vmatpush1.msra.mxu0 %v3721
    %3823 = vmatprep.subr.mxu0 0.0
    %3824 = vmatpush1.msra.mxu0 %v3722
    %3825 = vmatprep.subr.mxu0 0.0
    %3826 = vmatpush1.msra.mxu0 %v3723
    %3827 = vmatprep.subr.mxu0 0.0
    %3828 = vmatpush1.msra.mxu0 %v3724
    %3829 = vmatprep.subr.mxu0 0.0
    %3830 = vmatpush1.msra.mxu0 %v3725
    %3831 = vmatprep.subr.mxu0 0.0
    %3832 = vmatpush1.msra.mxu0 %v3726
    %3833 = vmatprep.subr.mxu0 0.0
    %3834 = vmatpush1.msra.mxu0 %v3727
    %3835 = vmatprep.subr.mxu0 0.0
    %3836 = vmatpush1.msra.mxu0 %v3728
    %3837 = vmatprep.subr.mxu0 0.0
    %3838 = vmatpush1.msra.mxu0 %v3729
    %3839 = vmatprep.subr.mxu0 0.0
    %3840 = vmatpush1.msra.mxu0 %v3730
    %3841 = vmatprep.subr.mxu0 0.0
    %3842 = vmatpush1.msra.mxu0 %v3731
    %3843 = vmatprep.subr.mxu0 0.0
    %3844 = vmatpush1.msra.mxu0 0.0
    %3845 = vmatprep.subr.mxu0 0.0
    %3846 = vmatpush1.msra.mxu0 0.0
    %3847 = vmatprep.subr.mxu0 0.0
    %3848 = vmatpush1.msra.mxu0 0.0
    %3849 = vmatprep.subr.mxu0 0.0
    %3850 = vmatpush1.msra.mxu0 0.0
    %3851 = vmatprep.subr.mxu0 0.0
    %3852 = vmatpush1.msra.mxu0 0.0
    %3853 = vmatprep.subr.mxu0 0.0
    %3854 = vmatpush1.msra.mxu0 0.0
    %3855 = vmatprep.subr.mxu0 0.0
    %3856 = vmatpush1.msra.mxu0 0.0
    %3857 = vmatprep.subr.mxu0 0.0
    %3858 = vmatpush1.msra.mxu0 0.0
    %3859 = vmatprep.subr.mxu0 0.0
    %3860 = vmatpush1.msra.mxu0 0.0
    %3861 = vmatprep.subr.mxu0 0.0
    %3862 = vmatpush1.msra.mxu0 0.0
    %3863 = vmatprep.subr.mxu0 0.0
    %3864 = vmatpush1.msra.mxu0 0.0
    %3865 = vmatprep.subr.mxu0 0.0
    %3866 = vmatpush1.msra.mxu0 0.0
    %3867 = vmatprep.subr.mxu0 0.0
    %3868 = vmatpush1.msra.mxu0 0.0
    %3869 = vmatprep.subr.mxu0 0.0
    %3870 = vmatpush1.msra.mxu0 0.0
    %3871 = vmatprep.subr.mxu0 0.0
    %3872 = vmatpush1.msra.mxu0 0.0
    %3873 = vmatprep.subr.mxu0 0.0
    %3874 = vmatpush1.msra.mxu0 0.0
    %3875 = vmatprep.mubr.f32.mxu0 0.0
    %3876 = vmatmul.mubr.f32.gmra.mrb[0].mxu0 %v3578
    %v3877 = vpop.f32.mrb[0].mxu0
    %v3878 = vadd.f32 %v3808, %v3877
    %v3879 = vpop.f32.mrb[0].mxu0
    %3880 = vdwg.mxu0
    %v3881 = vld [vmem:[%s10] sm:$0xff]
    %v3882 = vld [vmem:[%s10 + $0x8] sm:$0xff]
    %v3883 = vld [vmem:[%s10 + $0x10] sm:$0xff]
    %v3884 = vld [vmem:[%s10 + $0x18] sm:$0xff]
    %3885 = vmatprep.subr.mxu0 0.0
    %3886 = vmatpush1.msra.mxu0 %v3881
    %3887 = vmatprep.subr.mxu0 0.0
    %3888 = vmatpush1.msra.mxu0 %v3882
    %3889 = vmatprep.subr.mxu0 0.0
    %3890 = vmatpush1.msra.mxu0 %v3883
    %3891 = vmatprep.subr.mxu0 0.0
    %3892 = vmatpush1.msra.mxu0 %v3884
    %3893 = vmatprep.subr.mxu0 0.0
    %3894 = vmatpush1.msra.mxu0 0.0
    %3895 = vmatprep.subr.mxu0 0.0
    %3896 = vmatpush1.msra.mxu0 0.0
    %3897 = vmatprep.subr.mxu0 0.0
    %3898 = vmatpush1.msra.mxu0 0.0
    %3899 = vmatprep.subr.mxu0 0.0
    %3900 = vmatpush1.msra.mxu0 0.0
    %3901 = vmatprep.subr.mxu0 0.0
    %3902 = vmatpush1.msra.mxu0 0.0
    %3903 = vmatprep.subr.mxu0 0.0
    %3904 = vmatpush1.msra.mxu0 0.0
    %3905 = vmatprep.subr.mxu0 0.0
    %3906 = vmatpush1.msra.mxu0 0.0
    %3907 = vmatprep.subr.mxu0 0.0
    %3908 = vmatpush1.msra.mxu0 0.0
    %3909 = vmatprep.subr.mxu0 0.0
    %3910 = vmatpush1.msra.mxu0 0.0
    %3911 = vmatprep.subr.mxu0 0.0
    %3912 = vmatpush1.msra.mxu0 0.0
    %3913 = vmatprep.subr.mxu0 0.0
    %3914 = vmatpush1.msra.mxu0 0.0
    %3915 = vmatprep.subr.mxu0 0.0
    %3916 = vmatpush1.msra.mxu0 0.0
    %3917 = vmatprep.subr.mxu0 0.0
    %3918 = vmatpush1.msra.mxu0 0.0
    %3919 = vmatprep.subr.mxu0 0.0
    %3920 = vmatpush1.msra.mxu0 0.0
    %3921 = vmatprep.subr.mxu0 0.0
    %3922 = vmatpush1.msra.mxu0 0.0
    %3923 = vmatprep.subr.mxu0 0.0
    %3924 = vmatpush1.msra.mxu0 0.0
    %3925 = vmatprep.subr.mxu0 0.0
    %3926 = vmatpush1.msra.mxu0 0.0
    %3927 = vmatprep.subr.mxu0 0.0
    %3928 = vmatpush1.msra.mxu0 0.0
    %3929 = vmatprep.subr.mxu0 0.0
    %3930 = vmatpush1.msra.mxu0 0.0
    %3931 = vmatprep.subr.mxu0 0.0
    %3932 = vmatpush1.msra.mxu0 0.0
    %3933 = vmatprep.subr.mxu0 0.0
    %3934 = vmatpush1.msra.mxu0 0.0
    %3935 = vmatprep.subr.mxu0 0.0
    %3936 = vmatpush1.msra.mxu0 0.0
    %3937 = vmatprep.subr.mxu0 0.0
    %3938 = vmatpush1.msra.mxu0 0.0
    %3939 = vmatprep.subr.mxu0 0.0
    %3940 = vmatpush1.msra.mxu0 0.0
    %3941 = vmatprep.subr.mxu0 0.0
    %3942 = vmatpush1.msra.mxu0 0.0
    %3943 = vmatprep.subr.mxu0 0.0
    %3944 = vmatpush1.msra.mxu0 0.0
    %3945 = vmatprep.subr.mxu0 0.0
    %3946 = vmatpush1.msra.mxu0 0.0
    %3947 = vmatprep.subr.mxu0 0.0
    %3948 = vmatpush1.msra.mxu0 0.0
    %3949 = vmatprep.mubr.f32.mxu0 0.0
    %3950 = vmatmul.mubr.f32.gmra.mrb[0].mxu0 %v3376
    %v3951 = vpop.f32.mrb[0].mxu0
    %v3952 = vadd.f32 0.0, %v3951
    %v3953 = vpop.f32.mrb[0].mxu0
    %3954 = vdwg.mxu0
    %v3955 = vadd.f32 %v3878, %v3952
    %v3956 = vld [vmem:[%s11] sm:$0x1]
    %v3958 = vlaneseq
    %v3959 = vshrl.u32 %v3958, 7
    %v3960 = vsub.s32 0, %v3959
    %v3961 = vrot.slane %v3956, %v3960
    %v3963 = vadd.f32 %v3955, %v3961
    %v3964 = vxor.u32 %v3963, 2147483648
    %v3965 = vmul.f32 %v3964, 1.442695
    %v3966 = vpow.pop %v3965
    %v3967 = vadd.f32 %v3966, 1.0
    %v3968 = vrcp.pop %v3967
    %v3969 = vmul.f32 1.0, %v3968
    %v3970 = vtanh.pop %v3963
    %v3971 = vmul.f32 %v3969, %v3288
    %3973 = vrot.lane.b32.xlu0 %v3970, 64
    %v3974 = vpop.permute.xlu0 %3973
    %v3976 = vmul.f32 %v3969, %v3974
    %3978 = vrot.lane.b32.xlu0 %v3976, 32
    %v3979 = vpop.permute.xlu0 %3978
    %v3981 = vadd.f32 %v3971, %v3979
    %v3982 = vtanh.pop %v3981
    %3984 = vrot.lane.b32.xlu0 %v3982, 64
    %v3985 = vpop.permute.xlu0 %3984
    %v3987 = vmul.f32 %v3969, %v3985
    %v3988 = vld [vmem:[%s12] sm:$0xff]
    %v3989 = vld [vmem:[%s12 + $0x8] sm:$0xff]
    %v3990 = vld [vmem:[%s12 + $0x10] sm:$0xff]
    %v3991 = vld [vmem:[%s12 + $0x18] sm:$0xff]
    %v3992 = vld [vmem:[%s13] sm:$0xff]
    %v3993 = vld [vmem:[%s13 + $0x8] sm:$0xff]
    %v3994 = vld [vmem:[%s13 + $0x10] sm:$0xff]
    %v3995 = vld [vmem:[%s13 + $0x18] sm:$0xff]
    %3996 = vmatprep.subr.mxu0 0.0
    %3997 = vmatpush1.msra.mxu0 %v3992
    %3998 = vmatprep.subr.mxu0 0.0
    %3999 = vmatpush1.msra.mxu0 %v3993
    %4000 = vmatprep.subr.mxu0 0.0
    %4001 = vmatpush1.msra.mxu0 %v3994
    %4002 = vmatprep.subr.mxu0 0.0
    %4003 = vmatpush1.msra.mxu0 %v3995
    %4004 = vmatprep.subr.mxu0 0.0
    %4005 = vmatpush1.msra.mxu0 0.0
    %4006 = vmatprep.subr.mxu0 0.0
    %4007 = vmatpush1.msra.mxu0 0.0
    %4008 = vmatprep.subr.mxu0 0.0
    %4009 = vmatpush1.msra.mxu0 0.0
    %4010 = vmatprep.subr.mxu0 0.0
    %4011 = vmatpush1.msra.mxu0 0.0
    %4012 = vmatprep.subr.mxu0 0.0
    %4013 = vmatpush1.msra.mxu0 0.0
    %4014 = vmatprep.subr.mxu0 0.0
    %4015 = vmatpush1.msra.mxu0 0.0
    %4016 = vmatprep.subr.mxu0 0.0
    %4017 = vmatpush1.msra.mxu0 0.0
    %4018 = vmatprep.subr.mxu0 0.0
    %4019 = vmatpush1.msra.mxu0 0.0
    %4020 = vmatprep.subr.mxu0 0.0
    %4021 = vmatpush1.msra.mxu0 0.0
    %4022 = vmatprep.subr.mxu0 0.0
    %4023 = vmatpush1.msra.mxu0 0.0
    %4024 = vmatprep.subr.mxu0 0.0
    %4025 = vmatpush1.msra.mxu0 0.0
    %4026 = vmatprep.subr.mxu0 0.0
    %4027 = vmatpush1.msra.mxu0 0.0
    %4028 = vmatprep.subr.mxu0 0.0
    %4029 = vmatpush1.msra.mxu0 0.0
    %4030 = vmatprep.subr.mxu0 0.0
    %4031 = vmatpush1.msra.mxu0 0.0
    %4032 = vmatprep.subr.mxu0 0.0
    %4033 = vmatpush1.msra.mxu0 0.0
    %4034 = vmatprep.subr.mxu0 0.0
    %4035 = vmatpush1.msra.mxu0 0.0
    %4036 = vmatprep.subr.mxu0 0.0
    %4037 = vmatpush1.msra.mxu0 0.0
    %4038 = vmatprep.subr.mxu0 0.0
    %4039 = vmatpush1.msra.mxu0 0.0
    %4040 = vmatprep.subr.mxu0 0.0
    %4041 = vmatpush1.msra.mxu0 0.0
    %4042 = vmatprep.subr.mxu0 0.0
    %4043 = vmatpush1.msra.mxu0 0.0
    %4044 = vmatprep.subr.mxu0 0.0
    %4045 = vmatpush1.msra.mxu0 0.0
    %4046 = vmatprep.subr.mxu0 0.0
    %4047 = vmatpush1.msra.mxu0 0.0
    %4048 = vmatprep.subr.mxu0 0.0
    %4049 = vmatpush1.msra.mxu0 0.0
    %4050 = vmatprep.subr.mxu0 0.0
    %4051 = vmatpush1.msra.mxu0 0.0
    %4052 = vmatprep.subr.mxu0 0.0
    %4053 = vmatpush1.msra.mxu0 0.0
    %4054 = vmatprep.subr.mxu0 0.0
    %4055 = vmatpush1.msra.mxu0 0.0
    %4056 = vmatprep.subr.mxu0 0.0
    %4057 = vmatpush1.msra.mxu0 0.0
    %4058 = vmatprep.subr.mxu0 0.0
    %4059 = vmatpush1.msra.mxu0 0.0
    %4060 = vmatprep.mubr.f32.mxu0 0.0
    %4061 = vmatmul.mubr.f32.gmra.mrb[0].mxu0 %v3739
    %v4062 = vpop.f32.mrb[0].mxu0
    %v4063 = vadd.f32 0.0, %v4062
    %v4064 = vpop.f32.mrb[0].mxu0
    %4065 = vdwg.mxu0
    %4067 = vrot.lane.b32.xlu0 %v3987, 32
    %v4068 = vpop.permute.xlu0 %4067
    %v4069 = vsel %vm80, %v4068, 0
    %4071 = vmatprep.subr.mxu0 0.0
    %4072 = vmatpush1.msra.mxu0 %v3988
    %4073 = vmatprep.subr.mxu0 0.0
    %4074 = vmatpush1.msra.mxu0 %v3989
    %4075 = vmatprep.subr.mxu0 0.0
    %4076 = vmatpush1.msra.mxu0 %v3990
    %4077 = vmatprep.subr.mxu0 0.0
    %4078 = vmatpush1.msra.mxu0 %v3991
    %4079 = vmatprep.subr.mxu0 0.0
    %4080 = vmatpush1.msra.mxu0 0.0
    %4081 = vmatprep.subr.mxu0 0.0
    %4082 = vmatpush1.msra.mxu0 0.0
    %4083 = vmatprep.subr.mxu0 0.0
    %4084 = vmatpush1.msra.mxu0 0.0
    %4085 = vmatprep.subr.mxu0 0.0
    %4086 = vmatpush1.msra.mxu0 0.0
    %4087 = vmatprep.subr.mxu0 0.0
    %4088 = vmatpush1.msra.mxu0 0.0
    %4089 = vmatprep.subr.mxu0 0.0
    %4090 = vmatpush1.msra.mxu0 0.0
    %4091 = vmatprep.subr.mxu0 0.0
    %4092 = vmatpush1.msra.mxu0 0.0
    %4093 = vmatprep.subr.mxu0 0.0
    %4094 = vmatpush1.msra.mxu0 0.0
    %4095 = vmatprep.subr.mxu0 0.0
    %4096 = vmatpush1.msra.mxu0 0.0
    %4097 = vmatprep.subr.mxu0 0.0
    %4098 = vmatpush1.msra.mxu0 0.0
    %4099 = vmatprep.subr.mxu0 0.0
    %4100 = vmatpush1.msra.mxu0 0.0
    %4101 = vmatprep.subr.mxu0 0.0
    %4102 = vmatpush1.msra.mxu0 0.0
    %4103 = vmatprep.subr.mxu0 0.0
    %4104 = vmatpush1.msra.mxu0 0.0
    %4105 = vmatprep.subr.mxu0 0.0
    %4106 = vmatpush1.msra.mxu0 0.0
    %4107 = vmatprep.subr.mxu0 0.0
    %4108 = vmatpush1.msra.mxu0 0.0
    %4109 = vmatprep.subr.mxu0 0.0
    %4110 = vmatpush1.msra.mxu0 0.0
    %4111 = vmatprep.subr.mxu0 0.0
    %4112 = vmatpush1.msra.mxu0 0.0
    %4113 = vmatprep.subr.mxu0 0.0
    %4114 = vmatpush1.msra.mxu0 0.0
    %4115 = vmatprep.subr.mxu0 0.0
    %4116 = vmatpush1.msra.mxu0 0.0
    %4117 = vmatprep.subr.mxu0 0.0
    %4118 = vmatpush1.msra.mxu0 0.0
    %4119 = vmatprep.subr.mxu0 0.0
    %4120 = vmatpush1.msra.mxu0 0.0
    %4121 = vmatprep.subr.mxu0 0.0
    %4122 = vmatpush1.msra.mxu0 0.0
    %4123 = vmatprep.subr.mxu0 0.0
    %4124 = vmatpush1.msra.mxu0 0.0
    %4125 = vmatprep.subr.mxu0 0.0
    %4126 = vmatpush1.msra.mxu0 0.0
    %4127 = vmatprep.subr.mxu0 0.0
    %4128 = vmatpush1.msra.mxu0 0.0
    %4129 = vmatprep.subr.mxu0 0.0
    %4130 = vmatpush1.msra.mxu0 0.0
    %4131 = vmatprep.subr.mxu0 0.0
    %4132 = vmatpush1.msra.mxu0 0.0
    %4133 = vmatprep.subr.mxu0 0.0
    %4134 = vmatpush1.msra.mxu0 0.0
    %4135 = vmatprep.mubr.f32.mxu0 0.0
    %4136 = vmatmul.mubr.f32.gmra.mrb[0].mxu0 %v4069
    %v4137 = vpop.f32.mrb[0].mxu0
    %v4138 = vadd.f32 %v4063, %v4137
    %v4139 = vpop.f32.mrb[0].mxu0
    %4140 = vdwg.mxu0
    %v4141 = vld [vmem:[%s14] sm:$0xff]
    %v4142 = vld [vmem:[%s14 + $0x8] sm:$0xff]
    %v4143 = vld [vmem:[%s14 + $0x10] sm:$0xff]
    %v4144 = vld [vmem:[%s14 + $0x18] sm:$0xff]
    %v4145 = vld [vmem:[%s14 + $0x20] sm:$0xff]
    %v4146 = vld [vmem:[%s14 + $0x28] sm:$0xff]
    %v4147 = vld [vmem:[%s14 + $0x30] sm:$0xff]
    %v4148 = vld [vmem:[%s14 + $0x38] sm:$0xff]
    %v4149 = vld [vmem:[%s14 + $0x40] sm:$0xff]
    %v4150 = vld [vmem:[%s14 + $0x48] sm:$0xff]
    %v4151 = vld [vmem:[%s14 + $0x50] sm:$0xff]
    %v4152 = vld [vmem:[%s14 + $0x58] sm:$0xff]
    %v4153 = vld [vmem:[%s14 + $0x60] sm:$0xff]
    %v4154 = vld [vmem:[%s14 + $0x68] sm:$0xff]
    %v4155 = vld [vmem:[%s14 + $0x70] sm:$0xff]
    %v4156 = vld [vmem:[%s14 + $0x78] sm:$0xff]
    %4157 = vmatprep.subr.mxu0 0.0
    %4158 = vmatpush1.msra.mxu0 %v4141
    %4159 = vmatprep.subr.mxu0 0.0
    %4160 = vmatpush1.msra.mxu0 %v4142
    %4161 = vmatprep.subr.mxu0 0.0
    %4162 = vmatpush1.msra.mxu0 %v4143
    %4163 = vmatprep.subr.mxu0 0.0
    %4164 = vmatpush1.msra.mxu0 %v4144
    %4165 = vmatprep.subr.mxu0 0.0
    %4166 = vmatpush1.msra.mxu0 %v4145
    %4167 = vmatprep.subr.mxu0 0.0
    %4168 = vmatpush1.msra.mxu0 %v4146
    %4169 = vmatprep.subr.mxu0 0.0
    %4170 = vmatpush1.msra.mxu0 %v4147
    %4171 = vmatprep.subr.mxu0 0.0
    %4172 = vmatpush1.msra.mxu0 %v4148
    %4173 = vmatprep.subr.mxu0 0.0
    %4174 = vmatpush1.msra.mxu0 %v4149
    %4175 = vmatprep.subr.mxu0 0.0
    %4176 = vmatpush1.msra.mxu0 %v4150
    %4177 = vmatprep.subr.mxu0 0.0
    %4178 = vmatpush1.msra.mxu0 %v4151
    %4179 = vmatprep.subr.mxu0 0.0
    %4180 = vmatpush1.msra.mxu0 %v4152
    %4181 = vmatprep.subr.mxu0 0.0
    %4182 = vmatpush1.msra.mxu0 %v4153
    %4183 = vmatprep.subr.mxu0 0.0
    %4184 = vmatpush1.msra.mxu0 %v4154
    %4185 = vmatprep.subr.mxu0 0.0
    %4186 = vmatpush1.msra.mxu0 %v4155
    %4187 = vmatprep.subr.mxu0 0.0
    %4188 = vmatpush1.msra.mxu0 %v4156
    %4189 = vmatprep.subr.mxu0 0.0
    %4190 = vmatpush1.msra.mxu0 0.0
    %4191 = vmatprep.subr.mxu0 0.0
    %4192 = vmatpush1.msra.mxu0 0.0
    %4193 = vmatprep.subr.mxu0 0.0
    %4194 = vmatpush1.msra.mxu0 0.0
    %4195 = vmatprep.subr.mxu0 0.0
    %4196 = vmatpush1.msra.mxu0 0.0
    %4197 = vmatprep.subr.mxu0 0.0
    %4198 = vmatpush1.msra.mxu0 0.0
    %4199 = vmatprep.subr.mxu0 0.0
    %4200 = vmatpush1.msra.mxu0 0.0
    %4201 = vmatprep.subr.mxu0 0.0
    %4202 = vmatpush1.msra.mxu0 0.0
    %4203 = vmatprep.subr.mxu0 0.0
    %4204 = vmatpush1.msra.mxu0 0.0
    %4205 = vmatprep.subr.mxu0 0.0
    %4206 = vmatpush1.msra.mxu0 0.0
    %4207 = vmatprep.subr.mxu0 0.0
    %4208 = vmatpush1.msra.mxu0 0.0
    %4209 = vmatprep.subr.mxu0 0.0
    %4210 = vmatpush1.msra.mxu0 0.0
    %4211 = vmatprep.subr.mxu0 0.0
    %4212 = vmatpush1.msra.mxu0 0.0
    %4213 = vmatprep.subr.mxu0 0.0
    %4214 = vmatpush1.msra.mxu0 0.0
    %4215 = vmatprep.subr.mxu0 0.0
    %4216 = vmatpush1.msra.mxu0 0.0
    %4217 = vmatprep.subr.mxu0 0.0
    %4218 = vmatpush1.msra.mxu0 0.0
    %4219 = vmatprep.subr.mxu0 0.0
    %4220 = vmatpush1.msra.mxu0 0.0
    %4221 = vmatprep.mubr.f32.mxu0 0.0
    %4222 = vmatmul.mubr.f32.gmra.mrb[0].mxu0 %v3578
    %v4223 = vpop.f32.mrb[0].mxu0
    %v4224 = vadd.f32 0.0, %v4223
    %v4225 = vpop.f32.mrb[0].mxu0
    %4226 = vdwg.mxu0
    %v4227 = vadd.f32 %v4138, %v4224
    %v4228 = vld [vmem:[%s15] sm:$0x1]
    %v4230 = vlaneseq
    %v4231 = vshrl.u32 %v4230, 7
    %v4232 = vsub.s32 0, %v4231
    %v4233 = vrot.slane %v4228, %v4232
    %v4235 = vadd.f32 %v4227, %v4233
    %s4236 = scalar_lea.vmem %s19, 6
    %4237 = vst [vmem:[%s4236] sm:$0x3] %v4235
    %v4238 = vsel %vm1494, %v4235, -1e+30
    %v4239 = vsel %vm2160, %v4238, -inf
    %4240 = vmax.xlane.f32.xlu0 %v4239
    %v4241 = vpop.xlane.xlu0 %4240
    %vm4242 = vcmp.ge.f32.partialorder %v4238, %v4241
    %v4243 = vsel %vm4242, %v1493, 128
    %v4244 = vsel %vm2160, %v4243, 2147483647
    %v4245 = vand.u32 %v4244, 65535
    %v4246 = vshra.s32 %v4244, 16
    %v4247 = vcvt.s32.f32 %v4245
    %v4248 = vcvt.s32.f32 %v4246
    %4249 = vmin.xlane.f32.xlu0 %v4248
    %v4250 = vpop.xlane.xlu0 %4249
    %vm4251 = vcmp.eq.f32.partialorder %v4248, %v4250
    %v4252 = vsel %vm4251, %v4247, inf
    %4253 = vmin.xlane.f32.xlu0 %v4252
    %v4254 = vpop.xlane.xlu0 %4253
    %v4255 = vcvt.f32.s32 %v4254
    %v4256 = vcvt.f32.s32 %v4250
    %v4257 = vshll.u32 %v4256, 16
    %v4258 = vadd.s32 %v4257, %v4255
    %vm4259 = vcmp.eq.s32.totalorder %v1493, %v4258
    %v4260 = vsel %vm4259, 1, 0
    %v4261 = vcvt.s32.f32 %v4260
    %s4262 = sld [smem:[#allocation3 + $0x3]]
    %s4263 = scvt.s32.f32 %s4262
    %s4264 = scalar_lea.vmem %s17, 6
    %v4265 = vld [vmem:[%s4264] sm:$0x3]
    %v4266 = vstv %s4263
    %v4267 = vmul.f32 %v4266, %v4265
    %s4268 = ssub.f32 1.0, %s4263
    %v4269 = vstv %s4268
    %v4270 = vmul.f32 %v4269, %v4261
    %v4271 = vadd.f32 %v4267, %v4270
    %v4273 = vunpack.c.l.s4 1966171168
    %v4274 = vunpack.c.0.s8 %v4273
    %v4275 = vlaneseq
    %v4276 = vshrl.u32 %v4275, 7
    %v4277 = vsub.s32 %v4274, %v4276
    %v4278 = vrot.slane %v3987, %v4277
    %v4279 = vcombine.high %v4278, %v4278
    %v4281 = vunpack.c.l.s4 1966171168
    %v4282 = vunpack.c.0.s8 %v4281
    %v4283 = vlaneseq
    %v4284 = vshrl.u32 %v4283, 7
    %v4285 = vsub.s32 %v4282, %v4284
    %v4286 = vrot.slane %v4278, %v4285
    %v4288 = vunpack.c.l.s4 1966171168
    %v4289 = vunpack.c.0.s8 %v4288
    %v4290 = vlaneseq
    %v4291 = vshrl.u32 %v4290, 7
    %v4292 = vsub.s32 %v4289, %v4291
    %v4293 = vrot.slane %v4279, %v4292
    %v4294 = vlaneseq
    %v4295 = vshrl.u32 %v4294, 7
    %v4296 = vsub.s32 0, %v4295
    %v4297 = vrot.slane %v4286, %v4296
    %v4298 = vlaneseq
    %v4299 = vshrl.u32 %v4298, 7
    %v4300 = vsub.s32 0, %v4299
    %v4301 = vrot.slane %v4293, %v4300
    %4302 = vrot.lane.b32.xlu0 %v4297, 32
    %v4303 = vpop.permute.xlu0 %4302
    %4304 = vrot.lane.b32.xlu0 %v4301, 32
    %v4305 = vpop.permute.xlu0 %4304
    %v4308 = vmul.f32 %v1484, %v4303
    %v4309 = vmul.f32 %v1489, %v4305
    %v4310 = vsel %vm80, %v4308, 0.0
    %4311 = vadd.xlane.f32.xlu0 %v4310
    %v4312 = vpop.xlane.xlu0 %4311
    %v4313 = vsel %vm80, %v4309, 0.0
    %4314 = vadd.xlane.f32.xlu0 %v4313
    %v4315 = vpop.xlane.xlu0 %4314
    %v4318 = vlaneseq
    %v4319 = vshrl.u32 %v4318, 7
    %v4320 = vsub.s32 %v1493, %v4319
    %v4321 = vrot.slane %v4312, %v4320
    %v4322 = vlaneseq
    %v4323 = vshrl.u32 %v4322, 7
    %v4324 = vsub.s32 %v1493, %v4323
    %v4325 = vrot.slane %v4315, %v4324
    %v4326 = vsel %vm1547, %v4325, %v4321
    %v4328 = vsel %vm1550, %v4326, -inf
    %4329 = vmax.xlane.f32.xlu0 %v4328
    %v4330 = vpop.xlane.xlu0 %4329
    %v4332 = vlaneseq
    %v4333 = vshrl.u32 %v4332, 7
    %v4334 = vsub.s32 0, %v4333
    %v4335 = vrot.slane %v4330, %v4334
    %v4336 = vlaneseq
    %v4337 = vshrl.u32 %v4336, 7
    %v4338 = vsub.s32 1, %v4337
    %v4339 = vrot.slane %v4330, %v4338
    %v4342 = vsub.f32 %v4312, %v4335
    %v4343 = vsub.f32 %v4315, %v4339
    %v4344 = vmul.f32 %v4342, 1.442695
    %v4345 = vpow.pop %v4344
    %v4346 = vmul.f32 %v4343, 1.442695
    %v4347 = vpow.pop %v4346
    %4350 = vset.pattern.permute.xlu0 0
    %4351 = vperm.xlu0 %4350, %v4345
    %v4352 = vpop.permute.xlu0 %4351
    %4353 = vset.pattern.permute.xlu0 0
    %4354 = vperm.xlu0 %4353, %v4347
    %v4355 = vpop.permute.xlu0 %4354
    %v4356 = vlaneseq
    %v4357 = vshrl.u32 %v4356, 7
    %v4358 = vsub.s32 %v1493, %v4357
    %v4359 = vrot.slane %v4352, %v4358
    %v4360 = vlaneseq
    %v4361 = vshrl.u32 %v4360, 7
    %v4362 = vsub.s32 %v1493, %v4361
    %v4363 = vrot.slane %v4355, %v4362
    %v4364 = vsel %vm1547, %v4363, %v4359
    %v4366 = vsel %vm1550, %v4364, 0.0
    %4367 = vadd.xlane.f32.xlu0 %v4366
    %v4368 = vpop.xlane.xlu0 %4367
    %v4369 = vrcp.pop %v4368
    %v4371 = vlaneseq
    %v4372 = vshrl.u32 %v4371, 7
    %v4373 = vsub.s32 0, %v4372
    %v4374 = vrot.slane %v4369, %v4373
    %v4375 = vlaneseq
    %v4376 = vshrl.u32 %v4375, 7
    %v4377 = vsub.s32 1, %v4376
    %v4378 = vrot.slane %v4369, %v4377
    %v4381 = vmul.f32 %v4345, %v4374
    %v4382 = vmul.f32 %v4347, %v4378
    %4384 = vset.pattern.permute.xlu0 0
    %4385 = vperm.xlu0 %4384, %v4381
    %v4386 = vpop.permute.xlu0 %4385
    %4389 = vset.pattern.permute.xlu0 0
    %4390 = vperm.xlu0 %4389, %v4382
    %v4391 = vpop.permute.xlu0 %4390
    %v4393 = vmul.f32 %v4386, %v1398
    %v4394 = vmul.f32 %v4391, %v1399
    %v4395 = vsel %vm80, %v4393, 0.0
    %v4396 = vrot.slane %v4395, 4
    %v4397 = vadd.f32 %v4395, %v4396
    %v4398 = vrot.slane %v4397, 2
    %v4399 = vadd.f32 %v4397, %v4398
    %v4400 = vrot.slane %v4399, 1
    %v4401 = vadd.f32 %v4399, %v4400
    %v4402 = vsel %vm80, %v4394, 0.0
    %v4403 = vrot.slane %v4402, 4
    %v4404 = vadd.f32 %v4402, %v4403
    %v4405 = vrot.slane %v4404, 2
    %v4406 = vadd.f32 %v4404, %v4405
    %v4407 = vrot.slane %v4406, 1
    %v4408 = vadd.f32 %v4406, %v4407
    %v4409 = vld [vmem:[%s8] sm:$0xff]
    %v4410 = vld [vmem:[%s8 + $0x8] sm:$0xff]
    %v4411 = vld [vmem:[%s8 + $0x10] sm:$0xff]
    %v4412 = vld [vmem:[%s8 + $0x18] sm:$0xff]
    %v4413 = vld [vmem:[%s8 + $0x20] sm:$0xff]
    %v4414 = vld [vmem:[%s8 + $0x28] sm:$0xff]
    %v4415 = vld [vmem:[%s8 + $0x30] sm:$0xff]
    %v4416 = vld [vmem:[%s8 + $0x38] sm:$0xff]
    %v4417 = vld [vmem:[%s8 + $0x40] sm:$0xff]
    %v4418 = vld [vmem:[%s8 + $0x48] sm:$0xff]
    %v4419 = vld [vmem:[%s8 + $0x50] sm:$0xff]
    %v4420 = vld [vmem:[%s8 + $0x58] sm:$0xff]
    %v4421 = vld [vmem:[%s8 + $0x60] sm:$0xff]
    %v4422 = vld [vmem:[%s8 + $0x68] sm:$0xff]
    %v4423 = vld [vmem:[%s8 + $0x70] sm:$0xff]
    %v4424 = vld [vmem:[%s8 + $0x78] sm:$0xff]
    %v4425 = vld [vmem:[%s9] sm:$0xff]
    %v4426 = vld [vmem:[%s9 + $0x8] sm:$0xff]
    %v4427 = vld [vmem:[%s9 + $0x10] sm:$0xff]
    %v4428 = vld [vmem:[%s9 + $0x18] sm:$0xff]
    %v4431 = vsel %vm1547, %v4408, %v4401
    %v4432 = vsel %vm80, %v4431, 0
    %4434 = vmatprep.subr.mxu0 0.0
    %4435 = vmatpush1.msra.mxu0 %v4425
    %4436 = vmatprep.subr.mxu0 0.0
    %4437 = vmatpush1.msra.mxu0 %v4426
    %4438 = vmatprep.subr.mxu0 0.0
    %4439 = vmatpush1.msra.mxu0 %v4427
    %4440 = vmatprep.subr.mxu0 0.0
    %4441 = vmatpush1.msra.mxu0 %v4428
    %4442 = vmatprep.subr.mxu0 0.0
    %4443 = vmatpush1.msra.mxu0 0.0
    %4444 = vmatprep.subr.mxu0 0.0
    %4445 = vmatpush1.msra.mxu0 0.0
    %4446 = vmatprep.subr.mxu0 0.0
    %4447 = vmatpush1.msra.mxu0 0.0
    %4448 = vmatprep.subr.mxu0 0.0
    %4449 = vmatpush1.msra.mxu0 0.0
    %4450 = vmatprep.subr.mxu0 0.0
    %4451 = vmatpush1.msra.mxu0 0.0
    %4452 = vmatprep.subr.mxu0 0.0
    %4453 = vmatpush1.msra.mxu0 0.0
    %4454 = vmatprep.subr.mxu0 0.0
    %4455 = vmatpush1.msra.mxu0 0.0
    %4456 = vmatprep.subr.mxu0 0.0
    %4457 = vmatpush1.msra.mxu0 0.0
    %4458 = vmatprep.subr.mxu0 0.0
    %4459 = vmatpush1.msra.mxu0 0.0
    %4460 = vmatprep.subr.mxu0 0.0
    %4461 = vmatpush1.msra.mxu0 0.0
    %4462 = vmatprep.subr.mxu0 0.0
    %4463 = vmatpush1.msra.mxu0 0.0
    %4464 = vmatprep.subr.mxu0 0.0
    %4465 = vmatpush1.msra.mxu0 0.0
    %4466 = vmatprep.subr.mxu0 0.0
    %4467 = vmatpush1.msra.mxu0 0.0
    %4468 = vmatprep.subr.mxu0 0.0
    %4469 = vmatpush1.msra.mxu0 0.0
    %4470 = vmatprep.subr.mxu0 0.0
    %4471 = vmatpush1.msra.mxu0 0.0
    %4472 = vmatprep.subr.mxu0 0.0
    %4473 = vmatpush1.msra.mxu0 0.0
    %4474 = vmatprep.subr.mxu0 0.0
    %4475 = vmatpush1.msra.mxu0 0.0
    %4476 = vmatprep.subr.mxu0 0.0
    %4477 = vmatpush1.msra.mxu0 0.0
    %4478 = vmatprep.subr.mxu0 0.0
    %4479 = vmatpush1.msra.mxu0 0.0
    %4480 = vmatprep.subr.mxu0 0.0
    %4481 = vmatpush1.msra.mxu0 0.0
    %4482 = vmatprep.subr.mxu0 0.0
    %4483 = vmatpush1.msra.mxu0 0.0
    %4484 = vmatprep.subr.mxu0 0.0
    %4485 = vmatpush1.msra.mxu0 0.0
    %4486 = vmatprep.subr.mxu0 0.0
    %4487 = vmatpush1.msra.mxu0 0.0
    %4488 = vmatprep.subr.mxu0 0.0
    %4489 = vmatpush1.msra.mxu0 0.0
    %4490 = vmatprep.subr.mxu0 0.0
    %4491 = vmatpush1.msra.mxu0 0.0
    %4492 = vmatprep.subr.mxu0 0.0
    %4493 = vmatpush1.msra.mxu0 0.0
    %4494 = vmatprep.subr.mxu0 0.0
    %4495 = vmatpush1.msra.mxu0 0.0
    %4496 = vmatprep.subr.mxu0 0.0
    %4497 = vmatpush1.msra.mxu0 0.0
    %4498 = vmatprep.mubr.f32.mxu0 0.0
    %4499 = vmatmul.mubr.f32.gmra.mrb[0].mxu0 %v4432
    %v4500 = vpop.f32.mrb[0].mxu0
    %v4501 = vadd.f32 0.0, %v4500
    %v4502 = vpop.f32.mrb[0].mxu0
    %4503 = vdwg.mxu0
    %4504 = vmatprep.subr.mxu0 0.0
    %4505 = vmatpush1.msra.mxu0 %v4409
    %4506 = vmatprep.subr.mxu0 0.0
    %4507 = vmatpush1.msra.mxu0 %v4410
    %4508 = vmatprep.subr.mxu0 0.0
    %4509 = vmatpush1.msra.mxu0 %v4411
    %4510 = vmatprep.subr.mxu0 0.0
    %4511 = vmatpush1.msra.mxu0 %v4412
    %4512 = vmatprep.subr.mxu0 0.0
    %4513 = vmatpush1.msra.mxu0 %v4413
    %4514 = vmatprep.subr.mxu0 0.0
    %4515 = vmatpush1.msra.mxu0 %v4414
    %4516 = vmatprep.subr.mxu0 0.0
    %4517 = vmatpush1.msra.mxu0 %v4415
    %4518 = vmatprep.subr.mxu0 0.0
    %4519 = vmatpush1.msra.mxu0 %v4416
    %4520 = vmatprep.subr.mxu0 0.0
    %4521 = vmatpush1.msra.mxu0 %v4417
    %4522 = vmatprep.subr.mxu0 0.0
    %4523 = vmatpush1.msra.mxu0 %v4418
    %4524 = vmatprep.subr.mxu0 0.0
    %4525 = vmatpush1.msra.mxu0 %v4419
    %4526 = vmatprep.subr.mxu0 0.0
    %4527 = vmatpush1.msra.mxu0 %v4420
    %4528 = vmatprep.subr.mxu0 0.0
    %4529 = vmatpush1.msra.mxu0 %v4421
    %4530 = vmatprep.subr.mxu0 0.0
    %4531 = vmatpush1.msra.mxu0 %v4422
    %4532 = vmatprep.subr.mxu0 0.0
    %4533 = vmatpush1.msra.mxu0 %v4423
    %4534 = vmatprep.subr.mxu0 0.0
    %4535 = vmatpush1.msra.mxu0 %v4424
    %4536 = vmatprep.subr.mxu0 0.0
    %4537 = vmatpush1.msra.mxu0 0.0
    %4538 = vmatprep.subr.mxu0 0.0
    %4539 = vmatpush1.msra.mxu0 0.0
    %4540 = vmatprep.subr.mxu0 0.0
    %4541 = vmatpush1.msra.mxu0 0.0
    %4542 = vmatprep.subr.mxu0 0.0
    %4543 = vmatpush1.msra.mxu0 0.0
    %4544 = vmatprep.subr.mxu0 0.0
    %4545 = vmatpush1.msra.mxu0 0.0
    %4546 = vmatprep.subr.mxu0 0.0
    %4547 = vmatpush1.msra.mxu0 0.0
    %4548 = vmatprep.subr.mxu0 0.0
    %4549 = vmatpush1.msra.mxu0 0.0
    %4550 = vmatprep.subr.mxu0 0.0
    %4551 = vmatpush1.msra.mxu0 0.0
    %4552 = vmatprep.subr.mxu0 0.0
    %4553 = vmatpush1.msra.mxu0 0.0
    %4554 = vmatprep.subr.mxu0 0.0
    %4555 = vmatpush1.msra.mxu0 0.0
    %4556 = vmatprep.subr.mxu0 0.0
    %4557 = vmatpush1.msra.mxu0 0.0
    %4558 = vmatprep.subr.mxu0 0.0
    %4559 = vmatpush1.msra.mxu0 0.0
    %4560 = vmatprep.subr.mxu0 0.0
    %4561 = vmatpush1.msra.mxu0 0.0
    %4562 = vmatprep.subr.mxu0 0.0
    %4563 = vmatpush1.msra.mxu0 0.0
    %4564 = vmatprep.subr.mxu0 0.0
    %4565 = vmatpush1.msra.mxu0 0.0
    %4566 = vmatprep.subr.mxu0 0.0
    %4567 = vmatpush1.msra.mxu0 0.0
    %4568 = vmatprep.mubr.f32.mxu0 0.0
    %4569 = vmatmul.mubr.f32.gmra.mrb[0].mxu0 %v4271
    %v4570 = vpop.f32.mrb[0].mxu0
    %v4571 = vadd.f32 %v4501, %v4570
    %v4572 = vpop.f32.mrb[0].mxu0
    %4573 = vdwg.mxu0
    %v4574 = vld [vmem:[%s10] sm:$0xff]
    %v4575 = vld [vmem:[%s10 + $0x8] sm:$0xff]
    %v4576 = vld [vmem:[%s10 + $0x10] sm:$0xff]
    %v4577 = vld [vmem:[%s10 + $0x18] sm:$0xff]
    %4578 = vmatprep.subr.mxu0 0.0
    %4579 = vmatpush1.msra.mxu0 %v4574
    %4580 = vmatprep.subr.mxu0 0.0
    %4581 = vmatpush1.msra.mxu0 %v4575
    %4582 = vmatprep.subr.mxu0 0.0
    %4583 = vmatpush1.msra.mxu0 %v4576
    %4584 = vmatprep.subr.mxu0 0.0
    %4585 = vmatpush1.msra.mxu0 %v4577
    %4586 = vmatprep.subr.mxu0 0.0
    %4587 = vmatpush1.msra.mxu0 0.0
    %4588 = vmatprep.subr.mxu0 0.0
    %4589 = vmatpush1.msra.mxu0 0.0
    %4590 = vmatprep.subr.mxu0 0.0
    %4591 = vmatpush1.msra.mxu0 0.0
    %4592 = vmatprep.subr.mxu0 0.0
    %4593 = vmatpush1.msra.mxu0 0.0
    %4594 = vmatprep.subr.mxu0 0.0
    %4595 = vmatpush1.msra.mxu0 0.0
    %4596 = vmatprep.subr.mxu0 0.0
    %4597 = vmatpush1.msra.mxu0 0.0
    %4598 = vmatprep.subr.mxu0 0.0
    %4599 = vmatpush1.msra.mxu0 0.0
    %4600 = vmatprep.subr.mxu0 0.0
    %4601 = vmatpush1.msra.mxu0 0.0
    %4602 = vmatprep.subr.mxu0 0.0
    %4603 = vmatpush1.msra.mxu0 0.0
    %4604 = vmatprep.subr.mxu0 0.0
    %4605 = vmatpush1.msra.mxu0 0.0
    %4606 = vmatprep.subr.mxu0 0.0
    %4607 = vmatpush1.msra.mxu0 0.0
    %4608 = vmatprep.subr.mxu0 0.0
    %4609 = vmatpush1.msra.mxu0 0.0
    %4610 = vmatprep.subr.mxu0 0.0
    %4611 = vmatpush1.msra.mxu0 0.0
    %4612 = vmatprep.subr.mxu0 0.0
    %4613 = vmatpush1.msra.mxu0 0.0
    %4614 = vmatprep.subr.mxu0 0.0
    %4615 = vmatpush1.msra.mxu0 0.0
    %4616 = vmatprep.subr.mxu0 0.0
    %4617 = vmatpush1.msra.mxu0 0.0
    %4618 = vmatprep.subr.mxu0 0.0
    %4619 = vmatpush1.msra.mxu0 0.0
    %4620 = vmatprep.subr.mxu0 0.0
    %4621 = vmatpush1.msra.mxu0 0.0
    %4622 = vmatprep.subr.mxu0 0.0
    %4623 = vmatpush1.msra.mxu0 0.0
    %4624 = vmatprep.subr.mxu0 0.0
    %4625 = vmatpush1.msra.mxu0 0.0
    %4626 = vmatprep.subr.mxu0 0.0
    %4627 = vmatpush1.msra.mxu0 0.0
    %4628 = vmatprep.subr.mxu0 0.0
    %4629 = vmatpush1.msra.mxu0 0.0
    %4630 = vmatprep.subr.mxu0 0.0
    %4631 = vmatpush1.msra.mxu0 0.0
    %4632 = vmatprep.subr.mxu0 0.0
    %4633 = vmatpush1.msra.mxu0 0.0
    %4634 = vmatprep.subr.mxu0 0.0
    %4635 = vmatpush1.msra.mxu0 0.0
    %4636 = vmatprep.subr.mxu0 0.0
    %4637 = vmatpush1.msra.mxu0 0.0
    %4638 = vmatprep.subr.mxu0 0.0
    %4639 = vmatpush1.msra.mxu0 0.0
    %4640 = vmatprep.subr.mxu0 0.0
    %4641 = vmatpush1.msra.mxu0 0.0
    %4642 = vmatprep.mubr.f32.mxu0 0.0
    %4643 = vmatmul.mubr.f32.gmra.mrb[0].mxu0 %v4069
    %v4644 = vpop.f32.mrb[0].mxu0
    %v4645 = vadd.f32 0.0, %v4644
    %v4646 = vpop.f32.mrb[0].mxu0
    %4647 = vdwg.mxu0
    %v4648 = vadd.f32 %v4571, %v4645
    %v4649 = vld [vmem:[%s11] sm:$0x1]
    %v4651 = vlaneseq
    %v4652 = vshrl.u32 %v4651, 7
    %v4653 = vsub.s32 0, %v4652
    %v4654 = vrot.slane %v4649, %v4653
    %v4656 = vadd.f32 %v4648, %v4654
    %v4657 = vxor.u32 %v4656, 2147483648
    %v4658 = vmul.f32 %v4657, 1.442695
    %v4659 = vpow.pop %v4658
    %v4660 = vadd.f32 %v4659, 1.0
    %v4661 = vrcp.pop %v4660
    %v4662 = vmul.f32 1.0, %v4661
    %v4663 = vtanh.pop %v4656
    %v4664 = vmul.f32 %v4662, %v3981
    %4666 = vrot.lane.b32.xlu0 %v4663, 64
    %v4667 = vpop.permute.xlu0 %4666
    %v4669 = vmul.f32 %v4662, %v4667
    %4671 = vrot.lane.b32.xlu0 %v4669, 32
    %v4672 = vpop.permute.xlu0 %4671
    %v4674 = vadd.f32 %v4664, %v4672
    %v4675 = vtanh.pop %v4674
    %4677 = vrot.lane.b32.xlu0 %v4675, 64
    %v4678 = vpop.permute.xlu0 %4677
    %v4680 = vmul.f32 %v4662, %v4678
    %v4681 = vld [vmem:[%s12] sm:$0xff]
    %v4682 = vld [vmem:[%s12 + $0x8] sm:$0xff]
    %v4683 = vld [vmem:[%s12 + $0x10] sm:$0xff]
    %v4684 = vld [vmem:[%s12 + $0x18] sm:$0xff]
    %v4685 = vld [vmem:[%s13] sm:$0xff]
    %v4686 = vld [vmem:[%s13 + $0x8] sm:$0xff]
    %v4687 = vld [vmem:[%s13 + $0x10] sm:$0xff]
    %v4688 = vld [vmem:[%s13 + $0x18] sm:$0xff]
    %4689 = vmatprep.subr.mxu0 0.0
    %4690 = vmatpush1.msra.mxu0 %v4685
    %4691 = vmatprep.subr.mxu0 0.0
    %4692 = vmatpush1.msra.mxu0 %v4686
    %4693 = vmatprep.subr.mxu0 0.0
    %4694 = vmatpush1.msra.mxu0 %v4687
    %4695 = vmatprep.subr.mxu0 0.0
    %4696 = vmatpush1.msra.mxu0 %v4688
    %4697 = vmatprep.subr.mxu0 0.0
    %4698 = vmatpush1.msra.mxu0 0.0
    %4699 = vmatprep.subr.mxu0 0.0
    %4700 = vmatpush1.msra.mxu0 0.0
    %4701 = vmatprep.subr.mxu0 0.0
    %4702 = vmatpush1.msra.mxu0 0.0
    %4703 = vmatprep.subr.mxu0 0.0
    %4704 = vmatpush1.msra.mxu0 0.0
    %4705 = vmatprep.subr.mxu0 0.0
    %4706 = vmatpush1.msra.mxu0 0.0
    %4707 = vmatprep.subr.mxu0 0.0
    %4708 = vmatpush1.msra.mxu0 0.0
    %4709 = vmatprep.subr.mxu0 0.0
    %4710 = vmatpush1.msra.mxu0 0.0
    %4711 = vmatprep.subr.mxu0 0.0
    %4712 = vmatpush1.msra.mxu0 0.0
    %4713 = vmatprep.subr.mxu0 0.0
    %4714 = vmatpush1.msra.mxu0 0.0
    %4715 = vmatprep.subr.mxu0 0.0
    %4716 = vmatpush1.msra.mxu0 0.0
    %4717 = vmatprep.subr.mxu0 0.0
    %4718 = vmatpush1.msra.mxu0 0.0
    %4719 = vmatprep.subr.mxu0 0.0
    %4720 = vmatpush1.msra.mxu0 0.0
    %4721 = vmatprep.subr.mxu0 0.0
    %4722 = vmatpush1.msra.mxu0 0.0
    %4723 = vmatprep.subr.mxu0 0.0
    %4724 = vmatpush1.msra.mxu0 0.0
    %4725 = vmatprep.subr.mxu0 0.0
    %4726 = vmatpush1.msra.mxu0 0.0
    %4727 = vmatprep.subr.mxu0 0.0
    %4728 = vmatpush1.msra.mxu0 0.0
    %4729 = vmatprep.subr.mxu0 0.0
    %4730 = vmatpush1.msra.mxu0 0.0
    %4731 = vmatprep.subr.mxu0 0.0
    %4732 = vmatpush1.msra.mxu0 0.0
    %4733 = vmatprep.subr.mxu0 0.0
    %4734 = vmatpush1.msra.mxu0 0.0
    %4735 = vmatprep.subr.mxu0 0.0
    %4736 = vmatpush1.msra.mxu0 0.0
    %4737 = vmatprep.subr.mxu0 0.0
    %4738 = vmatpush1.msra.mxu0 0.0
    %4739 = vmatprep.subr.mxu0 0.0
    %4740 = vmatpush1.msra.mxu0 0.0
    %4741 = vmatprep.subr.mxu0 0.0
    %4742 = vmatpush1.msra.mxu0 0.0
    %4743 = vmatprep.subr.mxu0 0.0
    %4744 = vmatpush1.msra.mxu0 0.0
    %4745 = vmatprep.subr.mxu0 0.0
    %4746 = vmatpush1.msra.mxu0 0.0
    %4747 = vmatprep.subr.mxu0 0.0
    %4748 = vmatpush1.msra.mxu0 0.0
    %4749 = vmatprep.subr.mxu0 0.0
    %4750 = vmatpush1.msra.mxu0 0.0
    %4751 = vmatprep.subr.mxu0 0.0
    %4752 = vmatpush1.msra.mxu0 0.0
    %4753 = vmatprep.mubr.f32.mxu0 0.0
    %4754 = vmatmul.mubr.f32.gmra.mrb[0].mxu0 %v4432
    %v4755 = vpop.f32.mrb[0].mxu0
    %v4756 = vadd.f32 0.0, %v4755
    %v4757 = vpop.f32.mrb[0].mxu0
    %4758 = vdwg.mxu0
    %4760 = vrot.lane.b32.xlu0 %v4680, 32
    %v4761 = vpop.permute.xlu0 %4760
    %v4762 = vsel %vm80, %v4761, 0
    %4764 = vmatprep.subr.mxu0 0.0
    %4765 = vmatpush1.msra.mxu0 %v4681
    %4766 = vmatprep.subr.mxu0 0.0
    %4767 = vmatpush1.msra.mxu0 %v4682
    %4768 = vmatprep.subr.mxu0 0.0
    %4769 = vmatpush1.msra.mxu0 %v4683
    %4770 = vmatprep.subr.mxu0 0.0
    %4771 = vmatpush1.msra.mxu0 %v4684
    %4772 = vmatprep.subr.mxu0 0.0
    %4773 = vmatpush1.msra.mxu0 0.0
    %4774 = vmatprep.subr.mxu0 0.0
    %4775 = vmatpush1.msra.mxu0 0.0
    %4776 = vmatprep.subr.mxu0 0.0
    %4777 = vmatpush1.msra.mxu0 0.0
    %4778 = vmatprep.subr.mxu0 0.0
    %4779 = vmatpush1.msra.mxu0 0.0
    %4780 = vmatprep.subr.mxu0 0.0
    %4781 = vmatpush1.msra.mxu0 0.0
    %4782 = vmatprep.subr.mxu0 0.0
    %4783 = vmatpush1.msra.mxu0 0.0
    %4784 = vmatprep.subr.mxu0 0.0
    %4785 = vmatpush1.msra.mxu0 0.0
    %4786 = vmatprep.subr.mxu0 0.0
    %4787 = vmatpush1.msra.mxu0 0.0
    %4788 = vmatprep.subr.mxu0 0.0
    %4789 = vmatpush1.msra.mxu0 0.0
    %4790 = vmatprep.subr.mxu0 0.0
    %4791 = vmatpush1.msra.mxu0 0.0
    %4792 = vmatprep.subr.mxu0 0.0
    %4793 = vmatpush1.msra.mxu0 0.0
    %4794 = vmatprep.subr.mxu0 0.0
    %4795 = vmatpush1.msra.mxu0 0.0
    %4796 = vmatprep.subr.mxu0 0.0
    %4797 = vmatpush1.msra.mxu0 0.0
    %4798 = vmatprep.subr.mxu0 0.0
    %4799 = vmatpush1.msra.mxu0 0.0
    %4800 = vmatprep.subr.mxu0 0.0
    %4801 = vmatpush1.msra.mxu0 0.0
    %4802 = vmatprep.subr.mxu0 0.0
    %4803 = vmatpush1.msra.mxu0 0.0
    %4804 = vmatprep.subr.mxu0 0.0
    %4805 = vmatpush1.msra.mxu0 0.0
    %4806 = vmatprep.subr.mxu0 0.0
    %4807 = vmatpush1.msra.mxu0 0.0
    %4808 = vmatprep.subr.mxu0 0.0
    %4809 = vmatpush1.msra.mxu0 0.0
    %4810 = vmatprep.subr.mxu0 0.0
    %4811 = vmatpush1.msra.mxu0 0.0
    %4812 = vmatprep.subr.mxu0 0.0
    %4813 = vmatpush1.msra.mxu0 0.0
    %4814 = vmatprep.subr.mxu0 0.0
    %4815 = vmatpush1.msra.mxu0 0.0
    %4816 = vmatprep.subr.mxu0 0.0
    %4817 = vmatpush1.msra.mxu0 0.0
    %4818 = vmatprep.subr.mxu0 0.0
    %4819 = vmatpush1.msra.mxu0 0.0
    %4820 = vmatprep.subr.mxu0 0.0
    %4821 = vmatpush1.msra.mxu0 0.0
    %4822 = vmatprep.subr.mxu0 0.0
    %4823 = vmatpush1.msra.mxu0 0.0
    %4824 = vmatprep.subr.mxu0 0.0
    %4825 = vmatpush1.msra.mxu0 0.0
    %4826 = vmatprep.subr.mxu0 0.0
    %4827 = vmatpush1.msra.mxu0 0.0
    %4828 = vmatprep.mubr.f32.mxu0 0.0
    %4829 = vmatmul.mubr.f32.gmra.mrb[0].mxu0 %v4762
    %v4830 = vpop.f32.mrb[0].mxu0
    %v4831 = vadd.f32 %v4756, %v4830
    %v4832 = vpop.f32.mrb[0].mxu0
    %4833 = vdwg.mxu0
    %v4834 = vld [vmem:[%s14] sm:$0xff]
    %v4835 = vld [vmem:[%s14 + $0x8] sm:$0xff]
    %v4836 = vld [vmem:[%s14 + $0x10] sm:$0xff]
    %v4837 = vld [vmem:[%s14 + $0x18] sm:$0xff]
    %v4838 = vld [vmem:[%s14 + $0x20] sm:$0xff]
    %v4839 = vld [vmem:[%s14 + $0x28] sm:$0xff]
    %v4840 = vld [vmem:[%s14 + $0x30] sm:$0xff]
    %v4841 = vld [vmem:[%s14 + $0x38] sm:$0xff]
    %v4842 = vld [vmem:[%s14 + $0x40] sm:$0xff]
    %v4843 = vld [vmem:[%s14 + $0x48] sm:$0xff]
    %v4844 = vld [vmem:[%s14 + $0x50] sm:$0xff]
    %v4845 = vld [vmem:[%s14 + $0x58] sm:$0xff]
    %v4846 = vld [vmem:[%s14 + $0x60] sm:$0xff]
    %v4847 = vld [vmem:[%s14 + $0x68] sm:$0xff]
    %v4848 = vld [vmem:[%s14 + $0x70] sm:$0xff]
    %v4849 = vld [vmem:[%s14 + $0x78] sm:$0xff]
    %4850 = vmatprep.subr.mxu0 0.0
    %4851 = vmatpush1.msra.mxu0 %v4834
    %4852 = vmatprep.subr.mxu0 0.0
    %4853 = vmatpush1.msra.mxu0 %v4835
    %4854 = vmatprep.subr.mxu0 0.0
    %4855 = vmatpush1.msra.mxu0 %v4836
    %4856 = vmatprep.subr.mxu0 0.0
    %4857 = vmatpush1.msra.mxu0 %v4837
    %4858 = vmatprep.subr.mxu0 0.0
    %4859 = vmatpush1.msra.mxu0 %v4838
    %4860 = vmatprep.subr.mxu0 0.0
    %4861 = vmatpush1.msra.mxu0 %v4839
    %4862 = vmatprep.subr.mxu0 0.0
    %4863 = vmatpush1.msra.mxu0 %v4840
    %4864 = vmatprep.subr.mxu0 0.0
    %4865 = vmatpush1.msra.mxu0 %v4841
    %4866 = vmatprep.subr.mxu0 0.0
    %4867 = vmatpush1.msra.mxu0 %v4842
    %4868 = vmatprep.subr.mxu0 0.0
    %4869 = vmatpush1.msra.mxu0 %v4843
    %4870 = vmatprep.subr.mxu0 0.0
    %4871 = vmatpush1.msra.mxu0 %v4844
    %4872 = vmatprep.subr.mxu0 0.0
    %4873 = vmatpush1.msra.mxu0 %v4845
    %4874 = vmatprep.subr.mxu0 0.0
    %4875 = vmatpush1.msra.mxu0 %v4846
    %4876 = vmatprep.subr.mxu0 0.0
    %4877 = vmatpush1.msra.mxu0 %v4847
    %4878 = vmatprep.subr.mxu0 0.0
    %4879 = vmatpush1.msra.mxu0 %v4848
    %4880 = vmatprep.subr.mxu0 0.0
    %4881 = vmatpush1.msra.mxu0 %v4849
    %4882 = vmatprep.subr.mxu0 0.0
    %4883 = vmatpush1.msra.mxu0 0.0
    %4884 = vmatprep.subr.mxu0 0.0
    %4885 = vmatpush1.msra.mxu0 0.0
    %4886 = vmatprep.subr.mxu0 0.0
    %4887 = vmatpush1.msra.mxu0 0.0
    %4888 = vmatprep.subr.mxu0 0.0
    %4889 = vmatpush1.msra.mxu0 0.0
    %4890 = vmatprep.subr.mxu0 0.0
    %4891 = vmatpush1.msra.mxu0 0.0
    %4892 = vmatprep.subr.mxu0 0.0
    %4893 = vmatpush1.msra.mxu0 0.0
    %4894 = vmatprep.subr.mxu0 0.0
    %4895 = vmatpush1.msra.mxu0 0.0
    %4896 = vmatprep.subr.mxu0 0.0
    %4897 = vmatpush1.msra.mxu0 0.0
    %4898 = vmatprep.subr.mxu0 0.0
    %4899 = vmatpush1.msra.mxu0 0.0
    %4900 = vmatprep.subr.mxu0 0.0
    %4901 = vmatpush1.msra.mxu0 0.0
    %4902 = vmatprep.subr.mxu0 0.0
    %4903 = vmatpush1.msra.mxu0 0.0
    %4904 = vmatprep.subr.mxu0 0.0
    %4905 = vmatpush1.msra.mxu0 0.0
    %4906 = vmatprep.subr.mxu0 0.0
    %4907 = vmatpush1.msra.mxu0 0.0
    %4908 = vmatprep.subr.mxu0 0.0
    %4909 = vmatpush1.msra.mxu0 0.0
    %4910 = vmatprep.subr.mxu0 0.0
    %4911 = vmatpush1.msra.mxu0 0.0
    %4912 = vmatprep.subr.mxu0 0.0
    %4913 = vmatpush1.msra.mxu0 0.0
    %4914 = vmatprep.mubr.f32.mxu0 0.0
    %4915 = vmatmul.mubr.f32.gmra.mrb[0].mxu0 %v4271
    %v4916 = vpop.f32.mrb[0].mxu0
    %v4917 = vadd.f32 0.0, %v4916
    %v4918 = vpop.f32.mrb[0].mxu0
    %4919 = vdwg.mxu0
    %v4920 = vadd.f32 %v4831, %v4917
    %v4921 = vld [vmem:[%s15] sm:$0x1]
    %v4923 = vlaneseq
    %v4924 = vshrl.u32 %v4923, 7
    %v4925 = vsub.s32 0, %v4924
    %v4926 = vrot.slane %v4921, %v4925
    %v4928 = vadd.f32 %v4920, %v4926
    %s4929 = scalar_lea.vmem %s19, 8
    %4930 = vst [vmem:[%s4929] sm:$0x3] %v4928
    %v4931 = vsel %vm1494, %v4928, -1e+30
    %v4932 = vsel %vm2160, %v4931, -inf
    %4933 = vmax.xlane.f32.xlu0 %v4932
    %v4934 = vpop.xlane.xlu0 %4933
    %vm4935 = vcmp.ge.f32.partialorder %v4931, %v4934
    %v4936 = vsel %vm4935, %v1493, 128
    %v4937 = vsel %vm2160, %v4936, 2147483647
    %v4938 = vand.u32 %v4937, 65535
    %v4939 = vshra.s32 %v4937, 16
    %v4940 = vcvt.s32.f32 %v4938
    %v4941 = vcvt.s32.f32 %v4939
    %4942 = vmin.xlane.f32.xlu0 %v4941
    %v4943 = vpop.xlane.xlu0 %4942
    %vm4944 = vcmp.eq.f32.partialorder %v4941, %v4943
    %v4945 = vsel %vm4944, %v4940, inf
    %4946 = vmin.xlane.f32.xlu0 %v4945
    %v4947 = vpop.xlane.xlu0 %4946
    %v4948 = vcvt.f32.s32 %v4947
    %v4949 = vcvt.f32.s32 %v4943
    %v4950 = vshll.u32 %v4949, 16
    %v4951 = vadd.s32 %v4950, %v4948
    %vm4952 = vcmp.eq.s32.totalorder %v1493, %v4951
    %v4953 = vsel %vm4952, 1, 0
    %v4954 = vcvt.s32.f32 %v4953
    %s4955 = sld [smem:[#allocation3 + $0x4]]
    %s4956 = scvt.s32.f32 %s4955
    %s4957 = scalar_lea.vmem %s17, 8
    %v4958 = vld [vmem:[%s4957] sm:$0x3]
    %v4959 = vstv %s4956
    %v4960 = vmul.f32 %v4959, %v4958
    %s4961 = ssub.f32 1.0, %s4956
    %v4962 = vstv %s4961
    %v4963 = vmul.f32 %v4962, %v4954
    %v4964 = vadd.f32 %v4960, %v4963
    %v4966 = vunpack.c.l.s4 1966171168
    %v4967 = vunpack.c.0.s8 %v4966
    %v4968 = vlaneseq
    %v4969 = vshrl.u32 %v4968, 7
    %v4970 = vsub.s32 %v4967, %v4969
    %v4971 = vrot.slane %v4680, %v4970
    %v4972 = vcombine.high %v4971, %v4971
    %v4974 = vunpack.c.l.s4 1966171168
    %v4975 = vunpack.c.0.s8 %v4974
    %v4976 = vlaneseq
    %v4977 = vshrl.u32 %v4976, 7
    %v4978 = vsub.s32 %v4975, %v4977
    %v4979 = vrot.slane %v4971, %v4978
    %v4981 = vunpack.c.l.s4 1966171168
    %v4982 = vunpack.c.0.s8 %v4981
    %v4983 = vlaneseq
    %v4984 = vshrl.u32 %v4983, 7
    %v4985 = vsub.s32 %v4982, %v4984
    %v4986 = vrot.slane %v4972, %v4985
    %v4987 = vlaneseq
    %v4988 = vshrl.u32 %v4987, 7
    %v4989 = vsub.s32 0, %v4988
    %v4990 = vrot.slane %v4979, %v4989
    %v4991 = vlaneseq
    %v4992 = vshrl.u32 %v4991, 7
    %v4993 = vsub.s32 0, %v4992
    %v4994 = vrot.slane %v4986, %v4993
    %4995 = vrot.lane.b32.xlu0 %v4990, 32
    %v4996 = vpop.permute.xlu0 %4995
    %4997 = vrot.lane.b32.xlu0 %v4994, 32
    %v4998 = vpop.permute.xlu0 %4997
    %v5001 = vmul.f32 %v1484, %v4996
    %v5002 = vmul.f32 %v1489, %v4998
    %v5003 = vsel %vm80, %v5001, 0.0
    %5004 = vadd.xlane.f32.xlu0 %v5003
    %v5005 = vpop.xlane.xlu0 %5004
    %v5006 = vsel %vm80, %v5002, 0.0
    %5007 = vadd.xlane.f32.xlu0 %v5006
    %v5008 = vpop.xlane.xlu0 %5007
    %v5011 = vlaneseq
    %v5012 = vshrl.u32 %v5011, 7
    %v5013 = vsub.s32 %v1493, %v5012
    %v5014 = vrot.slane %v5005, %v5013
    %v5015 = vlaneseq
    %v5016 = vshrl.u32 %v5015, 7
    %v5017 = vsub.s32 %v1493, %v5016
    %v5018 = vrot.slane %v5008, %v5017
    %v5019 = vsel %vm1547, %v5018, %v5014
    %v5021 = vsel %vm1550, %v5019, -inf
    %5022 = vmax.xlane.f32.xlu0 %v5021
    %v5023 = vpop.xlane.xlu0 %5022
    %v5025 = vlaneseq
    %v5026 = vshrl.u32 %v5025, 7
    %v5027 = vsub.s32 0, %v5026
    %v5028 = vrot.slane %v5023, %v5027
    %v5029 = vlaneseq
    %v5030 = vshrl.u32 %v5029, 7
    %v5031 = vsub.s32 1, %v5030
    %v5032 = vrot.slane %v5023, %v5031
    %v5035 = vsub.f32 %v5005, %v5028
    %v5036 = vsub.f32 %v5008, %v5032
    %v5037 = vmul.f32 %v5035, 1.442695
    %v5038 = vpow.pop %v5037
    %v5039 = vmul.f32 %v5036, 1.442695
    %v5040 = vpow.pop %v5039
    %5043 = vset.pattern.permute.xlu0 0
    %5044 = vperm.xlu0 %5043, %v5038
    %v5045 = vpop.permute.xlu0 %5044
    %5046 = vset.pattern.permute.xlu0 0
    %5047 = vperm.xlu0 %5046, %v5040
    %v5048 = vpop.permute.xlu0 %5047
    %v5049 = vlaneseq
    %v5050 = vshrl.u32 %v5049, 7
    %v5051 = vsub.s32 %v1493, %v5050
    %v5052 = vrot.slane %v5045, %v5051
    %v5053 = vlaneseq
    %v5054 = vshrl.u32 %v5053, 7
    %v5055 = vsub.s32 %v1493, %v5054
    %v5056 = vrot.slane %v5048, %v5055
    %v5057 = vsel %vm1547, %v5056, %v5052
    %v5059 = vsel %vm1550, %v5057, 0.0
    %5060 = vadd.xlane.f32.xlu0 %v5059
    %v5061 = vpop.xlane.xlu0 %5060
    %v5062 = vrcp.pop %v5061
    %v5064 = vlaneseq
    %v5065 = vshrl.u32 %v5064, 7
    %v5066 = vsub.s32 0, %v5065
    %v5067 = vrot.slane %v5062, %v5066
    %v5068 = vlaneseq
    %v5069 = vshrl.u32 %v5068, 7
    %v5070 = vsub.s32 1, %v5069
    %v5071 = vrot.slane %v5062, %v5070
    %v5074 = vmul.f32 %v5038, %v5067
    %v5075 = vmul.f32 %v5040, %v5071
    %5077 = vset.pattern.permute.xlu0 0
    %5078 = vperm.xlu0 %5077, %v5074
    %v5079 = vpop.permute.xlu0 %5078
    %5082 = vset.pattern.permute.xlu0 0
    %5083 = vperm.xlu0 %5082, %v5075
    %v5084 = vpop.permute.xlu0 %5083
    %v5086 = vmul.f32 %v5079, %v1398
    %v5087 = vmul.f32 %v5084, %v1399
    %v5088 = vsel %vm80, %v5086, 0.0
    %v5089 = vrot.slane %v5088, 4
    %v5090 = vadd.f32 %v5088, %v5089
    %v5091 = vrot.slane %v5090, 2
    %v5092 = vadd.f32 %v5090, %v5091
    %v5093 = vrot.slane %v5092, 1
    %v5094 = vadd.f32 %v5092, %v5093
    %v5095 = vsel %vm80, %v5087, 0.0
    %v5096 = vrot.slane %v5095, 4
    %v5097 = vadd.f32 %v5095, %v5096
    %v5098 = vrot.slane %v5097, 2
    %v5099 = vadd.f32 %v5097, %v5098
    %v5100 = vrot.slane %v5099, 1
    %v5101 = vadd.f32 %v5099, %v5100
    %v5102 = vld [vmem:[%s8] sm:$0xff]
    %v5103 = vld [vmem:[%s8 + $0x8] sm:$0xff]
    %v5104 = vld [vmem:[%s8 + $0x10] sm:$0xff]
    %v5105 = vld [vmem:[%s8 + $0x18] sm:$0xff]
    %v5106 = vld [vmem:[%s8 + $0x20] sm:$0xff]
    %v5107 = vld [vmem:[%s8 + $0x28] sm:$0xff]
    %v5108 = vld [vmem:[%s8 + $0x30] sm:$0xff]
    %v5109 = vld [vmem:[%s8 + $0x38] sm:$0xff]
    %v5110 = vld [vmem:[%s8 + $0x40] sm:$0xff]
    %v5111 = vld [vmem:[%s8 + $0x48] sm:$0xff]
    %v5112 = vld [vmem:[%s8 + $0x50] sm:$0xff]
    %v5113 = vld [vmem:[%s8 + $0x58] sm:$0xff]
    %v5114 = vld [vmem:[%s8 + $0x60] sm:$0xff]
    %v5115 = vld [vmem:[%s8 + $0x68] sm:$0xff]
    %v5116 = vld [vmem:[%s8 + $0x70] sm:$0xff]
    %v5117 = vld [vmem:[%s8 + $0x78] sm:$0xff]
    %v5118 = vld [vmem:[%s9] sm:$0xff]
    %v5119 = vld [vmem:[%s9 + $0x8] sm:$0xff]
    %v5120 = vld [vmem:[%s9 + $0x10] sm:$0xff]
    %v5121 = vld [vmem:[%s9 + $0x18] sm:$0xff]
    %v5124 = vsel %vm1547, %v5101, %v5094
    %v5125 = vsel %vm80, %v5124, 0
    %5127 = vmatprep.subr.mxu0 0.0
    %5128 = vmatpush1.msra.mxu0 %v5118
    %5129 = vmatprep.subr.mxu0 0.0
    %5130 = vmatpush1.msra.mxu0 %v5119
    %5131 = vmatprep.subr.mxu0 0.0
    %5132 = vmatpush1.msra.mxu0 %v5120
    %5133 = vmatprep.subr.mxu0 0.0
    %5134 = vmatpush1.msra.mxu0 %v5121
    %5135 = vmatprep.subr.mxu0 0.0
    %5136 = vmatpush1.msra.mxu0 0.0
    %5137 = vmatprep.subr.mxu0 0.0
    %5138 = vmatpush1.msra.mxu0 0.0
    %5139 = vmatprep.subr.mxu0 0.0
    %5140 = vmatpush1.msra.mxu0 0.0
    %5141 = vmatprep.subr.mxu0 0.0
    %5142 = vmatpush1.msra.mxu0 0.0
    %5143 = vmatprep.subr.mxu0 0.0
    %5144 = vmatpush1.msra.mxu0 0.0
    %5145 = vmatprep.subr.mxu0 0.0
    %5146 = vmatpush1.msra.mxu0 0.0
    %5147 = vmatprep.subr.mxu0 0.0
    %5148 = vmatpush1.msra.mxu0 0.0
    %5149 = vmatprep.subr.mxu0 0.0
    %5150 = vmatpush1.msra.mxu0 0.0
    %5151 = vmatprep.subr.mxu0 0.0
    %5152 = vmatpush1.msra.mxu0 0.0
    %5153 = vmatprep.subr.mxu0 0.0
    %5154 = vmatpush1.msra.mxu0 0.0
    %5155 = vmatprep.subr.mxu0 0.0
    %5156 = vmatpush1.msra.mxu0 0.0
    %5157 = vmatprep.subr.mxu0 0.0
    %5158 = vmatpush1.msra.mxu0 0.0
    %5159 = vmatprep.subr.mxu0 0.0
    %5160 = vmatpush1.msra.mxu0 0.0
    %5161 = vmatprep.subr.mxu0 0.0
    %5162 = vmatpush1.msra.mxu0 0.0
    %5163 = vmatprep.subr.mxu0 0.0
    %5164 = vmatpush1.msra.mxu0 0.0
    %5165 = vmatprep.subr.mxu0 0.0
    %5166 = vmatpush1.msra.mxu0 0.0
    %5167 = vmatprep.subr.mxu0 0.0
    %5168 = vmatpush1.msra.mxu0 0.0
    %5169 = vmatprep.subr.mxu0 0.0
    %5170 = vmatpush1.msra.mxu0 0.0
    %5171 = vmatprep.subr.mxu0 0.0
    %5172 = vmatpush1.msra.mxu0 0.0
    %5173 = vmatprep.subr.mxu0 0.0
    %5174 = vmatpush1.msra.mxu0 0.0
    %5175 = vmatprep.subr.mxu0 0.0
    %5176 = vmatpush1.msra.mxu0 0.0
    %5177 = vmatprep.subr.mxu0 0.0
    %5178 = vmatpush1.msra.mxu0 0.0
    %5179 = vmatprep.subr.mxu0 0.0
    %5180 = vmatpush1.msra.mxu0 0.0
    %5181 = vmatprep.subr.mxu0 0.0
    %5182 = vmatpush1.msra.mxu0 0.0
    %5183 = vmatprep.subr.mxu0 0.0
    %5184 = vmatpush1.msra.mxu0 0.0
    %5185 = vmatprep.subr.mxu0 0.0
    %5186 = vmatpush1.msra.mxu0 0.0
    %5187 = vmatprep.subr.mxu0 0.0
    %5188 = vmatpush1.msra.mxu0 0.0
    %5189 = vmatprep.subr.mxu0 0.0
    %5190 = vmatpush1.msra.mxu0 0.0
    %5191 = vmatprep.mubr.f32.mxu0 0.0
    %5192 = vmatmul.mubr.f32.gmra.mrb[0].mxu0 %v5125
    %v5193 = vpop.f32.mrb[0].mxu0
    %v5194 = vadd.f32 0.0, %v5193
    %v5195 = vpop.f32.mrb[0].mxu0
    %5196 = vdwg.mxu0
    %5197 = vmatprep.subr.mxu0 0.0
    %5198 = vmatpush1.msra.mxu0 %v5102
    %5199 = vmatprep.subr.mxu0 0.0
    %5200 = vmatpush1.msra.mxu0 %v5103
    %5201 = vmatprep.subr.mxu0 0.0
    %5202 = vmatpush1.msra.mxu0 %v5104
    %5203 = vmatprep.subr.mxu0 0.0
    %5204 = vmatpush1.msra.mxu0 %v5105
    %5205 = vmatprep.subr.mxu0 0.0
    %5206 = vmatpush1.msra.mxu0 %v5106
    %5207 = vmatprep.subr.mxu0 0.0
    %5208 = vmatpush1.msra.mxu0 %v5107
    %5209 = vmatprep.subr.mxu0 0.0
    %5210 = vmatpush1.msra.mxu0 %v5108
    %5211 = vmatprep.subr.mxu0 0.0
    %5212 = vmatpush1.msra.mxu0 %v5109
    %5213 = vmatprep.subr.mxu0 0.0
    %5214 = vmatpush1.msra.mxu0 %v5110
    %5215 = vmatprep.subr.mxu0 0.0
    %5216 = vmatpush1.msra.mxu0 %v5111
    %5217 = vmatprep.subr.mxu0 0.0
    %5218 = vmatpush1.msra.mxu0 %v5112
    %5219 = vmatprep.subr.mxu0 0.0
    %5220 = vmatpush1.msra.mxu0 %v5113
    %5221 = vmatprep.subr.mxu0 0.0
    %5222 = vmatpush1.msra.mxu0 %v5114
    %5223 = vmatprep.subr.mxu0 0.0
    %5224 = vmatpush1.msra.mxu0 %v5115
    %5225 = vmatprep.subr.mxu0 0.0
    %5226 = vmatpush1.msra.mxu0 %v5116
    %5227 = vmatprep.subr.mxu0 0.0
    %5228 = vmatpush1.msra.mxu0 %v5117
    %5229 = vmatprep.subr.mxu0 0.0
    %5230 = vmatpush1.msra.mxu0 0.0
    %5231 = vmatprep.subr.mxu0 0.0
    %5232 = vmatpush1.msra.mxu0 0.0
    %5233 = vmatprep.subr.mxu0 0.0
    %5234 = vmatpush1.msra.mxu0 0.0
    %5235 = vmatprep.subr.mxu0 0.0
    %5236 = vmatpush1.msra.mxu0 0.0
    %5237 = vmatprep.subr.mxu0 0.0
    %5238 = vmatpush1.msra.mxu0 0.0
    %5239 = vmatprep.subr.mxu0 0.0
    %5240 = vmatpush1.msra.mxu0 0.0
    %5241 = vmatprep.subr.mxu0 0.0
    %5242 = vmatpush1.msra.mxu0 0.0
    %5243 = vmatprep.subr.mxu0 0.0
    %5244 = vmatpush1.msra.mxu0 0.0
    %5245 = vmatprep.subr.mxu0 0.0
    %5246 = vmatpush1.msra.mxu0 0.0
    %5247 = vmatprep.subr.mxu0 0.0
    %5248 = vmatpush1.msra.mxu0 0.0
    %5249 = vmatprep.subr.mxu0 0.0
    %5250 = vmatpush1.msra.mxu0 0.0
    %5251 = vmatprep.subr.mxu0 0.0
    %5252 = vmatpush1.msra.mxu0 0.0
    %5253 = vmatprep.subr.mxu0 0.0
    %5254 = vmatpush1.msra.mxu0 0.0
    %5255 = vmatprep.subr.mxu0 0.0
    %5256 = vmatpush1.msra.mxu0 0.0
    %5257 = vmatprep.subr.mxu0 0.0
    %5258 = vmatpush1.msra.mxu0 0.0
    %5259 = vmatprep.subr.mxu0 0.0
    %5260 = vmatpush1.msra.mxu0 0.0
    %5261 = vmatprep.mubr.f32.mxu0 0.0
    %5262 = vmatmul.mubr.f32.gmra.mrb[0].mxu0 %v4964
    %v5263 = vpop.f32.mrb[0].mxu0
    %v5264 = vadd.f32 %v5194, %v5263
    %v5265 = vpop.f32.mrb[0].mxu0
    %5266 = vdwg.mxu0
    %v5267 = vld [vmem:[%s10] sm:$0xff]
    %v5268 = vld [vmem:[%s10 + $0x8] sm:$0xff]
    %v5269 = vld [vmem:[%s10 + $0x10] sm:$0xff]
    %v5270 = vld [vmem:[%s10 + $0x18] sm:$0xff]
    %5271 = vmatprep.subr.mxu0 0.0
    %5272 = vmatpush1.msra.mxu0 %v5267
    %5273 = vmatprep.subr.mxu0 0.0
    %5274 = vmatpush1.msra.mxu0 %v5268
    %5275 = vmatprep.subr.mxu0 0.0
    %5276 = vmatpush1.msra.mxu0 %v5269
    %5277 = vmatprep.subr.mxu0 0.0
    %5278 = vmatpush1.msra.mxu0 %v5270
    %5279 = vmatprep.subr.mxu0 0.0
    %5280 = vmatpush1.msra.mxu0 0.0
    %5281 = vmatprep.subr.mxu0 0.0
    %5282 = vmatpush1.msra.mxu0 0.0
    %5283 = vmatprep.subr.mxu0 0.0
    %5284 = vmatpush1.msra.mxu0 0.0
    %5285 = vmatprep.subr.mxu0 0.0
    %5286 = vmatpush1.msra.mxu0 0.0
    %5287 = vmatprep.subr.mxu0 0.0
    %5288 = vmatpush1.msra.mxu0 0.0
    %5289 = vmatprep.subr.mxu0 0.0
    %5290 = vmatpush1.msra.mxu0 0.0
    %5291 = vmatprep.subr.mxu0 0.0
    %5292 = vmatpush1.msra.mxu0 0.0
    %5293 = vmatprep.subr.mxu0 0.0
    %5294 = vmatpush1.msra.mxu0 0.0
    %5295 = vmatprep.subr.mxu0 0.0
    %5296 = vmatpush1.msra.mxu0 0.0
    %5297 = vmatprep.subr.mxu0 0.0
    %5298 = vmatpush1.msra.mxu0 0.0
    %5299 = vmatprep.subr.mxu0 0.0
    %5300 = vmatpush1.msra.mxu0 0.0
    %5301 = vmatprep.subr.mxu0 0.0
    %5302 = vmatpush1.msra.mxu0 0.0
    %5303 = vmatprep.subr.mxu0 0.0
    %5304 = vmatpush1.msra.mxu0 0.0
    %5305 = vmatprep.subr.mxu0 0.0
    %5306 = vmatpush1.msra.mxu0 0.0
    %5307 = vmatprep.subr.mxu0 0.0
    %5308 = vmatpush1.msra.mxu0 0.0
    %5309 = vmatprep.subr.mxu0 0.0
    %5310 = vmatpush1.msra.mxu0 0.0
    %5311 = vmatprep.subr.mxu0 0.0
    %5312 = vmatpush1.msra.mxu0 0.0
    %5313 = vmatprep.subr.mxu0 0.0
    %5314 = vmatpush1.msra.mxu0 0.0
    %5315 = vmatprep.subr.mxu0 0.0
    %5316 = vmatpush1.msra.mxu0 0.0
    %5317 = vmatprep.subr.mxu0 0.0
    %5318 = vmatpush1.msra.mxu0 0.0
    %5319 = vmatprep.subr.mxu0 0.0
    %5320 = vmatpush1.msra.mxu0 0.0
    %5321 = vmatprep.subr.mxu0 0.0
    %5322 = vmatpush1.msra.mxu0 0.0
    %5323 = vmatprep.subr.mxu0 0.0
    %5324 = vmatpush1.msra.mxu0 0.0
    %5325 = vmatprep.subr.mxu0 0.0
    %5326 = vmatpush1.msra.mxu0 0.0
    %5327 = vmatprep.subr.mxu0 0.0
    %5328 = vmatpush1.msra.mxu0 0.0
    %5329 = vmatprep.subr.mxu0 0.0
    %5330 = vmatpush1.msra.mxu0 0.0
    %5331 = vmatprep.subr.mxu0 0.0
    %5332 = vmatpush1.msra.mxu0 0.0
    %5333 = vmatprep.subr.mxu0 0.0
    %5334 = vmatpush1.msra.mxu0 0.0
    %5335 = vmatprep.mubr.f32.mxu0 0.0
    %5336 = vmatmul.mubr.f32.gmra.mrb[0].mxu0 %v4762
    %v5337 = vpop.f32.mrb[0].mxu0
    %v5338 = vadd.f32 0.0, %v5337
    %v5339 = vpop.f32.mrb[0].mxu0
    %5340 = vdwg.mxu0
    %v5341 = vadd.f32 %v5264, %v5338
    %v5342 = vld [vmem:[%s11] sm:$0x1]
    %v5344 = vlaneseq
    %v5345 = vshrl.u32 %v5344, 7
    %v5346 = vsub.s32 0, %v5345
    %v5347 = vrot.slane %v5342, %v5346
    %v5349 = vadd.f32 %v5341, %v5347
    %v5350 = vxor.u32 %v5349, 2147483648
    %v5351 = vmul.f32 %v5350, 1.442695
    %v5352 = vpow.pop %v5351
    %v5353 = vadd.f32 %v5352, 1.0
    %v5354 = vrcp.pop %v5353
    %v5355 = vmul.f32 1.0, %v5354
    %v5356 = vtanh.pop %v5349
    %v5357 = vmul.f32 %v5355, %v4674
    %5359 = vrot.lane.b32.xlu0 %v5356, 64
    %v5360 = vpop.permute.xlu0 %5359
    %v5362 = vmul.f32 %v5355, %v5360
    %5364 = vrot.lane.b32.xlu0 %v5362, 32
    %v5365 = vpop.permute.xlu0 %5364
    %v5367 = vadd.f32 %v5357, %v5365
    %v5368 = vtanh.pop %v5367
    %5370 = vrot.lane.b32.xlu0 %v5368, 64
    %v5371 = vpop.permute.xlu0 %5370
    %v5373 = vmul.f32 %v5355, %v5371
    %v5374 = vld [vmem:[%s12] sm:$0xff]
    %v5375 = vld [vmem:[%s12 + $0x8] sm:$0xff]
    %v5376 = vld [vmem:[%s12 + $0x10] sm:$0xff]
    %v5377 = vld [vmem:[%s12 + $0x18] sm:$0xff]
    %v5378 = vld [vmem:[%s13] sm:$0xff]
    %v5379 = vld [vmem:[%s13 + $0x8] sm:$0xff]
    %v5380 = vld [vmem:[%s13 + $0x10] sm:$0xff]
    %v5381 = vld [vmem:[%s13 + $0x18] sm:$0xff]
    %5382 = vmatprep.subr.mxu0 0.0
    %5383 = vmatpush1.msra.mxu0 %v5378
    %5384 = vmatprep.subr.mxu0 0.0
    %5385 = vmatpush1.msra.mxu0 %v5379
    %5386 = vmatprep.subr.mxu0 0.0
    %5387 = vmatpush1.msra.mxu0 %v5380
    %5388 = vmatprep.subr.mxu0 0.0
    %5389 = vmatpush1.msra.mxu0 %v5381
    %5390 = vmatprep.subr.mxu0 0.0
    %5391 = vmatpush1.msra.mxu0 0.0
    %5392 = vmatprep.subr.mxu0 0.0
    %5393 = vmatpush1.msra.mxu0 0.0
    %5394 = vmatprep.subr.mxu0 0.0
    %5395 = vmatpush1.msra.mxu0 0.0
    %5396 = vmatprep.subr.mxu0 0.0
    %5397 = vmatpush1.msra.mxu0 0.0
    %5398 = vmatprep.subr.mxu0 0.0
    %5399 = vmatpush1.msra.mxu0 0.0
    %5400 = vmatprep.subr.mxu0 0.0
    %5401 = vmatpush1.msra.mxu0 0.0
    %5402 = vmatprep.subr.mxu0 0.0
    %5403 = vmatpush1.msra.mxu0 0.0
    %5404 = vmatprep.subr.mxu0 0.0
    %5405 = vmatpush1.msra.mxu0 0.0
    %5406 = vmatprep.subr.mxu0 0.0
    %5407 = vmatpush1.msra.mxu0 0.0
    %5408 = vmatprep.subr.mxu0 0.0
    %5409 = vmatpush1.msra.mxu0 0.0
    %5410 = vmatprep.subr.mxu0 0.0
    %5411 = vmatpush1.msra.mxu0 0.0
    %5412 = vmatprep.subr.mxu0 0.0
    %5413 = vmatpush1.msra.mxu0 0.0
    %5414 = vmatprep.subr.mxu0 0.0
    %5415 = vmatpush1.msra.mxu0 0.0
    %5416 = vmatprep.subr.mxu0 0.0
    %5417 = vmatpush1.msra.mxu0 0.0
    %5418 = vmatprep.subr.mxu0 0.0
    %5419 = vmatpush1.msra.mxu0 0.0
    %5420 = vmatprep.subr.mxu0 0.0
    %5421 = vmatpush1.msra.mxu0 0.0
    %5422 = vmatprep.subr.mxu0 0.0
    %5423 = vmatpush1.msra.mxu0 0.0
    %5424 = vmatprep.subr.mxu0 0.0
    %5425 = vmatpush1.msra.mxu0 0.0
    %5426 = vmatprep.subr.mxu0 0.0
    %5427 = vmatpush1.msra.mxu0 0.0
    %5428 = vmatprep.subr.mxu0 0.0
    %5429 = vmatpush1.msra.mxu0 0.0
    %5430 = vmatprep.subr.mxu0 0.0
    %5431 = vmatpush1.msra.mxu0 0.0
    %5432 = vmatprep.subr.mxu0 0.0
    %5433 = vmatpush1.msra.mxu0 0.0
    %5434 = vmatprep.subr.mxu0 0.0
    %5435 = vmatpush1.msra.mxu0 0.0
    %5436 = vmatprep.subr.mxu0 0.0
    %5437 = vmatpush1.msra.mxu0 0.0
    %5438 = vmatprep.subr.mxu0 0.0
    %5439 = vmatpush1.msra.mxu0 0.0
    %5440 = vmatprep.subr.mxu0 0.0
    %5441 = vmatpush1.msra.mxu0 0.0
    %5442 = vmatprep.subr.mxu0 0.0
    %5443 = vmatpush1.msra.mxu0 0.0
    %5444 = vmatprep.subr.mxu0 0.0
    %5445 = vmatpush1.msra.mxu0 0.0
    %5446 = vmatprep.mubr.f32.mxu0 0.0
    %5447 = vmatmul.mubr.f32.gmra.mrb[0].mxu0 %v5125
    %v5448 = vpop.f32.mrb[0].mxu0
    %v5449 = vadd.f32 0.0, %v5448
    %v5450 = vpop.f32.mrb[0].mxu0
    %5451 = vdwg.mxu0
    %5453 = vrot.lane.b32.xlu0 %v5373, 32
    %v5454 = vpop.permute.xlu0 %5453
    %v5455 = vsel %vm80, %v5454, 0
    %5457 = vmatprep.subr.mxu0 0.0
    %5458 = vmatpush1.msra.mxu0 %v5374
    %5459 = vmatprep.subr.mxu0 0.0
    %5460 = vmatpush1.msra.mxu0 %v5375
    %5461 = vmatprep.subr.mxu0 0.0
    %5462 = vmatpush1.msra.mxu0 %v5376
    %5463 = vmatprep.subr.mxu0 0.0
    %5464 = vmatpush1.msra.mxu0 %v5377
    %5465 = vmatprep.subr.mxu0 0.0
    %5466 = vmatpush1.msra.mxu0 0.0
    %5467 = vmatprep.subr.mxu0 0.0
    %5468 = vmatpush1.msra.mxu0 0.0
    %5469 = vmatprep.subr.mxu0 0.0
    %5470 = vmatpush1.msra.mxu0 0.0
    %5471 = vmatprep.subr.mxu0 0.0
    %5472 = vmatpush1.msra.mxu0 0.0
    %5473 = vmatprep.subr.mxu0 0.0
    %5474 = vmatpush1.msra.mxu0 0.0
    %5475 = vmatprep.subr.mxu0 0.0
    %5476 = vmatpush1.msra.mxu0 0.0
    %5477 = vmatprep.subr.mxu0 0.0
    %5478 = vmatpush1.msra.mxu0 0.0
    %5479 = vmatprep.subr.mxu0 0.0
    %5480 = vmatpush1.msra.mxu0 0.0
    %5481 = vmatprep.subr.mxu0 0.0
    %5482 = vmatpush1.msra.mxu0 0.0
    %5483 = vmatprep.subr.mxu0 0.0
    %5484 = vmatpush1.msra.mxu0 0.0
    %5485 = vmatprep.subr.mxu0 0.0
    %5486 = vmatpush1.msra.mxu0 0.0
    %5487 = vmatprep.subr.mxu0 0.0
    %5488 = vmatpush1.msra.mxu0 0.0
    %5489 = vmatprep.subr.mxu0 0.0
    %5490 = vmatpush1.msra.mxu0 0.0
    %5491 = vmatprep.subr.mxu0 0.0
    %5492 = vmatpush1.msra.mxu0 0.0
    %5493 = vmatprep.subr.mxu0 0.0
    %5494 = vmatpush1.msra.mxu0 0.0
    %5495 = vmatprep.subr.mxu0 0.0
    %5496 = vmatpush1.msra.mxu0 0.0
    %5497 = vmatprep.subr.mxu0 0.0
    %5498 = vmatpush1.msra.mxu0 0.0
    %5499 = vmatprep.subr.mxu0 0.0
    %5500 = vmatpush1.msra.mxu0 0.0
    %5501 = vmatprep.subr.mxu0 0.0
    %5502 = vmatpush1.msra.mxu0 0.0
    %5503 = vmatprep.subr.mxu0 0.0
    %5504 = vmatpush1.msra.mxu0 0.0
    %5505 = vmatprep.subr.mxu0 0.0
    %5506 = vmatpush1.msra.mxu0 0.0
    %5507 = vmatprep.subr.mxu0 0.0
    %5508 = vmatpush1.msra.mxu0 0.0
    %5509 = vmatprep.subr.mxu0 0.0
    %5510 = vmatpush1.msra.mxu0 0.0
    %5511 = vmatprep.subr.mxu0 0.0
    %5512 = vmatpush1.msra.mxu0 0.0
    %5513 = vmatprep.subr.mxu0 0.0
    %5514 = vmatpush1.msra.mxu0 0.0
    %5515 = vmatprep.subr.mxu0 0.0
    %5516 = vmatpush1.msra.mxu0 0.0
    %5517 = vmatprep.subr.mxu0 0.0
    %5518 = vmatpush1.msra.mxu0 0.0
    %5519 = vmatprep.subr.mxu0 0.0
    %5520 = vmatpush1.msra.mxu0 0.0
    %5521 = vmatprep.mubr.f32.mxu0 0.0
    %5522 = vmatmul.mubr.f32.gmra.mrb[0].mxu0 %v5455
    %v5523 = vpop.f32.mrb[0].mxu0
    %v5524 = vadd.f32 %v5449, %v5523
    %v5525 = vpop.f32.mrb[0].mxu0
    %5526 = vdwg.mxu0
    %v5527 = vld [vmem:[%s14] sm:$0xff]
    %v5528 = vld [vmem:[%s14 + $0x8] sm:$0xff]
    %v5529 = vld [vmem:[%s14 + $0x10] sm:$0xff]
    %v5530 = vld [vmem:[%s14 + $0x18] sm:$0xff]
    %v5531 = vld [vmem:[%s14 + $0x20] sm:$0xff]
    %v5532 = vld [vmem:[%s14 + $0x28] sm:$0xff]
    %v5533 = vld [vmem:[%s14 + $0x30] sm:$0xff]
    %v5534 = vld [vmem:[%s14 + $0x38] sm:$0xff]
    %v5535 = vld [vmem:[%s14 + $0x40] sm:$0xff]
    %v5536 = vld [vmem:[%s14 + $0x48] sm:$0xff]
    %v5537 = vld [vmem:[%s14 + $0x50] sm:$0xff]
    %v5538 = vld [vmem:[%s14 + $0x58] sm:$0xff]
    %v5539 = vld [vmem:[%s14 + $0x60] sm:$0xff]
    %v5540 = vld [vmem:[%s14 + $0x68] sm:$0xff]
    %v5541 = vld [vmem:[%s14 + $0x70] sm:$0xff]
    %v5542 = vld [vmem:[%s14 + $0x78] sm:$0xff]
    %5543 = vmatprep.subr.mxu0 0.0
    %5544 = vmatpush1.msra.mxu0 %v5527
    %5545 = vmatprep.subr.mxu0 0.0
    %5546 = vmatpush1.msra.mxu0 %v5528
    %5547 = vmatprep.subr.mxu0 0.0
    %5548 = vmatpush1.msra.mxu0 %v5529
    %5549 = vmatprep.subr.mxu0 0.0
    %5550 = vmatpush1.msra.mxu0 %v5530
    %5551 = vmatprep.subr.mxu0 0.0
    %5552 = vmatpush1.msra.mxu0 %v5531
    %5553 = vmatprep.subr.mxu0 0.0
    %5554 = vmatpush1.msra.mxu0 %v5532
    %5555 = vmatprep.subr.mxu0 0.0
    %5556 = vmatpush1.msra.mxu0 %v5533
    %5557 = vmatprep.subr.mxu0 0.0
    %5558 = vmatpush1.msra.mxu0 %v5534
    %5559 = vmatprep.subr.mxu0 0.0
    %5560 = vmatpush1.msra.mxu0 %v5535
    %5561 = vmatprep.subr.mxu0 0.0
    %5562 = vmatpush1.msra.mxu0 %v5536
    %5563 = vmatprep.subr.mxu0 0.0
    %5564 = vmatpush1.msra.mxu0 %v5537
    %5565 = vmatprep.subr.mxu0 0.0
    %5566 = vmatpush1.msra.mxu0 %v5538
    %5567 = vmatprep.subr.mxu0 0.0
    %5568 = vmatpush1.msra.mxu0 %v5539
    %5569 = vmatprep.subr.mxu0 0.0
    %5570 = vmatpush1.msra.mxu0 %v5540
    %5571 = vmatprep.subr.mxu0 0.0
    %5572 = vmatpush1.msra.mxu0 %v5541
    %5573 = vmatprep.subr.mxu0 0.0
    %5574 = vmatpush1.msra.mxu0 %v5542
    %5575 = vmatprep.subr.mxu0 0.0
    %5576 = vmatpush1.msra.mxu0 0.0
    %5577 = vmatprep.subr.mxu0 0.0
    %5578 = vmatpush1.msra.mxu0 0.0
    %5579 = vmatprep.subr.mxu0 0.0
    %5580 = vmatpush1.msra.mxu0 0.0
    %5581 = vmatprep.subr.mxu0 0.0
    %5582 = vmatpush1.msra.mxu0 0.0
    %5583 = vmatprep.subr.mxu0 0.0
    %5584 = vmatpush1.msra.mxu0 0.0
    %5585 = vmatprep.subr.mxu0 0.0
    %5586 = vmatpush1.msra.mxu0 0.0
    %5587 = vmatprep.subr.mxu0 0.0
    %5588 = vmatpush1.msra.mxu0 0.0
    %5589 = vmatprep.subr.mxu0 0.0
    %5590 = vmatpush1.msra.mxu0 0.0
    %5591 = vmatprep.subr.mxu0 0.0
    %5592 = vmatpush1.msra.mxu0 0.0
    %5593 = vmatprep.subr.mxu0 0.0
    %5594 = vmatpush1.msra.mxu0 0.0
    %5595 = vmatprep.subr.mxu0 0.0
    %5596 = vmatpush1.msra.mxu0 0.0
    %5597 = vmatprep.subr.mxu0 0.0
    %5598 = vmatpush1.msra.mxu0 0.0
    %5599 = vmatprep.subr.mxu0 0.0
    %5600 = vmatpush1.msra.mxu0 0.0
    %5601 = vmatprep.subr.mxu0 0.0
    %5602 = vmatpush1.msra.mxu0 0.0
    %5603 = vmatprep.subr.mxu0 0.0
    %5604 = vmatpush1.msra.mxu0 0.0
    %5605 = vmatprep.subr.mxu0 0.0
    %5606 = vmatpush1.msra.mxu0 0.0
    %5607 = vmatprep.mubr.f32.mxu0 0.0
    %5608 = vmatmul.mubr.f32.gmra.mrb[0].mxu0 %v4964
    %v5609 = vpop.f32.mrb[0].mxu0
    %v5610 = vadd.f32 0.0, %v5609
    %v5611 = vpop.f32.mrb[0].mxu0
    %5612 = vdwg.mxu0
    %v5613 = vadd.f32 %v5524, %v5610
    %v5614 = vld [vmem:[%s15] sm:$0x1]
    %v5616 = vlaneseq
    %v5617 = vshrl.u32 %v5616, 7
    %v5618 = vsub.s32 0, %v5617
    %v5619 = vrot.slane %v5614, %v5618
    %v5621 = vadd.f32 %v5613, %v5619
    %s5622 = scalar_lea.vmem %s19, 10
    %5623 = vst [vmem:[%s5622] sm:$0x3] %v5621
    %v5624 = vsel %vm1494, %v5621, -1e+30
    %v5625 = vsel %vm2160, %v5624, -inf
    %5626 = vmax.xlane.f32.xlu0 %v5625
    %v5627 = vpop.xlane.xlu0 %5626
    %vm5628 = vcmp.ge.f32.partialorder %v5624, %v5627
    %v5629 = vsel %vm5628, %v1493, 128
    %v5630 = vsel %vm2160, %v5629, 2147483647
    %v5631 = vand.u32 %v5630, 65535
    %v5632 = vshra.s32 %v5630, 16
    %v5633 = vcvt.s32.f32 %v5631
    %v5634 = vcvt.s32.f32 %v5632
    %5635 = vmin.xlane.f32.xlu0 %v5634
    %v5636 = vpop.xlane.xlu0 %5635
    %vm5637 = vcmp.eq.f32.partialorder %v5634, %v5636
    %v5638 = vsel %vm5637, %v5633, inf
    %5639 = vmin.xlane.f32.xlu0 %v5638
    %v5640 = vpop.xlane.xlu0 %5639
    %v5641 = vcvt.f32.s32 %v5640
    %v5642 = vcvt.f32.s32 %v5636
    %v5643 = vshll.u32 %v5642, 16
    %v5644 = vadd.s32 %v5643, %v5641
    %vm5645 = vcmp.eq.s32.totalorder %v1493, %v5644
    %v5646 = vsel %vm5645, 1, 0
    %v5647 = vcvt.s32.f32 %v5646
    %s5648 = sld [smem:[#allocation3 + $0x5]]
    %s5649 = scvt.s32.f32 %s5648
    %s5650 = scalar_lea.vmem %s17, 10
    %v5651 = vld [vmem:[%s5650] sm:$0x3]
    %v5652 = vstv %s5649
    %v5653 = vmul.f32 %v5652, %v5651
    %s5654 = ssub.f32 1.0, %s5649
    %v5655 = vstv %s5654
    %v5656 = vmul.f32 %v5655, %v5647
    %v5657 = vadd.f32 %v5653, %v5656
    %v5659 = vunpack.c.l.s4 1966171168
    %v5660 = vunpack.c.0.s8 %v5659
    %v5661 = vlaneseq
    %v5662 = vshrl.u32 %v5661, 7
    %v5663 = vsub.s32 %v5660, %v5662
    %v5664 = vrot.slane %v5373, %v5663
    %v5665 = vcombine.high %v5664, %v5664
    %v5667 = vunpack.c.l.s4 1966171168
    %v5668 = vunpack.c.0.s8 %v5667
    %v5669 = vlaneseq
    %v5670 = vshrl.u32 %v5669, 7
    %v5671 = vsub.s32 %v5668, %v5670
    %v5672 = vrot.slane %v5664, %v5671
    %v5674 = vunpack.c.l.s4 1966171168
    %v5675 = vunpack.c.0.s8 %v5674
    %v5676 = vlaneseq
    %v5677 = vshrl.u32 %v5676, 7
    %v5678 = vsub.s32 %v5675, %v5677
    %v5679 = vrot.slane %v5665, %v5678
    %v5680 = vlaneseq
    %v5681 = vshrl.u32 %v5680, 7
    %v5682 = vsub.s32 0, %v5681
    %v5683 = vrot.slane %v5672, %v5682
    %v5684 = vlaneseq
    %v5685 = vshrl.u32 %v5684, 7
    %v5686 = vsub.s32 0, %v5685
    %v5687 = vrot.slane %v5679, %v5686
    %5688 = vrot.lane.b32.xlu0 %v5683, 32
    %v5689 = vpop.permute.xlu0 %5688
    %5690 = vrot.lane.b32.xlu0 %v5687, 32
    %v5691 = vpop.permute.xlu0 %5690
    %v5694 = vmul.f32 %v1484, %v5689
    %v5695 = vmul.f32 %v1489, %v5691
    %v5696 = vsel %vm80, %v5694, 0.0
    %5697 = vadd.xlane.f32.xlu0 %v5696
    %v5698 = vpop.xlane.xlu0 %5697
    %v5699 = vsel %vm80, %v5695, 0.0
    %5700 = vadd.xlane.f32.xlu0 %v5699
    %v5701 = vpop.xlane.xlu0 %5700
    %v5704 = vlaneseq
    %v5705 = vshrl.u32 %v5704, 7
    %v5706 = vsub.s32 %v1493, %v5705
    %v5707 = vrot.slane %v5698, %v5706
    %v5708 = vlaneseq
    %v5709 = vshrl.u32 %v5708, 7
    %v5710 = vsub.s32 %v1493, %v5709
    %v5711 = vrot.slane %v5701, %v5710
    %v5712 = vsel %vm1547, %v5711, %v5707
    %v5714 = vsel %vm1550, %v5712, -inf
    %5715 = vmax.xlane.f32.xlu0 %v5714
    %v5716 = vpop.xlane.xlu0 %5715
    %v5718 = vlaneseq
    %v5719 = vshrl.u32 %v5718, 7
    %v5720 = vsub.s32 0, %v5719
    %v5721 = vrot.slane %v5716, %v5720
    %v5722 = vlaneseq
    %v5723 = vshrl.u32 %v5722, 7
    %v5724 = vsub.s32 1, %v5723
    %v5725 = vrot.slane %v5716, %v5724
    %v5728 = vsub.f32 %v5698, %v5721
    %v5729 = vsub.f32 %v5701, %v5725
    %v5730 = vmul.f32 %v5728, 1.442695
    %v5731 = vpow.pop %v5730
    %v5732 = vmul.f32 %v5729, 1.442695
    %v5733 = vpow.pop %v5732
    %5736 = vset.pattern.permute.xlu0 0
    %5737 = vperm.xlu0 %5736, %v5731
    %v5738 = vpop.permute.xlu0 %5737
    %5739 = vset.pattern.permute.xlu0 0
    %5740 = vperm.xlu0 %5739, %v5733
    %v5741 = vpop.permute.xlu0 %5740
    %v5742 = vlaneseq
    %v5743 = vshrl.u32 %v5742, 7
    %v5744 = vsub.s32 %v1493, %v5743
    %v5745 = vrot.slane %v5738, %v5744
    %v5746 = vlaneseq
    %v5747 = vshrl.u32 %v5746, 7
    %v5748 = vsub.s32 %v1493, %v5747
    %v5749 = vrot.slane %v5741, %v5748
    %v5750 = vsel %vm1547, %v5749, %v5745
    %v5752 = vsel %vm1550, %v5750, 0.0
    %5753 = vadd.xlane.f32.xlu0 %v5752
    %v5754 = vpop.xlane.xlu0 %5753
    %v5755 = vrcp.pop %v5754
    %v5757 = vlaneseq
    %v5758 = vshrl.u32 %v5757, 7
    %v5759 = vsub.s32 0, %v5758
    %v5760 = vrot.slane %v5755, %v5759
    %v5761 = vlaneseq
    %v5762 = vshrl.u32 %v5761, 7
    %v5763 = vsub.s32 1, %v5762
    %v5764 = vrot.slane %v5755, %v5763
    %v5767 = vmul.f32 %v5731, %v5760
    %v5768 = vmul.f32 %v5733, %v5764
    %5770 = vset.pattern.permute.xlu0 0
    %5771 = vperm.xlu0 %5770, %v5767
    %v5772 = vpop.permute.xlu0 %5771
    %5775 = vset.pattern.permute.xlu0 0
    %5776 = vperm.xlu0 %5775, %v5768
    %v5777 = vpop.permute.xlu0 %5776
    %v5779 = vmul.f32 %v5772, %v1398
    %v5780 = vmul.f32 %v5777, %v1399
    %v5781 = vsel %vm80, %v5779, 0.0
    %v5782 = vrot.slane %v5781, 4
    %v5783 = vadd.f32 %v5781, %v5782
    %v5784 = vrot.slane %v5783, 2
    %v5785 = vadd.f32 %v5783, %v5784
    %v5786 = vrot.slane %v5785, 1
    %v5787 = vadd.f32 %v5785, %v5786
    %v5788 = vsel %vm80, %v5780, 0.0
    %v5789 = vrot.slane %v5788, 4
    %v5790 = vadd.f32 %v5788, %v5789
    %v5791 = vrot.slane %v5790, 2
    %v5792 = vadd.f32 %v5790, %v5791
    %v5793 = vrot.slane %v5792, 1
    %v5794 = vadd.f32 %v5792, %v5793
    %v5795 = vld [vmem:[%s8] sm:$0xff]
    %v5796 = vld [vmem:[%s8 + $0x8] sm:$0xff]
    %v5797 = vld [vmem:[%s8 + $0x10] sm:$0xff]
    %v5798 = vld [vmem:[%s8 + $0x18] sm:$0xff]
    %v5799 = vld [vmem:[%s8 + $0x20] sm:$0xff]
    %v5800 = vld [vmem:[%s8 + $0x28] sm:$0xff]
    %v5801 = vld [vmem:[%s8 + $0x30] sm:$0xff]
    %v5802 = vld [vmem:[%s8 + $0x38] sm:$0xff]
    %v5803 = vld [vmem:[%s8 + $0x40] sm:$0xff]
    %v5804 = vld [vmem:[%s8 + $0x48] sm:$0xff]
    %v5805 = vld [vmem:[%s8 + $0x50] sm:$0xff]
    %v5806 = vld [vmem:[%s8 + $0x58] sm:$0xff]
    %v5807 = vld [vmem:[%s8 + $0x60] sm:$0xff]
    %v5808 = vld [vmem:[%s8 + $0x68] sm:$0xff]
    %v5809 = vld [vmem:[%s8 + $0x70] sm:$0xff]
    %v5810 = vld [vmem:[%s8 + $0x78] sm:$0xff]
    %v5811 = vld [vmem:[%s9] sm:$0xff]
    %v5812 = vld [vmem:[%s9 + $0x8] sm:$0xff]
    %v5813 = vld [vmem:[%s9 + $0x10] sm:$0xff]
    %v5814 = vld [vmem:[%s9 + $0x18] sm:$0xff]
    %v5817 = vsel %vm1547, %v5794, %v5787
    %v5818 = vsel %vm80, %v5817, 0
    %5820 = vmatprep.subr.mxu0 0.0
    %5821 = vmatpush1.msra.mxu0 %v5811
    %5822 = vmatprep.subr.mxu0 0.0
    %5823 = vmatpush1.msra.mxu0 %v5812
    %5824 = vmatprep.subr.mxu0 0.0
    %5825 = vmatpush1.msra.mxu0 %v5813
    %5826 = vmatprep.subr.mxu0 0.0
    %5827 = vmatpush1.msra.mxu0 %v5814
    %5828 = vmatprep.subr.mxu0 0.0
    %5829 = vmatpush1.msra.mxu0 0.0
    %5830 = vmatprep.subr.mxu0 0.0
    %5831 = vmatpush1.msra.mxu0 0.0
    %5832 = vmatprep.subr.mxu0 0.0
    %5833 = vmatpush1.msra.mxu0 0.0
    %5834 = vmatprep.subr.mxu0 0.0
    %5835 = vmatpush1.msra.mxu0 0.0
    %5836 = vmatprep.subr.mxu0 0.0
    %5837 = vmatpush1.msra.mxu0 0.0
    %5838 = vmatprep.subr.mxu0 0.0
    %5839 = vmatpush1.msra.mxu0 0.0
    %5840 = vmatprep.subr.mxu0 0.0
    %5841 = vmatpush1.msra.mxu0 0.0
    %5842 = vmatprep.subr.mxu0 0.0
    %5843 = vmatpush1.msra.mxu0 0.0
    %5844 = vmatprep.subr.mxu0 0.0
    %5845 = vmatpush1.msra.mxu0 0.0
    %5846 = vmatprep.subr.mxu0 0.0
    %5847 = vmatpush1.msra.mxu0 0.0
    %5848 = vmatprep.subr.mxu0 0.0
    %5849 = vmatpush1.msra.mxu0 0.0
    %5850 = vmatprep.subr.mxu0 0.0
    %5851 = vmatpush1.msra.mxu0 0.0
    %5852 = vmatprep.subr.mxu0 0.0
    %5853 = vmatpush1.msra.mxu0 0.0
    %5854 = vmatprep.subr.mxu0 0.0
    %5855 = vmatpush1.msra.mxu0 0.0
    %5856 = vmatprep.subr.mxu0 0.0
    %5857 = vmatpush1.msra.mxu0 0.0
    %5858 = vmatprep.subr.mxu0 0.0
    %5859 = vmatpush1.msra.mxu0 0.0
    %5860 = vmatprep.subr.mxu0 0.0
    %5861 = vmatpush1.msra.mxu0 0.0
    %5862 = vmatprep.subr.mxu0 0.0
    %5863 = vmatpush1.msra.mxu0 0.0
    %5864 = vmatprep.subr.mxu0 0.0
    %5865 = vmatpush1.msra.mxu0 0.0
    %5866 = vmatprep.subr.mxu0 0.0
    %5867 = vmatpush1.msra.mxu0 0.0
    %5868 = vmatprep.subr.mxu0 0.0
    %5869 = vmatpush1.msra.mxu0 0.0
    %5870 = vmatprep.subr.mxu0 0.0
    %5871 = vmatpush1.msra.mxu0 0.0
    %5872 = vmatprep.subr.mxu0 0.0
    %5873 = vmatpush1.msra.mxu0 0.0
    %5874 = vmatprep.subr.mxu0 0.0
    %5875 = vmatpush1.msra.mxu0 0.0
    %5876 = vmatprep.subr.mxu0 0.0
    %5877 = vmatpush1.msra.mxu0 0.0
    %5878 = vmatprep.subr.mxu0 0.0
    %5879 = vmatpush1.msra.mxu0 0.0
    %5880 = vmatprep.subr.mxu0 0.0
    %5881 = vmatpush1.msra.mxu0 0.0
    %5882 = vmatprep.subr.mxu0 0.0
    %5883 = vmatpush1.msra.mxu0 0.0
    %5884 = vmatprep.mubr.f32.mxu0 0.0
    %5885 = vmatmul.mubr.f32.gmra.mrb[0].mxu0 %v5818
    %v5886 = vpop.f32.mrb[0].mxu0
    %v5887 = vadd.f32 0.0, %v5886
    %v5888 = vpop.f32.mrb[0].mxu0
    %5889 = vdwg.mxu0
    %5890 = vmatprep.subr.mxu0 0.0
    %5891 = vmatpush1.msra.mxu0 %v5795
    %5892 = vmatprep.subr.mxu0 0.0
    %5893 = vmatpush1.msra.mxu0 %v5796
    %5894 = vmatprep.subr.mxu0 0.0
    %5895 = vmatpush1.msra.mxu0 %v5797
    %5896 = vmatprep.subr.mxu0 0.0
    %5897 = vmatpush1.msra.mxu0 %v5798
    %5898 = vmatprep.subr.mxu0 0.0
    %5899 = vmatpush1.msra.mxu0 %v5799
    %5900 = vmatprep.subr.mxu0 0.0
    %5901 = vmatpush1.msra.mxu0 %v5800
    %5902 = vmatprep.subr.mxu0 0.0
    %5903 = vmatpush1.msra.mxu0 %v5801
    %5904 = vmatprep.subr.mxu0 0.0
    %5905 = vmatpush1.msra.mxu0 %v5802
    %5906 = vmatprep.subr.mxu0 0.0
    %5907 = vmatpush1.msra.mxu0 %v5803
    %5908 = vmatprep.subr.mxu0 0.0
    %5909 = vmatpush1.msra.mxu0 %v5804
    %5910 = vmatprep.subr.mxu0 0.0
    %5911 = vmatpush1.msra.mxu0 %v5805
    %5912 = vmatprep.subr.mxu0 0.0
    %5913 = vmatpush1.msra.mxu0 %v5806
    %5914 = vmatprep.subr.mxu0 0.0
    %5915 = vmatpush1.msra.mxu0 %v5807
    %5916 = vmatprep.subr.mxu0 0.0
    %5917 = vmatpush1.msra.mxu0 %v5808
    %5918 = vmatprep.subr.mxu0 0.0
    %5919 = vmatpush1.msra.mxu0 %v5809
    %5920 = vmatprep.subr.mxu0 0.0
    %5921 = vmatpush1.msra.mxu0 %v5810
    %5922 = vmatprep.subr.mxu0 0.0
    %5923 = vmatpush1.msra.mxu0 0.0
    %5924 = vmatprep.subr.mxu0 0.0
    %5925 = vmatpush1.msra.mxu0 0.0
    %5926 = vmatprep.subr.mxu0 0.0
    %5927 = vmatpush1.msra.mxu0 0.0
    %5928 = vmatprep.subr.mxu0 0.0
    %5929 = vmatpush1.msra.mxu0 0.0
    %5930 = vmatprep.subr.mxu0 0.0
    %5931 = vmatpush1.msra.mxu0 0.0
    %5932 = vmatprep.subr.mxu0 0.0
    %5933 = vmatpush1.msra.mxu0 0.0
    %5934 = vmatprep.subr.mxu0 0.0
    %5935 = vmatpush1.msra.mxu0 0.0
    %5936 = vmatprep.subr.mxu0 0.0
    %5937 = vmatpush1.msra.mxu0 0.0
    %5938 = vmatprep.subr.mxu0 0.0
    %5939 = vmatpush1.msra.mxu0 0.0
    %5940 = vmatprep.subr.mxu0 0.0
    %5941 = vmatpush1.msra.mxu0 0.0
    %5942 = vmatprep.subr.mxu0 0.0
    %5943 = vmatpush1.msra.mxu0 0.0
    %5944 = vmatprep.subr.mxu0 0.0
    %5945 = vmatpush1.msra.mxu0 0.0
    %5946 = vmatprep.subr.mxu0 0.0
    %5947 = vmatpush1.msra.mxu0 0.0
    %5948 = vmatprep.subr.mxu0 0.0
    %5949 = vmatpush1.msra.mxu0 0.0
    %5950 = vmatprep.subr.mxu0 0.0
    %5951 = vmatpush1.msra.mxu0 0.0
    %5952 = vmatprep.subr.mxu0 0.0
    %5953 = vmatpush1.msra.mxu0 0.0
    %5954 = vmatprep.mubr.f32.mxu0 0.0
    %5955 = vmatmul.mubr.f32.gmra.mrb[0].mxu0 %v5657
    %v5956 = vpop.f32.mrb[0].mxu0
    %v5957 = vadd.f32 %v5887, %v5956
    %v5958 = vpop.f32.mrb[0].mxu0
    %5959 = vdwg.mxu0
    %v5960 = vld [vmem:[%s10] sm:$0xff]
    %v5961 = vld [vmem:[%s10 + $0x8] sm:$0xff]
    %v5962 = vld [vmem:[%s10 + $0x10] sm:$0xff]
    %v5963 = vld [vmem:[%s10 + $0x18] sm:$0xff]
    %5964 = vmatprep.subr.mxu0 0.0
    %5965 = vmatpush1.msra.mxu0 %v5960
    %5966 = vmatprep.subr.mxu0 0.0
    %5967 = vmatpush1.msra.mxu0 %v5961
    %5968 = vmatprep.subr.mxu0 0.0
    %5969 = vmatpush1.msra.mxu0 %v5962
    %5970 = vmatprep.subr.mxu0 0.0
    %5971 = vmatpush1.msra.mxu0 %v5963
    %5972 = vmatprep.subr.mxu0 0.0
    %5973 = vmatpush1.msra.mxu0 0.0
    %5974 = vmatprep.subr.mxu0 0.0
    %5975 = vmatpush1.msra.mxu0 0.0
    %5976 = vmatprep.subr.mxu0 0.0
    %5977 = vmatpush1.msra.mxu0 0.0
    %5978 = vmatprep.subr.mxu0 0.0
    %5979 = vmatpush1.msra.mxu0 0.0
    %5980 = vmatprep.subr.mxu0 0.0
    %5981 = vmatpush1.msra.mxu0 0.0
    %5982 = vmatprep.subr.mxu0 0.0
    %5983 = vmatpush1.msra.mxu0 0.0
    %5984 = vmatprep.subr.mxu0 0.0
    %5985 = vmatpush1.msra.mxu0 0.0
    %5986 = vmatprep.subr.mxu0 0.0
    %5987 = vmatpush1.msra.mxu0 0.0
    %5988 = vmatprep.subr.mxu0 0.0
    %5989 = vmatpush1.msra.mxu0 0.0
    %5990 = vmatprep.subr.mxu0 0.0
    %5991 = vmatpush1.msra.mxu0 0.0
    %5992 = vmatprep.subr.mxu0 0.0
    %5993 = vmatpush1.msra.mxu0 0.0
    %5994 = vmatprep.subr.mxu0 0.0
    %5995 = vmatpush1.msra.mxu0 0.0
    %5996 = vmatprep.subr.mxu0 0.0
    %5997 = vmatpush1.msra.mxu0 0.0
    %5998 = vmatprep.subr.mxu0 0.0
    %5999 = vmatpush1.msra.mxu0 0.0
    %6000 = vmatprep.subr.mxu0 0.0
    %6001 = vmatpush1.msra.mxu0 0.0
    %6002 = vmatprep.subr.mxu0 0.0
    %6003 = vmatpush1.msra.mxu0 0.0
    %6004 = vmatprep.subr.mxu0 0.0
    %6005 = vmatpush1.msra.mxu0 0.0
    %6006 = vmatprep.subr.mxu0 0.0
    %6007 = vmatpush1.msra.mxu0 0.0
    %6008 = vmatprep.subr.mxu0 0.0
    %6009 = vmatpush1.msra.mxu0 0.0
    %6010 = vmatprep.subr.mxu0 0.0
    %6011 = vmatpush1.msra.mxu0 0.0
    %6012 = vmatprep.subr.mxu0 0.0
    %6013 = vmatpush1.msra.mxu0 0.0
    %6014 = vmatprep.subr.mxu0 0.0
    %6015 = vmatpush1.msra.mxu0 0.0
    %6016 = vmatprep.subr.mxu0 0.0
    %6017 = vmatpush1.msra.mxu0 0.0
    %6018 = vmatprep.subr.mxu0 0.0
    %6019 = vmatpush1.msra.mxu0 0.0
    %6020 = vmatprep.subr.mxu0 0.0
    %6021 = vmatpush1.msra.mxu0 0.0
    %6022 = vmatprep.subr.mxu0 0.0
    %6023 = vmatpush1.msra.mxu0 0.0
    %6024 = vmatprep.subr.mxu0 0.0
    %6025 = vmatpush1.msra.mxu0 0.0
    %6026 = vmatprep.subr.mxu0 0.0
    %6027 = vmatpush1.msra.mxu0 0.0
    %6028 = vmatprep.mubr.f32.mxu0 0.0
    %6029 = vmatmul.mubr.f32.gmra.mrb[0].mxu0 %v5455
    %v6030 = vpop.f32.mrb[0].mxu0
    %v6031 = vadd.f32 0.0, %v6030
    %v6032 = vpop.f32.mrb[0].mxu0
    %6033 = vdwg.mxu0
    %v6034 = vadd.f32 %v5957, %v6031
    %v6035 = vld [vmem:[%s11] sm:$0x1]
    %v6037 = vlaneseq
    %v6038 = vshrl.u32 %v6037, 7
    %v6039 = vsub.s32 0, %v6038
    %v6040 = vrot.slane %v6035, %v6039
    %v6042 = vadd.f32 %v6034, %v6040
    %v6043 = vxor.u32 %v6042, 2147483648
    %v6044 = vmul.f32 %v6043, 1.442695
    %v6045 = vpow.pop %v6044
    %v6046 = vadd.f32 %v6045, 1.0
    %v6047 = vrcp.pop %v6046
    %v6048 = vmul.f32 1.0, %v6047
    %v6049 = vtanh.pop %v6042
    %v6050 = vmul.f32 %v6048, %v5367
    %6052 = vrot.lane.b32.xlu0 %v6049, 64
    %v6053 = vpop.permute.xlu0 %6052
    %v6055 = vmul.f32 %v6048, %v6053
    %6057 = vrot.lane.b32.xlu0 %v6055, 32
    %v6058 = vpop.permute.xlu0 %6057
    %v6060 = vadd.f32 %v6050, %v6058
    %v6061 = vtanh.pop %v6060
    %6063 = vrot.lane.b32.xlu0 %v6061, 64
    %v6064 = vpop.permute.xlu0 %6063
    %v6066 = vmul.f32 %v6048, %v6064
    %v6067 = vld [vmem:[%s12] sm:$0xff]
    %v6068 = vld [vmem:[%s12 + $0x8] sm:$0xff]
    %v6069 = vld [vmem:[%s12 + $0x10] sm:$0xff]
    %v6070 = vld [vmem:[%s12 + $0x18] sm:$0xff]
    %v6071 = vld [vmem:[%s13] sm:$0xff]
    %v6072 = vld [vmem:[%s13 + $0x8] sm:$0xff]
    %v6073 = vld [vmem:[%s13 + $0x10] sm:$0xff]
    %v6074 = vld [vmem:[%s13 + $0x18] sm:$0xff]
    %6075 = vmatprep.subr.mxu0 0.0
    %6076 = vmatpush1.msra.mxu0 %v6071
    %6077 = vmatprep.subr.mxu0 0.0
    %6078 = vmatpush1.msra.mxu0 %v6072
    %6079 = vmatprep.subr.mxu0 0.0
    %6080 = vmatpush1.msra.mxu0 %v6073
    %6081 = vmatprep.subr.mxu0 0.0
    %6082 = vmatpush1.msra.mxu0 %v6074
    %6083 = vmatprep.subr.mxu0 0.0
    %6084 = vmatpush1.msra.mxu0 0.0
    %6085 = vmatprep.subr.mxu0 0.0
    %6086 = vmatpush1.msra.mxu0 0.0
    %6087 = vmatprep.subr.mxu0 0.0
    %6088 = vmatpush1.msra.mxu0 0.0
    %6089 = vmatprep.subr.mxu0 0.0
    %6090 = vmatpush1.msra.mxu0 0.0
    %6091 = vmatprep.subr.mxu0 0.0
    %6092 = vmatpush1.msra.mxu0 0.0
    %6093 = vmatprep.subr.mxu0 0.0
    %6094 = vmatpush1.msra.mxu0 0.0
    %6095 = vmatprep.subr.mxu0 0.0
    %6096 = vmatpush1.msra.mxu0 0.0
    %6097 = vmatprep.subr.mxu0 0.0
    %6098 = vmatpush1.msra.mxu0 0.0
    %6099 = vmatprep.subr.mxu0 0.0
    %6100 = vmatpush1.msra.mxu0 0.0
    %6101 = vmatprep.subr.mxu0 0.0
    %6102 = vmatpush1.msra.mxu0 0.0
    %6103 = vmatprep.subr.mxu0 0.0
    %6104 = vmatpush1.msra.mxu0 0.0
    %6105 = vmatprep.subr.mxu0 0.0
    %6106 = vmatpush1.msra.mxu0 0.0
    %6107 = vmatprep.subr.mxu0 0.0
    %6108 = vmatpush1.msra.mxu0 0.0
    %6109 = vmatprep.subr.mxu0 0.0
    %6110 = vmatpush1.msra.mxu0 0.0
    %6111 = vmatprep.subr.mxu0 0.0
    %6112 = vmatpush1.msra.mxu0 0.0
    %6113 = vmatprep.subr.mxu0 0.0
    %6114 = vmatpush1.msra.mxu0 0.0
    %6115 = vmatprep.subr.mxu0 0.0
    %6116 = vmatpush1.msra.mxu0 0.0
    %6117 = vmatprep.subr.mxu0 0.0
    %6118 = vmatpush1.msra.mxu0 0.0
    %6119 = vmatprep.subr.mxu0 0.0
    %6120 = vmatpush1.msra.mxu0 0.0
    %6121 = vmatprep.subr.mxu0 0.0
    %6122 = vmatpush1.msra.mxu0 0.0
    %6123 = vmatprep.subr.mxu0 0.0
    %6124 = vmatpush1.msra.mxu0 0.0
    %6125 = vmatprep.subr.mxu0 0.0
    %6126 = vmatpush1.msra.mxu0 0.0
    %6127 = vmatprep.subr.mxu0 0.0
    %6128 = vmatpush1.msra.mxu0 0.0
    %6129 = vmatprep.subr.mxu0 0.0
    %6130 = vmatpush1.msra.mxu0 0.0
    %6131 = vmatprep.subr.mxu0 0.0
    %6132 = vmatpush1.msra.mxu0 0.0
    %6133 = vmatprep.subr.mxu0 0.0
    %6134 = vmatpush1.msra.mxu0 0.0
    %6135 = vmatprep.subr.mxu0 0.0
    %6136 = vmatpush1.msra.mxu0 0.0
    %6137 = vmatprep.subr.mxu0 0.0
    %6138 = vmatpush1.msra.mxu0 0.0
    %6139 = vmatprep.mubr.f32.mxu0 0.0
    %6140 = vmatmul.mubr.f32.gmra.mrb[0].mxu0 %v5818
    %v6141 = vpop.f32.mrb[0].mxu0
    %v6142 = vadd.f32 0.0, %v6141
    %v6143 = vpop.f32.mrb[0].mxu0
    %6144 = vdwg.mxu0
    %6146 = vrot.lane.b32.xlu0 %v6066, 32
    %v6147 = vpop.permute.xlu0 %6146
    %v6148 = vsel %vm80, %v6147, 0
    %6150 = vmatprep.subr.mxu0 0.0
    %6151 = vmatpush1.msra.mxu0 %v6067
    %6152 = vmatprep.subr.mxu0 0.0
    %6153 = vmatpush1.msra.mxu0 %v6068
    %6154 = vmatprep.subr.mxu0 0.0
    %6155 = vmatpush1.msra.mxu0 %v6069
    %6156 = vmatprep.subr.mxu0 0.0
    %6157 = vmatpush1.msra.mxu0 %v6070
    %6158 = vmatprep.subr.mxu0 0.0
    %6159 = vmatpush1.msra.mxu0 0.0
    %6160 = vmatprep.subr.mxu0 0.0
    %6161 = vmatpush1.msra.mxu0 0.0
    %6162 = vmatprep.subr.mxu0 0.0
    %6163 = vmatpush1.msra.mxu0 0.0
    %6164 = vmatprep.subr.mxu0 0.0
    %6165 = vmatpush1.msra.mxu0 0.0
    %6166 = vmatprep.subr.mxu0 0.0
    %6167 = vmatpush1.msra.mxu0 0.0
    %6168 = vmatprep.subr.mxu0 0.0
    %6169 = vmatpush1.msra.mxu0 0.0
    %6170 = vmatprep.subr.mxu0 0.0
    %6171 = vmatpush1.msra.mxu0 0.0
    %6172 = vmatprep.subr.mxu0 0.0
    %6173 = vmatpush1.msra.mxu0 0.0
    %6174 = vmatprep.subr.mxu0 0.0
    %6175 = vmatpush1.msra.mxu0 0.0
    %6176 = vmatprep.subr.mxu0 0.0
    %6177 = vmatpush1.msra.mxu0 0.0
    %6178 = vmatprep.subr.mxu0 0.0
    %6179 = vmatpush1.msra.mxu0 0.0
    %6180 = vmatprep.subr.mxu0 0.0
    %6181 = vmatpush1.msra.mxu0 0.0
    %6182 = vmatprep.subr.mxu0 0.0
    %6183 = vmatpush1.msra.mxu0 0.0
    %6184 = vmatprep.subr.mxu0 0.0
    %6185 = vmatpush1.msra.mxu0 0.0
    %6186 = vmatprep.subr.mxu0 0.0
    %6187 = vmatpush1.msra.mxu0 0.0
    %6188 = vmatprep.subr.mxu0 0.0
    %6189 = vmatpush1.msra.mxu0 0.0
    %6190 = vmatprep.subr.mxu0 0.0
    %6191 = vmatpush1.msra.mxu0 0.0
    %6192 = vmatprep.subr.mxu0 0.0
    %6193 = vmatpush1.msra.mxu0 0.0
    %6194 = vmatprep.subr.mxu0 0.0
    %6195 = vmatpush1.msra.mxu0 0.0
    %6196 = vmatprep.subr.mxu0 0.0
    %6197 = vmatpush1.msra.mxu0 0.0
    %6198 = vmatprep.subr.mxu0 0.0
    %6199 = vmatpush1.msra.mxu0 0.0
    %6200 = vmatprep.subr.mxu0 0.0
    %6201 = vmatpush1.msra.mxu0 0.0
    %6202 = vmatprep.subr.mxu0 0.0
    %6203 = vmatpush1.msra.mxu0 0.0
    %6204 = vmatprep.subr.mxu0 0.0
    %6205 = vmatpush1.msra.mxu0 0.0
    %6206 = vmatprep.subr.mxu0 0.0
    %6207 = vmatpush1.msra.mxu0 0.0
    %6208 = vmatprep.subr.mxu0 0.0
    %6209 = vmatpush1.msra.mxu0 0.0
    %6210 = vmatprep.subr.mxu0 0.0
    %6211 = vmatpush1.msra.mxu0 0.0
    %6212 = vmatprep.subr.mxu0 0.0
    %6213 = vmatpush1.msra.mxu0 0.0
    %6214 = vmatprep.mubr.f32.mxu0 0.0
    %6215 = vmatmul.mubr.f32.gmra.mrb[0].mxu0 %v6148
    %v6216 = vpop.f32.mrb[0].mxu0
    %v6217 = vadd.f32 %v6142, %v6216
    %v6218 = vpop.f32.mrb[0].mxu0
    %6219 = vdwg.mxu0
    %v6220 = vld [vmem:[%s14] sm:$0xff]
    %v6221 = vld [vmem:[%s14 + $0x8] sm:$0xff]
    %v6222 = vld [vmem:[%s14 + $0x10] sm:$0xff]
    %v6223 = vld [vmem:[%s14 + $0x18] sm:$0xff]
    %v6224 = vld [vmem:[%s14 + $0x20] sm:$0xff]
    %v6225 = vld [vmem:[%s14 + $0x28] sm:$0xff]
    %v6226 = vld [vmem:[%s14 + $0x30] sm:$0xff]
    %v6227 = vld [vmem:[%s14 + $0x38] sm:$0xff]
    %v6228 = vld [vmem:[%s14 + $0x40] sm:$0xff]
    %v6229 = vld [vmem:[%s14 + $0x48] sm:$0xff]
    %v6230 = vld [vmem:[%s14 + $0x50] sm:$0xff]
    %v6231 = vld [vmem:[%s14 + $0x58] sm:$0xff]
    %v6232 = vld [vmem:[%s14 + $0x60] sm:$0xff]
    %v6233 = vld [vmem:[%s14 + $0x68] sm:$0xff]
    %v6234 = vld [vmem:[%s14 + $0x70] sm:$0xff]
    %v6235 = vld [vmem:[%s14 + $0x78] sm:$0xff]
    %6236 = vmatprep.subr.mxu0 0.0
    %6237 = vmatpush1.msra.mxu0 %v6220
    %6238 = vmatprep.subr.mxu0 0.0
    %6239 = vmatpush1.msra.mxu0 %v6221
    %6240 = vmatprep.subr.mxu0 0.0
    %6241 = vmatpush1.msra.mxu0 %v6222
    %6242 = vmatprep.subr.mxu0 0.0
    %6243 = vmatpush1.msra.mxu0 %v6223
    %6244 = vmatprep.subr.mxu0 0.0
    %6245 = vmatpush1.msra.mxu0 %v6224
    %6246 = vmatprep.subr.mxu0 0.0
    %6247 = vmatpush1.msra.mxu0 %v6225
    %6248 = vmatprep.subr.mxu0 0.0
    %6249 = vmatpush1.msra.mxu0 %v6226
    %6250 = vmatprep.subr.mxu0 0.0
    %6251 = vmatpush1.msra.mxu0 %v6227
    %6252 = vmatprep.subr.mxu0 0.0
    %6253 = vmatpush1.msra.mxu0 %v6228
    %6254 = vmatprep.subr.mxu0 0.0
    %6255 = vmatpush1.msra.mxu0 %v6229
    %6256 = vmatprep.subr.mxu0 0.0
    %6257 = vmatpush1.msra.mxu0 %v6230
    %6258 = vmatprep.subr.mxu0 0.0
    %6259 = vmatpush1.msra.mxu0 %v6231
    %6260 = vmatprep.subr.mxu0 0.0
    %6261 = vmatpush1.msra.mxu0 %v6232
    %6262 = vmatprep.subr.mxu0 0.0
    %6263 = vmatpush1.msra.mxu0 %v6233
    %6264 = vmatprep.subr.mxu0 0.0
    %6265 = vmatpush1.msra.mxu0 %v6234
    %6266 = vmatprep.subr.mxu0 0.0
    %6267 = vmatpush1.msra.mxu0 %v6235
    %6268 = vmatprep.subr.mxu0 0.0
    %6269 = vmatpush1.msra.mxu0 0.0
    %6270 = vmatprep.subr.mxu0 0.0
    %6271 = vmatpush1.msra.mxu0 0.0
    %6272 = vmatprep.subr.mxu0 0.0
    %6273 = vmatpush1.msra.mxu0 0.0
    %6274 = vmatprep.subr.mxu0 0.0
    %6275 = vmatpush1.msra.mxu0 0.0
    %6276 = vmatprep.subr.mxu0 0.0
    %6277 = vmatpush1.msra.mxu0 0.0
    %6278 = vmatprep.subr.mxu0 0.0
    %6279 = vmatpush1.msra.mxu0 0.0
    %6280 = vmatprep.subr.mxu0 0.0
    %6281 = vmatpush1.msra.mxu0 0.0
    %6282 = vmatprep.subr.mxu0 0.0
    %6283 = vmatpush1.msra.mxu0 0.0
    %6284 = vmatprep.subr.mxu0 0.0
    %6285 = vmatpush1.msra.mxu0 0.0
    %6286 = vmatprep.subr.mxu0 0.0
    %6287 = vmatpush1.msra.mxu0 0.0
    %6288 = vmatprep.subr.mxu0 0.0
    %6289 = vmatpush1.msra.mxu0 0.0
    %6290 = vmatprep.subr.mxu0 0.0
    %6291 = vmatpush1.msra.mxu0 0.0
    %6292 = vmatprep.subr.mxu0 0.0
    %6293 = vmatpush1.msra.mxu0 0.0
    %6294 = vmatprep.subr.mxu0 0.0
    %6295 = vmatpush1.msra.mxu0 0.0
    %6296 = vmatprep.subr.mxu0 0.0
    %6297 = vmatpush1.msra.mxu0 0.0
    %6298 = vmatprep.subr.mxu0 0.0
    %6299 = vmatpush1.msra.mxu0 0.0
    %6300 = vmatprep.mubr.f32.mxu0 0.0
    %6301 = vmatmul.mubr.f32.gmra.mrb[0].mxu0 %v5657
    %v6302 = vpop.f32.mrb[0].mxu0
    %v6303 = vadd.f32 0.0, %v6302
    %v6304 = vpop.f32.mrb[0].mxu0
    %6305 = vdwg.mxu0
    %v6306 = vadd.f32 %v6217, %v6303
    %v6307 = vld [vmem:[%s15] sm:$0x1]
    %v6309 = vlaneseq
    %v6310 = vshrl.u32 %v6309, 7
    %v6311 = vsub.s32 0, %v6310
    %v6312 = vrot.slane %v6307, %v6311
    %v6314 = vadd.f32 %v6306, %v6312
    %s6315 = scalar_lea.vmem %s19, 12
    %6316 = vst [vmem:[%s6315] sm:$0x3] %v6314
    // Predicated region
    $region82: #{seq2seq_forward.1} parent=1 // pred_check
      _
    $region83: #{seq2seq_forward.1} parent=1 // pred_check_branch
      %6318 = sbr.rel (0) target = $region85
    $region84: #{seq2seq_forward.1} parent=1 // pred_region
      _
    $region85: #{seq2seq_forward.1} parent=1 // pred_fallthru
      _
    // Predicated region
    $region86: #{seq2seq_forward.1} parent=1 // pred_check
      _
    $region87: #{seq2seq_forward.1} parent=1 // pred_check_branch
      %6320 = sbr.rel (0) target = $region89
    $region88: #{seq2seq_forward.1} parent=1 // pred_region
      _
    $region89: #{seq2seq_forward.1} parent=1 // pred_fallthru
      _
    %6321 = vsyncpa [#allocation4], 1

</llo_original>
